<compile_context>
chip_gen: v5e
topology: v5e:2x2
jax: 0.10.0
libtpu: 0.0.40
codegen_flags: <defaults>
</compile_context>

<pallas_src>
import functools

import jax
import jax.numpy as jnp
from jax.experimental import pallas as pl
from jax.experimental.pallas import tpu as pltpu


# ---------------------------------------------------------------------------
# Fused forward kernel.
# ---------------------------------------------------------------------------
def _fused_kernel(x_ref, wu_ref, bu_ref, w1_ref, b1_ref, w2_ref, b2_ref,
                  w3_ref, b3_ref, mask_ref, o_ref,
                  comb_ref, d1_ref, d2_ref, *, wc, total):
    # x_ref    : (Cin, TOTAL_PAD) input canvas (flattened padded spatial on lanes)
    # w*_ref   : (9, Cout, Cin)   per-tap weights     b*_ref: (Cout, 1) biases
    # mask_ref : (3, TOTAL)       output-region masks for combined / d1 / d2
    # o_ref    : (1, TOTAL)       final canvas (valid region at rows/cols [0, H))
    # comb/d1/d2_ref : (C, TOTAL_PAD) VMEM canvases for the intermediates.

    # Zero only the read-ahead tails; the [:, :total] body of every canvas is
    # fully overwritten before it is read.
    comb_ref[:, total:] = jnp.zeros(
        (comb_ref.shape[0], comb_ref.shape[1] - total), comb_ref.dtype)
    d1_ref[:, total:] = jnp.zeros(
        (d1_ref.shape[0], d1_ref.shape[1] - total), d1_ref.dtype)
    d2_ref[:, total:] = jnp.zeros(
        (d2_ref.shape[0], d2_ref.shape[1] - total), d2_ref.dtype)

    def conv3x3(in_ref, w_ref, b_ref, relu, mask_row):
        cout, cin = w_ref.shape[1], w_ref.shape[2]
        acc = jnp.zeros((cout, total), jnp.float32)
        for kh in range(3):
            for kw in range(3):
                s = kh * wc + kw
                xs = in_ref[:, s:s + total]         # (Cin, TOTAL) shifted lane slice
                w_tap = w_ref[kh * 3 + kw]          # (Cout, Cin)
                if cin == 1:
                    # Outer product via VPU broadcast; skip a degenerate K=1 matmul.
                    acc = acc + w_tap * xs
                else:
                    acc = acc + jnp.dot(w_tap, xs,
                                        preferred_element_type=jnp.float32)
        acc = acc + b_ref[...]                      # (Cout,1) lane-broadcast
        if relu:
            acc = jnp.maximum(acc, 0.0)
        if mask_row is not None:
            acc = acc * mask_ref[mask_row:mask_row + 1, :]
        return acc

    # unet1 + unet2 fused into one (2 x Cin) conv -> `combined` (torch.cat).
    comb_ref[:, :total] = conv3x3(x_ref, wu_ref, bu_ref, relu=False, mask_row=0)
    # conv_decision_1: ConvTranspose2d(2->12,k3,s1) as full-pad conv, + ReLU.
    d1_ref[:, :total] = conv3x3(comb_ref, w1_ref, b1_ref, relu=True, mask_row=1)
    # conv_decision_2: Conv2d(12->6,k3) valid, + ReLU.
    d2_ref[:, :total] = conv3x3(d1_ref, w2_ref, b2_ref, relu=True, mask_row=2)
    # conv_decision_3: Conv2d(6->1,k3,'same'); final region extracted by wrapper.
    o_ref[...] = conv3x3(d2_ref, w3_ref, b3_ref, relu=False, mask_row=None)


# ---------------------------------------------------------------------------
# Weight-layout helpers.
# ---------------------------------------------------------------------------
def _pt_conv_to_hwio(w_oihw):
    # PyTorch Conv2d weight (O, I, KH, KW) -> HWIO
    return jnp.transpose(w_oihw, (2, 3, 1, 0))


def _pt_convtranspose_to_hwio(w_iohw):
    # ConvTranspose2d (I, O, KH, KW), stride 1, pad 0  ==  regular conv with
    # spatially flipped kernel, channels swapped, 'full' padding (K-1).
    w_flipped = jnp.flip(w_iohw, axis=(2, 3))          # (I, O, KH, KW)
    return jnp.transpose(w_flipped, (2, 3, 0, 1))      # (KH, KW, I, O)


def _hwio_to_taps(w_hwio):
    # HWIO (3,3,Cin,Cout) -> per-tap (9, Cout, Cin), k = kh*3 + kw.
    kh, kw, ci, co = w_hwio.shape
    return (jnp.transpose(w_hwio, (0, 1, 3, 2))
            .reshape(kh * kw, co, ci).astype(jnp.float32))


# ---------------------------------------------------------------------------
# Parameter construction (deterministic, synthetic).
# ---------------------------------------------------------------------------
def make_params(key, in_channels=1):
    ks = jax.random.split(key, 10)
    s = 0.1
    params = {
        # TODO(synk): the sub-UNet architectures (unet1 / unet2) are injected in
        # the reference module and not defined there; modeled here as single
        # 3x3 'same' convs producing 1 channel each (HWIO weights).
        "unet1_w": jax.random.normal(ks[0], (3, 3, in_channels, 1), jnp.float32) * s,
        "unet1_b": jax.random.normal(ks[1], (1,), jnp.float32) * s,
        "unet2_w": jax.random.normal(ks[2], (3, 3, in_channels, 1), jnp.float32) * s,
        "unet2_b": jax.random.normal(ks[3], (1,), jnp.float32) * s,
        # conv_decision_1: ConvTranspose2d(2 -> 12, k=3, stride=1, bias=True)
        "ct1_w_pt": jax.random.normal(ks[4], (2, 12, 3, 3), jnp.float32) * s,
        "ct1_b": jax.random.normal(ks[5], (12,), jnp.float32) * s,
        # conv_decision_2: Conv2d(12 -> 6, k=3, stride=1, bias=True)
        "c2_w_pt": jax.random.normal(ks[6], (6, 12, 3, 3), jnp.float32) * s,
        "c2_b": jax.random.normal(ks[7], (6,), jnp.float32) * s,
        # conv_decision_3: Conv2d(6 -> 1, k=3, stride=1, padding='same', bias=True)
        "c3_w_pt": jax.random.normal(ks[8], (1, 6, 3, 3), jnp.float32) * s,
        "c3_b": jax.random.normal(ks[9], (1,), jnp.float32) * s,
    }
    return params


# ---------------------------------------------------------------------------
# EnsembleUNet forward (single fused Pallas kernel).
# ---------------------------------------------------------------------------
def ensemble_unet_forward(params, x_nchw):
    N, C, H, W = x_nchw.shape
    # Canvas geometry: the input is placed at offset R0; each conv shifts its
    # output by -pad, so with pads 1,2,0,1 the final output lands at offset 0.
    R0 = 4
    HC, WC = H + 2 * R0, W + 2 * R0
    TOTAL = N * HC * WC                     # 1152 for the default shapes (9 vregs/row)
    PADL = 128                              # read-ahead tail >= max tap shift (2*WC+2)
    TOTAL_PAD = TOTAL + PADL

    # ---- canvas-layout input (one-time layout plumbing on a ~2 KB tensor) ----
    xc = jnp.transpose(x_nchw, (1, 0, 2, 3))                       # (C, N, H, W)
    xc = jnp.pad(xc, ((0, 0), (0, 0), (R0, HC - H - R0), (R0, WC - W - R0)))
    xc = xc.reshape(C, TOTAL).astype(jnp.float32)
    xc = jnp.pad(xc, ((0, 0), (0, PADL)))                          # (C, TOTAL_PAD)

    # ---- weights in per-tap (9, Cout, Cin) form ----
    w_u_hwio = jnp.concatenate([params["unet1_w"], params["unet2_w"]], axis=3)  # (3,3,C,2)
    wu = _hwio_to_taps(w_u_hwio)                                                # (9,2,C)
    bu = jnp.concatenate([params["unet1_b"], params["unet2_b"]]).reshape(2, 1)
    w1 = _hwio_to_taps(_pt_convtranspose_to_hwio(params["ct1_w_pt"]))           # (9,12,2)
    b1 = params["ct1_b"].reshape(12, 1)
    w2 = _hwio_to_taps(_pt_conv_to_hwio(params["c2_w_pt"]))                     # (9,6,12)
    b2 = params["c2_b"].reshape(6, 1)
    w3 = _hwio_to_taps(_pt_conv_to_hwio(params["c3_w_pt"]))                     # (9,1,6)
    b3 = params["c3_b"].reshape(1, 1)

    # ---- output-region masks: keep canvases zero outside each layer's output ----
    def region_mask(off, h, w):
        m = jnp.zeros((HC, WC), jnp.float32).at[off:off + h, off:off + w].set(1.0)
        return jnp.tile(m[None], (N, 1, 1)).reshape(1, TOTAL)

    masks = jnp.concatenate([
        region_mask(R0 - 1, H, W),           # combined: 'same' conv -> (H, W)
        region_mask(R0 - 3, H + 2, W + 2),   # d1: full-pad conv -> (H+2, W+2)
        region_mask(R0 - 3, H, W),           # d2: valid conv -> (H, W)
    ], axis=0)                               # (3, TOTAL)

    kernel = functools.partial(_fused_kernel, wc=WC, total=TOTAL)

    def full(shape):
        nd = len(shape)
        return pl.BlockSpec(shape, lambda i, nd=nd: (0,) * nd)

    out_flat = pl.pallas_call(
        kernel,
        out_shape=jax.ShapeDtypeStruct((1, TOTAL), jnp.float32),
        grid=(1,),
        in_specs=[
            full((C, TOTAL_PAD)),
            full((9, 2, C)), full((2, 1)),
            full((9, 12, 2)), full((12, 1)),
            full((9, 6, 12)), full((6, 1)),
            full((9, 1, 6)), full((1, 1)),
            full((3, TOTAL)),
        ],
        out_specs=full((1, TOTAL)),
        scratch_shapes=[
            pltpu.VMEM((2, TOTAL_PAD), jnp.float32),    # combined canvas
            pltpu.VMEM((12, TOTAL_PAD), jnp.float32),   # d1 canvas
            pltpu.VMEM((6, TOTAL_PAD), jnp.float32),    # d2 canvas
        ],
        compiler_params=pltpu.CompilerParams(
            dimension_semantics=("arbitrary",)),
    )(xc, wu, bu, w1, b1, w2, b2, w3, b3, masks)

    # Extract the final (H, W) region and return NCHW (layout plumbing only).
    out = out_flat.reshape(1, N, HC, WC)[:, :, :H, :W]
    return jnp.transpose(out, (1, 0, 2, 3))                         # (N, 1, H, W)


# ---------------------------------------------------------------------------
# Pure-JAX reference (lax conv) for correctness check.
# ---------------------------------------------------------------------------
def _ref_conv(x, w, b, pad, relu=False):
    out = jax.lax.conv_general_dilated(
        x, w, window_strides=(1, 1),
        padding=[(pad, pad), (pad, pad)],
        dimension_numbers=("NHWC", "HWIO", "NHWC"))
    out = out + b.reshape(1, 1, 1, -1)
    return jnp.maximum(out, 0.0) if relu else out


def ensemble_unet_ref(params, x_nchw):
    x = jnp.transpose(x_nchw, (0, 2, 3, 1))
    out1 = _ref_conv(x, params["unet1_w"], params["unet1_b"], 1)
    out2 = _ref_conv(x, params["unet2_w"], params["unet2_b"], 1)
    combined = jnp.concatenate([out1, out2], axis=-1)
    w_ct = _pt_convtranspose_to_hwio(params["ct1_w_pt"])
    d1 = _ref_conv(combined, w_ct, params["ct1_b"], 2, relu=True)
    w2 = _pt_conv_to_hwio(params["c2_w_pt"])
    d2 = _ref_conv(d1, w2, params["c2_b"], 0, relu=True)
    w3 = _pt_conv_to_hwio(params["c3_w_pt"])
    d3 = _ref_conv(d2, w3, params["c3_b"], 1, relu=False)
    return jnp.transpose(d3, (0, 3, 1, 2))


if __name__ == "__main__":
    key = jax.random.PRNGKey(0)
    k_x, k_p = jax.random.split(key)

    N, C, H, W = 2, 1, 16, 16
    x = jax.random.normal(k_x, (N, C, H, W), jnp.float32)
    params = make_params(k_p, in_channels=C)

    fwd = jax.jit(ensemble_unet_forward)
    out = jax.block_until_ready(fwd(params, x))
    assert out.shape == (N, 1, H, W), out.shape

    ref = jax.block_until_ready(ensemble_unet_ref(params, x))
    assert jnp.allclose(out, ref, rtol=1e-4, atol=1e-4), (
        float(jnp.max(jnp.abs(out - ref))))

    print("KERNEL_OK")
</pallas_src>

<mosaic_0001>
module attributes {stable_mosaic.version = 11 : i64} {
  func.func @_fused_kernel(%arg0: i32, %arg1: memref<1x1280xf32, #tpu.memory_space<vmem>>, %arg2: memref<9x2x1xf32, #tpu.memory_space<vmem>>, %arg3: memref<2x1xf32, #tpu.memory_space<vmem>>, %arg4: memref<9x12x2xf32, #tpu.memory_space<vmem>>, %arg5: memref<12x1xf32, #tpu.memory_space<vmem>>, %arg6: memref<9x6x12xf32, #tpu.memory_space<vmem>>, %arg7: memref<6x1xf32, #tpu.memory_space<vmem>>, %arg8: memref<9x1x6xf32, #tpu.memory_space<vmem>>, %arg9: memref<1x1xf32, #tpu.memory_space<vmem>>, %arg10: memref<3x1152xf32, #tpu.memory_space<vmem>>, %arg11: memref<1x1152xf32, #tpu.memory_space<vmem>>, %arg12: memref<2x1280xf32, #tpu.memory_space<vmem>>, %arg13: memref<12x1280xf32, #tpu.memory_space<vmem>>, %arg14: memref<6x1280xf32, #tpu.memory_space<vmem>>) attributes {dimension_semantics = [#tpu.dimension_semantics<arbitrary>], iteration_bounds = array<i64: 1>, scalar_prefetch = 0 : i64, scratch_operands = 3 : i64, tpu.core_type = #tpu.core_type<tc>, window_params = [{pipeline_mode = #tpu.pipeline_mode<synchronous>, transform_indices = @transform_0, window_bounds = array<i64: 1, 1280>}, {pipeline_mode = #tpu.pipeline_mode<synchronous>, transform_indices = @transform_1, window_bounds = array<i64: 9, 2, 1>}, {pipeline_mode = #tpu.pipeline_mode<synchronous>, transform_indices = @transform_2, window_bounds = array<i64: 2, 1>}, {pipeline_mode = #tpu.pipeline_mode<synchronous>, transform_indices = @transform_3, window_bounds = array<i64: 9, 12, 2>}, {pipeline_mode = #tpu.pipeline_mode<synchronous>, transform_indices = @transform_4, window_bounds = array<i64: 12, 1>}, {pipeline_mode = #tpu.pipeline_mode<synchronous>, transform_indices = @transform_5, window_bounds = array<i64: 9, 6, 12>}, {pipeline_mode = #tpu.pipeline_mode<synchronous>, transform_indices = @transform_6, window_bounds = array<i64: 6, 1>}, {pipeline_mode = #tpu.pipeline_mode<synchronous>, transform_indices = @transform_7, window_bounds = array<i64: 9, 1, 6>}, {pipeline_mode = #tpu.pipeline_mode<synchronous>, transform_indices = @transform_8, window_bounds = array<i64: 1, 1>}, {pipeline_mode = #tpu.pipeline_mode<synchronous>, transform_indices = @transform_9, window_bounds = array<i64: 3, 1152>}, {pipeline_mode = #tpu.pipeline_mode<synchronous>, transform_indices = @transform_10, window_bounds = array<i64: 1, 1152>}]} {
    %cst = arith.constant 0.000000e+00 : f32
    %0 = vector.broadcast %cst : f32 to vector<2x128xf32>
    %c0 = arith.constant 0 : index
    %c1152 = arith.constant 1152 : index
    %1 = vector.load %arg12[%c0, %c1152] : memref<2x1280xf32, #tpu.memory_space<vmem>>, vector<2x128xf32>
    tpu.vector_store %arg12[%c0, %c1152], %0 {strides = array<i32>} : memref<2x1280xf32, #tpu.memory_space<vmem>>, vector<2x128xf32>,
    %cst_0 = arith.constant 0.000000e+00 : f32
    %2 = vector.broadcast %cst_0 : f32 to vector<12x128xf32>
    %c0_1 = arith.constant 0 : index
    %c1152_2 = arith.constant 1152 : index
    %3 = vector.load %arg13[%c0_1, %c1152_2] : memref<12x1280xf32, #tpu.memory_space<vmem>>, vector<12x128xf32>
    tpu.vector_store %arg13[%c0_1, %c1152_2], %2 {strides = array<i32>} : memref<12x1280xf32, #tpu.memory_space<vmem>>, vector<12x128xf32>,
    %cst_3 = arith.constant 0.000000e+00 : f32
    %4 = vector.broadcast %cst_3 : f32 to vector<6x128xf32>
    %c0_4 = arith.constant 0 : index
    %c1152_5 = arith.constant 1152 : index
    %5 = vector.load %arg14[%c0_4, %c1152_5] : memref<6x1280xf32, #tpu.memory_space<vmem>>, vector<6x128xf32>
    tpu.vector_store %arg14[%c0_4, %c1152_5], %4 {strides = array<i32>} : memref<6x1280xf32, #tpu.memory_space<vmem>>, vector<6x128xf32>,
    %cst_6 = arith.constant 0.000000e+00 : f32
    %6 = vector.broadcast %cst_6 : f32 to vector<2x1152xf32>
    %c0_7 = arith.constant 0 : index
    %c0_8 = arith.constant 0 : index
    %7 = vector.load %arg1[%c0_7, %c0_8] : memref<1x1280xf32, #tpu.memory_space<vmem>>, vector<1x1152xf32>
    %c0_9 = arith.constant 0 : index
    %c0_10 = arith.constant 0 : index
    %c0_11 = arith.constant 0 : index
    %8 = vector.load %arg2[%c0_9, %c0_10, %c0_11] : memref<9x2x1xf32, #tpu.memory_space<vmem>>, vector<1x2x1xf32>
    %9 = vector.shape_cast %8 : vector<1x2x1xf32> to vector<2x1xf32>
    %10 = vector.broadcast %9 : vector<2x1xf32> to vector<2x1152xf32>
    %11 = vector.broadcast %7 : vector<1x1152xf32> to vector<2x1152xf32>
    %12 = arith.mulf %10, %11 : vector<2x1152xf32>
    %13 = arith.addf %6, %12 : vector<2x1152xf32>
    %c0_12 = arith.constant 0 : index
    %c1 = arith.constant 1 : index
    %14 = vector.load %arg1[%c0_12, %c1] : memref<1x1280xf32, #tpu.memory_space<vmem>>, vector<1x1152xf32>
    %c1_13 = arith.constant 1 : index
    %c0_14 = arith.constant 0 : index
    %c0_15 = arith.constant 0 : index
    %15 = vector.load %arg2[%c1_13, %c0_14, %c0_15] : memref<9x2x1xf32, #tpu.memory_space<vmem>>, vector<1x2x1xf32>
    %16 = vector.shape_cast %15 : vector<1x2x1xf32> to vector<2x1xf32>
    %17 = vector.broadcast %16 : vector<2x1xf32> to vector<2x1152xf32>
    %18 = vector.broadcast %14 : vector<1x1152xf32> to vector<2x1152xf32>
    %19 = arith.mulf %17, %18 : vector<2x1152xf32>
    %20 = arith.addf %13, %19 : vector<2x1152xf32>
    %c0_16 = arith.constant 0 : index
    %c2 = arith.constant 2 : index
    %21 = vector.load %arg1[%c0_16, %c2] : memref<1x1280xf32, #tpu.memory_space<vmem>>, vector<1x1152xf32>
    %c2_17 = arith.constant 2 : index
    %c0_18 = arith.constant 0 : index
    %c0_19 = arith.constant 0 : index
    %22 = vector.load %arg2[%c2_17, %c0_18, %c0_19] : memref<9x2x1xf32, #tpu.memory_space<vmem>>, vector<1x2x1xf32>
    %23 = vector.shape_cast %22 : vector<1x2x1xf32> to vector<2x1xf32>
    %24 = vector.broadcast %23 : vector<2x1xf32> to vector<2x1152xf32>
    %25 = vector.broadcast %21 : vector<1x1152xf32> to vector<2x1152xf32>
    %26 = arith.mulf %24, %25 : vector<2x1152xf32>
    %27 = arith.addf %20, %26 : vector<2x1152xf32>
    %c0_20 = arith.constant 0 : index
    %c24 = arith.constant 24 : index
    %28 = vector.load %arg1[%c0_20, %c24] : memref<1x1280xf32, #tpu.memory_space<vmem>>, vector<1x1152xf32>
    %c3 = arith.constant 3 : index
    %c0_21 = arith.constant 0 : index
    %c0_22 = arith.constant 0 : index
    %29 = vector.load %arg2[%c3, %c0_21, %c0_22] : memref<9x2x1xf32, #tpu.memory_space<vmem>>, vector<1x2x1xf32>
    %30 = vector.shape_cast %29 : vector<1x2x1xf32> to vector<2x1xf32>
    %31 = vector.broadcast %30 : vector<2x1xf32> to vector<2x1152xf32>
    %32 = vector.broadcast %28 : vector<1x1152xf32> to vector<2x1152xf32>
    %33 = arith.mulf %31, %32 : vector<2x1152xf32>
    %34 = arith.addf %27, %33 : vector<2x1152xf32>
    %c0_23 = arith.constant 0 : index
    %c25 = arith.constant 25 : index
    %35 = vector.load %arg1[%c0_23, %c25] : memref<1x1280xf32, #tpu.memory_space<vmem>>, vector<1x1152xf32>
    %c4 = arith.constant 4 : index
    %c0_24 = arith.constant 0 : index
    %c0_25 = arith.constant 0 : index
    %36 = vector.load %arg2[%c4, %c0_24, %c0_25] : memref<9x2x1xf32, #tpu.memory_space<vmem>>, vector<1x2x1xf32>
    %37 = vector.shape_cast %36 : vector<1x2x1xf32> to vector<2x1xf32>
    %38 = vector.broadcast %37 : vector<2x1xf32> to vector<2x1152xf32>
    %39 = vector.broadcast %35 : vector<1x1152xf32> to vector<2x1152xf32>
    %40 = arith.mulf %38, %39 : vector<2x1152xf32>
    %41 = arith.addf %34, %40 : vector<2x1152xf32>
    %c0_26 = arith.constant 0 : index
    %c26 = arith.constant 26 : index
    %42 = vector.load %arg1[%c0_26, %c26] : memref<1x1280xf32, #tpu.memory_space<vmem>>, vector<1x1152xf32>
    %c5 = arith.constant 5 : index
    %c0_27 = arith.constant 0 : index
    %c0_28 = arith.constant 0 : index
    %43 = vector.load %arg2[%c5, %c0_27, %c0_28] : memref<9x2x1xf32, #tpu.memory_space<vmem>>, vector<1x2x1xf32>
    %44 = vector.shape_cast %43 : vector<1x2x1xf32> to vector<2x1xf32>
    %45 = vector.broadcast %44 : vector<2x1xf32> to vector<2x1152xf32>
    %46 = vector.broadcast %42 : vector<1x1152xf32> to vector<2x1152xf32>
    %47 = arith.mulf %45, %46 : vector<2x1152xf32>
    %48 = arith.addf %41, %47 : vector<2x1152xf32>
    %c0_29 = arith.constant 0 : index
    %c48 = arith.constant 48 : index
    %49 = vector.load %arg1[%c0_29, %c48] : memref<1x1280xf32, #tpu.memory_space<vmem>>, vector<1x1152xf32>
    %c6 = arith.constant 6 : index
    %c0_30 = arith.constant 0 : index
    %c0_31 = arith.constant 0 : index
    %50 = vector.load %arg2[%c6, %c0_30, %c0_31] : memref<9x2x1xf32, #tpu.memory_space<vmem>>, vector<1x2x1xf32>
    %51 = vector.shape_cast %50 : vector<1x2x1xf32> to vector<2x1xf32>
    %52 = vector.broadcast %51 : vector<2x1xf32> to vector<2x1152xf32>
    %53 = vector.broadcast %49 : vector<1x1152xf32> to vector<2x1152xf32>
    %54 = arith.mulf %52, %53 : vector<2x1152xf32>
    %55 = arith.addf %48, %54 : vector<2x1152xf32>
    %c0_32 = arith.constant 0 : index
    %c49 = arith.constant 49 : index
    %56 = vector.load %arg1[%c0_32, %c49] : memref<1x1280xf32, #tpu.memory_space<vmem>>, vector<1x1152xf32>
    %c7 = arith.constant 7 : index
    %c0_33 = arith.constant 0 : index
    %c0_34 = arith.constant 0 : index
    %57 = vector.load %arg2[%c7, %c0_33, %c0_34] : memref<9x2x1xf32, #tpu.memory_space<vmem>>, vector<1x2x1xf32>
    %58 = vector.shape_cast %57 : vector<1x2x1xf32> to vector<2x1xf32>
    %59 = vector.broadcast %58 : vector<2x1xf32> to vector<2x1152xf32>
    %60 = vector.broadcast %56 : vector<1x1152xf32> to vector<2x1152xf32>
    %61 = arith.mulf %59, %60 : vector<2x1152xf32>
    %62 = arith.addf %55, %61 : vector<2x1152xf32>
    %c0_35 = arith.constant 0 : index
    %c50 = arith.constant 50 : index
    %63 = vector.load %arg1[%c0_35, %c50] : memref<1x1280xf32, #tpu.memory_space<vmem>>, vector<1x1152xf32>
    %c8 = arith.constant 8 : index
    %c0_36 = arith.constant 0 : index
    %c0_37 = arith.constant 0 : index
    %64 = vector.load %arg2[%c8, %c0_36, %c0_37] : memref<9x2x1xf32, #tpu.memory_space<vmem>>, vector<1x2x1xf32>
    %65 = vector.shape_cast %64 : vector<1x2x1xf32> to vector<2x1xf32>
    %66 = vector.broadcast %65 : vector<2x1xf32> to vector<2x1152xf32>
    %67 = vector.broadcast %63 : vector<1x1152xf32> to vector<2x1152xf32>
    %68 = arith.mulf %66, %67 : vector<2x1152xf32>
    %69 = arith.addf %62, %68 : vector<2x1152xf32>
    %c0_38 = arith.constant 0 : index
    %c0_39 = arith.constant 0 : index
    %70 = vector.load %arg3[%c0_38, %c0_39] : memref<2x1xf32, #tpu.memory_space<vmem>>, vector<2x1xf32>
    %71 = vector.broadcast %70 : vector<2x1xf32> to vector<2x1152xf32>
    %72 = arith.addf %69, %71 : vector<2x1152xf32>
    %c0_40 = arith.constant 0 : index
    %c0_41 = arith.constant 0 : index
    %73 = vector.load %arg10[%c0_40, %c0_41] : memref<3x1152xf32, #tpu.memory_space<vmem>>, vector<1x1152xf32>
    %74 = vector.broadcast %73 : vector<1x1152xf32> to vector<2x1152xf32>
    %75 = arith.mulf %72, %74 : vector<2x1152xf32>
    %c0_42 = arith.constant 0 : index
    %c0_43 = arith.constant 0 : index
    %76 = vector.load %arg12[%c0_42, %c0_43] : memref<2x1280xf32, #tpu.memory_space<vmem>>, vector<2x1152xf32>
    tpu.vector_store %arg12[%c0_42, %c0_43], %75 {strides = array<i32>} : memref<2x1280xf32, #tpu.memory_space<vmem>>, vector<2x1152xf32>,
    %cst_44 = arith.constant 0.000000e+00 : f32
    %77 = vector.broadcast %cst_44 : f32 to vector<12x1152xf32>
    %c0_45 = arith.constant 0 : index
    %c0_46 = arith.constant 0 : index
    %78 = vector.load %arg12[%c0_45, %c0_46] : memref<2x1280xf32, #tpu.memory_space<vmem>>, vector<2x1152xf32>
    %c0_47 = arith.constant 0 : index
    %c0_48 = arith.constant 0 : index
    %c0_49 = arith.constant 0 : index
    %79 = vector.load %arg4[%c0_47, %c0_48, %c0_49] : memref<9x12x2xf32, #tpu.memory_space<vmem>>, vector<1x12x2xf32>
    %80 = vector.shape_cast %79 : vector<1x12x2xf32> to vector<12x2xf32>
    %cst_50 = arith.constant dense<0.000000e+00> : vector<12x1152xf32>
    %81 = tpu.matmul %80, %78, %cst_50 {dimension_numbers = #tpu.dot_dimension_numbers<[1], [0], [0], [1], [0, 0, 1, 1], [], []>} : vector<12x2xf32>, vector<2x1152xf32>, vector<12x1152xf32> -> vector<12x1152xf32>
    %82 = arith.addf %77, %81 : vector<12x1152xf32>
    %c0_51 = arith.constant 0 : index
    %c1_52 = arith.constant 1 : index
    %83 = vector.load %arg12[%c0_51, %c1_52] : memref<2x1280xf32, #tpu.memory_space<vmem>>, vector<2x1152xf32>
    %c1_53 = arith.constant 1 : index
    %c0_54 = arith.constant 0 : index
    %c0_55 = arith.constant 0 : index
    %84 = vector.load %arg4[%c1_53, %c0_54, %c0_55] : memref<9x12x2xf32, #tpu.memory_space<vmem>>, vector<1x12x2xf32>
    %85 = vector.shape_cast %84 : vector<1x12x2xf32> to vector<12x2xf32>
    %cst_56 = arith.constant dense<0.000000e+00> : vector<12x1152xf32>
    %86 = tpu.matmul %85, %83, %cst_56 {dimension_numbers = #tpu.dot_dimension_numbers<[1], [0], [0], [1], [0, 0, 1, 1], [], []>} : vector<12x2xf32>, vector<2x1152xf32>, vector<12x1152xf32> -> vector<12x1152xf32>
    %87 = arith.addf %82, %86 : vector<12x1152xf32>
    %c0_57 = arith.constant 0 : index
    %c2_58 = arith.constant 2 : index
    %88 = vector.load %arg12[%c0_57, %c2_58] : memref<2x1280xf32, #tpu.memory_space<vmem>>, vector<2x1152xf32>
    %c2_59 = arith.constant 2 : index
    %c0_60 = arith.constant 0 : index
    %c0_61 = arith.constant 0 : index
    %89 = vector.load %arg4[%c2_59, %c0_60, %c0_61] : memref<9x12x2xf32, #tpu.memory_space<vmem>>, vector<1x12x2xf32>
    %90 = vector.shape_cast %89 : vector<1x12x2xf32> to vector<12x2xf32>
    %cst_62 = arith.constant dense<0.000000e+00> : vector<12x1152xf32>
    %91 = tpu.matmul %90, %88, %cst_62 {dimension_numbers = #tpu.dot_dimension_numbers<[1], [0], [0], [1], [0, 0, 1, 1], [], []>} : vector<12x2xf32>, vector<2x1152xf32>, vector<12x1152xf32> -> vector<12x1152xf32>
    %92 = arith.addf %87, %91 : vector<12x1152xf32>
    %c0_63 = arith.constant 0 : index
    %c24_64 = arith.constant 24 : index
    %93 = vector.load %arg12[%c0_63, %c24_64] : memref<2x1280xf32, #tpu.memory_space<vmem>>, vector<2x1152xf32>
    %c3_65 = arith.constant 3 : index
    %c0_66 = arith.constant 0 : index
    %c0_67 = arith.constant 0 : index
    %94 = vector.load %arg4[%c3_65, %c0_66, %c0_67] : memref<9x12x2xf32, #tpu.memory_space<vmem>>, vector<1x12x2xf32>
    %95 = vector.shape_cast %94 : vector<1x12x2xf32> to vector<12x2xf32>
    %cst_68 = arith.constant dense<0.000000e+00> : vector<12x1152xf32>
    %96 = tpu.matmul %95, %93, %cst_68 {dimension_numbers = #tpu.dot_dimension_numbers<[1], [0], [0], [1], [0, 0, 1, 1], [], []>} : vector<12x2xf32>, vector<2x1152xf32>, vector<12x1152xf32> -> vector<12x1152xf32>
    %97 = arith.addf %92, %96 : vector<12x1152xf32>
    %c0_69 = arith.constant 0 : index
    %c25_70 = arith.constant 25 : index
    %98 = vector.load %arg12[%c0_69, %c25_70] : memref<2x1280xf32, #tpu.memory_space<vmem>>, vector<2x1152xf32>
    %c4_71 = arith.constant 4 : index
    %c0_72 = arith.constant 0 : index
    %c0_73 = arith.constant 0 : index
    %99 = vector.load %arg4[%c4_71, %c0_72, %c0_73] : memref<9x12x2xf32, #tpu.memory_space<vmem>>, vector<1x12x2xf32>
    %100 = vector.shape_cast %99 : vector<1x12x2xf32> to vector<12x2xf32>
    %cst_74 = arith.constant dense<0.000000e+00> : vector<12x1152xf32>
    %101 = tpu.matmul %100, %98, %cst_74 {dimension_numbers = #tpu.dot_dimension_numbers<[1], [0], [0], [1], [0, 0, 1, 1], [], []>} : vector<12x2xf32>, vector<2x1152xf32>, vector<12x1152xf32> -> vector<12x1152xf32>
    %102 = arith.addf %97, %101 : vector<12x1152xf32>
    %c0_75 = arith.constant 0 : index
    %c26_76 = arith.constant 26 : index
    %103 = vector.load %arg12[%c0_75, %c26_76] : memref<2x1280xf32, #tpu.memory_space<vmem>>, vector<2x1152xf32>
    %c5_77 = arith.constant 5 : index
    %c0_78 = arith.constant 0 : index
    %c0_79 = arith.constant 0 : index
    %104 = vector.load %arg4[%c5_77, %c0_78, %c0_79] : memref<9x12x2xf32, #tpu.memory_space<vmem>>, vector<1x12x2xf32>
    %105 = vector.shape_cast %104 : vector<1x12x2xf32> to vector<12x2xf32>
    %cst_80 = arith.constant dense<0.000000e+00> : vector<12x1152xf32>
    %106 = tpu.matmul %105, %103, %cst_80 {dimension_numbers = #tpu.dot_dimension_numbers<[1], [0], [0], [1], [0, 0, 1, 1], [], []>} : vector<12x2xf32>, vector<2x1152xf32>, vector<12x1152xf32> -> vector<12x1152xf32>
    %107 = arith.addf %102, %106 : vector<12x1152xf32>
    %c0_81 = arith.constant 0 : index
    %c48_82 = arith.constant 48 : index
    %108 = vector.load %arg12[%c0_81, %c48_82] : memref<2x1280xf32, #tpu.memory_space<vmem>>, vector<2x1152xf32>
    %c6_83 = arith.constant 6 : index
    %c0_84 = arith.constant 0 : index
    %c0_85 = arith.constant 0 : index
    %109 = vector.load %arg4[%c6_83, %c0_84, %c0_85] : memref<9x12x2xf32, #tpu.memory_space<vmem>>, vector<1x12x2xf32>
    %110 = vector.shape_cast %109 : vector<1x12x2xf32> to vector<12x2xf32>
    %cst_86 = arith.constant dense<0.000000e+00> : vector<12x1152xf32>
    %111 = tpu.matmul %110, %108, %cst_86 {dimension_numbers = #tpu.dot_dimension_numbers<[1], [0], [0], [1], [0, 0, 1, 1], [], []>} : vector<12x2xf32>, vector<2x1152xf32>, vector<12x1152xf32> -> vector<12x1152xf32>
    %112 = arith.addf %107, %111 : vector<12x1152xf32>
    %c0_87 = arith.constant 0 : index
    %c49_88 = arith.constant 49 : index
    %113 = vector.load %arg12[%c0_87, %c49_88] : memref<2x1280xf32, #tpu.memory_space<vmem>>, vector<2x1152xf32>
    %c7_89 = arith.constant 7 : index
    %c0_90 = arith.constant 0 : index
    %c0_91 = arith.constant 0 : index
    %114 = vector.load %arg4[%c7_89, %c0_90, %c0_91] : memref<9x12x2xf32, #tpu.memory_space<vmem>>, vector<1x12x2xf32>
    %115 = vector.shape_cast %114 : vector<1x12x2xf32> to vector<12x2xf32>
    %cst_92 = arith.constant dense<0.000000e+00> : vector<12x1152xf32>
    %116 = tpu.matmul %115, %113, %cst_92 {dimension_numbers = #tpu.dot_dimension_numbers<[1], [0], [0], [1], [0, 0, 1, 1], [], []>} : vector<12x2xf32>, vector<2x1152xf32>, vector<12x1152xf32> -> vector<12x1152xf32>
    %117 = arith.addf %112, %116 : vector<12x1152xf32>
    %c0_93 = arith.constant 0 : index
    %c50_94 = arith.constant 50 : index
    %118 = vector.load %arg12[%c0_93, %c50_94] : memref<2x1280xf32, #tpu.memory_space<vmem>>, vector<2x1152xf32>
    %c8_95 = arith.constant 8 : index
    %c0_96 = arith.constant 0 : index
    %c0_97 = arith.constant 0 : index
    %119 = vector.load %arg4[%c8_95, %c0_96, %c0_97] : memref<9x12x2xf32, #tpu.memory_space<vmem>>, vector<1x12x2xf32>
    %120 = vector.shape_cast %119 : vector<1x12x2xf32> to vector<12x2xf32>
    %cst_98 = arith.constant dense<0.000000e+00> : vector<12x1152xf32>
    %121 = tpu.matmul %120, %118, %cst_98 {dimension_numbers = #tpu.dot_dimension_numbers<[1], [0], [0], [1], [0, 0, 1, 1], [], []>} : vector<12x2xf32>, vector<2x1152xf32>, vector<12x1152xf32> -> vector<12x1152xf32>
    %122 = arith.addf %117, %121 : vector<12x1152xf32>
    %c0_99 = arith.constant 0 : index
    %c0_100 = arith.constant 0 : index
    %123 = vector.load %arg5[%c0_99, %c0_100] : memref<12x1xf32, #tpu.memory_space<vmem>>, vector<12x1xf32>
    %124 = vector.broadcast %123 : vector<12x1xf32> to vector<12x1152xf32>
    %125 = arith.addf %122, %124 : vector<12x1152xf32>
    %cst_101 = arith.constant 0.000000e+00 : f32
    %126 = vector.broadcast %cst_101 : f32 to vector<12x1152xf32>
    %127 = arith.maximumf %125, %126 : vector<12x1152xf32>
    %c1_102 = arith.constant 1 : index
    %c0_103 = arith.constant 0 : index
    %128 = vector.load %arg10[%c1_102, %c0_103] : memref<3x1152xf32, #tpu.memory_space<vmem>>, vector<1x1152xf32>
    %129 = vector.broadcast %128 : vector<1x1152xf32> to vector<12x1152xf32>
    %130 = arith.mulf %127, %129 : vector<12x1152xf32>
    %c0_104 = arith.constant 0 : index
    %c0_105 = arith.constant 0 : index
    %131 = vector.load %arg13[%c0_104, %c0_105] : memref<12x1280xf32, #tpu.memory_space<vmem>>, vector<12x1152xf32>
    tpu.vector_store %arg13[%c0_104, %c0_105], %130 {strides = array<i32>} : memref<12x1280xf32, #tpu.memory_space<vmem>>, vector<12x1152xf32>,
    %cst_106 = arith.constant 0.000000e+00 : f32
    %132 = vector.broadcast %cst_106 : f32 to vector<6x1152xf32>
    %c0_107 = arith.constant 0 : index
    %c0_108 = arith.constant 0 : index
    %133 = vector.load %arg13[%c0_107, %c0_108] : memref<12x1280xf32, #tpu.memory_space<vmem>>, vector<12x1152xf32>
    %c0_109 = arith.constant 0 : index
    %c0_110 = arith.constant 0 : index
    %c0_111 = arith.constant 0 : index
    %134 = vector.load %arg6[%c0_109, %c0_110, %c0_111] : memref<9x6x12xf32, #tpu.memory_space<vmem>>, vector<1x6x12xf32>
    %135 = vector.shape_cast %134 : vector<1x6x12xf32> to vector<6x12xf32>
    %cst_112 = arith.constant dense<0.000000e+00> : vector<6x1152xf32>
    %136 = tpu.matmul %135, %133, %cst_112 {dimension_numbers = #tpu.dot_dimension_numbers<[1], [0], [0], [1], [0, 0, 1, 1], [], []>} : vector<6x12xf32>, vector<12x1152xf32>, vector<6x1152xf32> -> vector<6x1152xf32>
    %137 = arith.addf %132, %136 : vector<6x1152xf32>
    %c0_113 = arith.constant 0 : index
    %c1_114 = arith.constant 1 : index
    %138 = vector.load %arg13[%c0_113, %c1_114] : memref<12x1280xf32, #tpu.memory_space<vmem>>, vector<12x1152xf32>
    %c1_115 = arith.constant 1 : index
    %c0_116 = arith.constant 0 : index
    %c0_117 = arith.constant 0 : index
    %139 = vector.load %arg6[%c1_115, %c0_116, %c0_117] : memref<9x6x12xf32, #tpu.memory_space<vmem>>, vector<1x6x12xf32>
    %140 = vector.shape_cast %139 : vector<1x6x12xf32> to vector<6x12xf32>
    %cst_118 = arith.constant dense<0.000000e+00> : vector<6x1152xf32>
    %141 = tpu.matmul %140, %138, %cst_118 {dimension_numbers = #tpu.dot_dimension_numbers<[1], [0], [0], [1], [0, 0, 1, 1], [], []>} : vector<6x12xf32>, vector<12x1152xf32>, vector<6x1152xf32> -> vector<6x1152xf32>
    %142 = arith.addf %137, %141 : vector<6x1152xf32>
    %c0_119 = arith.constant 0 : index
    %c2_120 = arith.constant 2 : index
    %143 = vector.load %arg13[%c0_119, %c2_120] : memref<12x1280xf32, #tpu.memory_space<vmem>>, vector<12x1152xf32>
    %c2_121 = arith.constant 2 : index
    %c0_122 = arith.constant 0 : index
    %c0_123 = arith.constant 0 : index
    %144 = vector.load %arg6[%c2_121, %c0_122, %c0_123] : memref<9x6x12xf32, #tpu.memory_space<vmem>>, vector<1x6x12xf32>
    %145 = vector.shape_cast %144 : vector<1x6x12xf32> to vector<6x12xf32>
    %cst_124 = arith.constant dense<0.000000e+00> : vector<6x1152xf32>
    %146 = tpu.matmul %145, %143, %cst_124 {dimension_numbers = #tpu.dot_dimension_numbers<[1], [0], [0], [1], [0, 0, 1, 1], [], []>} : vector<6x12xf32>, vector<12x1152xf32>, vector<6x1152xf32> -> vector<6x1152xf32>
    %147 = arith.addf %142, %146 : vector<6x1152xf32>
    %c0_125 = arith.constant 0 : index
    %c24_126 = arith.constant 24 : index
    %148 = vector.load %arg13[%c0_125, %c24_126] : memref<12x1280xf32, #tpu.memory_space<vmem>>, vector<12x1152xf32>
    %c3_127 = arith.constant 3 : index
    %c0_128 = arith.constant 0 : index
    %c0_129 = arith.constant 0 : index
    %149 = vector.load %arg6[%c3_127, %c0_128, %c0_129] : memref<9x6x12xf32, #tpu.memory_space<vmem>>, vector<1x6x12xf32>
    %150 = vector.shape_cast %149 : vector<1x6x12xf32> to vector<6x12xf32>
    %cst_130 = arith.constant dense<0.000000e+00> : vector<6x1152xf32>
    %151 = tpu.matmul %150, %148, %cst_130 {dimension_numbers = #tpu.dot_dimension_numbers<[1], [0], [0], [1], [0, 0, 1, 1], [], []>} : vector<6x12xf32>, vector<12x1152xf32>, vector<6x1152xf32> -> vector<6x1152xf32>
    %152 = arith.addf %147, %151 : vector<6x1152xf32>
    %c0_131 = arith.constant 0 : index
    %c25_132 = arith.constant 25 : index
    %153 = vector.load %arg13[%c0_131, %c25_132] : memref<12x1280xf32, #tpu.memory_space<vmem>>, vector<12x1152xf32>
    %c4_133 = arith.constant 4 : index
    %c0_134 = arith.constant 0 : index
    %c0_135 = arith.constant 0 : index
    %154 = vector.load %arg6[%c4_133, %c0_134, %c0_135] : memref<9x6x12xf32, #tpu.memory_space<vmem>>, vector<1x6x12xf32>
    %155 = vector.shape_cast %154 : vector<1x6x12xf32> to vector<6x12xf32>
    %cst_136 = arith.constant dense<0.000000e+00> : vector<6x1152xf32>
    %156 = tpu.matmul %155, %153, %cst_136 {dimension_numbers = #tpu.dot_dimension_numbers<[1], [0], [0], [1], [0, 0, 1, 1], [], []>} : vector<6x12xf32>, vector<12x1152xf32>, vector<6x1152xf32> -> vector<6x1152xf32>
    %157 = arith.addf %152, %156 : vector<6x1152xf32>
    %c0_137 = arith.constant 0 : index
    %c26_138 = arith.constant 26 : index
    %158 = vector.load %arg13[%c0_137, %c26_138] : memref<12x1280xf32, #tpu.memory_space<vmem>>, vector<12x1152xf32>
    %c5_139 = arith.constant 5 : index
    %c0_140 = arith.constant 0 : index
    %c0_141 = arith.constant 0 : index
    %159 = vector.load %arg6[%c5_139, %c0_140, %c0_141] : memref<9x6x12xf32, #tpu.memory_space<vmem>>, vector<1x6x12xf32>
    %160 = vector.shape_cast %159 : vector<1x6x12xf32> to vector<6x12xf32>
    %cst_142 = arith.constant dense<0.000000e+00> : vector<6x1152xf32>
    %161 = tpu.matmul %160, %158, %cst_142 {dimension_numbers = #tpu.dot_dimension_numbers<[1], [0], [0], [1], [0, 0, 1, 1], [], []>} : vector<6x12xf32>, vector<12x1152xf32>, vector<6x1152xf32> -> vector<6x1152xf32>
    %162 = arith.addf %157, %161 : vector<6x1152xf32>
    %c0_143 = arith.constant 0 : index
    %c48_144 = arith.constant 48 : index
    %163 = vector.load %arg13[%c0_143, %c48_144] : memref<12x1280xf32, #tpu.memory_space<vmem>>, vector<12x1152xf32>
    %c6_145 = arith.constant 6 : index
    %c0_146 = arith.constant 0 : index
    %c0_147 = arith.constant 0 : index
    %164 = vector.load %arg6[%c6_145, %c0_146, %c0_147] : memref<9x6x12xf32, #tpu.memory_space<vmem>>, vector<1x6x12xf32>
    %165 = vector.shape_cast %164 : vector<1x6x12xf32> to vector<6x12xf32>
    %cst_148 = arith.constant dense<0.000000e+00> : vector<6x1152xf32>
    %166 = tpu.matmul %165, %163, %cst_148 {dimension_numbers = #tpu.dot_dimension_numbers<[1], [0], [0], [1], [0, 0, 1, 1], [], []>} : vector<6x12xf32>, vector<12x1152xf32>, vector<6x1152xf32> -> vector<6x1152xf32>
    %167 = arith.addf %162, %166 : vector<6x1152xf32>
    %c0_149 = arith.constant 0 : index
    %c49_150 = arith.constant 49 : index
    %168 = vector.load %arg13[%c0_149, %c49_150] : memref<12x1280xf32, #tpu.memory_space<vmem>>, vector<12x1152xf32>
    %c7_151 = arith.constant 7 : index
    %c0_152 = arith.constant 0 : index
    %c0_153 = arith.constant 0 : index
    %169 = vector.load %arg6[%c7_151, %c0_152, %c0_153] : memref<9x6x12xf32, #tpu.memory_space<vmem>>, vector<1x6x12xf32>
    %170 = vector.shape_cast %169 : vector<1x6x12xf32> to vector<6x12xf32>
    %cst_154 = arith.constant dense<0.000000e+00> : vector<6x1152xf32>
    %171 = tpu.matmul %170, %168, %cst_154 {dimension_numbers = #tpu.dot_dimension_numbers<[1], [0], [0], [1], [0, 0, 1, 1], [], []>} : vector<6x12xf32>, vector<12x1152xf32>, vector<6x1152xf32> -> vector<6x1152xf32>
    %172 = arith.addf %167, %171 : vector<6x1152xf32>
    %c0_155 = arith.constant 0 : index
    %c50_156 = arith.constant 50 : index
    %173 = vector.load %arg13[%c0_155, %c50_156] : memref<12x1280xf32, #tpu.memory_space<vmem>>, vector<12x1152xf32>
    %c8_157 = arith.constant 8 : index
    %c0_158 = arith.constant 0 : index
    %c0_159 = arith.constant 0 : index
    %174 = vector.load %arg6[%c8_157, %c0_158, %c0_159] : memref<9x6x12xf32, #tpu.memory_space<vmem>>, vector<1x6x12xf32>
    %175 = vector.shape_cast %174 : vector<1x6x12xf32> to vector<6x12xf32>
    %cst_160 = arith.constant dense<0.000000e+00> : vector<6x1152xf32>
    %176 = tpu.matmul %175, %173, %cst_160 {dimension_numbers = #tpu.dot_dimension_numbers<[1], [0], [0], [1], [0, 0, 1, 1], [], []>} : vector<6x12xf32>, vector<12x1152xf32>, vector<6x1152xf32> -> vector<6x1152xf32>
    %177 = arith.addf %172, %176 : vector<6x1152xf32>
    %c0_161 = arith.constant 0 : index
    %c0_162 = arith.constant 0 : index
    %178 = vector.load %arg7[%c0_161, %c0_162] : memref<6x1xf32, #tpu.memory_space<vmem>>, vector<6x1xf32>
    %179 = vector.broadcast %178 : vector<6x1xf32> to vector<6x1152xf32>
    %180 = arith.addf %177, %179 : vector<6x1152xf32>
    %cst_163 = arith.constant 0.000000e+00 : f32
    %181 = vector.broadcast %cst_163 : f32 to vector<6x1152xf32>
    %182 = arith.maximumf %180, %181 : vector<6x1152xf32>
    %c2_164 = arith.constant 2 : index
    %c0_165 = arith.constant 0 : index
    %183 = vector.load %arg10[%c2_164, %c0_165] : memref<3x1152xf32, #tpu.memory_space<vmem>>, vector<1x1152xf32>
    %184 = vector.broadcast %183 : vector<1x1152xf32> to vector<6x1152xf32>
    %185 = arith.mulf %182, %184 : vector<6x1152xf32>
    %c0_166 = arith.constant 0 : index
    %c0_167 = arith.constant 0 : index
    %186 = vector.load %arg14[%c0_166, %c0_167] : memref<6x1280xf32, #tpu.memory_space<vmem>>, vector<6x1152xf32>
    tpu.vector_store %arg14[%c0_166, %c0_167], %185 {strides = array<i32>} : memref<6x1280xf32, #tpu.memory_space<vmem>>, vector<6x1152xf32>,
    %cst_168 = arith.constant 0.000000e+00 : f32
    %187 = vector.broadcast %cst_168 : f32 to vector<1x1152xf32>
    %c0_169 = arith.constant 0 : index
    %c0_170 = arith.constant 0 : index
    %188 = vector.load %arg14[%c0_169, %c0_170] : memref<6x1280xf32, #tpu.memory_space<vmem>>, vector<6x1152xf32>
    %c0_171 = arith.constant 0 : index
    %c0_172 = arith.constant 0 : index
    %c0_173 = arith.constant 0 : index
    %189 = vector.load %arg8[%c0_171, %c0_172, %c0_173] : memref<9x1x6xf32, #tpu.memory_space<vmem>>, vector<1x1x6xf32>
    %190 = vector.shape_cast %189 : vector<1x1x6xf32> to vector<1x6xf32>
    %cst_174 = arith.constant dense<0.000000e+00> : vector<1x1152xf32>
    %191 = tpu.matmul %190, %188, %cst_174 {dimension_numbers = #tpu.dot_dimension_numbers<[1], [0], [0], [1], [0, 0, 1, 1], [], []>} : vector<1x6xf32>, vector<6x1152xf32>, vector<1x1152xf32> -> vector<1x1152xf32>
    %192 = arith.addf %187, %191 : vector<1x1152xf32>
    %c0_175 = arith.constant 0 : index
    %c1_176 = arith.constant 1 : index
    %193 = vector.load %arg14[%c0_175, %c1_176] : memref<6x1280xf32, #tpu.memory_space<vmem>>, vector<6x1152xf32>
    %c1_177 = arith.constant 1 : index
    %c0_178 = arith.constant 0 : index
    %c0_179 = arith.constant 0 : index
    %194 = vector.load %arg8[%c1_177, %c0_178, %c0_179] : memref<9x1x6xf32, #tpu.memory_space<vmem>>, vector<1x1x6xf32>
    %195 = vector.shape_cast %194 : vector<1x1x6xf32> to vector<1x6xf32>
    %cst_180 = arith.constant dense<0.000000e+00> : vector<1x1152xf32>
    %196 = tpu.matmul %195, %193, %cst_180 {dimension_numbers = #tpu.dot_dimension_numbers<[1], [0], [0], [1], [0, 0, 1, 1], [], []>} : vector<1x6xf32>, vector<6x1152xf32>, vector<1x1152xf32> -> vector<1x1152xf32>
    %197 = arith.addf %192, %196 : vector<1x1152xf32>
    %c0_181 = arith.constant 0 : index
    %c2_182 = arith.constant 2 : index
    %198 = vector.load %arg14[%c0_181, %c2_182] : memref<6x1280xf32, #tpu.memory_space<vmem>>, vector<6x1152xf32>
    %c2_183 = arith.constant 2 : index
    %c0_184 = arith.constant 0 : index
    %c0_185 = arith.constant 0 : index
    %199 = vector.load %arg8[%c2_183, %c0_184, %c0_185] : memref<9x1x6xf32, #tpu.memory_space<vmem>>, vector<1x1x6xf32>
    %200 = vector.shape_cast %199 : vector<1x1x6xf32> to vector<1x6xf32>
    %cst_186 = arith.constant dense<0.000000e+00> : vector<1x1152xf32>
    %201 = tpu.matmul %200, %198, %cst_186 {dimension_numbers = #tpu.dot_dimension_numbers<[1], [0], [0], [1], [0, 0, 1, 1], [], []>} : vector<1x6xf32>, vector<6x1152xf32>, vector<1x1152xf32> -> vector<1x1152xf32>
    %202 = arith.addf %197, %201 : vector<1x1152xf32>
    %c0_187 = arith.constant 0 : index
    %c24_188 = arith.constant 24 : index
    %203 = vector.load %arg14[%c0_187, %c24_188] : memref<6x1280xf32, #tpu.memory_space<vmem>>, vector<6x1152xf32>
    %c3_189 = arith.constant 3 : index
    %c0_190 = arith.constant 0 : index
    %c0_191 = arith.constant 0 : index
    %204 = vector.load %arg8[%c3_189, %c0_190, %c0_191] : memref<9x1x6xf32, #tpu.memory_space<vmem>>, vector<1x1x6xf32>
    %205 = vector.shape_cast %204 : vector<1x1x6xf32> to vector<1x6xf32>
    %cst_192 = arith.constant dense<0.000000e+00> : vector<1x1152xf32>
    %206 = tpu.matmul %205, %203, %cst_192 {dimension_numbers = #tpu.dot_dimension_numbers<[1], [0], [0], [1], [0, 0, 1, 1], [], []>} : vector<1x6xf32>, vector<6x1152xf32>, vector<1x1152xf32> -> vector<1x1152xf32>
    %207 = arith.addf %202, %206 : vector<1x1152xf32>
    %c0_193 = arith.constant 0 : index
    %c25_194 = arith.constant 25 : index
    %208 = vector.load %arg14[%c0_193, %c25_194] : memref<6x1280xf32, #tpu.memory_space<vmem>>, vector<6x1152xf32>
    %c4_195 = arith.constant 4 : index
    %c0_196 = arith.constant 0 : index
    %c0_197 = arith.constant 0 : index
    %209 = vector.load %arg8[%c4_195, %c0_196, %c0_197] : memref<9x1x6xf32, #tpu.memory_space<vmem>>, vector<1x1x6xf32>
    %210 = vector.shape_cast %209 : vector<1x1x6xf32> to vector<1x6xf32>
    %cst_198 = arith.constant dense<0.000000e+00> : vector<1x1152xf32>
    %211 = tpu.matmul %210, %208, %cst_198 {dimension_numbers = #tpu.dot_dimension_numbers<[1], [0], [0], [1], [0, 0, 1, 1], [], []>} : vector<1x6xf32>, vector<6x1152xf32>, vector<1x1152xf32> -> vector<1x1152xf32>
    %212 = arith.addf %207, %211 : vector<1x1152xf32>
    %c0_199 = arith.constant 0 : index
    %c26_200 = arith.constant 26 : index
    %213 = vector.load %arg14[%c0_199, %c26_200] : memref<6x1280xf32, #tpu.memory_space<vmem>>, vector<6x1152xf32>
    %c5_201 = arith.constant 5 : index
    %c0_202 = arith.constant 0 : index
    %c0_203 = arith.constant 0 : index
    %214 = vector.load %arg8[%c5_201, %c0_202, %c0_203] : memref<9x1x6xf32, #tpu.memory_space<vmem>>, vector<1x1x6xf32>
    %215 = vector.shape_cast %214 : vector<1x1x6xf32> to vector<1x6xf32>
    %cst_204 = arith.constant dense<0.000000e+00> : vector<1x1152xf32>
    %216 = tpu.matmul %215, %213, %cst_204 {dimension_numbers = #tpu.dot_dimension_numbers<[1], [0], [0], [1], [0, 0, 1, 1], [], []>} : vector<1x6xf32>, vector<6x1152xf32>, vector<1x1152xf32> -> vector<1x1152xf32>
    %217 = arith.addf %212, %216 : vector<1x1152xf32>
    %c0_205 = arith.constant 0 : index
    %c48_206 = arith.constant 48 : index
    %218 = vector.load %arg14[%c0_205, %c48_206] : memref<6x1280xf32, #tpu.memory_space<vmem>>, vector<6x1152xf32>
    %c6_207 = arith.constant 6 : index
    %c0_208 = arith.constant 0 : index
    %c0_209 = arith.constant 0 : index
    %219 = vector.load %arg8[%c6_207, %c0_208, %c0_209] : memref<9x1x6xf32, #tpu.memory_space<vmem>>, vector<1x1x6xf32>
    %220 = vector.shape_cast %219 : vector<1x1x6xf32> to vector<1x6xf32>
    %cst_210 = arith.constant dense<0.000000e+00> : vector<1x1152xf32>
    %221 = tpu.matmul %220, %218, %cst_210 {dimension_numbers = #tpu.dot_dimension_numbers<[1], [0], [0], [1], [0, 0, 1, 1], [], []>} : vector<1x6xf32>, vector<6x1152xf32>, vector<1x1152xf32> -> vector<1x1152xf32>
    %222 = arith.addf %217, %221 : vector<1x1152xf32>
    %c0_211 = arith.constant 0 : index
    %c49_212 = arith.constant 49 : index
    %223 = vector.load %arg14[%c0_211, %c49_212] : memref<6x1280xf32, #tpu.memory_space<vmem>>, vector<6x1152xf32>
    %c7_213 = arith.constant 7 : index
    %c0_214 = arith.constant 0 : index
    %c0_215 = arith.constant 0 : index
    %224 = vector.load %arg8[%c7_213, %c0_214, %c0_215] : memref<9x1x6xf32, #tpu.memory_space<vmem>>, vector<1x1x6xf32>
    %225 = vector.shape_cast %224 : vector<1x1x6xf32> to vector<1x6xf32>
    %cst_216 = arith.constant dense<0.000000e+00> : vector<1x1152xf32>
    %226 = tpu.matmul %225, %223, %cst_216 {dimension_numbers = #tpu.dot_dimension_numbers<[1], [0], [0], [1], [0, 0, 1, 1], [], []>} : vector<1x6xf32>, vector<6x1152xf32>, vector<1x1152xf32> -> vector<1x1152xf32>
    %227 = arith.addf %222, %226 : vector<1x1152xf32>
    %c0_217 = arith.constant 0 : index
    %c50_218 = arith.constant 50 : index
    %228 = vector.load %arg14[%c0_217, %c50_218] : memref<6x1280xf32, #tpu.memory_space<vmem>>, vector<6x1152xf32>
    %c8_219 = arith.constant 8 : index
    %c0_220 = arith.constant 0 : index
    %c0_221 = arith.constant 0 : index
    %229 = vector.load %arg8[%c8_219, %c0_220, %c0_221] : memref<9x1x6xf32, #tpu.memory_space<vmem>>, vector<1x1x6xf32>
    %230 = vector.shape_cast %229 : vector<1x1x6xf32> to vector<1x6xf32>
    %cst_222 = arith.constant dense<0.000000e+00> : vector<1x1152xf32>
    %231 = tpu.matmul %230, %228, %cst_222 {dimension_numbers = #tpu.dot_dimension_numbers<[1], [0], [0], [1], [0, 0, 1, 1], [], []>} : vector<1x6xf32>, vector<6x1152xf32>, vector<1x1152xf32> -> vector<1x1152xf32>
    %232 = arith.addf %227, %231 : vector<1x1152xf32>
    %c0_223 = arith.constant 0 : index
    %c0_224 = arith.constant 0 : index
    %233 = vector.load %arg9[%c0_223, %c0_224] : memref<1x1xf32, #tpu.memory_space<vmem>>, vector<1x1xf32>
    %234 = vector.broadcast %233 : vector<1x1xf32> to vector<1x1152xf32>
    %235 = arith.addf %232, %234 : vector<1x1152xf32>
    %c0_225 = arith.constant 0 : index
    %c0_226 = arith.constant 0 : index
    %236 = vector.load %arg11[%c0_225, %c0_226] : memref<1x1152xf32, #tpu.memory_space<vmem>>, vector<1x1152xf32>
    tpu.vector_store %arg11[%c0_225, %c0_226], %235 {strides = array<i32>} : memref<1x1152xf32, #tpu.memory_space<vmem>>, vector<1x1152xf32>,
    return
  }
  func.func @transform_0(%arg0: i32) -> (i32, i32) {
    %c0_i32 = arith.constant 0 : i32
    %c0_i32_0 = arith.constant 0 : i32
    %c0_i32_1 = arith.constant 0 : i32
    return %c0_i32, %c0_i32_0 : i32, i32
  }
  func.func @transform_1(%arg0: i32) -> (i32, i32, i32) {
    %c0_i32 = arith.constant 0 : i32
    %c0_i32_0 = arith.constant 0 : i32
    %c0_i32_1 = arith.constant 0 : i32
    %c0_i32_2 = arith.constant 0 : i32
    return %c0_i32, %c0_i32_0, %c0_i32_1 : i32, i32, i32
  }
  func.func @transform_2(%arg0: i32) -> (i32, i32) {
    %c0_i32 = arith.constant 0 : i32
    %c0_i32_0 = arith.constant 0 : i32
    %c0_i32_1 = arith.constant 0 : i32
    return %c0_i32, %c0_i32_0 : i32, i32
  }
  func.func @transform_3(%arg0: i32) -> (i32, i32, i32) {
    %c0_i32 = arith.constant 0 : i32
    %c0_i32_0 = arith.constant 0 : i32
    %c0_i32_1 = arith.constant 0 : i32
    %c0_i32_2 = arith.constant 0 : i32
    return %c0_i32, %c0_i32_0, %c0_i32_1 : i32, i32, i32
  }
  func.func @transform_4(%arg0: i32) -> (i32, i32) {
    %c0_i32 = arith.constant 0 : i32
    %c0_i32_0 = arith.constant 0 : i32
    %c0_i32_1 = arith.constant 0 : i32
    return %c0_i32, %c0_i32_0 : i32, i32
  }
  func.func @transform_5(%arg0: i32) -> (i32, i32, i32) {
    %c0_i32 = arith.constant 0 : i32
    %c0_i32_0 = arith.constant 0 : i32
    %c0_i32_1 = arith.constant 0 : i32
    %c0_i32_2 = arith.constant 0 : i32
    return %c0_i32, %c0_i32_0, %c0_i32_1 : i32, i32, i32
  }
  func.func @transform_6(%arg0: i32) -> (i32, i32) {
    %c0_i32 = arith.constant 0 : i32
    %c0_i32_0 = arith.constant 0 : i32
    %c0_i32_1 = arith.constant 0 : i32
    return %c0_i32, %c0_i32_0 : i32, i32
  }
  func.func @transform_7(%arg0: i32) -> (i32, i32, i32) {
    %c0_i32 = arith.constant 0 : i32
    %c0_i32_0 = arith.constant 0 : i32
    %c0_i32_1 = arith.constant 0 : i32
    %c0_i32_2 = arith.constant 0 : i32
    return %c0_i32, %c0_i32_0, %c0_i32_1 : i32, i32, i32
  }
  func.func @transform_8(%arg0: i32) -> (i32, i32) {
    %c0_i32 = arith.constant 0 : i32
    %c0_i32_0 = arith.constant 0 : i32
    %c0_i32_1 = arith.constant 0 : i32
    return %c0_i32, %c0_i32_0 : i32, i32
  }
  func.func @transform_9(%arg0: i32) -> (i32, i32) {
    %c0_i32 = arith.constant 0 : i32
    %c0_i32_0 = arith.constant 0 : i32
    %c0_i32_1 = arith.constant 0 : i32
    return %c0_i32, %c0_i32_0 : i32, i32
  }
  func.func @transform_10(%arg0: i32) -> (i32, i32) {
    %c0_i32 = arith.constant 0 : i32
    %c0_i32_0 = arith.constant 0 : i32
    %c0_i32_1 = arith.constant 0 : i32
    return %c0_i32, %c0_i32_0 : i32, i32
  }
}

</mosaic_0001>

<llo_original>
// kernel: tile.14
$region0: #{tile.14}
  #allocation0 [shape = 's32[1]{0}', space=sflag, size = 0x4, scoped, tag = 'scoped memory for tile.14']
  %s0 = inlined_call_operand.vmem [shape: f32[24,24], index: 0, kind: input, shape index: {}]
  %s1 = inlined_call_operand.vmem [shape: f32[2,1,1,24,1,24], index: 1, kind: output, shape index: {}]
  // Predicated region
  $region2: #{tile.14} parent=0 // pred_check
    _
  $region3: #{tile.14} parent=0 // pred_check_branch
    %3 = sbr.rel (0) target = $region5
  $region4: #{tile.14} parent=0 // pred_region
    _
  $region5: #{tile.14} parent=0 // pred_fallthru
    _
  %v4 = vld [vmem:[%s0] sm:$0xff]
  %5 = vst [vmem:[%s1] sm:$0xff] %v4
  %s6 = scalar_lea.vmem %s1, 24
  %7 = vst [vmem:[%s6] sm:$0xff] %v4
  %s8 = scalar_lea.vmem %s0, 8
  %v9 = vld [vmem:[%s8] sm:$0xff]
  %s10 = scalar_lea.vmem %s1, 8
  %11 = vst [vmem:[%s10] sm:$0xff] %v9
  %s12 = scalar_lea.vmem %s1, 32
  %13 = vst [vmem:[%s12] sm:$0xff] %v9
  %s14 = scalar_lea.vmem %s0, 16
  %v15 = vld [vmem:[%s14] sm:$0xff]
  %s16 = scalar_lea.vmem %s1, 16
  %17 = vst [vmem:[%s16] sm:$0xff] %v15
  %s18 = scalar_lea.vmem %s1, 40
  %19 = vst [vmem:[%s18] sm:$0xff] %v15

// kernel: tile.15
$region0: #{tile.15}
  %s0 = inlined_call_operand.vmem [shape: f32[2,1,1,24,1,24], index: 0, kind: input, shape index: {}]
  %s1 = inlined_call_operand.vmem [shape: f32[1,1152], index: 1, kind: output, shape index: {}]
  $region1: #{tile.15} parent=0
    #allocation0 [shape = 'u8[36864]{0}', space=vmem, size = 0x9000, scoped, tag = 'scoped mem for output reshape']
    %s2 = smov 3
    %v3 = vld [vmem:[%s0] ss:$16 sm:%s2]
    %s4 = scalar_lea.vmem %s0, 30
    %v5 = vld [vmem:[%s4] sm:$0x4]
    %vm6 = vcmask 1042434
    %v7 = vsel %vm6, %v5, %v3
    %vm8 = vcmask 195584
    %9 = vst.msk [vmem:[#allocation0] ss:$24 sm:$0x7] %vm8, %v7
    %s10 = scalar_lea.vmem %s0, 21
    %s11 = smov 3
    %v12 = vld [vmem:[%s10] ss:$-16 sm:%s11]
    %s13 = scalar_lea.vmem %s0, 35
    %v14 = vld [vmem:[%s13] sm:$0x4]
    %vm15 = vcmask 1042434
    %v16 = vsel %vm15, %v14, %v12
    %s17 = scalar_lea.vmem %s0, 5
    %v18 = vld [vmem:[%s17] sm:$0x1]
    %s19 = scalar_lea.vmem %s0, 53
    %s20 = smov 6
    %v21 = vld [vmem:[%s19] ss:$-16 sm:%s20]
    %vm22 = vcmask 1042433
    %v23 = vsel %vm22, %v21, %v18
    %vm24 = vcmask 64512
    %v25 = vsel %vm24, %v23, %v16
    %26 = vrot.lane.b32.xlu0 %v25, 120
    %v27 = vpop.permute.xlu0 %26
    %vm28 = vcmask 130048
    %s29 = scalar_lea.vmem [#allocation0], 32
    %30 = vst.msk [vmem:[%s29] ss:$-24 sm:$0x3] %vm28, %v27
    %s31 = scalar_lea.vmem [#allocation0], 54
    %32 = vst.msk [vmem:[%s31] sm:$0x4] %vm28, %v27
    %vm33 = vcmask 1048512
    %34 = vst.msk [vmem:[#allocation0] ss:$48 sm:$0x3] %vm33, %v27
    %s35 = scalar_lea.vmem [#allocation0], 22
    %36 = vst.msk [vmem:[%s35] sm:$0x4] %vm33, %v27
    %s37 = scalar_lea.vmem %s0, 42
    %s38 = smov 3
    %v39 = vld [vmem:[%s37] ss:$-16 sm:%s38]
    %s40 = scalar_lea.vmem %s0, 8
    %v41 = vld [vmem:[%s40] sm:$0x4]
    %vm42 = vcmask 1042434
    %v43 = vsel %vm42, %v41, %v39
    %s44 = scalar_lea.vmem %s0, 26
    %s45 = smov 3
    %v46 = vld [vmem:[%s44] ss:$-16 sm:%s45]
    %s47 = scalar_lea.vmem %s0, 40
    %v48 = vld [vmem:[%s47] sm:$0x4]
    %vm49 = vcmask 1042434
    %v50 = vsel %vm49, %v48, %v46
    %vm51 = vcmask 130048
    %v52 = vsel %vm51, %v50, %v43
    %53 = vrot.lane.b32.xlu0 %v52, 112
    %v54 = vpop.permute.xlu0 %53
    %vm55 = vcmask 64512
    %s56 = scalar_lea.vmem [#allocation0], 64
    %57 = vst.msk [vmem:[%s56] ss:$-24 sm:$0x7] %vm55, %v54
    %vm58 = vcmask 1048448
    %s59 = scalar_lea.vmem [#allocation0], 32
    %60 = vst.msk [vmem:[%s59] ss:$-24 sm:$0x3] %vm58, %v54
    %s61 = scalar_lea.vmem [#allocation0], 54
    %62 = vst.msk [vmem:[%s61] sm:$0x4] %vm58, %v54
    %s63 = scalar_lea.vmem %s0, 47
    %s64 = smov 3
    %v65 = vld [vmem:[%s63] ss:$-16 sm:%s64]
    %s66 = scalar_lea.vmem %s0, 13
    %v67 = vld [vmem:[%s66] sm:$0x4]
    %vm68 = vcmask 1042434
    %v69 = vsel %vm68, %v67, %v65
    %70 = vrot.lane.b32.xlu0 %v69, 104
    %v71 = vpop.permute.xlu0 %70
    %vm72 = vcmask 1048384
    %s73 = scalar_lea.vmem [#allocation0], 64
    %74 = vst.msk [vmem:[%s73] ss:$-24 sm:$0x7] %vm72, %v71
    %s75 = scalar_lea.vmem %s0, 4
    %v76 = vld [vmem:[%s75] sm:$0x1]
    %s77 = scalar_lea.vmem %s0, 52
    %s78 = smov 6
    %v79 = vld [vmem:[%s77] ss:$-16 sm:%s78]
    %vm80 = vcmask 1042433
    %v81 = vsel %vm80, %v79, %v76
    %82 = vrot.lane.b32.xlu0 %v81, 96
    %v83 = vpop.permute.xlu0 %82
    %vm84 = vcmask 982784
    %85 = vst.msk [vmem:[#allocation0] ss:$48 sm:$0x3] %vm84, %v83
    %s86 = scalar_lea.vmem [#allocation0], 22
    %87 = vst.msk [vmem:[%s86] sm:$0x4] %vm84, %v83
    %s88 = scalar_lea.vmem %s0, 25
    %s89 = smov 3
    %v90 = vld [vmem:[%s88] ss:$-16 sm:%s89]
    %s91 = scalar_lea.vmem %s0, 39
    %v92 = vld [vmem:[%s91] sm:$0x4]
    %vm93 = vcmask 1042434
    %v94 = vsel %vm93, %v92, %v90
    %95 = vrot.lane.b32.xlu0 %v94, 88
    %v96 = vpop.permute.xlu0 %95
    %vm97 = vcmask 917184
    %s98 = scalar_lea.vmem [#allocation0], 32
    %99 = vst.msk [vmem:[%s98] ss:$-24 sm:$0x3] %vm97, %v96
    %s100 = scalar_lea.vmem [#allocation0], 54
    %101 = vst.msk [vmem:[%s100] sm:$0x4] %vm97, %v96
    %s102 = scalar_lea.vmem %s0, 46
    %s103 = smov 3
    %v104 = vld [vmem:[%s102] ss:$-16 sm:%s103]
    %s105 = scalar_lea.vmem %s0, 12
    %v106 = vld [vmem:[%s105] sm:$0x4]
    %vm107 = vcmask 1042434
    %v108 = vsel %vm107, %v106, %v104
    %109 = vrot.lane.b32.xlu0 %v108, 80
    %v110 = vpop.permute.xlu0 %109
    %vm111 = vcmask 851584
    %s112 = scalar_lea.vmem [#allocation0], 64
    %113 = vst.msk [vmem:[%s112] ss:$-24 sm:$0x7] %vm111, %v110
    %s114 = scalar_lea.vmem %s0, 3
    %v115 = vld [vmem:[%s114] sm:$0x1]
    %s116 = scalar_lea.vmem %s0, 51
    %s117 = smov 6
    %v118 = vld [vmem:[%s116] ss:$-16 sm:%s117]
    %vm119 = vcmask 1042433
    %v120 = vsel %vm119, %v118, %v115
    %121 = vrot.lane.b32.xlu0 %v120, 72
    %v122 = vpop.permute.xlu0 %121
    %vm123 = vcmask 785984
    %124 = vst.msk [vmem:[#allocation0] ss:$48 sm:$0x3] %vm123, %v122
    %s125 = scalar_lea.vmem [#allocation0], 22
    %126 = vst.msk [vmem:[%s125] sm:$0x4] %vm123, %v122
    %s127 = scalar_lea.vmem %s0, 24
    %s128 = smov 3
    %v129 = vld [vmem:[%s127] ss:$-16 sm:%s128]
    %s130 = scalar_lea.vmem %s0, 38
    %v131 = vld [vmem:[%s130] sm:$0x4]
    %vm132 = vcmask 1042434
    %v133 = vsel %vm132, %v131, %v129
    %134 = vrot.lane.b32.xlu0 %v133, 64
    %v135 = vpop.permute.xlu0 %134
    %vm136 = vcmask 720384
    %s137 = scalar_lea.vmem [#allocation0], 32
    %138 = vst.msk [vmem:[%s137] ss:$-24 sm:$0x3] %vm136, %v135
    %s139 = scalar_lea.vmem [#allocation0], 54
    %140 = vst.msk [vmem:[%s139] sm:$0x4] %vm136, %v135
    %s141 = scalar_lea.vmem %s0, 45
    %s142 = smov 3
    %v143 = vld [vmem:[%s141] ss:$-16 sm:%s142]
    %s144 = scalar_lea.vmem %s0, 11
    %v145 = vld [vmem:[%s144] sm:$0x4]
    %vm146 = vcmask 1042434
    %v147 = vsel %vm146, %v145, %v143
    %148 = vrot.lane.b32.xlu0 %v147, 56
    %v149 = vpop.permute.xlu0 %148
    %vm150 = vcmask 654784
    %s151 = scalar_lea.vmem [#allocation0], 64
    %152 = vst.msk [vmem:[%s151] ss:$-24 sm:$0x7] %vm150, %v149
    %s153 = scalar_lea.vmem %s0, 2
    %v154 = vld [vmem:[%s153] sm:$0x1]
    %s155 = scalar_lea.vmem %s0, 50
    %s156 = smov 6
    %v157 = vld [vmem:[%s155] ss:$-16 sm:%s156]
    %vm158 = vcmask 1042433
    %v159 = vsel %vm158, %v157, %v154
    %160 = vrot.lane.b32.xlu0 %v159, 48
    %v161 = vpop.permute.xlu0 %160
    %vm162 = vcmask 589184
    %163 = vst.msk [vmem:[#allocation0] ss:$48 sm:$0x3] %vm162, %v161
    %s164 = scalar_lea.vmem [#allocation0], 22
    %165 = vst.msk [vmem:[%s164] sm:$0x4] %vm162, %v161
    %s166 = scalar_lea.vmem %s0, 23
    %s167 = smov 3
    %v168 = vld [vmem:[%s166] ss:$-16 sm:%s167]
    %s169 = scalar_lea.vmem %s0, 37
    %v170 = vld [vmem:[%s169] sm:$0x4]
    %vm171 = vcmask 1042434
    %v172 = vsel %vm171, %v170, %v168
    %173 = vrot.lane.b32.xlu0 %v172, 40
    %v174 = vpop.permute.xlu0 %173
    %vm175 = vcmask 523584
    %s176 = scalar_lea.vmem [#allocation0], 32
    %177 = vst.msk [vmem:[%s176] ss:$-24 sm:$0x3] %vm175, %v174
    %s178 = scalar_lea.vmem [#allocation0], 54
    %179 = vst.msk [vmem:[%s178] sm:$0x4] %vm175, %v174
    %s180 = scalar_lea.vmem %s0, 44
    %s181 = smov 3
    %v182 = vld [vmem:[%s180] ss:$-16 sm:%s181]
    %s183 = scalar_lea.vmem %s0, 10
    %v184 = vld [vmem:[%s183] sm:$0x4]
    %vm185 = vcmask 1042434
    %v186 = vsel %vm185, %v184, %v182
    %187 = vrot.lane.b32.xlu0 %v186, 32
    %v188 = vpop.permute.xlu0 %187
    %vm189 = vcmask 457984
    %s190 = scalar_lea.vmem [#allocation0], 64
    %191 = vst.msk [vmem:[%s190] ss:$-24 sm:$0x7] %vm189, %v188
    %s192 = scalar_lea.vmem %s0, 1
    %v193 = vld [vmem:[%s192] sm:$0x1]
    %s194 = scalar_lea.vmem %s0, 49
    %s195 = smov 6
    %v196 = vld [vmem:[%s194] ss:$-16 sm:%s195]
    %vm197 = vcmask 1042433
    %v198 = vsel %vm197, %v196, %v193
    %199 = vrot.lane.b32.xlu0 %v198, 24
    %v200 = vpop.permute.xlu0 %199
    %vm201 = vcmask 392384
    %202 = vst.msk [vmem:[#allocation0] ss:$48 sm:$0x3] %vm201, %v200
    %s203 = scalar_lea.vmem [#allocation0], 22
    %204 = vst.msk [vmem:[%s203] sm:$0x4] %vm201, %v200
    %s205 = scalar_lea.vmem %s0, 22
    %s206 = smov 3
    %v207 = vld [vmem:[%s205] ss:$-16 sm:%s206]
    %s208 = scalar_lea.vmem %s0, 36
    %v209 = vld [vmem:[%s208] sm:$0x4]
    %vm210 = vcmask 1042434
    %v211 = vsel %vm210, %v209, %v207
    %212 = vrot.lane.b32.xlu0 %v211, 16
    %v213 = vpop.permute.xlu0 %212
    %vm214 = vcmask 326784
    %s215 = scalar_lea.vmem [#allocation0], 32
    %216 = vst.msk [vmem:[%s215] ss:$-24 sm:$0x3] %vm214, %v213
    %s217 = scalar_lea.vmem [#allocation0], 54
    %218 = vst.msk [vmem:[%s217] sm:$0x4] %vm214, %v213
    %s219 = scalar_lea.vmem %s0, 43
    %s220 = smov 3
    %v221 = vld [vmem:[%s219] ss:$-16 sm:%s220]
    %s222 = scalar_lea.vmem %s0, 9
    %v223 = vld [vmem:[%s222] sm:$0x4]
    %vm224 = vcmask 1042434
    %v225 = vsel %vm224, %v223, %v221
    %226 = vrot.lane.b32.xlu0 %v225, 8
    %v227 = vpop.permute.xlu0 %226
    %vm228 = vcmask 261184
    %s229 = scalar_lea.vmem [#allocation0], 64
    %230 = vst.msk [vmem:[%s229] ss:$-24 sm:$0x7] %vm228, %v227
    %s232 = ssub.s32 2, 1
    %v233 = vld [vmem:[#allocation0] sm:%s232]
    %s235 = ssub.s32 2, 1
    %236 = vst [vmem:[%s1] sm:%s235] %v233
    %s237 = scalar_lea.vmem [#allocation0], 8
    %v238 = vld [vmem:[%s237] sm:%s232]
    %s240 = ssub.s32 2, 1
    %s241 = scalar_lea.vmem %s1, 1
    %242 = vst [vmem:[%s241] sm:%s240] %v238
    %s243 = scalar_lea.vmem [#allocation0], 16
    %v244 = vld [vmem:[%s243] sm:%s232]
    %s246 = ssub.s32 2, 1
    %s247 = scalar_lea.vmem %s1, 2
    %248 = vst [vmem:[%s247] sm:%s246] %v244
    %s249 = scalar_lea.vmem [#allocation0], 24
    %v250 = vld [vmem:[%s249] sm:%s232]
    %s252 = ssub.s32 2, 1
    %s253 = scalar_lea.vmem %s1, 3
    %254 = vst [vmem:[%s253] sm:%s252] %v250
    %s255 = scalar_lea.vmem [#allocation0], 32
    %v256 = vld [vmem:[%s255] sm:%s232]
    %s258 = ssub.s32 2, 1
    %s259 = scalar_lea.vmem %s1, 4
    %260 = vst [vmem:[%s259] sm:%s258] %v256
    %s261 = scalar_lea.vmem [#allocation0], 40
    %v262 = vld [vmem:[%s261] sm:%s232]
    %s264 = ssub.s32 2, 1
    %s265 = scalar_lea.vmem %s1, 5
    %266 = vst [vmem:[%s265] sm:%s264] %v262
    %s267 = scalar_lea.vmem [#allocation0], 48
    %v268 = vld [vmem:[%s267] sm:%s232]
    %s270 = ssub.s32 2, 1
    %s271 = scalar_lea.vmem %s1, 6
    %272 = vst [vmem:[%s271] sm:%s270] %v268
    %s273 = scalar_lea.vmem [#allocation0], 56
    %v274 = vld [vmem:[%s273] sm:%s232]
    %s276 = ssub.s32 2, 1
    %s277 = scalar_lea.vmem %s1, 7
    %278 = vst [vmem:[%s277] sm:%s276] %v274
    %s279 = scalar_lea.vmem [#allocation0], 64
    %v280 = vld [vmem:[%s279] sm:%s232]
    %s282 = ssub.s32 2, 1
    %s283 = scalar_lea.vmem %s1, 8
    %284 = vst [vmem:[%s283] sm:%s282] %v280

// kernel: ensemble_unet_forward.1
$region0: #{ensemble_unet_forward.1}
  #allocation0 [shape = 'u32[]', space=smem, size = 0x4, offset = 0x4, fixed_abs, tag = 'smem constant byte address 0x4 - core index']
  #allocation1 [shape = 'u32[72,128]{1,0:T(1,128)}', space=vmem, size = 0x9000, scoped, tag = 'internal scratch']
  #allocation2 [shape = 'f32[2,1280]{1,0:T(2,128)}', space=vmem, size = 0x2800, scoped, tag = 'scratch operand']
  #allocation3 [shape = 'f32[12,1280]{1,0:T(8,128)}', space=vmem, size = 0x14000, scoped, tag = 'scratch operand']
  #allocation4 [shape = 'f32[6,1280]{1,0:T(8,128)}', space=vmem, size = 0xa000, scoped, tag = 'scratch operand']
  #allocation5 [shape = 'f32[1,1]{1,0:T(1,128)S(1)}', space=vmem, size = 0x200, scoped, tag = 'scoped memory for ensemble_unet_forward.1']
  %s0 = inlined_call_operand.vmem [shape: f32[1,1280], index: 0, kind: input, shape index: {}]
  %s1 = inlined_call_operand.vmem [shape: f32[9,2,1], index: 1, kind: input, shape index: {}]
  %s2 = inlined_call_operand.vmem [shape: f32[2,1], index: 2, kind: input, shape index: {}]
  %s3 = inlined_call_operand.vmem [shape: f32[9,12,2], index: 3, kind: input, shape index: {}]
  %s4 = inlined_call_operand.vmem [shape: f32[12,1], index: 4, kind: input, shape index: {}]
  %s5 = inlined_call_operand.vmem [shape: f32[9,6,12], index: 5, kind: input, shape index: {}]
  %s6 = inlined_call_operand.vmem [shape: f32[6,1], index: 6, kind: input, shape index: {}]
  %s7 = inlined_call_operand.vmem [shape: f32[9,1,6], index: 7, kind: input, shape index: {}]
  %s8 = inlined_call_operand.<no memory space> [shape: f32[1,1], index: 8, kind: input, shape index: {}]
  %s9 = inlined_call_operand.vmem [shape: f32[3,1152], index: 9, kind: input, shape index: {}]
  %s10 = inlined_call_operand.vmem [shape: f32[1,1152], index: 10, kind: output, shape index: {}]
  %s11 = sld [smem:[#allocation0]]
  $region50: #{ensemble_unet_forward.1} parent=0
    _
  %s13 = ssub.s32 1, %s11
  %s14 = scalar_select 0, %s13, %s11
  %v15 = vstv %s8
  %16 = vst [vmem:[#allocation5] sm:$0x1] %v15
  // Predicated region
  $region2: #{ensemble_unet_forward.1} parent=0 // pred_check
    _
  $region3: #{ensemble_unet_forward.1} parent=0 // pred_check_branch
    %18 = sbr.rel (0) target = $region5
  $region4: #{ensemble_unet_forward.1} parent=0 // pred_region
    _
  $region5: #{ensemble_unet_forward.1} parent=0 // pred_fallthru
    _
  // Predicated region
  $region6: #{ensemble_unet_forward.1} parent=0 // pred_check
    _
  $region7: #{ensemble_unet_forward.1} parent=0 // pred_check_branch
    %20 = sbr.rel (0) target = $region9
  $region8: #{ensemble_unet_forward.1} parent=0 // pred_region
    _
  $region9: #{ensemble_unet_forward.1} parent=0 // pred_fallthru
    _
  // Predicated region
  $region10: #{ensemble_unet_forward.1} parent=0 // pred_check
    _
  $region11: #{ensemble_unet_forward.1} parent=0 // pred_check_branch
    %22 = sbr.rel (0) target = $region13
  $region12: #{ensemble_unet_forward.1} parent=0 // pred_region
    _
  $region13: #{ensemble_unet_forward.1} parent=0 // pred_fallthru
    _
  // Predicated region
  $region14: #{ensemble_unet_forward.1} parent=0 // pred_check
    _
  $region15: #{ensemble_unet_forward.1} parent=0 // pred_check_branch
    %24 = sbr.rel (0) target = $region17
  $region16: #{ensemble_unet_forward.1} parent=0 // pred_region
    _
  $region17: #{ensemble_unet_forward.1} parent=0 // pred_fallthru
    _
  // Predicated region
  $region18: #{ensemble_unet_forward.1} parent=0 // pred_check
    _
  $region19: #{ensemble_unet_forward.1} parent=0 // pred_check_branch
    %26 = sbr.rel (0) target = $region21
  $region20: #{ensemble_unet_forward.1} parent=0 // pred_region
    _
  $region21: #{ensemble_unet_forward.1} parent=0 // pred_fallthru
    _
  // Predicated region
  $region22: #{ensemble_unet_forward.1} parent=0 // pred_check
    _
  $region23: #{ensemble_unet_forward.1} parent=0 // pred_check_branch
    %28 = sbr.rel (0) target = $region25
  $region24: #{ensemble_unet_forward.1} parent=0 // pred_region
    _
  $region25: #{ensemble_unet_forward.1} parent=0 // pred_fallthru
    _
  // Predicated region
  $region26: #{ensemble_unet_forward.1} parent=0 // pred_check
    _
  $region27: #{ensemble_unet_forward.1} parent=0 // pred_check_branch
    %30 = sbr.rel (0) target = $region29
  $region28: #{ensemble_unet_forward.1} parent=0 // pred_region
    _
  $region29: #{ensemble_unet_forward.1} parent=0 // pred_fallthru
    _
  // Predicated region
  $region30: #{ensemble_unet_forward.1} parent=0 // pred_check
    _
  $region31: #{ensemble_unet_forward.1} parent=0 // pred_check_branch
    %32 = sbr.rel (0) target = $region33
  $region32: #{ensemble_unet_forward.1} parent=0 // pred_region
    _
  $region33: #{ensemble_unet_forward.1} parent=0 // pred_fallthru
    _
  // Predicated region
  $region34: #{ensemble_unet_forward.1} parent=0 // pred_check
    _
  $region35: #{ensemble_unet_forward.1} parent=0 // pred_check_branch
    %34 = sbr.rel (0) target = $region37
  $region36: #{ensemble_unet_forward.1} parent=0 // pred_region
    _
  $region37: #{ensemble_unet_forward.1} parent=0 // pred_fallthru
    _
  // Predicated region
  $region38: #{ensemble_unet_forward.1} parent=0 // pred_check
    _
  $region39: #{ensemble_unet_forward.1} parent=0 // pred_check_branch
    %36 = sbr.rel (0) target = $region41
  $region40: #{ensemble_unet_forward.1} parent=0 // pred_region
    _
  $region41: #{ensemble_unet_forward.1} parent=0 // pred_fallthru
    _
  %37 = vst [vmem:[#allocation2 + $0x12] sm:$0x3] 0.0
  %38 = vst [vmem:[#allocation3 + $0x48] sm:$0xff] 0.0
  %39 = vst [vmem:[#allocation3 + $0x98] sm:$0xf] 0.0
  %40 = vst [vmem:[#allocation4 + $0x48] sm:$0x3f] 0.0
  %v41 = vld [vmem:[%s0] sm:$0xff]
  %v42 = vld [vmem:[%s0 + $0x8] sm:$0x1]
  %v43 = vld [vmem:[%s1] sm:$0x3]
  %45 = vset.pattern.permute.xlu0 0
  %46 = vperm.xlu0 %45, %v43
  %v47 = vpop.permute.xlu0 %46
  %v51 = vperm.slane %v41, 0
  %v52 = vperm.slane %v41, 1
  %v53 = vperm.slane %v41, 2
  %v54 = vperm.slane %v41, 3
  %v55 = vperm.slane %v41, 4
  %v56 = vperm.slane %v41, 5
  %v57 = vperm.slane %v41, 6
  %v58 = vperm.slane %v41, 7
  %v59 = vperm.slane %v42, 0
  %v69 = vmul.f32 %v47, %v51
  %v70 = vmul.f32 %v47, %v52
  %v71 = vmul.f32 %v47, %v53
  %v72 = vmul.f32 %v47, %v54
  %v73 = vmul.f32 %v47, %v55
  %v74 = vmul.f32 %v47, %v56
  %v75 = vmul.f32 %v47, %v57
  %v76 = vmul.f32 %v47, %v58
  %v77 = vmul.f32 %v47, %v59
  %v78 = vadd.f32 %v69, 0.0
  %v79 = vadd.f32 %v70, 0.0
  %v80 = vadd.f32 %v71, 0.0
  %v81 = vadd.f32 %v72, 0.0
  %v82 = vadd.f32 %v73, 0.0
  %v83 = vadd.f32 %v74, 0.0
  %v84 = vadd.f32 %v75, 0.0
  %v85 = vadd.f32 %v76, 0.0
  %v86 = vadd.f32 %v77, 0.0
  %v87 = vld [vmem:[%s0] sm:$0xff]
  %v88 = vld [vmem:[%s0 + $0x8] sm:$0x3]
  %s89 = scalar_lea.vmem %s1, 2
  %v90 = vld [vmem:[%s89] sm:$0x3]
  %92 = vset.pattern.permute.xlu0 0
  %93 = vperm.xlu0 %92, %v90
  %v94 = vpop.permute.xlu0 %93
  %v98 = vperm.slane %v87, 0
  %v99 = vperm.slane %v87, 1
  %v100 = vperm.slane %v87, 2
  %v101 = vperm.slane %v87, 3
  %v102 = vperm.slane %v87, 4
  %v103 = vperm.slane %v87, 5
  %v104 = vperm.slane %v87, 6
  %v105 = vperm.slane %v87, 7
  %v106 = vperm.slane %v88, 0
  %v107 = vperm.slane %v88, 1
  %v118 = vmul.f32 %v94, %v98
  %v119 = vmul.f32 %v94, %v99
  %v120 = vmul.f32 %v94, %v100
  %v121 = vmul.f32 %v94, %v101
  %v122 = vmul.f32 %v94, %v102
  %v123 = vmul.f32 %v94, %v103
  %v124 = vmul.f32 %v94, %v104
  %v125 = vmul.f32 %v94, %v105
  %v126 = vmul.f32 %v94, %v106
  %v127 = vmul.f32 %v94, %v107
  %138 = vrot.lane.b32.xlu0 %v118, 127
  %v139 = vpop.permute.xlu0 %138
  %140 = vrot.lane.b32.xlu0 %v119, 127
  %v141 = vpop.permute.xlu0 %140
  %142 = vrot.lane.b32.xlu0 %v120, 127
  %v143 = vpop.permute.xlu0 %142
  %144 = vrot.lane.b32.xlu0 %v121, 127
  %v145 = vpop.permute.xlu0 %144
  %146 = vrot.lane.b32.xlu0 %v122, 127
  %v147 = vpop.permute.xlu0 %146
  %148 = vrot.lane.b32.xlu0 %v123, 127
  %v149 = vpop.permute.xlu0 %148
  %150 = vrot.lane.b32.xlu0 %v124, 127
  %v151 = vpop.permute.xlu0 %150
  %152 = vrot.lane.b32.xlu0 %v125, 127
  %v153 = vpop.permute.xlu0 %152
  %154 = vrot.lane.b32.xlu0 %v126, 127
  %v155 = vpop.permute.xlu0 %154
  %156 = vrot.lane.b32.xlu0 %v127, 127
  %v157 = vpop.permute.xlu0 %156
  %vm158 = vcmask 1039360
  %v159 = vsel %vm158, %v139, %v141
  %v160 = vsel %vm158, %v141, %v143
  %v161 = vsel %vm158, %v143, %v145
  %v162 = vsel %vm158, %v145, %v147
  %v163 = vsel %vm158, %v147, %v149
  %v164 = vsel %vm158, %v149, %v151
  %v165 = vsel %vm158, %v151, %v153
  %v166 = vsel %vm158, %v153, %v155
  %v167 = vsel %vm158, %v155, %v157
  %v177 = vadd.f32 %v78, %v159
  %v178 = vadd.f32 %v79, %v160
  %v179 = vadd.f32 %v80, %v161
  %v180 = vadd.f32 %v81, %v162
  %v181 = vadd.f32 %v82, %v163
  %v182 = vadd.f32 %v83, %v164
  %v183 = vadd.f32 %v84, %v165
  %v184 = vadd.f32 %v85, %v166
  %v185 = vadd.f32 %v86, %v167
  %s186 = scalar_lea.vmem %s1, 4
  %v187 = vld [vmem:[%s186] sm:$0x3]
  %189 = vset.pattern.permute.xlu0 0
  %190 = vperm.xlu0 %189, %v187
  %v191 = vpop.permute.xlu0 %190
  %v193 = vmul.f32 %v191, %v98
  %v194 = vmul.f32 %v191, %v99
  %v195 = vmul.f32 %v191, %v100
  %v196 = vmul.f32 %v191, %v101
  %v197 = vmul.f32 %v191, %v102
  %v198 = vmul.f32 %v191, %v103
  %v199 = vmul.f32 %v191, %v104
  %v200 = vmul.f32 %v191, %v105
  %v201 = vmul.f32 %v191, %v106
  %v202 = vmul.f32 %v191, %v107
  %213 = vrot.lane.b32.xlu0 %v193, 126
  %v214 = vpop.permute.xlu0 %213
  %215 = vrot.lane.b32.xlu0 %v194, 126
  %v216 = vpop.permute.xlu0 %215
  %217 = vrot.lane.b32.xlu0 %v195, 126
  %v218 = vpop.permute.xlu0 %217
  %219 = vrot.lane.b32.xlu0 %v196, 126
  %v220 = vpop.permute.xlu0 %219
  %221 = vrot.lane.b32.xlu0 %v197, 126
  %v222 = vpop.permute.xlu0 %221
  %223 = vrot.lane.b32.xlu0 %v198, 126
  %v224 = vpop.permute.xlu0 %223
  %225 = vrot.lane.b32.xlu0 %v199, 126
  %v226 = vpop.permute.xlu0 %225
  %227 = vrot.lane.b32.xlu0 %v200, 126
  %v228 = vpop.permute.xlu0 %227
  %229 = vrot.lane.b32.xlu0 %v201, 126
  %v230 = vpop.permute.xlu0 %229
  %231 = vrot.lane.b32.xlu0 %v202, 126
  %v232 = vpop.permute.xlu0 %231
  %vm233 = vcmask 1031168
  %v234 = vsel %vm233, %v214, %v216
  %v235 = vsel %vm233, %v216, %v218
  %v236 = vsel %vm233, %v218, %v220
  %v237 = vsel %vm233, %v220, %v222
  %v238 = vsel %vm233, %v222, %v224
  %v239 = vsel %vm233, %v224, %v226
  %v240 = vsel %vm233, %v226, %v228
  %v241 = vsel %vm233, %v228, %v230
  %v242 = vsel %vm233, %v230, %v232
  %v252 = vadd.f32 %v177, %v234
  %v253 = vadd.f32 %v178, %v235
  %v254 = vadd.f32 %v179, %v236
  %v255 = vadd.f32 %v180, %v237
  %v256 = vadd.f32 %v181, %v238
  %v257 = vadd.f32 %v182, %v239
  %v258 = vadd.f32 %v183, %v240
  %v259 = vadd.f32 %v184, %v241
  %v260 = vadd.f32 %v185, %v242
  %s261 = scalar_lea.vmem %s1, 6
  %v262 = vld [vmem:[%s261] sm:$0x3]
  %264 = vset.pattern.permute.xlu0 0
  %265 = vperm.xlu0 %264, %v262
  %v266 = vpop.permute.xlu0 %265
  %v268 = vmul.f32 %v266, %v98
  %v269 = vmul.f32 %v266, %v99
  %v270 = vmul.f32 %v266, %v100
  %v271 = vmul.f32 %v266, %v101
  %v272 = vmul.f32 %v266, %v102
  %v273 = vmul.f32 %v266, %v103
  %v274 = vmul.f32 %v266, %v104
  %v275 = vmul.f32 %v266, %v105
  %v276 = vmul.f32 %v266, %v106
  %v277 = vmul.f32 %v266, %v107
  %288 = vrot.lane.b32.xlu0 %v268, 104
  %v289 = vpop.permute.xlu0 %288
  %290 = vrot.lane.b32.xlu0 %v269, 104
  %v291 = vpop.permute.xlu0 %290
  %292 = vrot.lane.b32.xlu0 %v270, 104
  %v293 = vpop.permute.xlu0 %292
  %294 = vrot.lane.b32.xlu0 %v271, 104
  %v295 = vpop.permute.xlu0 %294
  %296 = vrot.lane.b32.xlu0 %v272, 104
  %v297 = vpop.permute.xlu0 %296
  %298 = vrot.lane.b32.xlu0 %v273, 104
  %v299 = vpop.permute.xlu0 %298
  %300 = vrot.lane.b32.xlu0 %v274, 104
  %v301 = vpop.permute.xlu0 %300
  %302 = vrot.lane.b32.xlu0 %v275, 104
  %v303 = vpop.permute.xlu0 %302
  %304 = vrot.lane.b32.xlu0 %v276, 104
  %v305 = vpop.permute.xlu0 %304
  %306 = vrot.lane.b32.xlu0 %v277, 104
  %v307 = vpop.permute.xlu0 %306
  %vm308 = vcmask 850944
  %v309 = vsel %vm308, %v289, %v291
  %v310 = vsel %vm308, %v291, %v293
  %v311 = vsel %vm308, %v293, %v295
  %v312 = vsel %vm308, %v295, %v297
  %v313 = vsel %vm308, %v297, %v299
  %v314 = vsel %vm308, %v299, %v301
  %v315 = vsel %vm308, %v301, %v303
  %v316 = vsel %vm308, %v303, %v305
  %v317 = vsel %vm308, %v305, %v307
  %v327 = vadd.f32 %v252, %v309
  %v328 = vadd.f32 %v253, %v310
  %v329 = vadd.f32 %v254, %v311
  %v330 = vadd.f32 %v255, %v312
  %v331 = vadd.f32 %v256, %v313
  %v332 = vadd.f32 %v257, %v314
  %v333 = vadd.f32 %v258, %v315
  %v334 = vadd.f32 %v259, %v316
  %v335 = vadd.f32 %v260, %v317
  %s336 = scalar_lea.vmem %s1, 8
  %v337 = vld [vmem:[%s336] sm:$0x3]
  %339 = vset.pattern.permute.xlu0 0
  %340 = vperm.xlu0 %339, %v337
  %v341 = vpop.permute.xlu0 %340
  %v343 = vmul.f32 %v341, %v98
  %v344 = vmul.f32 %v341, %v99
  %v345 = vmul.f32 %v341, %v100
  %v346 = vmul.f32 %v341, %v101
  %v347 = vmul.f32 %v341, %v102
  %v348 = vmul.f32 %v341, %v103
  %v349 = vmul.f32 %v341, %v104
  %v350 = vmul.f32 %v341, %v105
  %v351 = vmul.f32 %v341, %v106
  %v352 = vmul.f32 %v341, %v107
  %363 = vrot.lane.b32.xlu0 %v343, 103
  %v364 = vpop.permute.xlu0 %363
  %365 = vrot.lane.b32.xlu0 %v344, 103
  %v366 = vpop.permute.xlu0 %365
  %367 = vrot.lane.b32.xlu0 %v345, 103
  %v368 = vpop.permute.xlu0 %367
  %369 = vrot.lane.b32.xlu0 %v346, 103
  %v370 = vpop.permute.xlu0 %369
  %371 = vrot.lane.b32.xlu0 %v347, 103
  %v372 = vpop.permute.xlu0 %371
  %373 = vrot.lane.b32.xlu0 %v348, 103
  %v374 = vpop.permute.xlu0 %373
  %375 = vrot.lane.b32.xlu0 %v349, 103
  %v376 = vpop.permute.xlu0 %375
  %377 = vrot.lane.b32.xlu0 %v350, 103
  %v378 = vpop.permute.xlu0 %377
  %379 = vrot.lane.b32.xlu0 %v351, 103
  %v380 = vpop.permute.xlu0 %379
  %381 = vrot.lane.b32.xlu0 %v352, 103
  %v382 = vpop.permute.xlu0 %381
  %vm383 = vcmask 842752
  %v384 = vsel %vm383, %v364, %v366
  %v385 = vsel %vm383, %v366, %v368
  %v386 = vsel %vm383, %v368, %v370
  %v387 = vsel %vm383, %v370, %v372
  %v388 = vsel %vm383, %v372, %v374
  %v389 = vsel %vm383, %v374, %v376
  %v390 = vsel %vm383, %v376, %v378
  %v391 = vsel %vm383, %v378, %v380
  %v392 = vsel %vm383, %v380, %v382
  %v402 = vadd.f32 %v327, %v384
  %v403 = vadd.f32 %v328, %v385
  %v404 = vadd.f32 %v329, %v386
  %v405 = vadd.f32 %v330, %v387
  %v406 = vadd.f32 %v331, %v388
  %v407 = vadd.f32 %v332, %v389
  %v408 = vadd.f32 %v333, %v390
  %v409 = vadd.f32 %v334, %v391
  %v410 = vadd.f32 %v335, %v392
  %s411 = scalar_lea.vmem %s1, 10
  %v412 = vld [vmem:[%s411] sm:$0x3]
  %414 = vset.pattern.permute.xlu0 0
  %415 = vperm.xlu0 %414, %v412
  %v416 = vpop.permute.xlu0 %415
  %v418 = vmul.f32 %v416, %v98
  %v419 = vmul.f32 %v416, %v99
  %v420 = vmul.f32 %v416, %v100
  %v421 = vmul.f32 %v416, %v101
  %v422 = vmul.f32 %v416, %v102
  %v423 = vmul.f32 %v416, %v103
  %v424 = vmul.f32 %v416, %v104
  %v425 = vmul.f32 %v416, %v105
  %v426 = vmul.f32 %v416, %v106
  %v427 = vmul.f32 %v416, %v107
  %438 = vrot.lane.b32.xlu0 %v418, 102
  %v439 = vpop.permute.xlu0 %438
  %440 = vrot.lane.b32.xlu0 %v419, 102
  %v441 = vpop.permute.xlu0 %440
  %442 = vrot.lane.b32.xlu0 %v420, 102
  %v443 = vpop.permute.xlu0 %442
  %444 = vrot.lane.b32.xlu0 %v421, 102
  %v445 = vpop.permute.xlu0 %444
  %446 = vrot.lane.b32.xlu0 %v422, 102
  %v447 = vpop.permute.xlu0 %446
  %448 = vrot.lane.b32.xlu0 %v423, 102
  %v449 = vpop.permute.xlu0 %448
  %450 = vrot.lane.b32.xlu0 %v424, 102
  %v451 = vpop.permute.xlu0 %450
  %452 = vrot.lane.b32.xlu0 %v425, 102
  %v453 = vpop.permute.xlu0 %452
  %454 = vrot.lane.b32.xlu0 %v426, 102
  %v455 = vpop.permute.xlu0 %454
  %456 = vrot.lane.b32.xlu0 %v427, 102
  %v457 = vpop.permute.xlu0 %456
  %vm458 = vcmask 834560
  %v459 = vsel %vm458, %v439, %v441
  %v460 = vsel %vm458, %v441, %v443
  %v461 = vsel %vm458, %v443, %v445
  %v462 = vsel %vm458, %v445, %v447
  %v463 = vsel %vm458, %v447, %v449
  %v464 = vsel %vm458, %v449, %v451
  %v465 = vsel %vm458, %v451, %v453
  %v466 = vsel %vm458, %v453, %v455
  %v467 = vsel %vm458, %v455, %v457
  %v477 = vadd.f32 %v402, %v459
  %v478 = vadd.f32 %v403, %v460
  %v479 = vadd.f32 %v404, %v461
  %v480 = vadd.f32 %v405, %v462
  %v481 = vadd.f32 %v406, %v463
  %v482 = vadd.f32 %v407, %v464
  %v483 = vadd.f32 %v408, %v465
  %v484 = vadd.f32 %v409, %v466
  %v485 = vadd.f32 %v410, %v467
  %s486 = scalar_lea.vmem %s1, 12
  %v487 = vld [vmem:[%s486] sm:$0x3]
  %489 = vset.pattern.permute.xlu0 0
  %490 = vperm.xlu0 %489, %v487
  %v491 = vpop.permute.xlu0 %490
  %v493 = vmul.f32 %v491, %v98
  %v494 = vmul.f32 %v491, %v99
  %v495 = vmul.f32 %v491, %v100
  %v496 = vmul.f32 %v491, %v101
  %v497 = vmul.f32 %v491, %v102
  %v498 = vmul.f32 %v491, %v103
  %v499 = vmul.f32 %v491, %v104
  %v500 = vmul.f32 %v491, %v105
  %v501 = vmul.f32 %v491, %v106
  %v502 = vmul.f32 %v491, %v107
  %513 = vrot.lane.b32.xlu0 %v493, 80
  %v514 = vpop.permute.xlu0 %513
  %515 = vrot.lane.b32.xlu0 %v494, 80
  %v516 = vpop.permute.xlu0 %515
  %517 = vrot.lane.b32.xlu0 %v495, 80
  %v518 = vpop.permute.xlu0 %517
  %519 = vrot.lane.b32.xlu0 %v496, 80
  %v520 = vpop.permute.xlu0 %519
  %521 = vrot.lane.b32.xlu0 %v497, 80
  %v522 = vpop.permute.xlu0 %521
  %523 = vrot.lane.b32.xlu0 %v498, 80
  %v524 = vpop.permute.xlu0 %523
  %525 = vrot.lane.b32.xlu0 %v499, 80
  %v526 = vpop.permute.xlu0 %525
  %527 = vrot.lane.b32.xlu0 %v500, 80
  %v528 = vpop.permute.xlu0 %527
  %529 = vrot.lane.b32.xlu0 %v501, 80
  %v530 = vpop.permute.xlu0 %529
  %531 = vrot.lane.b32.xlu0 %v502, 80
  %v532 = vpop.permute.xlu0 %531
  %vm533 = vcmask 654336
  %v534 = vsel %vm533, %v514, %v516
  %v535 = vsel %vm533, %v516, %v518
  %v536 = vsel %vm533, %v518, %v520
  %v537 = vsel %vm533, %v520, %v522
  %v538 = vsel %vm533, %v522, %v524
  %v539 = vsel %vm533, %v524, %v526
  %v540 = vsel %vm533, %v526, %v528
  %v541 = vsel %vm533, %v528, %v530
  %v542 = vsel %vm533, %v530, %v532
  %v552 = vadd.f32 %v477, %v534
  %v553 = vadd.f32 %v478, %v535
  %v554 = vadd.f32 %v479, %v536
  %v555 = vadd.f32 %v480, %v537
  %v556 = vadd.f32 %v481, %v538
  %v557 = vadd.f32 %v482, %v539
  %v558 = vadd.f32 %v483, %v540
  %v559 = vadd.f32 %v484, %v541
  %v560 = vadd.f32 %v485, %v542
  %s561 = scalar_lea.vmem %s1, 14
  %v562 = vld [vmem:[%s561] sm:$0x3]
  %564 = vset.pattern.permute.xlu0 0
  %565 = vperm.xlu0 %564, %v562
  %v566 = vpop.permute.xlu0 %565
  %v568 = vmul.f32 %v566, %v98
  %v569 = vmul.f32 %v566, %v99
  %v570 = vmul.f32 %v566, %v100
  %v571 = vmul.f32 %v566, %v101
  %v572 = vmul.f32 %v566, %v102
  %v573 = vmul.f32 %v566, %v103
  %v574 = vmul.f32 %v566, %v104
  %v575 = vmul.f32 %v566, %v105
  %v576 = vmul.f32 %v566, %v106
  %v577 = vmul.f32 %v566, %v107
  %588 = vrot.lane.b32.xlu0 %v568, 79
  %v589 = vpop.permute.xlu0 %588
  %590 = vrot.lane.b32.xlu0 %v569, 79
  %v591 = vpop.permute.xlu0 %590
  %592 = vrot.lane.b32.xlu0 %v570, 79
  %v593 = vpop.permute.xlu0 %592
  %594 = vrot.lane.b32.xlu0 %v571, 79
  %v595 = vpop.permute.xlu0 %594
  %596 = vrot.lane.b32.xlu0 %v572, 79
  %v597 = vpop.permute.xlu0 %596
  %598 = vrot.lane.b32.xlu0 %v573, 79
  %v599 = vpop.permute.xlu0 %598
  %600 = vrot.lane.b32.xlu0 %v574, 79
  %v601 = vpop.permute.xlu0 %600
  %602 = vrot.lane.b32.xlu0 %v575, 79
  %v603 = vpop.permute.xlu0 %602
  %604 = vrot.lane.b32.xlu0 %v576, 79
  %v605 = vpop.permute.xlu0 %604
  %606 = vrot.lane.b32.xlu0 %v577, 79
  %v607 = vpop.permute.xlu0 %606
  %vm608 = vcmask 646144
  %v609 = vsel %vm608, %v589, %v591
  %v610 = vsel %vm608, %v591, %v593
  %v611 = vsel %vm608, %v593, %v595
  %v612 = vsel %vm608, %v595, %v597
  %v613 = vsel %vm608, %v597, %v599
  %v614 = vsel %vm608, %v599, %v601
  %v615 = vsel %vm608, %v601, %v603
  %v616 = vsel %vm608, %v603, %v605
  %v617 = vsel %vm608, %v605, %v607
  %v627 = vadd.f32 %v552, %v609
  %v628 = vadd.f32 %v553, %v610
  %v629 = vadd.f32 %v554, %v611
  %v630 = vadd.f32 %v555, %v612
  %v631 = vadd.f32 %v556, %v613
  %v632 = vadd.f32 %v557, %v614
  %v633 = vadd.f32 %v558, %v615
  %v634 = vadd.f32 %v559, %v616
  %v635 = vadd.f32 %v560, %v617
  %s636 = scalar_lea.vmem %s1, 16
  %v637 = vld [vmem:[%s636] sm:$0x3]
  %639 = vset.pattern.permute.xlu0 0
  %640 = vperm.xlu0 %639, %v637
  %v641 = vpop.permute.xlu0 %640
  %v643 = vmul.f32 %v641, %v98
  %v644 = vmul.f32 %v641, %v99
  %v645 = vmul.f32 %v641, %v100
  %v646 = vmul.f32 %v641, %v101
  %v647 = vmul.f32 %v641, %v102
  %v648 = vmul.f32 %v641, %v103
  %v649 = vmul.f32 %v641, %v104
  %v650 = vmul.f32 %v641, %v105
  %v651 = vmul.f32 %v641, %v106
  %v652 = vmul.f32 %v641, %v107
  %663 = vrot.lane.b32.xlu0 %v643, 78
  %v664 = vpop.permute.xlu0 %663
  %665 = vrot.lane.b32.xlu0 %v644, 78
  %v666 = vpop.permute.xlu0 %665
  %667 = vrot.lane.b32.xlu0 %v645, 78
  %v668 = vpop.permute.xlu0 %667
  %669 = vrot.lane.b32.xlu0 %v646, 78
  %v670 = vpop.permute.xlu0 %669
  %671 = vrot.lane.b32.xlu0 %v647, 78
  %v672 = vpop.permute.xlu0 %671
  %673 = vrot.lane.b32.xlu0 %v648, 78
  %v674 = vpop.permute.xlu0 %673
  %675 = vrot.lane.b32.xlu0 %v649, 78
  %v676 = vpop.permute.xlu0 %675
  %677 = vrot.lane.b32.xlu0 %v650, 78
  %v678 = vpop.permute.xlu0 %677
  %679 = vrot.lane.b32.xlu0 %v651, 78
  %v680 = vpop.permute.xlu0 %679
  %681 = vrot.lane.b32.xlu0 %v652, 78
  %v682 = vpop.permute.xlu0 %681
  %vm683 = vcmask 637952
  %v684 = vsel %vm683, %v664, %v666
  %v685 = vsel %vm683, %v666, %v668
  %v686 = vsel %vm683, %v668, %v670
  %v687 = vsel %vm683, %v670, %v672
  %v688 = vsel %vm683, %v672, %v674
  %v689 = vsel %vm683, %v674, %v676
  %v690 = vsel %vm683, %v676, %v678
  %v691 = vsel %vm683, %v678, %v680
  %v692 = vsel %vm683, %v680, %v682
  %v702 = vadd.f32 %v627, %v684
  %v703 = vadd.f32 %v628, %v685
  %v704 = vadd.f32 %v629, %v686
  %v705 = vadd.f32 %v630, %v687
  %v706 = vadd.f32 %v631, %v688
  %v707 = vadd.f32 %v632, %v689
  %v708 = vadd.f32 %v633, %v690
  %v709 = vadd.f32 %v634, %v691
  %v710 = vadd.f32 %v635, %v692
  %v711 = vld [vmem:[%s2] sm:$0x3]
  %713 = vset.pattern.permute.xlu0 0
  %714 = vperm.xlu0 %713, %v711
  %v715 = vpop.permute.xlu0 %714
  %v717 = vadd.f32 %v702, %v715
  %v718 = vadd.f32 %v703, %v715
  %v719 = vadd.f32 %v704, %v715
  %v720 = vadd.f32 %v705, %v715
  %v721 = vadd.f32 %v706, %v715
  %v722 = vadd.f32 %v707, %v715
  %v723 = vadd.f32 %v708, %v715
  %v724 = vadd.f32 %v709, %v715
  %v725 = vadd.f32 %v710, %v715
  %v726 = vld [vmem:[%s9] ss:$4 sm:$0xff]
  %s727 = scalar_lea.vmem %s9, 32
  %v728 = vld [vmem:[%s727] ss:$4 sm:$0x1]
  %v731 = vperm.slane %v726, 0
  %v732 = vperm.slane %v726, 1
  %v733 = vperm.slane %v726, 2
  %v734 = vperm.slane %v726, 3
  %v735 = vperm.slane %v726, 4
  %v736 = vperm.slane %v726, 5
  %v737 = vperm.slane %v726, 6
  %v738 = vperm.slane %v726, 7
  %v739 = vperm.slane %v728, 0
  %v749 = vmul.f32 %v717, %v731
  %v750 = vmul.f32 %v718, %v732
  %v751 = vmul.f32 %v719, %v733
  %v752 = vmul.f32 %v720, %v734
  %v753 = vmul.f32 %v721, %v735
  %v754 = vmul.f32 %v722, %v736
  %v755 = vmul.f32 %v723, %v737
  %v756 = vmul.f32 %v724, %v738
  %v757 = vmul.f32 %v725, %v739
  %v766 = vrot.slane %v750, 6
  %v767 = vrot.slane %v751, 4
  %v768 = vrot.slane %v752, 2
  %v769 = vrot.slane %v754, 6
  %v770 = vrot.slane %v755, 4
  %v771 = vrot.slane %v756, 2
  %vm772 = vcmask 1041408
  %v773 = vsel %vm772, %v749, %v766
  %vm774 = vcmask 1045508
  %v775 = vsel %vm774, %v767, %v768
  %vm776 = vcmask 1043456
  %v777 = vsel %vm776, %v773, %v775
  %v778 = vsel %vm772, %v753, %v769
  %v779 = vsel %vm774, %v770, %v771
  %v780 = vsel %vm776, %v778, %v779
  %783 = vst [vmem:[#allocation2] sm:$0xff] %v777
  %784 = vst [vmem:[#allocation2 + $0x8] sm:$0xff] %v780
  %785 = vst [vmem:[#allocation2 + $0x10] sm:$0x3] %v757
  %v786 = vld [vmem:[#allocation2] sm:$0xff]
  %v787 = vld [vmem:[#allocation2 + $0x8] sm:$0xff]
  %v788 = vld [vmem:[#allocation2 + $0x10] sm:$0x3]
  %v789 = vld [vmem:[%s3] sm:$0xff]
  %v790 = vld [vmem:[%s3 + $0x8] sm:$0xf]
  %v791 = vld [vmem:[#allocation2] sm:$0xff]
  %v792 = vld [vmem:[#allocation2 + $0x8] sm:$0xff]
  %v793 = vld [vmem:[#allocation2 + $0x10] sm:$0xf]
  %s794 = scalar_lea.vmem %s3, 16
  %v795 = vld [vmem:[%s794] sm:$0xff]
  %v796 = vld [vmem:[%s794 + $0x8] sm:$0xf]
  %800 = vst [vmem:[#allocation1] ss:$4 sm:$0xff] %v791
  %s801 = scalar_lea.vmem [#allocation1], 32
  %802 = vst [vmem:[%s801] ss:$4 sm:$0xff] %v792
  %v803 = vld.sshfl [vmem:[#allocation1] sm:$0xff pattern:$0x73625140]
  %v804 = vld.sshfl [vmem:[#allocation1 + $0x8] sm:$0xff pattern:$0x73625140]
  %v805 = vld.sshfl [vmem:[#allocation1 + $0x10] sm:$0xff pattern:$0x73625140]
  %v806 = vld.sshfl [vmem:[#allocation1 + $0x18] sm:$0xff pattern:$0x73625140]
  %v807 = vld.sshfl [vmem:[#allocation1 + $0x20] sm:$0xff pattern:$0x73625140]
  %v808 = vld.sshfl [vmem:[#allocation1 + $0x28] sm:$0xff pattern:$0x73625140]
  %v809 = vld.sshfl [vmem:[#allocation1 + $0x30] sm:$0xff pattern:$0x73625140]
  %v810 = vld.sshfl [vmem:[#allocation1 + $0x38] sm:$0xff pattern:$0x73625140]
  %811 = vst [vmem:[#allocation1] ss:$4 sm:$0xff] %v793
  %v812 = vld.sshfl [vmem:[#allocation1] sm:$0xff pattern:$0x73625140]
  %v813 = vld.sshfl [vmem:[#allocation1 + $0x8] sm:$0xff pattern:$0x73625140]
  %814 = vrot.lane.b32.xlu0 %v803, 127
  %v815 = vpop.permute.xlu0 %814
  %816 = vrot.lane.b32.xlu0 %v804, 127
  %v817 = vpop.permute.xlu0 %816
  %818 = vrot.lane.b32.xlu0 %v805, 127
  %v819 = vpop.permute.xlu0 %818
  %820 = vrot.lane.b32.xlu0 %v806, 127
  %v821 = vpop.permute.xlu0 %820
  %822 = vrot.lane.b32.xlu0 %v807, 127
  %v823 = vpop.permute.xlu0 %822
  %824 = vrot.lane.b32.xlu0 %v808, 127
  %v825 = vpop.permute.xlu0 %824
  %826 = vrot.lane.b32.xlu0 %v809, 127
  %v827 = vpop.permute.xlu0 %826
  %828 = vrot.lane.b32.xlu0 %v810, 127
  %v829 = vpop.permute.xlu0 %828
  %830 = vrot.lane.b32.xlu0 %v812, 127
  %v831 = vpop.permute.xlu0 %830
  %832 = vrot.lane.b32.xlu0 %v813, 127
  %v833 = vpop.permute.xlu0 %832
  %v834 = vsel %vm158, %v815, %v817
  %v835 = vsel %vm158, %v817, %v819
  %v836 = vsel %vm158, %v819, %v821
  %v837 = vsel %vm158, %v821, %v823
  %v838 = vsel %vm158, %v823, %v825
  %v839 = vsel %vm158, %v825, %v827
  %v840 = vsel %vm158, %v827, %v829
  %v841 = vsel %vm158, %v829, %v831
  %v842 = vsel %vm158, %v831, %v833
  %vm843 = vcmask 15360
  %v845 = vsel %vm843, %v795, 0
  %v848 = vsel %vm843, %v796, 0
  %v850 = vsel %vm772, %v834, 0
  %v852 = vsel %vm772, %v835, 0
  %v854 = vsel %vm772, %v836, 0
  %v856 = vsel %vm772, %v837, 0
  %v858 = vsel %vm772, %v838, 0
  %v860 = vsel %vm772, %v839, 0
  %v862 = vsel %vm772, %v840, 0
  %v864 = vsel %vm772, %v841, 0
  %v866 = vsel %vm772, %v842, 0
  %868 = vmatpush.msra.mxu0 0.0
  %869 = vmatpush.msra.mxu0 0.0
  %870 = vmatpush.msra.mxu0 0.0
  %871 = vmatpush.msra.mxu0 0.0
  %872 = vmatpush.msra.mxu0 0.0
  %873 = vmatpush.msra.mxu0 0.0
  %874 = vmatpush.msra.mxu0 0.0
  %875 = vmatpush.msra.mxu0 0.0
  %876 = vmatpush.msra.mxu0 0.0
  %877 = vmatpush.msra.mxu0 0.0
  %878 = vmatpush.msra.mxu0 0.0
  %879 = vmatpush.msra.mxu0 0.0
  %880 = vmatpush.msra.mxu0 0.0
  %881 = vmatpush.msra.mxu0 0.0
  %882 = vmatpush.msra.mxu0 0.0
  %883 = vmatpush.msra.mxu0 %v850
  %884 = vmatmul.f32.gmra.mxu0 %v845
  %v885 = vpop.f32.mrf.mxu0
  %v886 = vadd.f32 0.0, %v885
  %887 = vmatmul.f32.gmra.mxu0 %v848
  %v888 = vpop.f32.mrf.mxu0
  %v889 = vadd.f32 0.0, %v888
  %890 = vdwg.mxu0
  %891 = vmatpush.msra.mxu0 0.0
  %892 = vmatpush.msra.mxu0 0.0
  %893 = vmatpush.msra.mxu0 0.0
  %894 = vmatpush.msra.mxu0 0.0
  %895 = vmatpush.msra.mxu0 0.0
  %896 = vmatpush.msra.mxu0 0.0
  %897 = vmatpush.msra.mxu0 0.0
  %898 = vmatpush.msra.mxu0 0.0
  %899 = vmatpush.msra.mxu0 0.0
  %900 = vmatpush.msra.mxu0 0.0
  %901 = vmatpush.msra.mxu0 0.0
  %902 = vmatpush.msra.mxu0 0.0
  %903 = vmatpush.msra.mxu0 0.0
  %904 = vmatpush.msra.mxu0 0.0
  %905 = vmatpush.msra.mxu0 0.0
  %906 = vmatpush.msra.mxu0 %v852
  %907 = vmatmul.f32.gmra.mxu0 %v845
  %v908 = vpop.f32.mrf.mxu0
  %v909 = vadd.f32 0.0, %v908
  %910 = vmatmul.f32.gmra.mxu0 %v848
  %v911 = vpop.f32.mrf.mxu0
  %v912 = vadd.f32 0.0, %v911
  %913 = vdwg.mxu0
  %914 = vmatpush.msra.mxu0 0.0
  %915 = vmatpush.msra.mxu0 0.0
  %916 = vmatpush.msra.mxu0 0.0
  %917 = vmatpush.msra.mxu0 0.0
  %918 = vmatpush.msra.mxu0 0.0
  %919 = vmatpush.msra.mxu0 0.0
  %920 = vmatpush.msra.mxu0 0.0
  %921 = vmatpush.msra.mxu0 0.0
  %922 = vmatpush.msra.mxu0 0.0
  %923 = vmatpush.msra.mxu0 0.0
  %924 = vmatpush.msra.mxu0 0.0
  %925 = vmatpush.msra.mxu0 0.0
  %926 = vmatpush.msra.mxu0 0.0
  %927 = vmatpush.msra.mxu0 0.0
  %928 = vmatpush.msra.mxu0 0.0
  %929 = vmatpush.msra.mxu0 %v854
  %930 = vmatmul.f32.gmra.mxu0 %v845
  %v931 = vpop.f32.mrf.mxu0
  %v932 = vadd.f32 0.0, %v931
  %933 = vmatmul.f32.gmra.mxu0 %v848
  %v934 = vpop.f32.mrf.mxu0
  %v935 = vadd.f32 0.0, %v934
  %936 = vdwg.mxu0
  %937 = vmatpush.msra.mxu0 0.0
  %938 = vmatpush.msra.mxu0 0.0
  %939 = vmatpush.msra.mxu0 0.0
  %940 = vmatpush.msra.mxu0 0.0
  %941 = vmatpush.msra.mxu0 0.0
  %942 = vmatpush.msra.mxu0 0.0
  %943 = vmatpush.msra.mxu0 0.0
  %944 = vmatpush.msra.mxu0 0.0
  %945 = vmatpush.msra.mxu0 0.0
  %946 = vmatpush.msra.mxu0 0.0
  %947 = vmatpush.msra.mxu0 0.0
  %948 = vmatpush.msra.mxu0 0.0
  %949 = vmatpush.msra.mxu0 0.0
  %950 = vmatpush.msra.mxu0 0.0
  %951 = vmatpush.msra.mxu0 0.0
  %952 = vmatpush.msra.mxu0 %v856
  %953 = vmatmul.f32.gmra.mxu0 %v845
  %v954 = vpop.f32.mrf.mxu0
  %v955 = vadd.f32 0.0, %v954
  %956 = vmatmul.f32.gmra.mxu0 %v848
  %v957 = vpop.f32.mrf.mxu0
  %v958 = vadd.f32 0.0, %v957
  %959 = vdwg.mxu0
  %960 = vmatpush.msra.mxu0 0.0
  %961 = vmatpush.msra.mxu0 0.0
  %962 = vmatpush.msra.mxu0 0.0
  %963 = vmatpush.msra.mxu0 0.0
  %964 = vmatpush.msra.mxu0 0.0
  %965 = vmatpush.msra.mxu0 0.0
  %966 = vmatpush.msra.mxu0 0.0
  %967 = vmatpush.msra.mxu0 0.0
  %968 = vmatpush.msra.mxu0 0.0
  %969 = vmatpush.msra.mxu0 0.0
  %970 = vmatpush.msra.mxu0 0.0
  %971 = vmatpush.msra.mxu0 0.0
  %972 = vmatpush.msra.mxu0 0.0
  %973 = vmatpush.msra.mxu0 0.0
  %974 = vmatpush.msra.mxu0 0.0
  %975 = vmatpush.msra.mxu0 %v858
  %976 = vmatmul.f32.gmra.mxu0 %v845
  %v977 = vpop.f32.mrf.mxu0
  %v978 = vadd.f32 0.0, %v977
  %979 = vmatmul.f32.gmra.mxu0 %v848
  %v980 = vpop.f32.mrf.mxu0
  %v981 = vadd.f32 0.0, %v980
  %982 = vdwg.mxu0
  %983 = vmatpush.msra.mxu0 0.0
  %984 = vmatpush.msra.mxu0 0.0
  %985 = vmatpush.msra.mxu0 0.0
  %986 = vmatpush.msra.mxu0 0.0
  %987 = vmatpush.msra.mxu0 0.0
  %988 = vmatpush.msra.mxu0 0.0
  %989 = vmatpush.msra.mxu0 0.0
  %990 = vmatpush.msra.mxu0 0.0
  %991 = vmatpush.msra.mxu0 0.0
  %992 = vmatpush.msra.mxu0 0.0
  %993 = vmatpush.msra.mxu0 0.0
  %994 = vmatpush.msra.mxu0 0.0
  %995 = vmatpush.msra.mxu0 0.0
  %996 = vmatpush.msra.mxu0 0.0
  %997 = vmatpush.msra.mxu0 0.0
  %998 = vmatpush.msra.mxu0 %v860
  %999 = vmatmul.f32.gmra.mxu0 %v845
  %v1000 = vpop.f32.mrf.mxu0
  %v1001 = vadd.f32 0.0, %v1000
  %1002 = vmatmul.f32.gmra.mxu0 %v848
  %v1003 = vpop.f32.mrf.mxu0
  %v1004 = vadd.f32 0.0, %v1003
  %1005 = vdwg.mxu0
  %1006 = vmatpush.msra.mxu0 0.0
  %1007 = vmatpush.msra.mxu0 0.0
  %1008 = vmatpush.msra.mxu0 0.0
  %1009 = vmatpush.msra.mxu0 0.0
  %1010 = vmatpush.msra.mxu0 0.0
  %1011 = vmatpush.msra.mxu0 0.0
  %1012 = vmatpush.msra.mxu0 0.0
  %1013 = vmatpush.msra.mxu0 0.0
  %1014 = vmatpush.msra.mxu0 0.0
  %1015 = vmatpush.msra.mxu0 0.0
  %1016 = vmatpush.msra.mxu0 0.0
  %1017 = vmatpush.msra.mxu0 0.0
  %1018 = vmatpush.msra.mxu0 0.0
  %1019 = vmatpush.msra.mxu0 0.0
  %1020 = vmatpush.msra.mxu0 0.0
  %1021 = vmatpush.msra.mxu0 %v862
  %1022 = vmatmul.f32.gmra.mxu0 %v845
  %v1023 = vpop.f32.mrf.mxu0
  %v1024 = vadd.f32 0.0, %v1023
  %1025 = vmatmul.f32.gmra.mxu0 %v848
  %v1026 = vpop.f32.mrf.mxu0
  %v1027 = vadd.f32 0.0, %v1026
  %1028 = vdwg.mxu0
  %1029 = vmatpush.msra.mxu0 0.0
  %1030 = vmatpush.msra.mxu0 0.0
  %1031 = vmatpush.msra.mxu0 0.0
  %1032 = vmatpush.msra.mxu0 0.0
  %1033 = vmatpush.msra.mxu0 0.0
  %1034 = vmatpush.msra.mxu0 0.0
  %1035 = vmatpush.msra.mxu0 0.0
  %1036 = vmatpush.msra.mxu0 0.0
  %1037 = vmatpush.msra.mxu0 0.0
  %1038 = vmatpush.msra.mxu0 0.0
  %1039 = vmatpush.msra.mxu0 0.0
  %1040 = vmatpush.msra.mxu0 0.0
  %1041 = vmatpush.msra.mxu0 0.0
  %1042 = vmatpush.msra.mxu0 0.0
  %1043 = vmatpush.msra.mxu0 0.0
  %1044 = vmatpush.msra.mxu0 %v864
  %1045 = vmatmul.f32.gmra.mxu0 %v845
  %v1046 = vpop.f32.mrf.mxu0
  %v1047 = vadd.f32 0.0, %v1046
  %1048 = vmatmul.f32.gmra.mxu0 %v848
  %v1049 = vpop.f32.mrf.mxu0
  %v1050 = vadd.f32 0.0, %v1049
  %1051 = vdwg.mxu0
  %1052 = vmatpush.msra.mxu0 0.0
  %1053 = vmatpush.msra.mxu0 0.0
  %1054 = vmatpush.msra.mxu0 0.0
  %1055 = vmatpush.msra.mxu0 0.0
  %1056 = vmatpush.msra.mxu0 0.0
  %1057 = vmatpush.msra.mxu0 0.0
  %1058 = vmatpush.msra.mxu0 0.0
  %1059 = vmatpush.msra.mxu0 0.0
  %1060 = vmatpush.msra.mxu0 0.0
  %1061 = vmatpush.msra.mxu0 0.0
  %1062 = vmatpush.msra.mxu0 0.0
  %1063 = vmatpush.msra.mxu0 0.0
  %1064 = vmatpush.msra.mxu0 0.0
  %1065 = vmatpush.msra.mxu0 0.0
  %1066 = vmatpush.msra.mxu0 0.0
  %1067 = vmatpush.msra.mxu0 %v866
  %1068 = vmatmul.f32.gmra.mxu0 %v845
  %v1069 = vpop.f32.mrf.mxu0
  %v1070 = vadd.f32 0.0, %v1069
  %1071 = vmatmul.f32.gmra.mxu0 %v848
  %v1072 = vpop.f32.mrf.mxu0
  %v1073 = vadd.f32 0.0, %v1072
  %1074 = vdwg.mxu0
  %1078 = vst [vmem:[#allocation1] ss:$4 sm:$0xff] %v786
  %s1079 = scalar_lea.vmem [#allocation1], 32
  %1080 = vst [vmem:[%s1079] ss:$4 sm:$0xff] %v787
  %v1081 = vld.sshfl [vmem:[#allocation1] sm:$0xff pattern:$0x73625140]
  %v1082 = vld.sshfl [vmem:[#allocation1 + $0x8] sm:$0xff pattern:$0x73625140]
  %v1083 = vld.sshfl [vmem:[#allocation1 + $0x10] sm:$0xff pattern:$0x73625140]
  %v1084 = vld.sshfl [vmem:[#allocation1 + $0x18] sm:$0xff pattern:$0x73625140]
  %v1085 = vld.sshfl [vmem:[#allocation1 + $0x20] sm:$0xff pattern:$0x73625140]
  %v1086 = vld.sshfl [vmem:[#allocation1 + $0x28] sm:$0xff pattern:$0x73625140]
  %v1087 = vld.sshfl [vmem:[#allocation1 + $0x30] sm:$0xff pattern:$0x73625140]
  %v1088 = vld.sshfl [vmem:[#allocation1 + $0x38] sm:$0xff pattern:$0x73625140]
  %1089 = vst [vmem:[#allocation1] ss:$4 sm:$0xff] %v788
  %v1090 = vld.sshfl [vmem:[#allocation1] sm:$0xff pattern:$0x73625140]
  %v1092 = vsel %vm843, %v789, 0
  %v1095 = vsel %vm843, %v790, 0
  %v1097 = vsel %vm772, %v1081, 0
  %v1099 = vsel %vm772, %v1082, 0
  %v1101 = vsel %vm772, %v1083, 0
  %v1103 = vsel %vm772, %v1084, 0
  %v1105 = vsel %vm772, %v1085, 0
  %v1107 = vsel %vm772, %v1086, 0
  %v1109 = vsel %vm772, %v1087, 0
  %v1111 = vsel %vm772, %v1088, 0
  %v1113 = vsel %vm772, %v1090, 0
  %1115 = vmatpush.msra.mxu0 0.0
  %1116 = vmatpush.msra.mxu0 0.0
  %1117 = vmatpush.msra.mxu0 0.0
  %1118 = vmatpush.msra.mxu0 0.0
  %1119 = vmatpush.msra.mxu0 0.0
  %1120 = vmatpush.msra.mxu0 0.0
  %1121 = vmatpush.msra.mxu0 0.0
  %1122 = vmatpush.msra.mxu0 0.0
  %1123 = vmatpush.msra.mxu0 0.0
  %1124 = vmatpush.msra.mxu0 0.0
  %1125 = vmatpush.msra.mxu0 0.0
  %1126 = vmatpush.msra.mxu0 0.0
  %1127 = vmatpush.msra.mxu0 0.0
  %1128 = vmatpush.msra.mxu0 0.0
  %1129 = vmatpush.msra.mxu0 0.0
  %1130 = vmatpush.msra.mxu0 %v1097
  %1131 = vmatmul.f32.gmra.mxu0 %v1092
  %v1132 = vpop.f32.mrf.mxu0
  %v1133 = vadd.f32 %v886, %v1132
  %1134 = vmatmul.f32.gmra.mxu0 %v1095
  %v1135 = vpop.f32.mrf.mxu0
  %v1136 = vadd.f32 %v889, %v1135
  %1137 = vdwg.mxu0
  %1138 = vmatpush.msra.mxu0 0.0
  %1139 = vmatpush.msra.mxu0 0.0
  %1140 = vmatpush.msra.mxu0 0.0
  %1141 = vmatpush.msra.mxu0 0.0
  %1142 = vmatpush.msra.mxu0 0.0
  %1143 = vmatpush.msra.mxu0 0.0
  %1144 = vmatpush.msra.mxu0 0.0
  %1145 = vmatpush.msra.mxu0 0.0
  %1146 = vmatpush.msra.mxu0 0.0
  %1147 = vmatpush.msra.mxu0 0.0
  %1148 = vmatpush.msra.mxu0 0.0
  %1149 = vmatpush.msra.mxu0 0.0
  %1150 = vmatpush.msra.mxu0 0.0
  %1151 = vmatpush.msra.mxu0 0.0
  %1152 = vmatpush.msra.mxu0 0.0
  %1153 = vmatpush.msra.mxu0 %v1099
  %1154 = vmatmul.f32.gmra.mxu0 %v1092
  %v1155 = vpop.f32.mrf.mxu0
  %v1156 = vadd.f32 %v909, %v1155
  %1157 = vmatmul.f32.gmra.mxu0 %v1095
  %v1158 = vpop.f32.mrf.mxu0
  %v1159 = vadd.f32 %v912, %v1158
  %1160 = vdwg.mxu0
  %1161 = vmatpush.msra.mxu0 0.0
  %1162 = vmatpush.msra.mxu0 0.0
  %1163 = vmatpush.msra.mxu0 0.0
  %1164 = vmatpush.msra.mxu0 0.0
  %1165 = vmatpush.msra.mxu0 0.0
  %1166 = vmatpush.msra.mxu0 0.0
  %1167 = vmatpush.msra.mxu0 0.0
  %1168 = vmatpush.msra.mxu0 0.0
  %1169 = vmatpush.msra.mxu0 0.0
  %1170 = vmatpush.msra.mxu0 0.0
  %1171 = vmatpush.msra.mxu0 0.0
  %1172 = vmatpush.msra.mxu0 0.0
  %1173 = vmatpush.msra.mxu0 0.0
  %1174 = vmatpush.msra.mxu0 0.0
  %1175 = vmatpush.msra.mxu0 0.0
  %1176 = vmatpush.msra.mxu0 %v1101
  %1177 = vmatmul.f32.gmra.mxu0 %v1092
  %v1178 = vpop.f32.mrf.mxu0
  %v1179 = vadd.f32 %v932, %v1178
  %1180 = vmatmul.f32.gmra.mxu0 %v1095
  %v1181 = vpop.f32.mrf.mxu0
  %v1182 = vadd.f32 %v935, %v1181
  %1183 = vdwg.mxu0
  %1184 = vmatpush.msra.mxu0 0.0
  %1185 = vmatpush.msra.mxu0 0.0
  %1186 = vmatpush.msra.mxu0 0.0
  %1187 = vmatpush.msra.mxu0 0.0
  %1188 = vmatpush.msra.mxu0 0.0
  %1189 = vmatpush.msra.mxu0 0.0
  %1190 = vmatpush.msra.mxu0 0.0
  %1191 = vmatpush.msra.mxu0 0.0
  %1192 = vmatpush.msra.mxu0 0.0
  %1193 = vmatpush.msra.mxu0 0.0
  %1194 = vmatpush.msra.mxu0 0.0
  %1195 = vmatpush.msra.mxu0 0.0
  %1196 = vmatpush.msra.mxu0 0.0
  %1197 = vmatpush.msra.mxu0 0.0
  %1198 = vmatpush.msra.mxu0 0.0
  %1199 = vmatpush.msra.mxu0 %v1103
  %1200 = vmatmul.f32.gmra.mxu0 %v1092
  %v1201 = vpop.f32.mrf.mxu0
  %v1202 = vadd.f32 %v955, %v1201
  %1203 = vmatmul.f32.gmra.mxu0 %v1095
  %v1204 = vpop.f32.mrf.mxu0
  %v1205 = vadd.f32 %v958, %v1204
  %1206 = vdwg.mxu0
  %1207 = vmatpush.msra.mxu0 0.0
  %1208 = vmatpush.msra.mxu0 0.0
  %1209 = vmatpush.msra.mxu0 0.0
  %1210 = vmatpush.msra.mxu0 0.0
  %1211 = vmatpush.msra.mxu0 0.0
  %1212 = vmatpush.msra.mxu0 0.0
  %1213 = vmatpush.msra.mxu0 0.0
  %1214 = vmatpush.msra.mxu0 0.0
  %1215 = vmatpush.msra.mxu0 0.0
  %1216 = vmatpush.msra.mxu0 0.0
  %1217 = vmatpush.msra.mxu0 0.0
  %1218 = vmatpush.msra.mxu0 0.0
  %1219 = vmatpush.msra.mxu0 0.0
  %1220 = vmatpush.msra.mxu0 0.0
  %1221 = vmatpush.msra.mxu0 0.0
  %1222 = vmatpush.msra.mxu0 %v1105
  %1223 = vmatmul.f32.gmra.mxu0 %v1092
  %v1224 = vpop.f32.mrf.mxu0
  %v1225 = vadd.f32 %v978, %v1224
  %1226 = vmatmul.f32.gmra.mxu0 %v1095
  %v1227 = vpop.f32.mrf.mxu0
  %v1228 = vadd.f32 %v981, %v1227
  %1229 = vdwg.mxu0
  %1230 = vmatpush.msra.mxu0 0.0
  %1231 = vmatpush.msra.mxu0 0.0
  %1232 = vmatpush.msra.mxu0 0.0
  %1233 = vmatpush.msra.mxu0 0.0
  %1234 = vmatpush.msra.mxu0 0.0
  %1235 = vmatpush.msra.mxu0 0.0
  %1236 = vmatpush.msra.mxu0 0.0
  %1237 = vmatpush.msra.mxu0 0.0
  %1238 = vmatpush.msra.mxu0 0.0
  %1239 = vmatpush.msra.mxu0 0.0
  %1240 = vmatpush.msra.mxu0 0.0
  %1241 = vmatpush.msra.mxu0 0.0
  %1242 = vmatpush.msra.mxu0 0.0
  %1243 = vmatpush.msra.mxu0 0.0
  %1244 = vmatpush.msra.mxu0 0.0
  %1245 = vmatpush.msra.mxu0 %v1107
  %1246 = vmatmul.f32.gmra.mxu0 %v1092
  %v1247 = vpop.f32.mrf.mxu0
  %v1248 = vadd.f32 %v1001, %v1247
  %1249 = vmatmul.f32.gmra.mxu0 %v1095
  %v1250 = vpop.f32.mrf.mxu0
  %v1251 = vadd.f32 %v1004, %v1250
  %1252 = vdwg.mxu0
  %1253 = vmatpush.msra.mxu0 0.0
  %1254 = vmatpush.msra.mxu0 0.0
  %1255 = vmatpush.msra.mxu0 0.0
  %1256 = vmatpush.msra.mxu0 0.0
  %1257 = vmatpush.msra.mxu0 0.0
  %1258 = vmatpush.msra.mxu0 0.0
  %1259 = vmatpush.msra.mxu0 0.0
  %1260 = vmatpush.msra.mxu0 0.0
  %1261 = vmatpush.msra.mxu0 0.0
  %1262 = vmatpush.msra.mxu0 0.0
  %1263 = vmatpush.msra.mxu0 0.0
  %1264 = vmatpush.msra.mxu0 0.0
  %1265 = vmatpush.msra.mxu0 0.0
  %1266 = vmatpush.msra.mxu0 0.0
  %1267 = vmatpush.msra.mxu0 0.0
  %1268 = vmatpush.msra.mxu0 %v1109
  %1269 = vmatmul.f32.gmra.mxu0 %v1092
  %v1270 = vpop.f32.mrf.mxu0
  %v1271 = vadd.f32 %v1024, %v1270
  %1272 = vmatmul.f32.gmra.mxu0 %v1095
  %v1273 = vpop.f32.mrf.mxu0
  %v1274 = vadd.f32 %v1027, %v1273
  %1275 = vdwg.mxu0
  %1276 = vmatpush.msra.mxu0 0.0
  %1277 = vmatpush.msra.mxu0 0.0
  %1278 = vmatpush.msra.mxu0 0.0
  %1279 = vmatpush.msra.mxu0 0.0
  %1280 = vmatpush.msra.mxu0 0.0
  %1281 = vmatpush.msra.mxu0 0.0
  %1282 = vmatpush.msra.mxu0 0.0
  %1283 = vmatpush.msra.mxu0 0.0
  %1284 = vmatpush.msra.mxu0 0.0
  %1285 = vmatpush.msra.mxu0 0.0
  %1286 = vmatpush.msra.mxu0 0.0
  %1287 = vmatpush.msra.mxu0 0.0
  %1288 = vmatpush.msra.mxu0 0.0
  %1289 = vmatpush.msra.mxu0 0.0
  %1290 = vmatpush.msra.mxu0 0.0
  %1291 = vmatpush.msra.mxu0 %v1111
  %1292 = vmatmul.f32.gmra.mxu0 %v1092
  %v1293 = vpop.f32.mrf.mxu0
  %v1294 = vadd.f32 %v1047, %v1293
  %1295 = vmatmul.f32.gmra.mxu0 %v1095
  %v1296 = vpop.f32.mrf.mxu0
  %v1297 = vadd.f32 %v1050, %v1296
  %1298 = vdwg.mxu0
  %1299 = vmatpush.msra.mxu0 0.0
  %1300 = vmatpush.msra.mxu0 0.0
  %1301 = vmatpush.msra.mxu0 0.0
  %1302 = vmatpush.msra.mxu0 0.0
  %1303 = vmatpush.msra.mxu0 0.0
  %1304 = vmatpush.msra.mxu0 0.0
  %1305 = vmatpush.msra.mxu0 0.0
  %1306 = vmatpush.msra.mxu0 0.0
  %1307 = vmatpush.msra.mxu0 0.0
  %1308 = vmatpush.msra.mxu0 0.0
  %1309 = vmatpush.msra.mxu0 0.0
  %1310 = vmatpush.msra.mxu0 0.0
  %1311 = vmatpush.msra.mxu0 0.0
  %1312 = vmatpush.msra.mxu0 0.0
  %1313 = vmatpush.msra.mxu0 0.0
  %1314 = vmatpush.msra.mxu0 %v1113
  %1315 = vmatmul.f32.gmra.mxu0 %v1092
  %v1316 = vpop.f32.mrf.mxu0
  %v1317 = vadd.f32 %v1070, %v1316
  %1318 = vmatmul.f32.gmra.mxu0 %v1095
  %v1319 = vpop.f32.mrf.mxu0
  %v1320 = vadd.f32 %v1073, %v1319
  %1321 = vdwg.mxu0
  %v1322 = vld [vmem:[#allocation2] sm:$0xff]
  %v1323 = vld [vmem:[#allocation2 + $0x8] sm:$0xff]
  %v1324 = vld [vmem:[#allocation2 + $0x10] sm:$0xf]
  %s1325 = scalar_lea.vmem %s3, 32
  %v1326 = vld [vmem:[%s1325] sm:$0xff]
  %v1327 = vld [vmem:[%s1325 + $0x8] sm:$0xf]
  %1331 = vst [vmem:[#allocation1] ss:$4 sm:$0xff] %v1322
  %s1332 = scalar_lea.vmem [#allocation1], 32
  %1333 = vst [vmem:[%s1332] ss:$4 sm:$0xff] %v1323
  %v1334 = vld.sshfl [vmem:[#allocation1] sm:$0xff pattern:$0x73625140]
  %v1335 = vld.sshfl [vmem:[#allocation1 + $0x8] sm:$0xff pattern:$0x73625140]
  %v1336 = vld.sshfl [vmem:[#allocation1 + $0x10] sm:$0xff pattern:$0x73625140]
  %v1337 = vld.sshfl [vmem:[#allocation1 + $0x18] sm:$0xff pattern:$0x73625140]
  %v1338 = vld.sshfl [vmem:[#allocation1 + $0x20] sm:$0xff pattern:$0x73625140]
  %v1339 = vld.sshfl [vmem:[#allocation1 + $0x28] sm:$0xff pattern:$0x73625140]
  %v1340 = vld.sshfl [vmem:[#allocation1 + $0x30] sm:$0xff pattern:$0x73625140]
  %v1341 = vld.sshfl [vmem:[#allocation1 + $0x38] sm:$0xff pattern:$0x73625140]
  %1342 = vst [vmem:[#allocation1] ss:$4 sm:$0xff] %v1324
  %v1343 = vld.sshfl [vmem:[#allocation1] sm:$0xff pattern:$0x73625140]
  %v1344 = vld.sshfl [vmem:[#allocation1 + $0x8] sm:$0xff pattern:$0x73625140]
  %1345 = vrot.lane.b32.xlu0 %v1334, 126
  %v1346 = vpop.permute.xlu0 %1345
  %1347 = vrot.lane.b32.xlu0 %v1335, 126
  %v1348 = vpop.permute.xlu0 %1347
  %1349 = vrot.lane.b32.xlu0 %v1336, 126
  %v1350 = vpop.permute.xlu0 %1349
  %1351 = vrot.lane.b32.xlu0 %v1337, 126
  %v1352 = vpop.permute.xlu0 %1351
  %1353 = vrot.lane.b32.xlu0 %v1338, 126
  %v1354 = vpop.permute.xlu0 %1353
  %1355 = vrot.lane.b32.xlu0 %v1339, 126
  %v1356 = vpop.permute.xlu0 %1355
  %1357 = vrot.lane.b32.xlu0 %v1340, 126
  %v1358 = vpop.permute.xlu0 %1357
  %1359 = vrot.lane.b32.xlu0 %v1341, 126
  %v1360 = vpop.permute.xlu0 %1359
  %1361 = vrot.lane.b32.xlu0 %v1343, 126
  %v1362 = vpop.permute.xlu0 %1361
  %1363 = vrot.lane.b32.xlu0 %v1344, 126
  %v1364 = vpop.permute.xlu0 %1363
  %v1365 = vsel %vm233, %v1346, %v1348
  %v1366 = vsel %vm233, %v1348, %v1350
  %v1367 = vsel %vm233, %v1350, %v1352
  %v1368 = vsel %vm233, %v1352, %v1354
  %v1369 = vsel %vm233, %v1354, %v1356
  %v1370 = vsel %vm233, %v1356, %v1358
  %v1371 = vsel %vm233, %v1358, %v1360
  %v1372 = vsel %vm233, %v1360, %v1362
  %v1373 = vsel %vm233, %v1362, %v1364
  %v1375 = vsel %vm843, %v1326, 0
  %v1378 = vsel %vm843, %v1327, 0
  %v1380 = vsel %vm772, %v1365, 0
  %v1382 = vsel %vm772, %v1366, 0
  %v1384 = vsel %vm772, %v1367, 0
  %v1386 = vsel %vm772, %v1368, 0
  %v1388 = vsel %vm772, %v1369, 0
  %v1390 = vsel %vm772, %v1370, 0
  %v1392 = vsel %vm772, %v1371, 0
  %v1394 = vsel %vm772, %v1372, 0
  %v1396 = vsel %vm772, %v1373, 0
  %1398 = vmatpush.msra.mxu0 0.0
  %1399 = vmatpush.msra.mxu0 0.0
  %1400 = vmatpush.msra.mxu0 0.0
  %1401 = vmatpush.msra.mxu0 0.0
  %1402 = vmatpush.msra.mxu0 0.0
  %1403 = vmatpush.msra.mxu0 0.0
  %1404 = vmatpush.msra.mxu0 0.0
  %1405 = vmatpush.msra.mxu0 0.0
  %1406 = vmatpush.msra.mxu0 0.0
  %1407 = vmatpush.msra.mxu0 0.0
  %1408 = vmatpush.msra.mxu0 0.0
  %1409 = vmatpush.msra.mxu0 0.0
  %1410 = vmatpush.msra.mxu0 0.0
  %1411 = vmatpush.msra.mxu0 0.0
  %1412 = vmatpush.msra.mxu0 0.0
  %1413 = vmatpush.msra.mxu0 %v1380
  %1414 = vmatmul.f32.gmra.mxu0 %v1375
  %v1415 = vpop.f32.mrf.mxu0
  %v1416 = vadd.f32 0.0, %v1415
  %1417 = vmatmul.f32.gmra.mxu0 %v1378
  %v1418 = vpop.f32.mrf.mxu0
  %v1419 = vadd.f32 0.0, %v1418
  %1420 = vdwg.mxu0
  %1421 = vmatpush.msra.mxu0 0.0
  %1422 = vmatpush.msra.mxu0 0.0
  %1423 = vmatpush.msra.mxu0 0.0
  %1424 = vmatpush.msra.mxu0 0.0
  %1425 = vmatpush.msra.mxu0 0.0
  %1426 = vmatpush.msra.mxu0 0.0
  %1427 = vmatpush.msra.mxu0 0.0
  %1428 = vmatpush.msra.mxu0 0.0
  %1429 = vmatpush.msra.mxu0 0.0
  %1430 = vmatpush.msra.mxu0 0.0
  %1431 = vmatpush.msra.mxu0 0.0
  %1432 = vmatpush.msra.mxu0 0.0
  %1433 = vmatpush.msra.mxu0 0.0
  %1434 = vmatpush.msra.mxu0 0.0
  %1435 = vmatpush.msra.mxu0 0.0
  %1436 = vmatpush.msra.mxu0 %v1382
  %1437 = vmatmul.f32.gmra.mxu0 %v1375
  %v1438 = vpop.f32.mrf.mxu0
  %v1439 = vadd.f32 0.0, %v1438
  %1440 = vmatmul.f32.gmra.mxu0 %v1378
  %v1441 = vpop.f32.mrf.mxu0
  %v1442 = vadd.f32 0.0, %v1441
  %1443 = vdwg.mxu0
  %1444 = vmatpush.msra.mxu0 0.0
  %1445 = vmatpush.msra.mxu0 0.0
  %1446 = vmatpush.msra.mxu0 0.0
  %1447 = vmatpush.msra.mxu0 0.0
  %1448 = vmatpush.msra.mxu0 0.0
  %1449 = vmatpush.msra.mxu0 0.0
  %1450 = vmatpush.msra.mxu0 0.0
  %1451 = vmatpush.msra.mxu0 0.0
  %1452 = vmatpush.msra.mxu0 0.0
  %1453 = vmatpush.msra.mxu0 0.0
  %1454 = vmatpush.msra.mxu0 0.0
  %1455 = vmatpush.msra.mxu0 0.0
  %1456 = vmatpush.msra.mxu0 0.0
  %1457 = vmatpush.msra.mxu0 0.0
  %1458 = vmatpush.msra.mxu0 0.0
  %1459 = vmatpush.msra.mxu0 %v1384
  %1460 = vmatmul.f32.gmra.mxu0 %v1375
  %v1461 = vpop.f32.mrf.mxu0
  %v1462 = vadd.f32 0.0, %v1461
  %1463 = vmatmul.f32.gmra.mxu0 %v1378
  %v1464 = vpop.f32.mrf.mxu0
  %v1465 = vadd.f32 0.0, %v1464
  %1466 = vdwg.mxu0
  %1467 = vmatpush.msra.mxu0 0.0
  %1468 = vmatpush.msra.mxu0 0.0
  %1469 = vmatpush.msra.mxu0 0.0
  %1470 = vmatpush.msra.mxu0 0.0
  %1471 = vmatpush.msra.mxu0 0.0
  %1472 = vmatpush.msra.mxu0 0.0
  %1473 = vmatpush.msra.mxu0 0.0
  %1474 = vmatpush.msra.mxu0 0.0
  %1475 = vmatpush.msra.mxu0 0.0
  %1476 = vmatpush.msra.mxu0 0.0
  %1477 = vmatpush.msra.mxu0 0.0
  %1478 = vmatpush.msra.mxu0 0.0
  %1479 = vmatpush.msra.mxu0 0.0
  %1480 = vmatpush.msra.mxu0 0.0
  %1481 = vmatpush.msra.mxu0 0.0
  %1482 = vmatpush.msra.mxu0 %v1386
  %1483 = vmatmul.f32.gmra.mxu0 %v1375
  %v1484 = vpop.f32.mrf.mxu0
  %v1485 = vadd.f32 0.0, %v1484
  %1486 = vmatmul.f32.gmra.mxu0 %v1378
  %v1487 = vpop.f32.mrf.mxu0
  %v1488 = vadd.f32 0.0, %v1487
  %1489 = vdwg.mxu0
  %1490 = vmatpush.msra.mxu0 0.0
  %1491 = vmatpush.msra.mxu0 0.0
  %1492 = vmatpush.msra.mxu0 0.0
  %1493 = vmatpush.msra.mxu0 0.0
  %1494 = vmatpush.msra.mxu0 0.0
  %1495 = vmatpush.msra.mxu0 0.0
  %1496 = vmatpush.msra.mxu0 0.0
  %1497 = vmatpush.msra.mxu0 0.0
  %1498 = vmatpush.msra.mxu0 0.0
  %1499 = vmatpush.msra.mxu0 0.0
  %1500 = vmatpush.msra.mxu0 0.0
  %1501 = vmatpush.msra.mxu0 0.0
  %1502 = vmatpush.msra.mxu0 0.0
  %1503 = vmatpush.msra.mxu0 0.0
  %1504 = vmatpush.msra.mxu0 0.0
  %1505 = vmatpush.msra.mxu0 %v1388
  %1506 = vmatmul.f32.gmra.mxu0 %v1375
  %v1507 = vpop.f32.mrf.mxu0
  %v1508 = vadd.f32 0.0, %v1507
  %1509 = vmatmul.f32.gmra.mxu0 %v1378
  %v1510 = vpop.f32.mrf.mxu0
  %v1511 = vadd.f32 0.0, %v1510
  %1512 = vdwg.mxu0
  %1513 = vmatpush.msra.mxu0 0.0
  %1514 = vmatpush.msra.mxu0 0.0
  %1515 = vmatpush.msra.mxu0 0.0
  %1516 = vmatpush.msra.mxu0 0.0
  %1517 = vmatpush.msra.mxu0 0.0
  %1518 = vmatpush.msra.mxu0 0.0
  %1519 = vmatpush.msra.mxu0 0.0
  %1520 = vmatpush.msra.mxu0 0.0
  %1521 = vmatpush.msra.mxu0 0.0
  %1522 = vmatpush.msra.mxu0 0.0
  %1523 = vmatpush.msra.mxu0 0.0
  %1524 = vmatpush.msra.mxu0 0.0
  %1525 = vmatpush.msra.mxu0 0.0
  %1526 = vmatpush.msra.mxu0 0.0
  %1527 = vmatpush.msra.mxu0 0.0
  %1528 = vmatpush.msra.mxu0 %v1390
  %1529 = vmatmul.f32.gmra.mxu0 %v1375
  %v1530 = vpop.f32.mrf.mxu0
  %v1531 = vadd.f32 0.0, %v1530
  %1532 = vmatmul.f32.gmra.mxu0 %v1378
  %v1533 = vpop.f32.mrf.mxu0
  %v1534 = vadd.f32 0.0, %v1533
  %1535 = vdwg.mxu0
  %1536 = vmatpush.msra.mxu0 0.0
  %1537 = vmatpush.msra.mxu0 0.0
  %1538 = vmatpush.msra.mxu0 0.0
  %1539 = vmatpush.msra.mxu0 0.0
  %1540 = vmatpush.msra.mxu0 0.0
  %1541 = vmatpush.msra.mxu0 0.0
  %1542 = vmatpush.msra.mxu0 0.0
  %1543 = vmatpush.msra.mxu0 0.0
  %1544 = vmatpush.msra.mxu0 0.0
  %1545 = vmatpush.msra.mxu0 0.0
  %1546 = vmatpush.msra.mxu0 0.0
  %1547 = vmatpush.msra.mxu0 0.0
  %1548 = vmatpush.msra.mxu0 0.0
  %1549 = vmatpush.msra.mxu0 0.0
  %1550 = vmatpush.msra.mxu0 0.0
  %1551 = vmatpush.msra.mxu0 %v1392
  %1552 = vmatmul.f32.gmra.mxu0 %v1375
  %v1553 = vpop.f32.mrf.mxu0
  %v1554 = vadd.f32 0.0, %v1553
  %1555 = vmatmul.f32.gmra.mxu0 %v1378
  %v1556 = vpop.f32.mrf.mxu0
  %v1557 = vadd.f32 0.0, %v1556
  %1558 = vdwg.mxu0
  %1559 = vmatpush.msra.mxu0 0.0
  %1560 = vmatpush.msra.mxu0 0.0
  %1561 = vmatpush.msra.mxu0 0.0
  %1562 = vmatpush.msra.mxu0 0.0
  %1563 = vmatpush.msra.mxu0 0.0
  %1564 = vmatpush.msra.mxu0 0.0
  %1565 = vmatpush.msra.mxu0 0.0
  %1566 = vmatpush.msra.mxu0 0.0
  %1567 = vmatpush.msra.mxu0 0.0
  %1568 = vmatpush.msra.mxu0 0.0
  %1569 = vmatpush.msra.mxu0 0.0
  %1570 = vmatpush.msra.mxu0 0.0
  %1571 = vmatpush.msra.mxu0 0.0
  %1572 = vmatpush.msra.mxu0 0.0
  %1573 = vmatpush.msra.mxu0 0.0
  %1574 = vmatpush.msra.mxu0 %v1394
  %1575 = vmatmul.f32.gmra.mxu0 %v1375
  %v1576 = vpop.f32.mrf.mxu0
  %v1577 = vadd.f32 0.0, %v1576
  %1578 = vmatmul.f32.gmra.mxu0 %v1378
  %v1579 = vpop.f32.mrf.mxu0
  %v1580 = vadd.f32 0.0, %v1579
  %1581 = vdwg.mxu0
  %1582 = vmatpush.msra.mxu0 0.0
  %1583 = vmatpush.msra.mxu0 0.0
  %1584 = vmatpush.msra.mxu0 0.0
  %1585 = vmatpush.msra.mxu0 0.0
  %1586 = vmatpush.msra.mxu0 0.0
  %1587 = vmatpush.msra.mxu0 0.0
  %1588 = vmatpush.msra.mxu0 0.0
  %1589 = vmatpush.msra.mxu0 0.0
  %1590 = vmatpush.msra.mxu0 0.0
  %1591 = vmatpush.msra.mxu0 0.0
  %1592 = vmatpush.msra.mxu0 0.0
  %1593 = vmatpush.msra.mxu0 0.0
  %1594 = vmatpush.msra.mxu0 0.0
  %1595 = vmatpush.msra.mxu0 0.0
  %1596 = vmatpush.msra.mxu0 0.0
  %1597 = vmatpush.msra.mxu0 %v1396
  %1598 = vmatmul.f32.gmra.mxu0 %v1375
  %v1599 = vpop.f32.mrf.mxu0
  %v1600 = vadd.f32 0.0, %v1599
  %1601 = vmatmul.f32.gmra.mxu0 %v1378
  %v1602 = vpop.f32.mrf.mxu0
  %v1603 = vadd.f32 0.0, %v1602
  %1604 = vdwg.mxu0
  %v1605 = vadd.f32 %v1133, %v1416
  %v1606 = vadd.f32 %v1156, %v1439
  %v1607 = vadd.f32 %v1179, %v1462
  %v1608 = vadd.f32 %v1202, %v1485
  %v1609 = vadd.f32 %v1225, %v1508
  %v1610 = vadd.f32 %v1248, %v1531
  %v1611 = vadd.f32 %v1271, %v1554
  %v1612 = vadd.f32 %v1294, %v1577
  %v1613 = vadd.f32 %v1317, %v1600
  %v1614 = vadd.f32 %v1136, %v1419
  %v1615 = vadd.f32 %v1159, %v1442
  %v1616 = vadd.f32 %v1182, %v1465
  %v1617 = vadd.f32 %v1205, %v1488
  %v1618 = vadd.f32 %v1228, %v1511
  %v1619 = vadd.f32 %v1251, %v1534
  %v1620 = vadd.f32 %v1274, %v1557
  %v1621 = vadd.f32 %v1297, %v1580
  %v1622 = vadd.f32 %v1320, %v1603
  %v1623 = vld [vmem:[#allocation2] sm:$0xff]
  %v1624 = vld [vmem:[#allocation2 + $0x8] sm:$0xff]
  %v1625 = vld [vmem:[#allocation2 + $0x10] sm:$0xf]
  %s1626 = scalar_lea.vmem %s3, 48
  %v1627 = vld [vmem:[%s1626] sm:$0xff]
  %v1628 = vld [vmem:[%s1626 + $0x8] sm:$0xf]
  %1632 = vst [vmem:[#allocation1] ss:$4 sm:$0xff] %v1623
  %s1633 = scalar_lea.vmem [#allocation1], 32
  %1634 = vst [vmem:[%s1633] ss:$4 sm:$0xff] %v1624
  %v1635 = vld.sshfl [vmem:[#allocation1] sm:$0xff pattern:$0x73625140]
  %v1636 = vld.sshfl [vmem:[#allocation1 + $0x8] sm:$0xff pattern:$0x73625140]
  %v1637 = vld.sshfl [vmem:[#allocation1 + $0x10] sm:$0xff pattern:$0x73625140]
  %v1638 = vld.sshfl [vmem:[#allocation1 + $0x18] sm:$0xff pattern:$0x73625140]
  %v1639 = vld.sshfl [vmem:[#allocation1 + $0x20] sm:$0xff pattern:$0x73625140]
  %v1640 = vld.sshfl [vmem:[#allocation1 + $0x28] sm:$0xff pattern:$0x73625140]
  %v1641 = vld.sshfl [vmem:[#allocation1 + $0x30] sm:$0xff pattern:$0x73625140]
  %v1642 = vld.sshfl [vmem:[#allocation1 + $0x38] sm:$0xff pattern:$0x73625140]
  %1643 = vst [vmem:[#allocation1] ss:$4 sm:$0xff] %v1625
  %v1644 = vld.sshfl [vmem:[#allocation1] sm:$0xff pattern:$0x73625140]
  %v1645 = vld.sshfl [vmem:[#allocation1 + $0x8] sm:$0xff pattern:$0x73625140]
  %1646 = vrot.lane.b32.xlu0 %v1635, 104
  %v1647 = vpop.permute.xlu0 %1646
  %1648 = vrot.lane.b32.xlu0 %v1636, 104
  %v1649 = vpop.permute.xlu0 %1648
  %1650 = vrot.lane.b32.xlu0 %v1637, 104
  %v1651 = vpop.permute.xlu0 %1650
  %1652 = vrot.lane.b32.xlu0 %v1638, 104
  %v1653 = vpop.permute.xlu0 %1652
  %1654 = vrot.lane.b32.xlu0 %v1639, 104
  %v1655 = vpop.permute.xlu0 %1654
  %1656 = vrot.lane.b32.xlu0 %v1640, 104
  %v1657 = vpop.permute.xlu0 %1656
  %1658 = vrot.lane.b32.xlu0 %v1641, 104
  %v1659 = vpop.permute.xlu0 %1658
  %1660 = vrot.lane.b32.xlu0 %v1642, 104
  %v1661 = vpop.permute.xlu0 %1660
  %1662 = vrot.lane.b32.xlu0 %v1644, 104
  %v1663 = vpop.permute.xlu0 %1662
  %1664 = vrot.lane.b32.xlu0 %v1645, 104
  %v1665 = vpop.permute.xlu0 %1664
  %v1666 = vsel %vm308, %v1647, %v1649
  %v1667 = vsel %vm308, %v1649, %v1651
  %v1668 = vsel %vm308, %v1651, %v1653
  %v1669 = vsel %vm308, %v1653, %v1655
  %v1670 = vsel %vm308, %v1655, %v1657
  %v1671 = vsel %vm308, %v1657, %v1659
  %v1672 = vsel %vm308, %v1659, %v1661
  %v1673 = vsel %vm308, %v1661, %v1663
  %v1674 = vsel %vm308, %v1663, %v1665
  %v1676 = vsel %vm843, %v1627, 0
  %v1679 = vsel %vm843, %v1628, 0
  %v1681 = vsel %vm772, %v1666, 0
  %v1683 = vsel %vm772, %v1667, 0
  %v1685 = vsel %vm772, %v1668, 0
  %v1687 = vsel %vm772, %v1669, 0
  %v1689 = vsel %vm772, %v1670, 0
  %v1691 = vsel %vm772, %v1671, 0
  %v1693 = vsel %vm772, %v1672, 0
  %v1695 = vsel %vm772, %v1673, 0
  %v1697 = vsel %vm772, %v1674, 0
  %1699 = vmatpush.msra.mxu0 0.0
  %1700 = vmatpush.msra.mxu0 0.0
  %1701 = vmatpush.msra.mxu0 0.0
  %1702 = vmatpush.msra.mxu0 0.0
  %1703 = vmatpush.msra.mxu0 0.0
  %1704 = vmatpush.msra.mxu0 0.0
  %1705 = vmatpush.msra.mxu0 0.0
  %1706 = vmatpush.msra.mxu0 0.0
  %1707 = vmatpush.msra.mxu0 0.0
  %1708 = vmatpush.msra.mxu0 0.0
  %1709 = vmatpush.msra.mxu0 0.0
  %1710 = vmatpush.msra.mxu0 0.0
  %1711 = vmatpush.msra.mxu0 0.0
  %1712 = vmatpush.msra.mxu0 0.0
  %1713 = vmatpush.msra.mxu0 0.0
  %1714 = vmatpush.msra.mxu0 %v1681
  %1715 = vmatmul.f32.gmra.mxu0 %v1676
  %v1716 = vpop.f32.mrf.mxu0
  %v1717 = vadd.f32 0.0, %v1716
  %1718 = vmatmul.f32.gmra.mxu0 %v1679
  %v1719 = vpop.f32.mrf.mxu0
  %v1720 = vadd.f32 0.0, %v1719
  %1721 = vdwg.mxu0
  %1722 = vmatpush.msra.mxu0 0.0
  %1723 = vmatpush.msra.mxu0 0.0
  %1724 = vmatpush.msra.mxu0 0.0
  %1725 = vmatpush.msra.mxu0 0.0
  %1726 = vmatpush.msra.mxu0 0.0
  %1727 = vmatpush.msra.mxu0 0.0
  %1728 = vmatpush.msra.mxu0 0.0
  %1729 = vmatpush.msra.mxu0 0.0
  %1730 = vmatpush.msra.mxu0 0.0
  %1731 = vmatpush.msra.mxu0 0.0
  %1732 = vmatpush.msra.mxu0 0.0
  %1733 = vmatpush.msra.mxu0 0.0
  %1734 = vmatpush.msra.mxu0 0.0
  %1735 = vmatpush.msra.mxu0 0.0
  %1736 = vmatpush.msra.mxu0 0.0
  %1737 = vmatpush.msra.mxu0 %v1683
  %1738 = vmatmul.f32.gmra.mxu0 %v1676
  %v1739 = vpop.f32.mrf.mxu0
  %v1740 = vadd.f32 0.0, %v1739
  %1741 = vmatmul.f32.gmra.mxu0 %v1679
  %v1742 = vpop.f32.mrf.mxu0
  %v1743 = vadd.f32 0.0, %v1742
  %1744 = vdwg.mxu0
  %1745 = vmatpush.msra.mxu0 0.0
  %1746 = vmatpush.msra.mxu0 0.0
  %1747 = vmatpush.msra.mxu0 0.0
  %1748 = vmatpush.msra.mxu0 0.0
  %1749 = vmatpush.msra.mxu0 0.0
  %1750 = vmatpush.msra.mxu0 0.0
  %1751 = vmatpush.msra.mxu0 0.0
  %1752 = vmatpush.msra.mxu0 0.0
  %1753 = vmatpush.msra.mxu0 0.0
  %1754 = vmatpush.msra.mxu0 0.0
  %1755 = vmatpush.msra.mxu0 0.0
  %1756 = vmatpush.msra.mxu0 0.0
  %1757 = vmatpush.msra.mxu0 0.0
  %1758 = vmatpush.msra.mxu0 0.0
  %1759 = vmatpush.msra.mxu0 0.0
  %1760 = vmatpush.msra.mxu0 %v1685
  %1761 = vmatmul.f32.gmra.mxu0 %v1676
  %v1762 = vpop.f32.mrf.mxu0
  %v1763 = vadd.f32 0.0, %v1762
  %1764 = vmatmul.f32.gmra.mxu0 %v1679
  %v1765 = vpop.f32.mrf.mxu0
  %v1766 = vadd.f32 0.0, %v1765
  %1767 = vdwg.mxu0
  %1768 = vmatpush.msra.mxu0 0.0
  %1769 = vmatpush.msra.mxu0 0.0
  %1770 = vmatpush.msra.mxu0 0.0
  %1771 = vmatpush.msra.mxu0 0.0
  %1772 = vmatpush.msra.mxu0 0.0
  %1773 = vmatpush.msra.mxu0 0.0
  %1774 = vmatpush.msra.mxu0 0.0
  %1775 = vmatpush.msra.mxu0 0.0
  %1776 = vmatpush.msra.mxu0 0.0
  %1777 = vmatpush.msra.mxu0 0.0
  %1778 = vmatpush.msra.mxu0 0.0
  %1779 = vmatpush.msra.mxu0 0.0
  %1780 = vmatpush.msra.mxu0 0.0
  %1781 = vmatpush.msra.mxu0 0.0
  %1782 = vmatpush.msra.mxu0 0.0
  %1783 = vmatpush.msra.mxu0 %v1687
  %1784 = vmatmul.f32.gmra.mxu0 %v1676
  %v1785 = vpop.f32.mrf.mxu0
  %v1786 = vadd.f32 0.0, %v1785
  %1787 = vmatmul.f32.gmra.mxu0 %v1679
  %v1788 = vpop.f32.mrf.mxu0
  %v1789 = vadd.f32 0.0, %v1788
  %1790 = vdwg.mxu0
  %1791 = vmatpush.msra.mxu0 0.0
  %1792 = vmatpush.msra.mxu0 0.0
  %1793 = vmatpush.msra.mxu0 0.0
  %1794 = vmatpush.msra.mxu0 0.0
  %1795 = vmatpush.msra.mxu0 0.0
  %1796 = vmatpush.msra.mxu0 0.0
  %1797 = vmatpush.msra.mxu0 0.0
  %1798 = vmatpush.msra.mxu0 0.0
  %1799 = vmatpush.msra.mxu0 0.0
  %1800 = vmatpush.msra.mxu0 0.0
  %1801 = vmatpush.msra.mxu0 0.0
  %1802 = vmatpush.msra.mxu0 0.0
  %1803 = vmatpush.msra.mxu0 0.0
  %1804 = vmatpush.msra.mxu0 0.0
  %1805 = vmatpush.msra.mxu0 0.0
  %1806 = vmatpush.msra.mxu0 %v1689
  %1807 = vmatmul.f32.gmra.mxu0 %v1676
  %v1808 = vpop.f32.mrf.mxu0
  %v1809 = vadd.f32 0.0, %v1808
  %1810 = vmatmul.f32.gmra.mxu0 %v1679
  %v1811 = vpop.f32.mrf.mxu0
  %v1812 = vadd.f32 0.0, %v1811
  %1813 = vdwg.mxu0
  %1814 = vmatpush.msra.mxu0 0.0
  %1815 = vmatpush.msra.mxu0 0.0
  %1816 = vmatpush.msra.mxu0 0.0
  %1817 = vmatpush.msra.mxu0 0.0
  %1818 = vmatpush.msra.mxu0 0.0
  %1819 = vmatpush.msra.mxu0 0.0
  %1820 = vmatpush.msra.mxu0 0.0
  %1821 = vmatpush.msra.mxu0 0.0
  %1822 = vmatpush.msra.mxu0 0.0
  %1823 = vmatpush.msra.mxu0 0.0
  %1824 = vmatpush.msra.mxu0 0.0
  %1825 = vmatpush.msra.mxu0 0.0
  %1826 = vmatpush.msra.mxu0 0.0
  %1827 = vmatpush.msra.mxu0 0.0
  %1828 = vmatpush.msra.mxu0 0.0
  %1829 = vmatpush.msra.mxu0 %v1691
  %1830 = vmatmul.f32.gmra.mxu0 %v1676
  %v1831 = vpop.f32.mrf.mxu0
  %v1832 = vadd.f32 0.0, %v1831
  %1833 = vmatmul.f32.gmra.mxu0 %v1679
  %v1834 = vpop.f32.mrf.mxu0
  %v1835 = vadd.f32 0.0, %v1834
  %1836 = vdwg.mxu0
  %1837 = vmatpush.msra.mxu0 0.0
  %1838 = vmatpush.msra.mxu0 0.0
  %1839 = vmatpush.msra.mxu0 0.0
  %1840 = vmatpush.msra.mxu0 0.0
  %1841 = vmatpush.msra.mxu0 0.0
  %1842 = vmatpush.msra.mxu0 0.0
  %1843 = vmatpush.msra.mxu0 0.0
  %1844 = vmatpush.msra.mxu0 0.0
  %1845 = vmatpush.msra.mxu0 0.0
  %1846 = vmatpush.msra.mxu0 0.0
  %1847 = vmatpush.msra.mxu0 0.0
  %1848 = vmatpush.msra.mxu0 0.0
  %1849 = vmatpush.msra.mxu0 0.0
  %1850 = vmatpush.msra.mxu0 0.0
  %1851 = vmatpush.msra.mxu0 0.0
  %1852 = vmatpush.msra.mxu0 %v1693
  %1853 = vmatmul.f32.gmra.mxu0 %v1676
  %v1854 = vpop.f32.mrf.mxu0
  %v1855 = vadd.f32 0.0, %v1854
  %1856 = vmatmul.f32.gmra.mxu0 %v1679
  %v1857 = vpop.f32.mrf.mxu0
  %v1858 = vadd.f32 0.0, %v1857
  %1859 = vdwg.mxu0
  %1860 = vmatpush.msra.mxu0 0.0
  %1861 = vmatpush.msra.mxu0 0.0
  %1862 = vmatpush.msra.mxu0 0.0
  %1863 = vmatpush.msra.mxu0 0.0
  %1864 = vmatpush.msra.mxu0 0.0
  %1865 = vmatpush.msra.mxu0 0.0
  %1866 = vmatpush.msra.mxu0 0.0
  %1867 = vmatpush.msra.mxu0 0.0
  %1868 = vmatpush.msra.mxu0 0.0
  %1869 = vmatpush.msra.mxu0 0.0
  %1870 = vmatpush.msra.mxu0 0.0
  %1871 = vmatpush.msra.mxu0 0.0
  %1872 = vmatpush.msra.mxu0 0.0
  %1873 = vmatpush.msra.mxu0 0.0
  %1874 = vmatpush.msra.mxu0 0.0
  %1875 = vmatpush.msra.mxu0 %v1695
  %1876 = vmatmul.f32.gmra.mxu0 %v1676
  %v1877 = vpop.f32.mrf.mxu0
  %v1878 = vadd.f32 0.0, %v1877
  %1879 = vmatmul.f32.gmra.mxu0 %v1679
  %v1880 = vpop.f32.mrf.mxu0
  %v1881 = vadd.f32 0.0, %v1880
  %1882 = vdwg.mxu0
  %1883 = vmatpush.msra.mxu0 0.0
  %1884 = vmatpush.msra.mxu0 0.0
  %1885 = vmatpush.msra.mxu0 0.0
  %1886 = vmatpush.msra.mxu0 0.0
  %1887 = vmatpush.msra.mxu0 0.0
  %1888 = vmatpush.msra.mxu0 0.0
  %1889 = vmatpush.msra.mxu0 0.0
  %1890 = vmatpush.msra.mxu0 0.0
  %1891 = vmatpush.msra.mxu0 0.0
  %1892 = vmatpush.msra.mxu0 0.0
  %1893 = vmatpush.msra.mxu0 0.0
  %1894 = vmatpush.msra.mxu0 0.0
  %1895 = vmatpush.msra.mxu0 0.0
  %1896 = vmatpush.msra.mxu0 0.0
  %1897 = vmatpush.msra.mxu0 0.0
  %1898 = vmatpush.msra.mxu0 %v1697
  %1899 = vmatmul.f32.gmra.mxu0 %v1676
  %v1900 = vpop.f32.mrf.mxu0
  %v1901 = vadd.f32 0.0, %v1900
  %1902 = vmatmul.f32.gmra.mxu0 %v1679
  %v1903 = vpop.f32.mrf.mxu0
  %v1904 = vadd.f32 0.0, %v1903
  %1905 = vdwg.mxu0
  %v1906 = vadd.f32 %v1605, %v1717
  %v1907 = vadd.f32 %v1606, %v1740
  %v1908 = vadd.f32 %v1607, %v1763
  %v1909 = vadd.f32 %v1608, %v1786
  %v1910 = vadd.f32 %v1609, %v1809
  %v1911 = vadd.f32 %v1610, %v1832
  %v1912 = vadd.f32 %v1611, %v1855
  %v1913 = vadd.f32 %v1612, %v1878
  %v1914 = vadd.f32 %v1613, %v1901
  %v1915 = vadd.f32 %v1614, %v1720
  %v1916 = vadd.f32 %v1615, %v1743
  %v1917 = vadd.f32 %v1616, %v1766
  %v1918 = vadd.f32 %v1617, %v1789
  %v1919 = vadd.f32 %v1618, %v1812
  %v1920 = vadd.f32 %v1619, %v1835
  %v1921 = vadd.f32 %v1620, %v1858
  %v1922 = vadd.f32 %v1621, %v1881
  %v1923 = vadd.f32 %v1622, %v1904
  %v1924 = vld [vmem:[#allocation2] sm:$0xff]
  %v1925 = vld [vmem:[#allocation2 + $0x8] sm:$0xff]
  %v1926 = vld [vmem:[#allocation2 + $0x10] sm:$0xf]
  %s1927 = scalar_lea.vmem %s3, 64
  %v1928 = vld [vmem:[%s1927] sm:$0xff]
  %v1929 = vld [vmem:[%s1927 + $0x8] sm:$0xf]
  %1933 = vst [vmem:[#allocation1] ss:$4 sm:$0xff] %v1924
  %s1934 = scalar_lea.vmem [#allocation1], 32
  %1935 = vst [vmem:[%s1934] ss:$4 sm:$0xff] %v1925
  %v1936 = vld.sshfl [vmem:[#allocation1] sm:$0xff pattern:$0x73625140]
  %v1937 = vld.sshfl [vmem:[#allocation1 + $0x8] sm:$0xff pattern:$0x73625140]
  %v1938 = vld.sshfl [vmem:[#allocation1 + $0x10] sm:$0xff pattern:$0x73625140]
  %v1939 = vld.sshfl [vmem:[#allocation1 + $0x18] sm:$0xff pattern:$0x73625140]
  %v1940 = vld.sshfl [vmem:[#allocation1 + $0x20] sm:$0xff pattern:$0x73625140]
  %v1941 = vld.sshfl [vmem:[#allocation1 + $0x28] sm:$0xff pattern:$0x73625140]
  %v1942 = vld.sshfl [vmem:[#allocation1 + $0x30] sm:$0xff pattern:$0x73625140]
  %v1943 = vld.sshfl [vmem:[#allocation1 + $0x38] sm:$0xff pattern:$0x73625140]
  %1944 = vst [vmem:[#allocation1] ss:$4 sm:$0xff] %v1926
  %v1945 = vld.sshfl [vmem:[#allocation1] sm:$0xff pattern:$0x73625140]
  %v1946 = vld.sshfl [vmem:[#allocation1 + $0x8] sm:$0xff pattern:$0x73625140]
  %1947 = vrot.lane.b32.xlu0 %v1936, 103
  %v1948 = vpop.permute.xlu0 %1947
  %1949 = vrot.lane.b32.xlu0 %v1937, 103
  %v1950 = vpop.permute.xlu0 %1949
  %1951 = vrot.lane.b32.xlu0 %v1938, 103
  %v1952 = vpop.permute.xlu0 %1951
  %1953 = vrot.lane.b32.xlu0 %v1939, 103
  %v1954 = vpop.permute.xlu0 %1953
  %1955 = vrot.lane.b32.xlu0 %v1940, 103
  %v1956 = vpop.permute.xlu0 %1955
  %1957 = vrot.lane.b32.xlu0 %v1941, 103
  %v1958 = vpop.permute.xlu0 %1957
  %1959 = vrot.lane.b32.xlu0 %v1942, 103
  %v1960 = vpop.permute.xlu0 %1959
  %1961 = vrot.lane.b32.xlu0 %v1943, 103
  %v1962 = vpop.permute.xlu0 %1961
  %1963 = vrot.lane.b32.xlu0 %v1945, 103
  %v1964 = vpop.permute.xlu0 %1963
  %1965 = vrot.lane.b32.xlu0 %v1946, 103
  %v1966 = vpop.permute.xlu0 %1965
  %v1967 = vsel %vm383, %v1948, %v1950
  %v1968 = vsel %vm383, %v1950, %v1952
  %v1969 = vsel %vm383, %v1952, %v1954
  %v1970 = vsel %vm383, %v1954, %v1956
  %v1971 = vsel %vm383, %v1956, %v1958
  %v1972 = vsel %vm383, %v1958, %v1960
  %v1973 = vsel %vm383, %v1960, %v1962
  %v1974 = vsel %vm383, %v1962, %v1964
  %v1975 = vsel %vm383, %v1964, %v1966
  %v1977 = vsel %vm843, %v1928, 0
  %v1980 = vsel %vm843, %v1929, 0
  %v1982 = vsel %vm772, %v1967, 0
  %v1984 = vsel %vm772, %v1968, 0
  %v1986 = vsel %vm772, %v1969, 0
  %v1988 = vsel %vm772, %v1970, 0
  %v1990 = vsel %vm772, %v1971, 0
  %v1992 = vsel %vm772, %v1972, 0
  %v1994 = vsel %vm772, %v1973, 0
  %v1996 = vsel %vm772, %v1974, 0
  %v1998 = vsel %vm772, %v1975, 0
  %2000 = vmatpush.msra.mxu0 0.0
  %2001 = vmatpush.msra.mxu0 0.0
  %2002 = vmatpush.msra.mxu0 0.0
  %2003 = vmatpush.msra.mxu0 0.0
  %2004 = vmatpush.msra.mxu0 0.0
  %2005 = vmatpush.msra.mxu0 0.0
  %2006 = vmatpush.msra.mxu0 0.0
  %2007 = vmatpush.msra.mxu0 0.0
  %2008 = vmatpush.msra.mxu0 0.0
  %2009 = vmatpush.msra.mxu0 0.0
  %2010 = vmatpush.msra.mxu0 0.0
  %2011 = vmatpush.msra.mxu0 0.0
  %2012 = vmatpush.msra.mxu0 0.0
  %2013 = vmatpush.msra.mxu0 0.0
  %2014 = vmatpush.msra.mxu0 0.0
  %2015 = vmatpush.msra.mxu0 %v1982
  %2016 = vmatmul.f32.gmra.mxu0 %v1977
  %v2017 = vpop.f32.mrf.mxu0
  %v2018 = vadd.f32 0.0, %v2017
  %2019 = vmatmul.f32.gmra.mxu0 %v1980
  %v2020 = vpop.f32.mrf.mxu0
  %v2021 = vadd.f32 0.0, %v2020
  %2022 = vdwg.mxu0
  %2023 = vmatpush.msra.mxu0 0.0
  %2024 = vmatpush.msra.mxu0 0.0
  %2025 = vmatpush.msra.mxu0 0.0
  %2026 = vmatpush.msra.mxu0 0.0
  %2027 = vmatpush.msra.mxu0 0.0
  %2028 = vmatpush.msra.mxu0 0.0
  %2029 = vmatpush.msra.mxu0 0.0
  %2030 = vmatpush.msra.mxu0 0.0
  %2031 = vmatpush.msra.mxu0 0.0
  %2032 = vmatpush.msra.mxu0 0.0
  %2033 = vmatpush.msra.mxu0 0.0
  %2034 = vmatpush.msra.mxu0 0.0
  %2035 = vmatpush.msra.mxu0 0.0
  %2036 = vmatpush.msra.mxu0 0.0
  %2037 = vmatpush.msra.mxu0 0.0
  %2038 = vmatpush.msra.mxu0 %v1984
  %2039 = vmatmul.f32.gmra.mxu0 %v1977
  %v2040 = vpop.f32.mrf.mxu0
  %v2041 = vadd.f32 0.0, %v2040
  %2042 = vmatmul.f32.gmra.mxu0 %v1980
  %v2043 = vpop.f32.mrf.mxu0
  %v2044 = vadd.f32 0.0, %v2043
  %2045 = vdwg.mxu0
  %2046 = vmatpush.msra.mxu0 0.0
  %2047 = vmatpush.msra.mxu0 0.0
  %2048 = vmatpush.msra.mxu0 0.0
  %2049 = vmatpush.msra.mxu0 0.0
  %2050 = vmatpush.msra.mxu0 0.0
  %2051 = vmatpush.msra.mxu0 0.0
  %2052 = vmatpush.msra.mxu0 0.0
  %2053 = vmatpush.msra.mxu0 0.0
  %2054 = vmatpush.msra.mxu0 0.0
  %2055 = vmatpush.msra.mxu0 0.0
  %2056 = vmatpush.msra.mxu0 0.0
  %2057 = vmatpush.msra.mxu0 0.0
  %2058 = vmatpush.msra.mxu0 0.0
  %2059 = vmatpush.msra.mxu0 0.0
  %2060 = vmatpush.msra.mxu0 0.0
  %2061 = vmatpush.msra.mxu0 %v1986
  %2062 = vmatmul.f32.gmra.mxu0 %v1977
  %v2063 = vpop.f32.mrf.mxu0
  %v2064 = vadd.f32 0.0, %v2063
  %2065 = vmatmul.f32.gmra.mxu0 %v1980
  %v2066 = vpop.f32.mrf.mxu0
  %v2067 = vadd.f32 0.0, %v2066
  %2068 = vdwg.mxu0
  %2069 = vmatpush.msra.mxu0 0.0
  %2070 = vmatpush.msra.mxu0 0.0
  %2071 = vmatpush.msra.mxu0 0.0
  %2072 = vmatpush.msra.mxu0 0.0
  %2073 = vmatpush.msra.mxu0 0.0
  %2074 = vmatpush.msra.mxu0 0.0
  %2075 = vmatpush.msra.mxu0 0.0
  %2076 = vmatpush.msra.mxu0 0.0
  %2077 = vmatpush.msra.mxu0 0.0
  %2078 = vmatpush.msra.mxu0 0.0
  %2079 = vmatpush.msra.mxu0 0.0
  %2080 = vmatpush.msra.mxu0 0.0
  %2081 = vmatpush.msra.mxu0 0.0
  %2082 = vmatpush.msra.mxu0 0.0
  %2083 = vmatpush.msra.mxu0 0.0
  %2084 = vmatpush.msra.mxu0 %v1988
  %2085 = vmatmul.f32.gmra.mxu0 %v1977
  %v2086 = vpop.f32.mrf.mxu0
  %v2087 = vadd.f32 0.0, %v2086
  %2088 = vmatmul.f32.gmra.mxu0 %v1980
  %v2089 = vpop.f32.mrf.mxu0
  %v2090 = vadd.f32 0.0, %v2089
  %2091 = vdwg.mxu0
  %2092 = vmatpush.msra.mxu0 0.0
  %2093 = vmatpush.msra.mxu0 0.0
  %2094 = vmatpush.msra.mxu0 0.0
  %2095 = vmatpush.msra.mxu0 0.0
  %2096 = vmatpush.msra.mxu0 0.0
  %2097 = vmatpush.msra.mxu0 0.0
  %2098 = vmatpush.msra.mxu0 0.0
  %2099 = vmatpush.msra.mxu0 0.0
  %2100 = vmatpush.msra.mxu0 0.0
  %2101 = vmatpush.msra.mxu0 0.0
  %2102 = vmatpush.msra.mxu0 0.0
  %2103 = vmatpush.msra.mxu0 0.0
  %2104 = vmatpush.msra.mxu0 0.0
  %2105 = vmatpush.msra.mxu0 0.0
  %2106 = vmatpush.msra.mxu0 0.0
  %2107 = vmatpush.msra.mxu0 %v1990
  %2108 = vmatmul.f32.gmra.mxu0 %v1977
  %v2109 = vpop.f32.mrf.mxu0
  %v2110 = vadd.f32 0.0, %v2109
  %2111 = vmatmul.f32.gmra.mxu0 %v1980
  %v2112 = vpop.f32.mrf.mxu0
  %v2113 = vadd.f32 0.0, %v2112
  %2114 = vdwg.mxu0
  %2115 = vmatpush.msra.mxu0 0.0
  %2116 = vmatpush.msra.mxu0 0.0
  %2117 = vmatpush.msra.mxu0 0.0
  %2118 = vmatpush.msra.mxu0 0.0
  %2119 = vmatpush.msra.mxu0 0.0
  %2120 = vmatpush.msra.mxu0 0.0
  %2121 = vmatpush.msra.mxu0 0.0
  %2122 = vmatpush.msra.mxu0 0.0
  %2123 = vmatpush.msra.mxu0 0.0
  %2124 = vmatpush.msra.mxu0 0.0
  %2125 = vmatpush.msra.mxu0 0.0
  %2126 = vmatpush.msra.mxu0 0.0
  %2127 = vmatpush.msra.mxu0 0.0
  %2128 = vmatpush.msra.mxu0 0.0
  %2129 = vmatpush.msra.mxu0 0.0
  %2130 = vmatpush.msra.mxu0 %v1992
  %2131 = vmatmul.f32.gmra.mxu0 %v1977
  %v2132 = vpop.f32.mrf.mxu0
  %v2133 = vadd.f32 0.0, %v2132
  %2134 = vmatmul.f32.gmra.mxu0 %v1980
  %v2135 = vpop.f32.mrf.mxu0
  %v2136 = vadd.f32 0.0, %v2135
  %2137 = vdwg.mxu0
  %2138 = vmatpush.msra.mxu0 0.0
  %2139 = vmatpush.msra.mxu0 0.0
  %2140 = vmatpush.msra.mxu0 0.0
  %2141 = vmatpush.msra.mxu0 0.0
  %2142 = vmatpush.msra.mxu0 0.0
  %2143 = vmatpush.msra.mxu0 0.0
  %2144 = vmatpush.msra.mxu0 0.0
  %2145 = vmatpush.msra.mxu0 0.0
  %2146 = vmatpush.msra.mxu0 0.0
  %2147 = vmatpush.msra.mxu0 0.0
  %2148 = vmatpush.msra.mxu0 0.0
  %2149 = vmatpush.msra.mxu0 0.0
  %2150 = vmatpush.msra.mxu0 0.0
  %2151 = vmatpush.msra.mxu0 0.0
  %2152 = vmatpush.msra.mxu0 0.0
  %2153 = vmatpush.msra.mxu0 %v1994
  %2154 = vmatmul.f32.gmra.mxu0 %v1977
  %v2155 = vpop.f32.mrf.mxu0
  %v2156 = vadd.f32 0.0, %v2155
  %2157 = vmatmul.f32.gmra.mxu0 %v1980
  %v2158 = vpop.f32.mrf.mxu0
  %v2159 = vadd.f32 0.0, %v2158
  %2160 = vdwg.mxu0
  %2161 = vmatpush.msra.mxu0 0.0
  %2162 = vmatpush.msra.mxu0 0.0
  %2163 = vmatpush.msra.mxu0 0.0
  %2164 = vmatpush.msra.mxu0 0.0
  %2165 = vmatpush.msra.mxu0 0.0
  %2166 = vmatpush.msra.mxu0 0.0
  %2167 = vmatpush.msra.mxu0 0.0
  %2168 = vmatpush.msra.mxu0 0.0
  %2169 = vmatpush.msra.mxu0 0.0
  %2170 = vmatpush.msra.mxu0 0.0
  %2171 = vmatpush.msra.mxu0 0.0
  %2172 = vmatpush.msra.mxu0 0.0
  %2173 = vmatpush.msra.mxu0 0.0
  %2174 = vmatpush.msra.mxu0 0.0
  %2175 = vmatpush.msra.mxu0 0.0
  %2176 = vmatpush.msra.mxu0 %v1996
  %2177 = vmatmul.f32.gmra.mxu0 %v1977
  %v2178 = vpop.f32.mrf.mxu0
  %v2179 = vadd.f32 0.0, %v2178
  %2180 = vmatmul.f32.gmra.mxu0 %v1980
  %v2181 = vpop.f32.mrf.mxu0
  %v2182 = vadd.f32 0.0, %v2181
  %2183 = vdwg.mxu0
  %2184 = vmatpush.msra.mxu0 0.0
  %2185 = vmatpush.msra.mxu0 0.0
  %2186 = vmatpush.msra.mxu0 0.0
  %2187 = vmatpush.msra.mxu0 0.0
  %2188 = vmatpush.msra.mxu0 0.0
  %2189 = vmatpush.msra.mxu0 0.0
  %2190 = vmatpush.msra.mxu0 0.0
  %2191 = vmatpush.msra.mxu0 0.0
  %2192 = vmatpush.msra.mxu0 0.0
  %2193 = vmatpush.msra.mxu0 0.0
  %2194 = vmatpush.msra.mxu0 0.0
  %2195 = vmatpush.msra.mxu0 0.0
  %2196 = vmatpush.msra.mxu0 0.0
  %2197 = vmatpush.msra.mxu0 0.0
  %2198 = vmatpush.msra.mxu0 0.0
  %2199 = vmatpush.msra.mxu0 %v1998
  %2200 = vmatmul.f32.gmra.mxu0 %v1977
  %v2201 = vpop.f32.mrf.mxu0
  %v2202 = vadd.f32 0.0, %v2201
  %2203 = vmatmul.f32.gmra.mxu0 %v1980
  %v2204 = vpop.f32.mrf.mxu0
  %v2205 = vadd.f32 0.0, %v2204
  %2206 = vdwg.mxu0
  %v2207 = vadd.f32 %v1906, %v2018
  %v2208 = vadd.f32 %v1907, %v2041
  %v2209 = vadd.f32 %v1908, %v2064
  %v2210 = vadd.f32 %v1909, %v2087
  %v2211 = vadd.f32 %v1910, %v2110
  %v2212 = vadd.f32 %v1911, %v2133
  %v2213 = vadd.f32 %v1912, %v2156
  %v2214 = vadd.f32 %v1913, %v2179
  %v2215 = vadd.f32 %v1914, %v2202
  %v2216 = vadd.f32 %v1915, %v2021
  %v2217 = vadd.f32 %v1916, %v2044
  %v2218 = vadd.f32 %v1917, %v2067
  %v2219 = vadd.f32 %v1918, %v2090
  %v2220 = vadd.f32 %v1919, %v2113
  %v2221 = vadd.f32 %v1920, %v2136
  %v2222 = vadd.f32 %v1921, %v2159
  %v2223 = vadd.f32 %v1922, %v2182
  %v2224 = vadd.f32 %v1923, %v2205
  %v2225 = vld [vmem:[#allocation2] sm:$0xff]
  %v2226 = vld [vmem:[#allocation2 + $0x8] sm:$0xff]
  %v2227 = vld [vmem:[#allocation2 + $0x10] sm:$0xf]
  %s2228 = scalar_lea.vmem %s3, 80
  %v2229 = vld [vmem:[%s2228] sm:$0xff]
  %v2230 = vld [vmem:[%s2228 + $0x8] sm:$0xf]
  %2234 = vst [vmem:[#allocation1] ss:$4 sm:$0xff] %v2225
  %s2235 = scalar_lea.vmem [#allocation1], 32
  %2236 = vst [vmem:[%s2235] ss:$4 sm:$0xff] %v2226
  %v2237 = vld.sshfl [vmem:[#allocation1] sm:$0xff pattern:$0x73625140]
  %v2238 = vld.sshfl [vmem:[#allocation1 + $0x8] sm:$0xff pattern:$0x73625140]
  %v2239 = vld.sshfl [vmem:[#allocation1 + $0x10] sm:$0xff pattern:$0x73625140]
  %v2240 = vld.sshfl [vmem:[#allocation1 + $0x18] sm:$0xff pattern:$0x73625140]
  %v2241 = vld.sshfl [vmem:[#allocation1 + $0x20] sm:$0xff pattern:$0x73625140]
  %v2242 = vld.sshfl [vmem:[#allocation1 + $0x28] sm:$0xff pattern:$0x73625140]
  %v2243 = vld.sshfl [vmem:[#allocation1 + $0x30] sm:$0xff pattern:$0x73625140]
  %v2244 = vld.sshfl [vmem:[#allocation1 + $0x38] sm:$0xff pattern:$0x73625140]
  %2245 = vst [vmem:[#allocation1] ss:$4 sm:$0xff] %v2227
  %v2246 = vld.sshfl [vmem:[#allocation1] sm:$0xff pattern:$0x73625140]
  %v2247 = vld.sshfl [vmem:[#allocation1 + $0x8] sm:$0xff pattern:$0x73625140]
  %2248 = vrot.lane.b32.xlu0 %v2237, 102
  %v2249 = vpop.permute.xlu0 %2248
  %2250 = vrot.lane.b32.xlu0 %v2238, 102
  %v2251 = vpop.permute.xlu0 %2250
  %2252 = vrot.lane.b32.xlu0 %v2239, 102
  %v2253 = vpop.permute.xlu0 %2252
  %2254 = vrot.lane.b32.xlu0 %v2240, 102
  %v2255 = vpop.permute.xlu0 %2254
  %2256 = vrot.lane.b32.xlu0 %v2241, 102
  %v2257 = vpop.permute.xlu0 %2256
  %2258 = vrot.lane.b32.xlu0 %v2242, 102
  %v2259 = vpop.permute.xlu0 %2258
  %2260 = vrot.lane.b32.xlu0 %v2243, 102
  %v2261 = vpop.permute.xlu0 %2260
  %2262 = vrot.lane.b32.xlu0 %v2244, 102
  %v2263 = vpop.permute.xlu0 %2262
  %2264 = vrot.lane.b32.xlu0 %v2246, 102
  %v2265 = vpop.permute.xlu0 %2264
  %2266 = vrot.lane.b32.xlu0 %v2247, 102
  %v2267 = vpop.permute.xlu0 %2266
  %v2268 = vsel %vm458, %v2249, %v2251
  %v2269 = vsel %vm458, %v2251, %v2253
  %v2270 = vsel %vm458, %v2253, %v2255
  %v2271 = vsel %vm458, %v2255, %v2257
  %v2272 = vsel %vm458, %v2257, %v2259
  %v2273 = vsel %vm458, %v2259, %v2261
  %v2274 = vsel %vm458, %v2261, %v2263
  %v2275 = vsel %vm458, %v2263, %v2265
  %v2276 = vsel %vm458, %v2265, %v2267
  %v2278 = vsel %vm843, %v2229, 0
  %v2281 = vsel %vm843, %v2230, 0
  %v2283 = vsel %vm772, %v2268, 0
  %v2285 = vsel %vm772, %v2269, 0
  %v2287 = vsel %vm772, %v2270, 0
  %v2289 = vsel %vm772, %v2271, 0
  %v2291 = vsel %vm772, %v2272, 0
  %v2293 = vsel %vm772, %v2273, 0
  %v2295 = vsel %vm772, %v2274, 0
  %v2297 = vsel %vm772, %v2275, 0
  %v2299 = vsel %vm772, %v2276, 0
  %2301 = vmatpush.msra.mxu0 0.0
  %2302 = vmatpush.msra.mxu0 0.0
  %2303 = vmatpush.msra.mxu0 0.0
  %2304 = vmatpush.msra.mxu0 0.0
  %2305 = vmatpush.msra.mxu0 0.0
  %2306 = vmatpush.msra.mxu0 0.0
  %2307 = vmatpush.msra.mxu0 0.0
  %2308 = vmatpush.msra.mxu0 0.0
  %2309 = vmatpush.msra.mxu0 0.0
  %2310 = vmatpush.msra.mxu0 0.0
  %2311 = vmatpush.msra.mxu0 0.0
  %2312 = vmatpush.msra.mxu0 0.0
  %2313 = vmatpush.msra.mxu0 0.0
  %2314 = vmatpush.msra.mxu0 0.0
  %2315 = vmatpush.msra.mxu0 0.0
  %2316 = vmatpush.msra.mxu0 %v2283
  %2317 = vmatmul.f32.gmra.mxu0 %v2278
  %v2318 = vpop.f32.mrf.mxu0
  %v2319 = vadd.f32 0.0, %v2318
  %2320 = vmatmul.f32.gmra.mxu0 %v2281
  %v2321 = vpop.f32.mrf.mxu0
  %v2322 = vadd.f32 0.0, %v2321
  %2323 = vdwg.mxu0
  %2324 = vmatpush.msra.mxu0 0.0
  %2325 = vmatpush.msra.mxu0 0.0
  %2326 = vmatpush.msra.mxu0 0.0
  %2327 = vmatpush.msra.mxu0 0.0
  %2328 = vmatpush.msra.mxu0 0.0
  %2329 = vmatpush.msra.mxu0 0.0
  %2330 = vmatpush.msra.mxu0 0.0
  %2331 = vmatpush.msra.mxu0 0.0
  %2332 = vmatpush.msra.mxu0 0.0
  %2333 = vmatpush.msra.mxu0 0.0
  %2334 = vmatpush.msra.mxu0 0.0
  %2335 = vmatpush.msra.mxu0 0.0
  %2336 = vmatpush.msra.mxu0 0.0
  %2337 = vmatpush.msra.mxu0 0.0
  %2338 = vmatpush.msra.mxu0 0.0
  %2339 = vmatpush.msra.mxu0 %v2285
  %2340 = vmatmul.f32.gmra.mxu0 %v2278
  %v2341 = vpop.f32.mrf.mxu0
  %v2342 = vadd.f32 0.0, %v2341
  %2343 = vmatmul.f32.gmra.mxu0 %v2281
  %v2344 = vpop.f32.mrf.mxu0
  %v2345 = vadd.f32 0.0, %v2344
  %2346 = vdwg.mxu0
  %2347 = vmatpush.msra.mxu0 0.0
  %2348 = vmatpush.msra.mxu0 0.0
  %2349 = vmatpush.msra.mxu0 0.0
  %2350 = vmatpush.msra.mxu0 0.0
  %2351 = vmatpush.msra.mxu0 0.0
  %2352 = vmatpush.msra.mxu0 0.0
  %2353 = vmatpush.msra.mxu0 0.0
  %2354 = vmatpush.msra.mxu0 0.0
  %2355 = vmatpush.msra.mxu0 0.0
  %2356 = vmatpush.msra.mxu0 0.0
  %2357 = vmatpush.msra.mxu0 0.0
  %2358 = vmatpush.msra.mxu0 0.0
  %2359 = vmatpush.msra.mxu0 0.0
  %2360 = vmatpush.msra.mxu0 0.0
  %2361 = vmatpush.msra.mxu0 0.0
  %2362 = vmatpush.msra.mxu0 %v2287
  %2363 = vmatmul.f32.gmra.mxu0 %v2278
  %v2364 = vpop.f32.mrf.mxu0
  %v2365 = vadd.f32 0.0, %v2364
  %2366 = vmatmul.f32.gmra.mxu0 %v2281
  %v2367 = vpop.f32.mrf.mxu0
  %v2368 = vadd.f32 0.0, %v2367
  %2369 = vdwg.mxu0
  %2370 = vmatpush.msra.mxu0 0.0
  %2371 = vmatpush.msra.mxu0 0.0
  %2372 = vmatpush.msra.mxu0 0.0
  %2373 = vmatpush.msra.mxu0 0.0
  %2374 = vmatpush.msra.mxu0 0.0
  %2375 = vmatpush.msra.mxu0 0.0
  %2376 = vmatpush.msra.mxu0 0.0
  %2377 = vmatpush.msra.mxu0 0.0
  %2378 = vmatpush.msra.mxu0 0.0
  %2379 = vmatpush.msra.mxu0 0.0
  %2380 = vmatpush.msra.mxu0 0.0
  %2381 = vmatpush.msra.mxu0 0.0
  %2382 = vmatpush.msra.mxu0 0.0
  %2383 = vmatpush.msra.mxu0 0.0
  %2384 = vmatpush.msra.mxu0 0.0
  %2385 = vmatpush.msra.mxu0 %v2289
  %2386 = vmatmul.f32.gmra.mxu0 %v2278
  %v2387 = vpop.f32.mrf.mxu0
  %v2388 = vadd.f32 0.0, %v2387
  %2389 = vmatmul.f32.gmra.mxu0 %v2281
  %v2390 = vpop.f32.mrf.mxu0
  %v2391 = vadd.f32 0.0, %v2390
  %2392 = vdwg.mxu0
  %2393 = vmatpush.msra.mxu0 0.0
  %2394 = vmatpush.msra.mxu0 0.0
  %2395 = vmatpush.msra.mxu0 0.0
  %2396 = vmatpush.msra.mxu0 0.0
  %2397 = vmatpush.msra.mxu0 0.0
  %2398 = vmatpush.msra.mxu0 0.0
  %2399 = vmatpush.msra.mxu0 0.0
  %2400 = vmatpush.msra.mxu0 0.0
  %2401 = vmatpush.msra.mxu0 0.0
  %2402 = vmatpush.msra.mxu0 0.0
  %2403 = vmatpush.msra.mxu0 0.0
  %2404 = vmatpush.msra.mxu0 0.0
  %2405 = vmatpush.msra.mxu0 0.0
  %2406 = vmatpush.msra.mxu0 0.0
  %2407 = vmatpush.msra.mxu0 0.0
  %2408 = vmatpush.msra.mxu0 %v2291
  %2409 = vmatmul.f32.gmra.mxu0 %v2278
  %v2410 = vpop.f32.mrf.mxu0
  %v2411 = vadd.f32 0.0, %v2410
  %2412 = vmatmul.f32.gmra.mxu0 %v2281
  %v2413 = vpop.f32.mrf.mxu0
  %v2414 = vadd.f32 0.0, %v2413
  %2415 = vdwg.mxu0
  %2416 = vmatpush.msra.mxu0 0.0
  %2417 = vmatpush.msra.mxu0 0.0
  %2418 = vmatpush.msra.mxu0 0.0
  %2419 = vmatpush.msra.mxu0 0.0
  %2420 = vmatpush.msra.mxu0 0.0
  %2421 = vmatpush.msra.mxu0 0.0
  %2422 = vmatpush.msra.mxu0 0.0
  %2423 = vmatpush.msra.mxu0 0.0
  %2424 = vmatpush.msra.mxu0 0.0
  %2425 = vmatpush.msra.mxu0 0.0
  %2426 = vmatpush.msra.mxu0 0.0
  %2427 = vmatpush.msra.mxu0 0.0
  %2428 = vmatpush.msra.mxu0 0.0
  %2429 = vmatpush.msra.mxu0 0.0
  %2430 = vmatpush.msra.mxu0 0.0
  %2431 = vmatpush.msra.mxu0 %v2293
  %2432 = vmatmul.f32.gmra.mxu0 %v2278
  %v2433 = vpop.f32.mrf.mxu0
  %v2434 = vadd.f32 0.0, %v2433
  %2435 = vmatmul.f32.gmra.mxu0 %v2281
  %v2436 = vpop.f32.mrf.mxu0
  %v2437 = vadd.f32 0.0, %v2436
  %2438 = vdwg.mxu0
  %2439 = vmatpush.msra.mxu0 0.0
  %2440 = vmatpush.msra.mxu0 0.0
  %2441 = vmatpush.msra.mxu0 0.0
  %2442 = vmatpush.msra.mxu0 0.0
  %2443 = vmatpush.msra.mxu0 0.0
  %2444 = vmatpush.msra.mxu0 0.0
  %2445 = vmatpush.msra.mxu0 0.0
  %2446 = vmatpush.msra.mxu0 0.0
  %2447 = vmatpush.msra.mxu0 0.0
  %2448 = vmatpush.msra.mxu0 0.0
  %2449 = vmatpush.msra.mxu0 0.0
  %2450 = vmatpush.msra.mxu0 0.0
  %2451 = vmatpush.msra.mxu0 0.0
  %2452 = vmatpush.msra.mxu0 0.0
  %2453 = vmatpush.msra.mxu0 0.0
  %2454 = vmatpush.msra.mxu0 %v2295
  %2455 = vmatmul.f32.gmra.mxu0 %v2278
  %v2456 = vpop.f32.mrf.mxu0
  %v2457 = vadd.f32 0.0, %v2456
  %2458 = vmatmul.f32.gmra.mxu0 %v2281
  %v2459 = vpop.f32.mrf.mxu0
  %v2460 = vadd.f32 0.0, %v2459
  %2461 = vdwg.mxu0
  %2462 = vmatpush.msra.mxu0 0.0
  %2463 = vmatpush.msra.mxu0 0.0
  %2464 = vmatpush.msra.mxu0 0.0
  %2465 = vmatpush.msra.mxu0 0.0
  %2466 = vmatpush.msra.mxu0 0.0
  %2467 = vmatpush.msra.mxu0 0.0
  %2468 = vmatpush.msra.mxu0 0.0
  %2469 = vmatpush.msra.mxu0 0.0
  %2470 = vmatpush.msra.mxu0 0.0
  %2471 = vmatpush.msra.mxu0 0.0
  %2472 = vmatpush.msra.mxu0 0.0
  %2473 = vmatpush.msra.mxu0 0.0
  %2474 = vmatpush.msra.mxu0 0.0
  %2475 = vmatpush.msra.mxu0 0.0
  %2476 = vmatpush.msra.mxu0 0.0
  %2477 = vmatpush.msra.mxu0 %v2297
  %2478 = vmatmul.f32.gmra.mxu0 %v2278
  %v2479 = vpop.f32.mrf.mxu0
  %v2480 = vadd.f32 0.0, %v2479
  %2481 = vmatmul.f32.gmra.mxu0 %v2281
  %v2482 = vpop.f32.mrf.mxu0
  %v2483 = vadd.f32 0.0, %v2482
  %2484 = vdwg.mxu0
  %2485 = vmatpush.msra.mxu0 0.0
  %2486 = vmatpush.msra.mxu0 0.0
  %2487 = vmatpush.msra.mxu0 0.0
  %2488 = vmatpush.msra.mxu0 0.0
  %2489 = vmatpush.msra.mxu0 0.0
  %2490 = vmatpush.msra.mxu0 0.0
  %2491 = vmatpush.msra.mxu0 0.0
  %2492 = vmatpush.msra.mxu0 0.0
  %2493 = vmatpush.msra.mxu0 0.0
  %2494 = vmatpush.msra.mxu0 0.0
  %2495 = vmatpush.msra.mxu0 0.0
  %2496 = vmatpush.msra.mxu0 0.0
  %2497 = vmatpush.msra.mxu0 0.0
  %2498 = vmatpush.msra.mxu0 0.0
  %2499 = vmatpush.msra.mxu0 0.0
  %2500 = vmatpush.msra.mxu0 %v2299
  %2501 = vmatmul.f32.gmra.mxu0 %v2278
  %v2502 = vpop.f32.mrf.mxu0
  %v2503 = vadd.f32 0.0, %v2502
  %2504 = vmatmul.f32.gmra.mxu0 %v2281
  %v2505 = vpop.f32.mrf.mxu0
  %v2506 = vadd.f32 0.0, %v2505
  %2507 = vdwg.mxu0
  %v2508 = vadd.f32 %v2207, %v2319
  %v2509 = vadd.f32 %v2208, %v2342
  %v2510 = vadd.f32 %v2209, %v2365
  %v2511 = vadd.f32 %v2210, %v2388
  %v2512 = vadd.f32 %v2211, %v2411
  %v2513 = vadd.f32 %v2212, %v2434
  %v2514 = vadd.f32 %v2213, %v2457
  %v2515 = vadd.f32 %v2214, %v2480
  %v2516 = vadd.f32 %v2215, %v2503
  %v2517 = vadd.f32 %v2216, %v2322
  %v2518 = vadd.f32 %v2217, %v2345
  %v2519 = vadd.f32 %v2218, %v2368
  %v2520 = vadd.f32 %v2219, %v2391
  %v2521 = vadd.f32 %v2220, %v2414
  %v2522 = vadd.f32 %v2221, %v2437
  %v2523 = vadd.f32 %v2222, %v2460
  %v2524 = vadd.f32 %v2223, %v2483
  %v2525 = vadd.f32 %v2224, %v2506
  %v2526 = vld [vmem:[#allocation2] sm:$0xff]
  %v2527 = vld [vmem:[#allocation2 + $0x8] sm:$0xff]
  %v2528 = vld [vmem:[#allocation2 + $0x10] sm:$0xf]
  %s2529 = scalar_lea.vmem %s3, 96
  %v2530 = vld [vmem:[%s2529] sm:$0xff]
  %v2531 = vld [vmem:[%s2529 + $0x8] sm:$0xf]
  %2535 = vst [vmem:[#allocation1] ss:$4 sm:$0xff] %v2526
  %s2536 = scalar_lea.vmem [#allocation1], 32
  %2537 = vst [vmem:[%s2536] ss:$4 sm:$0xff] %v2527
  %v2538 = vld.sshfl [vmem:[#allocation1] sm:$0xff pattern:$0x73625140]
  %v2539 = vld.sshfl [vmem:[#allocation1 + $0x8] sm:$0xff pattern:$0x73625140]
  %v2540 = vld.sshfl [vmem:[#allocation1 + $0x10] sm:$0xff pattern:$0x73625140]
  %v2541 = vld.sshfl [vmem:[#allocation1 + $0x18] sm:$0xff pattern:$0x73625140]
  %v2542 = vld.sshfl [vmem:[#allocation1 + $0x20] sm:$0xff pattern:$0x73625140]
  %v2543 = vld.sshfl [vmem:[#allocation1 + $0x28] sm:$0xff pattern:$0x73625140]
  %v2544 = vld.sshfl [vmem:[#allocation1 + $0x30] sm:$0xff pattern:$0x73625140]
  %v2545 = vld.sshfl [vmem:[#allocation1 + $0x38] sm:$0xff pattern:$0x73625140]
  %2546 = vst [vmem:[#allocation1] ss:$4 sm:$0xff] %v2528
  %v2547 = vld.sshfl [vmem:[#allocation1] sm:$0xff pattern:$0x73625140]
  %v2548 = vld.sshfl [vmem:[#allocation1 + $0x8] sm:$0xff pattern:$0x73625140]
  %2549 = vrot.lane.b32.xlu0 %v2538, 80
  %v2550 = vpop.permute.xlu0 %2549
  %2551 = vrot.lane.b32.xlu0 %v2539, 80
  %v2552 = vpop.permute.xlu0 %2551
  %2553 = vrot.lane.b32.xlu0 %v2540, 80
  %v2554 = vpop.permute.xlu0 %2553
  %2555 = vrot.lane.b32.xlu0 %v2541, 80
  %v2556 = vpop.permute.xlu0 %2555
  %2557 = vrot.lane.b32.xlu0 %v2542, 80
  %v2558 = vpop.permute.xlu0 %2557
  %2559 = vrot.lane.b32.xlu0 %v2543, 80
  %v2560 = vpop.permute.xlu0 %2559
  %2561 = vrot.lane.b32.xlu0 %v2544, 80
  %v2562 = vpop.permute.xlu0 %2561
  %2563 = vrot.lane.b32.xlu0 %v2545, 80
  %v2564 = vpop.permute.xlu0 %2563
  %2565 = vrot.lane.b32.xlu0 %v2547, 80
  %v2566 = vpop.permute.xlu0 %2565
  %2567 = vrot.lane.b32.xlu0 %v2548, 80
  %v2568 = vpop.permute.xlu0 %2567
  %v2569 = vsel %vm533, %v2550, %v2552
  %v2570 = vsel %vm533, %v2552, %v2554
  %v2571 = vsel %vm533, %v2554, %v2556
  %v2572 = vsel %vm533, %v2556, %v2558
  %v2573 = vsel %vm533, %v2558, %v2560
  %v2574 = vsel %vm533, %v2560, %v2562
  %v2575 = vsel %vm533, %v2562, %v2564
  %v2576 = vsel %vm533, %v2564, %v2566
  %v2577 = vsel %vm533, %v2566, %v2568
  %v2579 = vsel %vm843, %v2530, 0
  %v2582 = vsel %vm843, %v2531, 0
  %v2584 = vsel %vm772, %v2569, 0
  %v2586 = vsel %vm772, %v2570, 0
  %v2588 = vsel %vm772, %v2571, 0
  %v2590 = vsel %vm772, %v2572, 0
  %v2592 = vsel %vm772, %v2573, 0
  %v2594 = vsel %vm772, %v2574, 0
  %v2596 = vsel %vm772, %v2575, 0
  %v2598 = vsel %vm772, %v2576, 0
  %v2600 = vsel %vm772, %v2577, 0
  %2602 = vmatpush.msra.mxu0 0.0
  %2603 = vmatpush.msra.mxu0 0.0
  %2604 = vmatpush.msra.mxu0 0.0
  %2605 = vmatpush.msra.mxu0 0.0
  %2606 = vmatpush.msra.mxu0 0.0
  %2607 = vmatpush.msra.mxu0 0.0
  %2608 = vmatpush.msra.mxu0 0.0
  %2609 = vmatpush.msra.mxu0 0.0
  %2610 = vmatpush.msra.mxu0 0.0
  %2611 = vmatpush.msra.mxu0 0.0
  %2612 = vmatpush.msra.mxu0 0.0
  %2613 = vmatpush.msra.mxu0 0.0
  %2614 = vmatpush.msra.mxu0 0.0
  %2615 = vmatpush.msra.mxu0 0.0
  %2616 = vmatpush.msra.mxu0 0.0
  %2617 = vmatpush.msra.mxu0 %v2584
  %2618 = vmatmul.f32.gmra.mxu0 %v2579
  %v2619 = vpop.f32.mrf.mxu0
  %v2620 = vadd.f32 0.0, %v2619
  %2621 = vmatmul.f32.gmra.mxu0 %v2582
  %v2622 = vpop.f32.mrf.mxu0
  %v2623 = vadd.f32 0.0, %v2622
  %2624 = vdwg.mxu0
  %2625 = vmatpush.msra.mxu0 0.0
  %2626 = vmatpush.msra.mxu0 0.0
  %2627 = vmatpush.msra.mxu0 0.0
  %2628 = vmatpush.msra.mxu0 0.0
  %2629 = vmatpush.msra.mxu0 0.0
  %2630 = vmatpush.msra.mxu0 0.0
  %2631 = vmatpush.msra.mxu0 0.0
  %2632 = vmatpush.msra.mxu0 0.0
  %2633 = vmatpush.msra.mxu0 0.0
  %2634 = vmatpush.msra.mxu0 0.0
  %2635 = vmatpush.msra.mxu0 0.0
  %2636 = vmatpush.msra.mxu0 0.0
  %2637 = vmatpush.msra.mxu0 0.0
  %2638 = vmatpush.msra.mxu0 0.0
  %2639 = vmatpush.msra.mxu0 0.0
  %2640 = vmatpush.msra.mxu0 %v2586
  %2641 = vmatmul.f32.gmra.mxu0 %v2579
  %v2642 = vpop.f32.mrf.mxu0
  %v2643 = vadd.f32 0.0, %v2642
  %2644 = vmatmul.f32.gmra.mxu0 %v2582
  %v2645 = vpop.f32.mrf.mxu0
  %v2646 = vadd.f32 0.0, %v2645
  %2647 = vdwg.mxu0
  %2648 = vmatpush.msra.mxu0 0.0
  %2649 = vmatpush.msra.mxu0 0.0
  %2650 = vmatpush.msra.mxu0 0.0
  %2651 = vmatpush.msra.mxu0 0.0
  %2652 = vmatpush.msra.mxu0 0.0
  %2653 = vmatpush.msra.mxu0 0.0
  %2654 = vmatpush.msra.mxu0 0.0
  %2655 = vmatpush.msra.mxu0 0.0
  %2656 = vmatpush.msra.mxu0 0.0
  %2657 = vmatpush.msra.mxu0 0.0
  %2658 = vmatpush.msra.mxu0 0.0
  %2659 = vmatpush.msra.mxu0 0.0
  %2660 = vmatpush.msra.mxu0 0.0
  %2661 = vmatpush.msra.mxu0 0.0
  %2662 = vmatpush.msra.mxu0 0.0
  %2663 = vmatpush.msra.mxu0 %v2588
  %2664 = vmatmul.f32.gmra.mxu0 %v2579
  %v2665 = vpop.f32.mrf.mxu0
  %v2666 = vadd.f32 0.0, %v2665
  %2667 = vmatmul.f32.gmra.mxu0 %v2582
  %v2668 = vpop.f32.mrf.mxu0
  %v2669 = vadd.f32 0.0, %v2668
  %2670 = vdwg.mxu0
  %2671 = vmatpush.msra.mxu0 0.0
  %2672 = vmatpush.msra.mxu0 0.0
  %2673 = vmatpush.msra.mxu0 0.0
  %2674 = vmatpush.msra.mxu0 0.0
  %2675 = vmatpush.msra.mxu0 0.0
  %2676 = vmatpush.msra.mxu0 0.0
  %2677 = vmatpush.msra.mxu0 0.0
  %2678 = vmatpush.msra.mxu0 0.0
  %2679 = vmatpush.msra.mxu0 0.0
  %2680 = vmatpush.msra.mxu0 0.0
  %2681 = vmatpush.msra.mxu0 0.0
  %2682 = vmatpush.msra.mxu0 0.0
  %2683 = vmatpush.msra.mxu0 0.0
  %2684 = vmatpush.msra.mxu0 0.0
  %2685 = vmatpush.msra.mxu0 0.0
  %2686 = vmatpush.msra.mxu0 %v2590
  %2687 = vmatmul.f32.gmra.mxu0 %v2579
  %v2688 = vpop.f32.mrf.mxu0
  %v2689 = vadd.f32 0.0, %v2688
  %2690 = vmatmul.f32.gmra.mxu0 %v2582
  %v2691 = vpop.f32.mrf.mxu0
  %v2692 = vadd.f32 0.0, %v2691
  %2693 = vdwg.mxu0
  %2694 = vmatpush.msra.mxu0 0.0
  %2695 = vmatpush.msra.mxu0 0.0
  %2696 = vmatpush.msra.mxu0 0.0
  %2697 = vmatpush.msra.mxu0 0.0
  %2698 = vmatpush.msra.mxu0 0.0
  %2699 = vmatpush.msra.mxu0 0.0
  %2700 = vmatpush.msra.mxu0 0.0
  %2701 = vmatpush.msra.mxu0 0.0
  %2702 = vmatpush.msra.mxu0 0.0
  %2703 = vmatpush.msra.mxu0 0.0
  %2704 = vmatpush.msra.mxu0 0.0
  %2705 = vmatpush.msra.mxu0 0.0
  %2706 = vmatpush.msra.mxu0 0.0
  %2707 = vmatpush.msra.mxu0 0.0
  %2708 = vmatpush.msra.mxu0 0.0
  %2709 = vmatpush.msra.mxu0 %v2592
  %2710 = vmatmul.f32.gmra.mxu0 %v2579
  %v2711 = vpop.f32.mrf.mxu0
  %v2712 = vadd.f32 0.0, %v2711
  %2713 = vmatmul.f32.gmra.mxu0 %v2582
  %v2714 = vpop.f32.mrf.mxu0
  %v2715 = vadd.f32 0.0, %v2714
  %2716 = vdwg.mxu0
  %2717 = vmatpush.msra.mxu0 0.0
  %2718 = vmatpush.msra.mxu0 0.0
  %2719 = vmatpush.msra.mxu0 0.0
  %2720 = vmatpush.msra.mxu0 0.0
  %2721 = vmatpush.msra.mxu0 0.0
  %2722 = vmatpush.msra.mxu0 0.0
  %2723 = vmatpush.msra.mxu0 0.0
  %2724 = vmatpush.msra.mxu0 0.0
  %2725 = vmatpush.msra.mxu0 0.0
  %2726 = vmatpush.msra.mxu0 0.0
  %2727 = vmatpush.msra.mxu0 0.0
  %2728 = vmatpush.msra.mxu0 0.0
  %2729 = vmatpush.msra.mxu0 0.0
  %2730 = vmatpush.msra.mxu0 0.0
  %2731 = vmatpush.msra.mxu0 0.0
  %2732 = vmatpush.msra.mxu0 %v2594
  %2733 = vmatmul.f32.gmra.mxu0 %v2579
  %v2734 = vpop.f32.mrf.mxu0
  %v2735 = vadd.f32 0.0, %v2734
  %2736 = vmatmul.f32.gmra.mxu0 %v2582
  %v2737 = vpop.f32.mrf.mxu0
  %v2738 = vadd.f32 0.0, %v2737
  %2739 = vdwg.mxu0
  %2740 = vmatpush.msra.mxu0 0.0
  %2741 = vmatpush.msra.mxu0 0.0
  %2742 = vmatpush.msra.mxu0 0.0
  %2743 = vmatpush.msra.mxu0 0.0
  %2744 = vmatpush.msra.mxu0 0.0
  %2745 = vmatpush.msra.mxu0 0.0
  %2746 = vmatpush.msra.mxu0 0.0
  %2747 = vmatpush.msra.mxu0 0.0
  %2748 = vmatpush.msra.mxu0 0.0
  %2749 = vmatpush.msra.mxu0 0.0
  %2750 = vmatpush.msra.mxu0 0.0
  %2751 = vmatpush.msra.mxu0 0.0
  %2752 = vmatpush.msra.mxu0 0.0
  %2753 = vmatpush.msra.mxu0 0.0
  %2754 = vmatpush.msra.mxu0 0.0
  %2755 = vmatpush.msra.mxu0 %v2596
  %2756 = vmatmul.f32.gmra.mxu0 %v2579
  %v2757 = vpop.f32.mrf.mxu0
  %v2758 = vadd.f32 0.0, %v2757
  %2759 = vmatmul.f32.gmra.mxu0 %v2582
  %v2760 = vpop.f32.mrf.mxu0
  %v2761 = vadd.f32 0.0, %v2760
  %2762 = vdwg.mxu0
  %2763 = vmatpush.msra.mxu0 0.0
  %2764 = vmatpush.msra.mxu0 0.0
  %2765 = vmatpush.msra.mxu0 0.0
  %2766 = vmatpush.msra.mxu0 0.0
  %2767 = vmatpush.msra.mxu0 0.0
  %2768 = vmatpush.msra.mxu0 0.0
  %2769 = vmatpush.msra.mxu0 0.0
  %2770 = vmatpush.msra.mxu0 0.0
  %2771 = vmatpush.msra.mxu0 0.0
  %2772 = vmatpush.msra.mxu0 0.0
  %2773 = vmatpush.msra.mxu0 0.0
  %2774 = vmatpush.msra.mxu0 0.0
  %2775 = vmatpush.msra.mxu0 0.0
  %2776 = vmatpush.msra.mxu0 0.0
  %2777 = vmatpush.msra.mxu0 0.0
  %2778 = vmatpush.msra.mxu0 %v2598
  %2779 = vmatmul.f32.gmra.mxu0 %v2579
  %v2780 = vpop.f32.mrf.mxu0
  %v2781 = vadd.f32 0.0, %v2780
  %2782 = vmatmul.f32.gmra.mxu0 %v2582
  %v2783 = vpop.f32.mrf.mxu0
  %v2784 = vadd.f32 0.0, %v2783
  %2785 = vdwg.mxu0
  %2786 = vmatpush.msra.mxu0 0.0
  %2787 = vmatpush.msra.mxu0 0.0
  %2788 = vmatpush.msra.mxu0 0.0
  %2789 = vmatpush.msra.mxu0 0.0
  %2790 = vmatpush.msra.mxu0 0.0
  %2791 = vmatpush.msra.mxu0 0.0
  %2792 = vmatpush.msra.mxu0 0.0
  %2793 = vmatpush.msra.mxu0 0.0
  %2794 = vmatpush.msra.mxu0 0.0
  %2795 = vmatpush.msra.mxu0 0.0
  %2796 = vmatpush.msra.mxu0 0.0
  %2797 = vmatpush.msra.mxu0 0.0
  %2798 = vmatpush.msra.mxu0 0.0
  %2799 = vmatpush.msra.mxu0 0.0
  %2800 = vmatpush.msra.mxu0 0.0
  %2801 = vmatpush.msra.mxu0 %v2600
  %2802 = vmatmul.f32.gmra.mxu0 %v2579
  %v2803 = vpop.f32.mrf.mxu0
  %v2804 = vadd.f32 0.0, %v2803
  %2805 = vmatmul.f32.gmra.mxu0 %v2582
  %v2806 = vpop.f32.mrf.mxu0
  %v2807 = vadd.f32 0.0, %v2806
  %2808 = vdwg.mxu0
  %v2809 = vadd.f32 %v2508, %v2620
  %v2810 = vadd.f32 %v2509, %v2643
  %v2811 = vadd.f32 %v2510, %v2666
  %v2812 = vadd.f32 %v2511, %v2689
  %v2813 = vadd.f32 %v2512, %v2712
  %v2814 = vadd.f32 %v2513, %v2735
  %v2815 = vadd.f32 %v2514, %v2758
  %v2816 = vadd.f32 %v2515, %v2781
  %v2817 = vadd.f32 %v2516, %v2804
  %v2818 = vadd.f32 %v2517, %v2623
  %v2819 = vadd.f32 %v2518, %v2646
  %v2820 = vadd.f32 %v2519, %v2669
  %v2821 = vadd.f32 %v2520, %v2692
  %v2822 = vadd.f32 %v2521, %v2715
  %v2823 = vadd.f32 %v2522, %v2738
  %v2824 = vadd.f32 %v2523, %v2761
  %v2825 = vadd.f32 %v2524, %v2784
  %v2826 = vadd.f32 %v2525, %v2807
  %v2827 = vld [vmem:[#allocation2] sm:$0xff]
  %v2828 = vld [vmem:[#allocation2 + $0x8] sm:$0xff]
  %v2829 = vld [vmem:[#allocation2 + $0x10] sm:$0xf]
  %s2830 = scalar_lea.vmem %s3, 112
  %v2831 = vld [vmem:[%s2830] sm:$0xff]
  %v2832 = vld [vmem:[%s2830 + $0x8] sm:$0xf]
  %2836 = vst [vmem:[#allocation1] ss:$4 sm:$0xff] %v2827
  %s2837 = scalar_lea.vmem [#allocation1], 32
  %2838 = vst [vmem:[%s2837] ss:$4 sm:$0xff] %v2828
  %v2839 = vld.sshfl [vmem:[#allocation1] sm:$0xff pattern:$0x73625140]
  %v2840 = vld.sshfl [vmem:[#allocation1 + $0x8] sm:$0xff pattern:$0x73625140]
  %v2841 = vld.sshfl [vmem:[#allocation1 + $0x10] sm:$0xff pattern:$0x73625140]
  %v2842 = vld.sshfl [vmem:[#allocation1 + $0x18] sm:$0xff pattern:$0x73625140]
  %v2843 = vld.sshfl [vmem:[#allocation1 + $0x20] sm:$0xff pattern:$0x73625140]
  %v2844 = vld.sshfl [vmem:[#allocation1 + $0x28] sm:$0xff pattern:$0x73625140]
  %v2845 = vld.sshfl [vmem:[#allocation1 + $0x30] sm:$0xff pattern:$0x73625140]
  %v2846 = vld.sshfl [vmem:[#allocation1 + $0x38] sm:$0xff pattern:$0x73625140]
  %2847 = vst [vmem:[#allocation1] ss:$4 sm:$0xff] %v2829
  %v2848 = vld.sshfl [vmem:[#allocation1] sm:$0xff pattern:$0x73625140]
  %v2849 = vld.sshfl [vmem:[#allocation1 + $0x8] sm:$0xff pattern:$0x73625140]
  %2850 = vrot.lane.b32.xlu0 %v2839, 79
  %v2851 = vpop.permute.xlu0 %2850
  %2852 = vrot.lane.b32.xlu0 %v2840, 79
  %v2853 = vpop.permute.xlu0 %2852
  %2854 = vrot.lane.b32.xlu0 %v2841, 79
  %v2855 = vpop.permute.xlu0 %2854
  %2856 = vrot.lane.b32.xlu0 %v2842, 79
  %v2857 = vpop.permute.xlu0 %2856
  %2858 = vrot.lane.b32.xlu0 %v2843, 79
  %v2859 = vpop.permute.xlu0 %2858
  %2860 = vrot.lane.b32.xlu0 %v2844, 79
  %v2861 = vpop.permute.xlu0 %2860
  %2862 = vrot.lane.b32.xlu0 %v2845, 79
  %v2863 = vpop.permute.xlu0 %2862
  %2864 = vrot.lane.b32.xlu0 %v2846, 79
  %v2865 = vpop.permute.xlu0 %2864
  %2866 = vrot.lane.b32.xlu0 %v2848, 79
  %v2867 = vpop.permute.xlu0 %2866
  %2868 = vrot.lane.b32.xlu0 %v2849, 79
  %v2869 = vpop.permute.xlu0 %2868
  %v2870 = vsel %vm608, %v2851, %v2853
  %v2871 = vsel %vm608, %v2853, %v2855
  %v2872 = vsel %vm608, %v2855, %v2857
  %v2873 = vsel %vm608, %v2857, %v2859
  %v2874 = vsel %vm608, %v2859, %v2861
  %v2875 = vsel %vm608, %v2861, %v2863
  %v2876 = vsel %vm608, %v2863, %v2865
  %v2877 = vsel %vm608, %v2865, %v2867
  %v2878 = vsel %vm608, %v2867, %v2869
  %v2880 = vsel %vm843, %v2831, 0
  %v2883 = vsel %vm843, %v2832, 0
  %v2885 = vsel %vm772, %v2870, 0
  %v2887 = vsel %vm772, %v2871, 0
  %v2889 = vsel %vm772, %v2872, 0
  %v2891 = vsel %vm772, %v2873, 0
  %v2893 = vsel %vm772, %v2874, 0
  %v2895 = vsel %vm772, %v2875, 0
  %v2897 = vsel %vm772, %v2876, 0
  %v2899 = vsel %vm772, %v2877, 0
  %v2901 = vsel %vm772, %v2878, 0
  %2903 = vmatpush.msra.mxu0 0.0
  %2904 = vmatpush.msra.mxu0 0.0
  %2905 = vmatpush.msra.mxu0 0.0
  %2906 = vmatpush.msra.mxu0 0.0
  %2907 = vmatpush.msra.mxu0 0.0
  %2908 = vmatpush.msra.mxu0 0.0
  %2909 = vmatpush.msra.mxu0 0.0
  %2910 = vmatpush.msra.mxu0 0.0
  %2911 = vmatpush.msra.mxu0 0.0
  %2912 = vmatpush.msra.mxu0 0.0
  %2913 = vmatpush.msra.mxu0 0.0
  %2914 = vmatpush.msra.mxu0 0.0
  %2915 = vmatpush.msra.mxu0 0.0
  %2916 = vmatpush.msra.mxu0 0.0
  %2917 = vmatpush.msra.mxu0 0.0
  %2918 = vmatpush.msra.mxu0 %v2885
  %2919 = vmatmul.f32.gmra.mxu0 %v2880
  %v2920 = vpop.f32.mrf.mxu0
  %v2921 = vadd.f32 0.0, %v2920
  %2922 = vmatmul.f32.gmra.mxu0 %v2883
  %v2923 = vpop.f32.mrf.mxu0
  %v2924 = vadd.f32 0.0, %v2923
  %2925 = vdwg.mxu0
  %2926 = vmatpush.msra.mxu0 0.0
  %2927 = vmatpush.msra.mxu0 0.0
  %2928 = vmatpush.msra.mxu0 0.0
  %2929 = vmatpush.msra.mxu0 0.0
  %2930 = vmatpush.msra.mxu0 0.0
  %2931 = vmatpush.msra.mxu0 0.0
  %2932 = vmatpush.msra.mxu0 0.0
  %2933 = vmatpush.msra.mxu0 0.0
  %2934 = vmatpush.msra.mxu0 0.0
  %2935 = vmatpush.msra.mxu0 0.0
  %2936 = vmatpush.msra.mxu0 0.0
  %2937 = vmatpush.msra.mxu0 0.0
  %2938 = vmatpush.msra.mxu0 0.0
  %2939 = vmatpush.msra.mxu0 0.0
  %2940 = vmatpush.msra.mxu0 0.0
  %2941 = vmatpush.msra.mxu0 %v2887
  %2942 = vmatmul.f32.gmra.mxu0 %v2880
  %v2943 = vpop.f32.mrf.mxu0
  %v2944 = vadd.f32 0.0, %v2943
  %2945 = vmatmul.f32.gmra.mxu0 %v2883
  %v2946 = vpop.f32.mrf.mxu0
  %v2947 = vadd.f32 0.0, %v2946
  %2948 = vdwg.mxu0
  %2949 = vmatpush.msra.mxu0 0.0
  %2950 = vmatpush.msra.mxu0 0.0
  %2951 = vmatpush.msra.mxu0 0.0
  %2952 = vmatpush.msra.mxu0 0.0
  %2953 = vmatpush.msra.mxu0 0.0
  %2954 = vmatpush.msra.mxu0 0.0
  %2955 = vmatpush.msra.mxu0 0.0
  %2956 = vmatpush.msra.mxu0 0.0
  %2957 = vmatpush.msra.mxu0 0.0
  %2958 = vmatpush.msra.mxu0 0.0
  %2959 = vmatpush.msra.mxu0 0.0
  %2960 = vmatpush.msra.mxu0 0.0
  %2961 = vmatpush.msra.mxu0 0.0
  %2962 = vmatpush.msra.mxu0 0.0
  %2963 = vmatpush.msra.mxu0 0.0
  %2964 = vmatpush.msra.mxu0 %v2889
  %2965 = vmatmul.f32.gmra.mxu0 %v2880
  %v2966 = vpop.f32.mrf.mxu0
  %v2967 = vadd.f32 0.0, %v2966
  %2968 = vmatmul.f32.gmra.mxu0 %v2883
  %v2969 = vpop.f32.mrf.mxu0
  %v2970 = vadd.f32 0.0, %v2969
  %2971 = vdwg.mxu0
  %2972 = vmatpush.msra.mxu0 0.0
  %2973 = vmatpush.msra.mxu0 0.0
  %2974 = vmatpush.msra.mxu0 0.0
  %2975 = vmatpush.msra.mxu0 0.0
  %2976 = vmatpush.msra.mxu0 0.0
  %2977 = vmatpush.msra.mxu0 0.0
  %2978 = vmatpush.msra.mxu0 0.0
  %2979 = vmatpush.msra.mxu0 0.0
  %2980 = vmatpush.msra.mxu0 0.0
  %2981 = vmatpush.msra.mxu0 0.0
  %2982 = vmatpush.msra.mxu0 0.0
  %2983 = vmatpush.msra.mxu0 0.0
  %2984 = vmatpush.msra.mxu0 0.0
  %2985 = vmatpush.msra.mxu0 0.0
  %2986 = vmatpush.msra.mxu0 0.0
  %2987 = vmatpush.msra.mxu0 %v2891
  %2988 = vmatmul.f32.gmra.mxu0 %v2880
  %v2989 = vpop.f32.mrf.mxu0
  %v2990 = vadd.f32 0.0, %v2989
  %2991 = vmatmul.f32.gmra.mxu0 %v2883
  %v2992 = vpop.f32.mrf.mxu0
  %v2993 = vadd.f32 0.0, %v2992
  %2994 = vdwg.mxu0
  %2995 = vmatpush.msra.mxu0 0.0
  %2996 = vmatpush.msra.mxu0 0.0
  %2997 = vmatpush.msra.mxu0 0.0
  %2998 = vmatpush.msra.mxu0 0.0
  %2999 = vmatpush.msra.mxu0 0.0
  %3000 = vmatpush.msra.mxu0 0.0
  %3001 = vmatpush.msra.mxu0 0.0
  %3002 = vmatpush.msra.mxu0 0.0
  %3003 = vmatpush.msra.mxu0 0.0
  %3004 = vmatpush.msra.mxu0 0.0
  %3005 = vmatpush.msra.mxu0 0.0
  %3006 = vmatpush.msra.mxu0 0.0
  %3007 = vmatpush.msra.mxu0 0.0
  %3008 = vmatpush.msra.mxu0 0.0
  %3009 = vmatpush.msra.mxu0 0.0
  %3010 = vmatpush.msra.mxu0 %v2893
  %3011 = vmatmul.f32.gmra.mxu0 %v2880
  %v3012 = vpop.f32.mrf.mxu0
  %v3013 = vadd.f32 0.0, %v3012
  %3014 = vmatmul.f32.gmra.mxu0 %v2883
  %v3015 = vpop.f32.mrf.mxu0
  %v3016 = vadd.f32 0.0, %v3015
  %3017 = vdwg.mxu0
  %3018 = vmatpush.msra.mxu0 0.0
  %3019 = vmatpush.msra.mxu0 0.0
  %3020 = vmatpush.msra.mxu0 0.0
  %3021 = vmatpush.msra.mxu0 0.0
  %3022 = vmatpush.msra.mxu0 0.0
  %3023 = vmatpush.msra.mxu0 0.0
  %3024 = vmatpush.msra.mxu0 0.0
  %3025 = vmatpush.msra.mxu0 0.0
  %3026 = vmatpush.msra.mxu0 0.0
  %3027 = vmatpush.msra.mxu0 0.0
  %3028 = vmatpush.msra.mxu0 0.0
  %3029 = vmatpush.msra.mxu0 0.0
  %3030 = vmatpush.msra.mxu0 0.0
  %3031 = vmatpush.msra.mxu0 0.0
  %3032 = vmatpush.msra.mxu0 0.0
  %3033 = vmatpush.msra.mxu0 %v2895
  %3034 = vmatmul.f32.gmra.mxu0 %v2880
  %v3035 = vpop.f32.mrf.mxu0
  %v3036 = vadd.f32 0.0, %v3035
  %3037 = vmatmul.f32.gmra.mxu0 %v2883
  %v3038 = vpop.f32.mrf.mxu0
  %v3039 = vadd.f32 0.0, %v3038
  %3040 = vdwg.mxu0
  %3041 = vmatpush.msra.mxu0 0.0
  %3042 = vmatpush.msra.mxu0 0.0
  %3043 = vmatpush.msra.mxu0 0.0
  %3044 = vmatpush.msra.mxu0 0.0
  %3045 = vmatpush.msra.mxu0 0.0
  %3046 = vmatpush.msra.mxu0 0.0
  %3047 = vmatpush.msra.mxu0 0.0
  %3048 = vmatpush.msra.mxu0 0.0
  %3049 = vmatpush.msra.mxu0 0.0
  %3050 = vmatpush.msra.mxu0 0.0
  %3051 = vmatpush.msra.mxu0 0.0
  %3052 = vmatpush.msra.mxu0 0.0
  %3053 = vmatpush.msra.mxu0 0.0
  %3054 = vmatpush.msra.mxu0 0.0
  %3055 = vmatpush.msra.mxu0 0.0
  %3056 = vmatpush.msra.mxu0 %v2897
  %3057 = vmatmul.f32.gmra.mxu0 %v2880
  %v3058 = vpop.f32.mrf.mxu0
  %v3059 = vadd.f32 0.0, %v3058
  %3060 = vmatmul.f32.gmra.mxu0 %v2883
  %v3061 = vpop.f32.mrf.mxu0
  %v3062 = vadd.f32 0.0, %v3061
  %3063 = vdwg.mxu0
  %3064 = vmatpush.msra.mxu0 0.0
  %3065 = vmatpush.msra.mxu0 0.0
  %3066 = vmatpush.msra.mxu0 0.0
  %3067 = vmatpush.msra.mxu0 0.0
  %3068 = vmatpush.msra.mxu0 0.0
  %3069 = vmatpush.msra.mxu0 0.0
  %3070 = vmatpush.msra.mxu0 0.0
  %3071 = vmatpush.msra.mxu0 0.0
  %3072 = vmatpush.msra.mxu0 0.0
  %3073 = vmatpush.msra.mxu0 0.0
  %3074 = vmatpush.msra.mxu0 0.0
  %3075 = vmatpush.msra.mxu0 0.0
  %3076 = vmatpush.msra.mxu0 0.0
  %3077 = vmatpush.msra.mxu0 0.0
  %3078 = vmatpush.msra.mxu0 0.0
  %3079 = vmatpush.msra.mxu0 %v2899
  %3080 = vmatmul.f32.gmra.mxu0 %v2880
  %v3081 = vpop.f32.mrf.mxu0
  %v3082 = vadd.f32 0.0, %v3081
  %3083 = vmatmul.f32.gmra.mxu0 %v2883
  %v3084 = vpop.f32.mrf.mxu0
  %v3085 = vadd.f32 0.0, %v3084
  %3086 = vdwg.mxu0
  %3087 = vmatpush.msra.mxu0 0.0
  %3088 = vmatpush.msra.mxu0 0.0
  %3089 = vmatpush.msra.mxu0 0.0
  %3090 = vmatpush.msra.mxu0 0.0
  %3091 = vmatpush.msra.mxu0 0.0
  %3092 = vmatpush.msra.mxu0 0.0
  %3093 = vmatpush.msra.mxu0 0.0
  %3094 = vmatpush.msra.mxu0 0.0
  %3095 = vmatpush.msra.mxu0 0.0
  %3096 = vmatpush.msra.mxu0 0.0
  %3097 = vmatpush.msra.mxu0 0.0
  %3098 = vmatpush.msra.mxu0 0.0
  %3099 = vmatpush.msra.mxu0 0.0
  %3100 = vmatpush.msra.mxu0 0.0
  %3101 = vmatpush.msra.mxu0 0.0
  %3102 = vmatpush.msra.mxu0 %v2901
  %3103 = vmatmul.f32.gmra.mxu0 %v2880
  %v3104 = vpop.f32.mrf.mxu0
  %v3105 = vadd.f32 0.0, %v3104
  %3106 = vmatmul.f32.gmra.mxu0 %v2883
  %v3107 = vpop.f32.mrf.mxu0
  %v3108 = vadd.f32 0.0, %v3107
  %3109 = vdwg.mxu0
  %v3110 = vadd.f32 %v2809, %v2921
  %v3111 = vadd.f32 %v2810, %v2944
  %v3112 = vadd.f32 %v2811, %v2967
  %v3113 = vadd.f32 %v2812, %v2990
  %v3114 = vadd.f32 %v2813, %v3013
  %v3115 = vadd.f32 %v2814, %v3036
  %v3116 = vadd.f32 %v2815, %v3059
  %v3117 = vadd.f32 %v2816, %v3082
  %v3118 = vadd.f32 %v2817, %v3105
  %v3119 = vadd.f32 %v2818, %v2924
  %v3120 = vadd.f32 %v2819, %v2947
  %v3121 = vadd.f32 %v2820, %v2970
  %v3122 = vadd.f32 %v2821, %v2993
  %v3123 = vadd.f32 %v2822, %v3016
  %v3124 = vadd.f32 %v2823, %v3039
  %v3125 = vadd.f32 %v2824, %v3062
  %v3126 = vadd.f32 %v2825, %v3085
  %v3127 = vadd.f32 %v2826, %v3108
  %v3128 = vld [vmem:[#allocation2] sm:$0xff]
  %v3129 = vld [vmem:[#allocation2 + $0x8] sm:$0xff]
  %v3130 = vld [vmem:[#allocation2 + $0x10] sm:$0xf]
  %s3131 = scalar_lea.vmem %s3, 128
  %v3132 = vld [vmem:[%s3131] sm:$0xff]
  %v3133 = vld [vmem:[%s3131 + $0x8] sm:$0xf]
  %3137 = vst [vmem:[#allocation1] ss:$4 sm:$0xff] %v3128
  %s3138 = scalar_lea.vmem [#allocation1], 32
  %3139 = vst [vmem:[%s3138] ss:$4 sm:$0xff] %v3129
  %v3140 = vld.sshfl [vmem:[#allocation1] sm:$0xff pattern:$0x73625140]
  %v3141 = vld.sshfl [vmem:[#allocation1 + $0x8] sm:$0xff pattern:$0x73625140]
  %v3142 = vld.sshfl [vmem:[#allocation1 + $0x10] sm:$0xff pattern:$0x73625140]
  %v3143 = vld.sshfl [vmem:[#allocation1 + $0x18] sm:$0xff pattern:$0x73625140]
  %v3144 = vld.sshfl [vmem:[#allocation1 + $0x20] sm:$0xff pattern:$0x73625140]
  %v3145 = vld.sshfl [vmem:[#allocation1 + $0x28] sm:$0xff pattern:$0x73625140]
  %v3146 = vld.sshfl [vmem:[#allocation1 + $0x30] sm:$0xff pattern:$0x73625140]
  %v3147 = vld.sshfl [vmem:[#allocation1 + $0x38] sm:$0xff pattern:$0x73625140]
  %3148 = vst [vmem:[#allocation1] ss:$4 sm:$0xff] %v3130
  %v3149 = vld.sshfl [vmem:[#allocation1] sm:$0xff pattern:$0x73625140]
  %v3150 = vld.sshfl [vmem:[#allocation1 + $0x8] sm:$0xff pattern:$0x73625140]
  %3151 = vrot.lane.b32.xlu0 %v3140, 78
  %v3152 = vpop.permute.xlu0 %3151
  %3153 = vrot.lane.b32.xlu0 %v3141, 78
  %v3154 = vpop.permute.xlu0 %3153
  %3155 = vrot.lane.b32.xlu0 %v3142, 78
  %v3156 = vpop.permute.xlu0 %3155
  %3157 = vrot.lane.b32.xlu0 %v3143, 78
  %v3158 = vpop.permute.xlu0 %3157
  %3159 = vrot.lane.b32.xlu0 %v3144, 78
  %v3160 = vpop.permute.xlu0 %3159
  %3161 = vrot.lane.b32.xlu0 %v3145, 78
  %v3162 = vpop.permute.xlu0 %3161
  %3163 = vrot.lane.b32.xlu0 %v3146, 78
  %v3164 = vpop.permute.xlu0 %3163
  %3165 = vrot.lane.b32.xlu0 %v3147, 78
  %v3166 = vpop.permute.xlu0 %3165
  %3167 = vrot.lane.b32.xlu0 %v3149, 78
  %v3168 = vpop.permute.xlu0 %3167
  %3169 = vrot.lane.b32.xlu0 %v3150, 78
  %v3170 = vpop.permute.xlu0 %3169
  %v3171 = vsel %vm683, %v3152, %v3154
  %v3172 = vsel %vm683, %v3154, %v3156
  %v3173 = vsel %vm683, %v3156, %v3158
  %v3174 = vsel %vm683, %v3158, %v3160
  %v3175 = vsel %vm683, %v3160, %v3162
  %v3176 = vsel %vm683, %v3162, %v3164
  %v3177 = vsel %vm683, %v3164, %v3166
  %v3178 = vsel %vm683, %v3166, %v3168
  %v3179 = vsel %vm683, %v3168, %v3170
  %v3181 = vsel %vm843, %v3132, 0
  %v3184 = vsel %vm843, %v3133, 0
  %v3186 = vsel %vm772, %v3171, 0
  %v3188 = vsel %vm772, %v3172, 0
  %v3190 = vsel %vm772, %v3173, 0
  %v3192 = vsel %vm772, %v3174, 0
  %v3194 = vsel %vm772, %v3175, 0
  %v3196 = vsel %vm772, %v3176, 0
  %v3198 = vsel %vm772, %v3177, 0
  %v3200 = vsel %vm772, %v3178, 0
  %v3202 = vsel %vm772, %v3179, 0
  %3204 = vmatpush.msra.mxu0 0.0
  %3205 = vmatpush.msra.mxu0 0.0
  %3206 = vmatpush.msra.mxu0 0.0
  %3207 = vmatpush.msra.mxu0 0.0
  %3208 = vmatpush.msra.mxu0 0.0
  %3209 = vmatpush.msra.mxu0 0.0
  %3210 = vmatpush.msra.mxu0 0.0
  %3211 = vmatpush.msra.mxu0 0.0
  %3212 = vmatpush.msra.mxu0 0.0
  %3213 = vmatpush.msra.mxu0 0.0
  %3214 = vmatpush.msra.mxu0 0.0
  %3215 = vmatpush.msra.mxu0 0.0
  %3216 = vmatpush.msra.mxu0 0.0
  %3217 = vmatpush.msra.mxu0 0.0
  %3218 = vmatpush.msra.mxu0 0.0
  %3219 = vmatpush.msra.mxu0 %v3186
  %3220 = vmatmul.f32.gmra.mxu0 %v3181
  %v3221 = vpop.f32.mrf.mxu0
  %v3222 = vadd.f32 0.0, %v3221
  %3223 = vmatmul.f32.gmra.mxu0 %v3184
  %v3224 = vpop.f32.mrf.mxu0
  %v3225 = vadd.f32 0.0, %v3224
  %3226 = vdwg.mxu0
  %3227 = vmatpush.msra.mxu0 0.0
  %3228 = vmatpush.msra.mxu0 0.0
  %3229 = vmatpush.msra.mxu0 0.0
  %3230 = vmatpush.msra.mxu0 0.0
  %3231 = vmatpush.msra.mxu0 0.0
  %3232 = vmatpush.msra.mxu0 0.0
  %3233 = vmatpush.msra.mxu0 0.0
  %3234 = vmatpush.msra.mxu0 0.0
  %3235 = vmatpush.msra.mxu0 0.0
  %3236 = vmatpush.msra.mxu0 0.0
  %3237 = vmatpush.msra.mxu0 0.0
  %3238 = vmatpush.msra.mxu0 0.0
  %3239 = vmatpush.msra.mxu0 0.0
  %3240 = vmatpush.msra.mxu0 0.0
  %3241 = vmatpush.msra.mxu0 0.0
  %3242 = vmatpush.msra.mxu0 %v3188
  %3243 = vmatmul.f32.gmra.mxu0 %v3181
  %v3244 = vpop.f32.mrf.mxu0
  %v3245 = vadd.f32 0.0, %v3244
  %3246 = vmatmul.f32.gmra.mxu0 %v3184
  %v3247 = vpop.f32.mrf.mxu0
  %v3248 = vadd.f32 0.0, %v3247
  %3249 = vdwg.mxu0
  %3250 = vmatpush.msra.mxu0 0.0
  %3251 = vmatpush.msra.mxu0 0.0
  %3252 = vmatpush.msra.mxu0 0.0
  %3253 = vmatpush.msra.mxu0 0.0
  %3254 = vmatpush.msra.mxu0 0.0
  %3255 = vmatpush.msra.mxu0 0.0
  %3256 = vmatpush.msra.mxu0 0.0
  %3257 = vmatpush.msra.mxu0 0.0
  %3258 = vmatpush.msra.mxu0 0.0
  %3259 = vmatpush.msra.mxu0 0.0
  %3260 = vmatpush.msra.mxu0 0.0
  %3261 = vmatpush.msra.mxu0 0.0
  %3262 = vmatpush.msra.mxu0 0.0
  %3263 = vmatpush.msra.mxu0 0.0
  %3264 = vmatpush.msra.mxu0 0.0
  %3265 = vmatpush.msra.mxu0 %v3190
  %3266 = vmatmul.f32.gmra.mxu0 %v3181
  %v3267 = vpop.f32.mrf.mxu0
  %v3268 = vadd.f32 0.0, %v3267
  %3269 = vmatmul.f32.gmra.mxu0 %v3184
  %v3270 = vpop.f32.mrf.mxu0
  %v3271 = vadd.f32 0.0, %v3270
  %3272 = vdwg.mxu0
  %3273 = vmatpush.msra.mxu0 0.0
  %3274 = vmatpush.msra.mxu0 0.0
  %3275 = vmatpush.msra.mxu0 0.0
  %3276 = vmatpush.msra.mxu0 0.0
  %3277 = vmatpush.msra.mxu0 0.0
  %3278 = vmatpush.msra.mxu0 0.0
  %3279 = vmatpush.msra.mxu0 0.0
  %3280 = vmatpush.msra.mxu0 0.0
  %3281 = vmatpush.msra.mxu0 0.0
  %3282 = vmatpush.msra.mxu0 0.0
  %3283 = vmatpush.msra.mxu0 0.0
  %3284 = vmatpush.msra.mxu0 0.0
  %3285 = vmatpush.msra.mxu0 0.0
  %3286 = vmatpush.msra.mxu0 0.0
  %3287 = vmatpush.msra.mxu0 0.0
  %3288 = vmatpush.msra.mxu0 %v3192
  %3289 = vmatmul.f32.gmra.mxu0 %v3181
  %v3290 = vpop.f32.mrf.mxu0
  %v3291 = vadd.f32 0.0, %v3290
  %3292 = vmatmul.f32.gmra.mxu0 %v3184
  %v3293 = vpop.f32.mrf.mxu0
  %v3294 = vadd.f32 0.0, %v3293
  %3295 = vdwg.mxu0
  %3296 = vmatpush.msra.mxu0 0.0
  %3297 = vmatpush.msra.mxu0 0.0
  %3298 = vmatpush.msra.mxu0 0.0
  %3299 = vmatpush.msra.mxu0 0.0
  %3300 = vmatpush.msra.mxu0 0.0
  %3301 = vmatpush.msra.mxu0 0.0
  %3302 = vmatpush.msra.mxu0 0.0
  %3303 = vmatpush.msra.mxu0 0.0
  %3304 = vmatpush.msra.mxu0 0.0
  %3305 = vmatpush.msra.mxu0 0.0
  %3306 = vmatpush.msra.mxu0 0.0
  %3307 = vmatpush.msra.mxu0 0.0
  %3308 = vmatpush.msra.mxu0 0.0
  %3309 = vmatpush.msra.mxu0 0.0
  %3310 = vmatpush.msra.mxu0 0.0
  %3311 = vmatpush.msra.mxu0 %v3194
  %3312 = vmatmul.f32.gmra.mxu0 %v3181
  %v3313 = vpop.f32.mrf.mxu0
  %v3314 = vadd.f32 0.0, %v3313
  %3315 = vmatmul.f32.gmra.mxu0 %v3184
  %v3316 = vpop.f32.mrf.mxu0
  %v3317 = vadd.f32 0.0, %v3316
  %3318 = vdwg.mxu0
  %3319 = vmatpush.msra.mxu0 0.0
  %3320 = vmatpush.msra.mxu0 0.0
  %3321 = vmatpush.msra.mxu0 0.0
  %3322 = vmatpush.msra.mxu0 0.0
  %3323 = vmatpush.msra.mxu0 0.0
  %3324 = vmatpush.msra.mxu0 0.0
  %3325 = vmatpush.msra.mxu0 0.0
  %3326 = vmatpush.msra.mxu0 0.0
  %3327 = vmatpush.msra.mxu0 0.0
  %3328 = vmatpush.msra.mxu0 0.0
  %3329 = vmatpush.msra.mxu0 0.0
  %3330 = vmatpush.msra.mxu0 0.0
  %3331 = vmatpush.msra.mxu0 0.0
  %3332 = vmatpush.msra.mxu0 0.0
  %3333 = vmatpush.msra.mxu0 0.0
  %3334 = vmatpush.msra.mxu0 %v3196
  %3335 = vmatmul.f32.gmra.mxu0 %v3181
  %v3336 = vpop.f32.mrf.mxu0
  %v3337 = vadd.f32 0.0, %v3336
  %3338 = vmatmul.f32.gmra.mxu0 %v3184
  %v3339 = vpop.f32.mrf.mxu0
  %v3340 = vadd.f32 0.0, %v3339
  %3341 = vdwg.mxu0
  %3342 = vmatpush.msra.mxu0 0.0
  %3343 = vmatpush.msra.mxu0 0.0
  %3344 = vmatpush.msra.mxu0 0.0
  %3345 = vmatpush.msra.mxu0 0.0
  %3346 = vmatpush.msra.mxu0 0.0
  %3347 = vmatpush.msra.mxu0 0.0
  %3348 = vmatpush.msra.mxu0 0.0
  %3349 = vmatpush.msra.mxu0 0.0
  %3350 = vmatpush.msra.mxu0 0.0
  %3351 = vmatpush.msra.mxu0 0.0
  %3352 = vmatpush.msra.mxu0 0.0
  %3353 = vmatpush.msra.mxu0 0.0
  %3354 = vmatpush.msra.mxu0 0.0
  %3355 = vmatpush.msra.mxu0 0.0
  %3356 = vmatpush.msra.mxu0 0.0
  %3357 = vmatpush.msra.mxu0 %v3198
  %3358 = vmatmul.f32.gmra.mxu0 %v3181
  %v3359 = vpop.f32.mrf.mxu0
  %v3360 = vadd.f32 0.0, %v3359
  %3361 = vmatmul.f32.gmra.mxu0 %v3184
  %v3362 = vpop.f32.mrf.mxu0
  %v3363 = vadd.f32 0.0, %v3362
  %3364 = vdwg.mxu0
  %3365 = vmatpush.msra.mxu0 0.0
  %3366 = vmatpush.msra.mxu0 0.0
  %3367 = vmatpush.msra.mxu0 0.0
  %3368 = vmatpush.msra.mxu0 0.0
  %3369 = vmatpush.msra.mxu0 0.0
  %3370 = vmatpush.msra.mxu0 0.0
  %3371 = vmatpush.msra.mxu0 0.0
  %3372 = vmatpush.msra.mxu0 0.0
  %3373 = vmatpush.msra.mxu0 0.0
  %3374 = vmatpush.msra.mxu0 0.0
  %3375 = vmatpush.msra.mxu0 0.0
  %3376 = vmatpush.msra.mxu0 0.0
  %3377 = vmatpush.msra.mxu0 0.0
  %3378 = vmatpush.msra.mxu0 0.0
  %3379 = vmatpush.msra.mxu0 0.0
  %3380 = vmatpush.msra.mxu0 %v3200
  %3381 = vmatmul.f32.gmra.mxu0 %v3181
  %v3382 = vpop.f32.mrf.mxu0
  %v3383 = vadd.f32 0.0, %v3382
  %3384 = vmatmul.f32.gmra.mxu0 %v3184
  %v3385 = vpop.f32.mrf.mxu0
  %v3386 = vadd.f32 0.0, %v3385
  %3387 = vdwg.mxu0
  %3388 = vmatpush.msra.mxu0 0.0
  %3389 = vmatpush.msra.mxu0 0.0
  %3390 = vmatpush.msra.mxu0 0.0
  %3391 = vmatpush.msra.mxu0 0.0
  %3392 = vmatpush.msra.mxu0 0.0
  %3393 = vmatpush.msra.mxu0 0.0
  %3394 = vmatpush.msra.mxu0 0.0
  %3395 = vmatpush.msra.mxu0 0.0
  %3396 = vmatpush.msra.mxu0 0.0
  %3397 = vmatpush.msra.mxu0 0.0
  %3398 = vmatpush.msra.mxu0 0.0
  %3399 = vmatpush.msra.mxu0 0.0
  %3400 = vmatpush.msra.mxu0 0.0
  %3401 = vmatpush.msra.mxu0 0.0
  %3402 = vmatpush.msra.mxu0 0.0
  %3403 = vmatpush.msra.mxu0 %v3202
  %3404 = vmatmul.f32.gmra.mxu0 %v3181
  %v3405 = vpop.f32.mrf.mxu0
  %v3406 = vadd.f32 0.0, %v3405
  %3407 = vmatmul.f32.gmra.mxu0 %v3184
  %v3408 = vpop.f32.mrf.mxu0
  %v3409 = vadd.f32 0.0, %v3408
  %3410 = vdwg.mxu0
  %v3411 = vadd.f32 %v3110, %v3222
  %v3412 = vadd.f32 %v3111, %v3245
  %v3413 = vadd.f32 %v3112, %v3268
  %v3414 = vadd.f32 %v3113, %v3291
  %v3415 = vadd.f32 %v3114, %v3314
  %v3416 = vadd.f32 %v3115, %v3337
  %v3417 = vadd.f32 %v3116, %v3360
  %v3418 = vadd.f32 %v3117, %v3383
  %v3419 = vadd.f32 %v3118, %v3406
  %v3420 = vadd.f32 %v3119, %v3225
  %v3421 = vadd.f32 %v3120, %v3248
  %v3422 = vadd.f32 %v3121, %v3271
  %v3423 = vadd.f32 %v3122, %v3294
  %v3424 = vadd.f32 %v3123, %v3317
  %v3425 = vadd.f32 %v3124, %v3340
  %v3426 = vadd.f32 %v3125, %v3363
  %v3427 = vadd.f32 %v3126, %v3386
  %v3428 = vadd.f32 %v3127, %v3409
  %v3429 = vld [vmem:[%s4] sm:$0xff]
  %v3430 = vld [vmem:[%s4 + $0x8] sm:$0xf]
  %3432 = vset.pattern.permute.xlu0 0
  %3433 = vperm.xlu0 %3432, %v3429
  %v3434 = vpop.permute.xlu0 %3433
  %3437 = vset.pattern.permute.xlu0 0
  %3438 = vperm.xlu0 %3437, %v3430
  %v3439 = vpop.permute.xlu0 %3438
  %v3441 = vadd.f32 %v3411, %v3434
  %v3442 = vadd.f32 %v3412, %v3434
  %v3443 = vadd.f32 %v3413, %v3434
  %v3444 = vadd.f32 %v3414, %v3434
  %v3445 = vadd.f32 %v3415, %v3434
  %v3446 = vadd.f32 %v3416, %v3434
  %v3447 = vadd.f32 %v3417, %v3434
  %v3448 = vadd.f32 %v3418, %v3434
  %v3449 = vadd.f32 %v3419, %v3434
  %v3450 = vadd.f32 %v3420, %v3439
  %v3451 = vadd.f32 %v3421, %v3439
  %v3452 = vadd.f32 %v3422, %v3439
  %v3453 = vadd.f32 %v3423, %v3439
  %v3454 = vadd.f32 %v3424, %v3439
  %v3455 = vadd.f32 %v3425, %v3439
  %v3456 = vadd.f32 %v3426, %v3439
  %v3457 = vadd.f32 %v3427, %v3439
  %v3458 = vadd.f32 %v3428, %v3439
  %v3459 = vmax.f32 %v3441, 0.0
  %v3460 = vmax.f32 %v3442, 0.0
  %v3461 = vmax.f32 %v3443, 0.0
  %v3462 = vmax.f32 %v3444, 0.0
  %v3463 = vmax.f32 %v3445, 0.0
  %v3464 = vmax.f32 %v3446, 0.0
  %v3465 = vmax.f32 %v3447, 0.0
  %v3466 = vmax.f32 %v3448, 0.0
  %v3467 = vmax.f32 %v3449, 0.0
  %v3468 = vmax.f32 %v3450, 0.0
  %v3469 = vmax.f32 %v3451, 0.0
  %v3470 = vmax.f32 %v3452, 0.0
  %v3471 = vmax.f32 %v3453, 0.0
  %v3472 = vmax.f32 %v3454, 0.0
  %v3473 = vmax.f32 %v3455, 0.0
  %v3474 = vmax.f32 %v3456, 0.0
  %v3475 = vmax.f32 %v3457, 0.0
  %v3476 = vmax.f32 %v3458, 0.0
  %s3477 = scalar_lea.vmem %s9, 1
  %v3478 = vld [vmem:[%s3477] ss:$4 sm:$0xff]
  %s3479 = scalar_lea.vmem %s9, 33
  %v3480 = vld [vmem:[%s3479] ss:$4 sm:$0x1]
  %v3483 = vperm.slane %v3478, 0
  %v3484 = vperm.slane %v3478, 1
  %v3485 = vperm.slane %v3478, 2
  %v3486 = vperm.slane %v3478, 3
  %v3487 = vperm.slane %v3478, 4
  %v3488 = vperm.slane %v3478, 5
  %v3489 = vperm.slane %v3478, 6
  %v3490 = vperm.slane %v3478, 7
  %v3491 = vperm.slane %v3480, 0
  %v3501 = vmul.f32 %v3459, %v3483
  %v3502 = vmul.f32 %v3460, %v3484
  %v3503 = vmul.f32 %v3461, %v3485
  %v3504 = vmul.f32 %v3462, %v3486
  %v3505 = vmul.f32 %v3463, %v3487
  %v3506 = vmul.f32 %v3464, %v3488
  %v3507 = vmul.f32 %v3465, %v3489
  %v3508 = vmul.f32 %v3466, %v3490
  %v3509 = vmul.f32 %v3467, %v3491
  %v3510 = vmul.f32 %v3468, %v3483
  %v3511 = vmul.f32 %v3469, %v3484
  %v3512 = vmul.f32 %v3470, %v3485
  %v3513 = vmul.f32 %v3471, %v3486
  %v3514 = vmul.f32 %v3472, %v3487
  %v3515 = vmul.f32 %v3473, %v3488
  %v3516 = vmul.f32 %v3474, %v3489
  %v3517 = vmul.f32 %v3475, %v3490
  %v3518 = vmul.f32 %v3476, %v3491
  %3519 = vst [vmem:[#allocation3] sm:$0xff] %v3501
  %3520 = vst [vmem:[#allocation3 + $0x8] sm:$0xff] %v3502
  %3521 = vst [vmem:[#allocation3 + $0x10] sm:$0xff] %v3503
  %3522 = vst [vmem:[#allocation3 + $0x18] sm:$0xff] %v3504
  %3523 = vst [vmem:[#allocation3 + $0x20] sm:$0xff] %v3505
  %3524 = vst [vmem:[#allocation3 + $0x28] sm:$0xff] %v3506
  %3525 = vst [vmem:[#allocation3 + $0x30] sm:$0xff] %v3507
  %3526 = vst [vmem:[#allocation3 + $0x38] sm:$0xff] %v3508
  %3527 = vst [vmem:[#allocation3 + $0x40] sm:$0xff] %v3509
  %3528 = vst [vmem:[#allocation3 + $0x50] sm:$0xf] %v3510
  %3529 = vst [vmem:[#allocation3 + $0x58] sm:$0xf] %v3511
  %3530 = vst [vmem:[#allocation3 + $0x60] sm:$0xf] %v3512
  %3531 = vst [vmem:[#allocation3 + $0x68] sm:$0xf] %v3513
  %3532 = vst [vmem:[#allocation3 + $0x70] sm:$0xf] %v3514
  %3533 = vst [vmem:[#allocation3 + $0x78] sm:$0xf] %v3515
  %3534 = vst [vmem:[#allocation3 + $0x80] sm:$0xf] %v3516
  %3535 = vst [vmem:[#allocation3 + $0x88] sm:$0xf] %v3517
  %3536 = vst [vmem:[#allocation3 + $0x90] sm:$0xf] %v3518
  %v3537 = vld [vmem:[#allocation3] sm:$0xff]
  %v3538 = vld [vmem:[#allocation3 + $0x8] sm:$0xff]
  %v3539 = vld [vmem:[#allocation3 + $0x10] sm:$0xff]
  %v3540 = vld [vmem:[#allocation3 + $0x18] sm:$0xff]
  %v3541 = vld [vmem:[#allocation3 + $0x20] sm:$0xff]
  %v3542 = vld [vmem:[#allocation3 + $0x28] sm:$0xff]
  %v3543 = vld [vmem:[#allocation3 + $0x30] sm:$0xff]
  %v3544 = vld [vmem:[#allocation3 + $0x38] sm:$0xff]
  %v3545 = vld [vmem:[#allocation3 + $0x40] sm:$0xff]
  %v3546 = vld [vmem:[#allocation3 + $0x50] sm:$0xf]
  %v3547 = vld [vmem:[#allocation3 + $0x58] sm:$0xf]
  %v3548 = vld [vmem:[#allocation3 + $0x60] sm:$0xf]
  %v3549 = vld [vmem:[#allocation3 + $0x68] sm:$0xf]
  %v3550 = vld [vmem:[#allocation3 + $0x70] sm:$0xf]
  %v3551 = vld [vmem:[#allocation3 + $0x78] sm:$0xf]
  %v3552 = vld [vmem:[#allocation3 + $0x80] sm:$0xf]
  %v3553 = vld [vmem:[#allocation3 + $0x88] sm:$0xf]
  %v3554 = vld [vmem:[#allocation3 + $0x90] sm:$0xf]
  %v3555 = vld [vmem:[%s5] sm:$0x3f]
  %v3556 = vld [vmem:[#allocation3 + $0x48] sm:$0xff]
  %v3557 = vld [vmem:[#allocation3 + $0x98] sm:$0xf]
  %s3558 = scalar_lea.vmem %s5, 8
  %v3559 = vld [vmem:[%s3558] sm:$0x3f]
  %3580 = vrot.lane.b32.xlu0 %v3537, 127
  %v3581 = vpop.permute.xlu0 %3580
  %3582 = vrot.lane.b32.xlu0 %v3538, 127
  %v3583 = vpop.permute.xlu0 %3582
  %3584 = vrot.lane.b32.xlu0 %v3539, 127
  %v3585 = vpop.permute.xlu0 %3584
  %3586 = vrot.lane.b32.xlu0 %v3540, 127
  %v3587 = vpop.permute.xlu0 %3586
  %3588 = vrot.lane.b32.xlu0 %v3541, 127
  %v3589 = vpop.permute.xlu0 %3588
  %3590 = vrot.lane.b32.xlu0 %v3542, 127
  %v3591 = vpop.permute.xlu0 %3590
  %3592 = vrot.lane.b32.xlu0 %v3543, 127
  %v3593 = vpop.permute.xlu0 %3592
  %3594 = vrot.lane.b32.xlu0 %v3544, 127
  %v3595 = vpop.permute.xlu0 %3594
  %3596 = vrot.lane.b32.xlu0 %v3545, 127
  %v3597 = vpop.permute.xlu0 %3596
  %3598 = vrot.lane.b32.xlu0 %v3556, 127
  %v3599 = vpop.permute.xlu0 %3598
  %3600 = vrot.lane.b32.xlu0 %v3546, 127
  %v3601 = vpop.permute.xlu0 %3600
  %3602 = vrot.lane.b32.xlu0 %v3547, 127
  %v3603 = vpop.permute.xlu0 %3602
  %3604 = vrot.lane.b32.xlu0 %v3548, 127
  %v3605 = vpop.permute.xlu0 %3604
  %3606 = vrot.lane.b32.xlu0 %v3549, 127
  %v3607 = vpop.permute.xlu0 %3606
  %3608 = vrot.lane.b32.xlu0 %v3550, 127
  %v3609 = vpop.permute.xlu0 %3608
  %3610 = vrot.lane.b32.xlu0 %v3551, 127
  %v3611 = vpop.permute.xlu0 %3610
  %3612 = vrot.lane.b32.xlu0 %v3552, 127
  %v3613 = vpop.permute.xlu0 %3612
  %3614 = vrot.lane.b32.xlu0 %v3553, 127
  %v3615 = vpop.permute.xlu0 %3614
  %3616 = vrot.lane.b32.xlu0 %v3554, 127
  %v3617 = vpop.permute.xlu0 %3616
  %3618 = vrot.lane.b32.xlu0 %v3557, 127
  %v3619 = vpop.permute.xlu0 %3618
  %v3620 = vsel %vm158, %v3581, %v3583
  %v3621 = vsel %vm158, %v3583, %v3585
  %v3622 = vsel %vm158, %v3585, %v3587
  %v3623 = vsel %vm158, %v3587, %v3589
  %v3624 = vsel %vm158, %v3589, %v3591
  %v3625 = vsel %vm158, %v3591, %v3593
  %v3626 = vsel %vm158, %v3593, %v3595
  %v3627 = vsel %vm158, %v3595, %v3597
  %v3628 = vsel %vm158, %v3597, %v3599
  %v3629 = vsel %vm158, %v3601, %v3603
  %v3630 = vsel %vm158, %v3603, %v3605
  %v3631 = vsel %vm158, %v3605, %v3607
  %v3632 = vsel %vm158, %v3607, %v3609
  %v3633 = vsel %vm158, %v3609, %v3611
  %v3634 = vsel %vm158, %v3611, %v3613
  %v3635 = vsel %vm158, %v3613, %v3615
  %v3636 = vsel %vm158, %v3615, %v3617
  %v3637 = vsel %vm158, %v3617, %v3619
  %vm3647 = vcmask 97280
  %v3649 = vsel %vm3647, %v3559, 0
  %v3651 = vsel %vm776, %v3629, 0
  %v3653 = vsel %vm776, %v3630, 0
  %v3655 = vsel %vm776, %v3631, 0
  %v3657 = vsel %vm776, %v3632, 0
  %v3659 = vsel %vm776, %v3633, 0
  %v3661 = vsel %vm776, %v3634, 0
  %v3663 = vsel %vm776, %v3635, 0
  %v3665 = vsel %vm776, %v3636, 0
  %v3667 = vsel %vm776, %v3637, 0
  %3669 = vmatpush.msra.mxu0 0.0
  %3670 = vmatpush.msra.mxu0 0.0
  %3671 = vmatpush.msra.mxu0 0.0
  %3672 = vmatpush.msra.mxu0 0.0
  %3673 = vmatpush.msra.mxu0 0.0
  %3674 = vmatpush.msra.mxu0 0.0
  %3675 = vmatpush.msra.mxu0 0.0
  %3676 = vmatpush.msra.mxu0 0.0
  %3677 = vmatpush.msra.mxu0 0.0
  %3678 = vmatpush.msra.mxu0 0.0
  %3679 = vmatpush.msra.mxu0 0.0
  %3680 = vmatpush.msra.mxu0 0.0
  %3681 = vmatpush.msra.mxu0 0.0
  %3682 = vmatpush.msra.mxu0 0.0
  %3683 = vmatpush.msra.mxu0 %v3651
  %3684 = vmatpush.msra.mxu0 %v3620
  %3685 = vmatmul.f32.gmra.mxu0 %v3649
  %v3686 = vpop.f32.mrf.mxu0
  %v3687 = vadd.f32 0.0, %v3686
  %3688 = vdwg.mxu0
  %3689 = vmatpush.msra.mxu0 0.0
  %3690 = vmatpush.msra.mxu0 0.0
  %3691 = vmatpush.msra.mxu0 0.0
  %3692 = vmatpush.msra.mxu0 0.0
  %3693 = vmatpush.msra.mxu0 0.0
  %3694 = vmatpush.msra.mxu0 0.0
  %3695 = vmatpush.msra.mxu0 0.0
  %3696 = vmatpush.msra.mxu0 0.0
  %3697 = vmatpush.msra.mxu0 0.0
  %3698 = vmatpush.msra.mxu0 0.0
  %3699 = vmatpush.msra.mxu0 0.0
  %3700 = vmatpush.msra.mxu0 0.0
  %3701 = vmatpush.msra.mxu0 0.0
  %3702 = vmatpush.msra.mxu0 0.0
  %3703 = vmatpush.msra.mxu0 %v3653
  %3704 = vmatpush.msra.mxu0 %v3621
  %3705 = vmatmul.f32.gmra.mxu0 %v3649
  %v3706 = vpop.f32.mrf.mxu0
  %v3707 = vadd.f32 0.0, %v3706
  %3708 = vdwg.mxu0
  %3709 = vmatpush.msra.mxu0 0.0
  %3710 = vmatpush.msra.mxu0 0.0
  %3711 = vmatpush.msra.mxu0 0.0
  %3712 = vmatpush.msra.mxu0 0.0
  %3713 = vmatpush.msra.mxu0 0.0
  %3714 = vmatpush.msra.mxu0 0.0
  %3715 = vmatpush.msra.mxu0 0.0
  %3716 = vmatpush.msra.mxu0 0.0
  %3717 = vmatpush.msra.mxu0 0.0
  %3718 = vmatpush.msra.mxu0 0.0
  %3719 = vmatpush.msra.mxu0 0.0
  %3720 = vmatpush.msra.mxu0 0.0
  %3721 = vmatpush.msra.mxu0 0.0
  %3722 = vmatpush.msra.mxu0 0.0
  %3723 = vmatpush.msra.mxu0 %v3655
  %3724 = vmatpush.msra.mxu0 %v3622
  %3725 = vmatmul.f32.gmra.mxu0 %v3649
  %v3726 = vpop.f32.mrf.mxu0
  %v3727 = vadd.f32 0.0, %v3726
  %3728 = vdwg.mxu0
  %3729 = vmatpush.msra.mxu0 0.0
  %3730 = vmatpush.msra.mxu0 0.0
  %3731 = vmatpush.msra.mxu0 0.0
  %3732 = vmatpush.msra.mxu0 0.0
  %3733 = vmatpush.msra.mxu0 0.0
  %3734 = vmatpush.msra.mxu0 0.0
  %3735 = vmatpush.msra.mxu0 0.0
  %3736 = vmatpush.msra.mxu0 0.0
  %3737 = vmatpush.msra.mxu0 0.0
  %3738 = vmatpush.msra.mxu0 0.0
  %3739 = vmatpush.msra.mxu0 0.0
  %3740 = vmatpush.msra.mxu0 0.0
  %3741 = vmatpush.msra.mxu0 0.0
  %3742 = vmatpush.msra.mxu0 0.0
  %3743 = vmatpush.msra.mxu0 %v3657
  %3744 = vmatpush.msra.mxu0 %v3623
  %3745 = vmatmul.f32.gmra.mxu0 %v3649
  %v3746 = vpop.f32.mrf.mxu0
  %v3747 = vadd.f32 0.0, %v3746
  %3748 = vdwg.mxu0
  %3749 = vmatpush.msra.mxu0 0.0
  %3750 = vmatpush.msra.mxu0 0.0
  %3751 = vmatpush.msra.mxu0 0.0
  %3752 = vmatpush.msra.mxu0 0.0
  %3753 = vmatpush.msra.mxu0 0.0
  %3754 = vmatpush.msra.mxu0 0.0
  %3755 = vmatpush.msra.mxu0 0.0
  %3756 = vmatpush.msra.mxu0 0.0
  %3757 = vmatpush.msra.mxu0 0.0
  %3758 = vmatpush.msra.mxu0 0.0
  %3759 = vmatpush.msra.mxu0 0.0
  %3760 = vmatpush.msra.mxu0 0.0
  %3761 = vmatpush.msra.mxu0 0.0
  %3762 = vmatpush.msra.mxu0 0.0
  %3763 = vmatpush.msra.mxu0 %v3659
  %3764 = vmatpush.msra.mxu0 %v3624
  %3765 = vmatmul.f32.gmra.mxu0 %v3649
  %v3766 = vpop.f32.mrf.mxu0
  %v3767 = vadd.f32 0.0, %v3766
  %3768 = vdwg.mxu0
  %3769 = vmatpush.msra.mxu0 0.0
  %3770 = vmatpush.msra.mxu0 0.0
  %3771 = vmatpush.msra.mxu0 0.0
  %3772 = vmatpush.msra.mxu0 0.0
  %3773 = vmatpush.msra.mxu0 0.0
  %3774 = vmatpush.msra.mxu0 0.0
  %3775 = vmatpush.msra.mxu0 0.0
  %3776 = vmatpush.msra.mxu0 0.0
  %3777 = vmatpush.msra.mxu0 0.0
  %3778 = vmatpush.msra.mxu0 0.0
  %3779 = vmatpush.msra.mxu0 0.0
  %3780 = vmatpush.msra.mxu0 0.0
  %3781 = vmatpush.msra.mxu0 0.0
  %3782 = vmatpush.msra.mxu0 0.0
  %3783 = vmatpush.msra.mxu0 %v3661
  %3784 = vmatpush.msra.mxu0 %v3625
  %3785 = vmatmul.f32.gmra.mxu0 %v3649
  %v3786 = vpop.f32.mrf.mxu0
  %v3787 = vadd.f32 0.0, %v3786
  %3788 = vdwg.mxu0
  %3789 = vmatpush.msra.mxu0 0.0
  %3790 = vmatpush.msra.mxu0 0.0
  %3791 = vmatpush.msra.mxu0 0.0
  %3792 = vmatpush.msra.mxu0 0.0
  %3793 = vmatpush.msra.mxu0 0.0
  %3794 = vmatpush.msra.mxu0 0.0
  %3795 = vmatpush.msra.mxu0 0.0
  %3796 = vmatpush.msra.mxu0 0.0
  %3797 = vmatpush.msra.mxu0 0.0
  %3798 = vmatpush.msra.mxu0 0.0
  %3799 = vmatpush.msra.mxu0 0.0
  %3800 = vmatpush.msra.mxu0 0.0
  %3801 = vmatpush.msra.mxu0 0.0
  %3802 = vmatpush.msra.mxu0 0.0
  %3803 = vmatpush.msra.mxu0 %v3663
  %3804 = vmatpush.msra.mxu0 %v3626
  %3805 = vmatmul.f32.gmra.mxu0 %v3649
  %v3806 = vpop.f32.mrf.mxu0
  %v3807 = vadd.f32 0.0, %v3806
  %3808 = vdwg.mxu0
  %3809 = vmatpush.msra.mxu0 0.0
  %3810 = vmatpush.msra.mxu0 0.0
  %3811 = vmatpush.msra.mxu0 0.0
  %3812 = vmatpush.msra.mxu0 0.0
  %3813 = vmatpush.msra.mxu0 0.0
  %3814 = vmatpush.msra.mxu0 0.0
  %3815 = vmatpush.msra.mxu0 0.0
  %3816 = vmatpush.msra.mxu0 0.0
  %3817 = vmatpush.msra.mxu0 0.0
  %3818 = vmatpush.msra.mxu0 0.0
  %3819 = vmatpush.msra.mxu0 0.0
  %3820 = vmatpush.msra.mxu0 0.0
  %3821 = vmatpush.msra.mxu0 0.0
  %3822 = vmatpush.msra.mxu0 0.0
  %3823 = vmatpush.msra.mxu0 %v3665
  %3824 = vmatpush.msra.mxu0 %v3627
  %3825 = vmatmul.f32.gmra.mxu0 %v3649
  %v3826 = vpop.f32.mrf.mxu0
  %v3827 = vadd.f32 0.0, %v3826
  %3828 = vdwg.mxu0
  %3829 = vmatpush.msra.mxu0 0.0
  %3830 = vmatpush.msra.mxu0 0.0
  %3831 = vmatpush.msra.mxu0 0.0
  %3832 = vmatpush.msra.mxu0 0.0
  %3833 = vmatpush.msra.mxu0 0.0
  %3834 = vmatpush.msra.mxu0 0.0
  %3835 = vmatpush.msra.mxu0 0.0
  %3836 = vmatpush.msra.mxu0 0.0
  %3837 = vmatpush.msra.mxu0 0.0
  %3838 = vmatpush.msra.mxu0 0.0
  %3839 = vmatpush.msra.mxu0 0.0
  %3840 = vmatpush.msra.mxu0 0.0
  %3841 = vmatpush.msra.mxu0 0.0
  %3842 = vmatpush.msra.mxu0 0.0
  %3843 = vmatpush.msra.mxu0 %v3667
  %3844 = vmatpush.msra.mxu0 %v3628
  %3845 = vmatmul.f32.gmra.mxu0 %v3649
  %v3846 = vpop.f32.mrf.mxu0
  %v3847 = vadd.f32 0.0, %v3846
  %3848 = vdwg.mxu0
  %v3850 = vsel %vm3647, %v3555, 0
  %v3852 = vsel %vm776, %v3546, 0
  %v3854 = vsel %vm776, %v3547, 0
  %v3856 = vsel %vm776, %v3548, 0
  %v3858 = vsel %vm776, %v3549, 0
  %v3860 = vsel %vm776, %v3550, 0
  %v3862 = vsel %vm776, %v3551, 0
  %v3864 = vsel %vm776, %v3552, 0
  %v3866 = vsel %vm776, %v3553, 0
  %v3868 = vsel %vm776, %v3554, 0
  %3870 = vmatpush.msra.mxu0 0.0
  %3871 = vmatpush.msra.mxu0 0.0
  %3872 = vmatpush.msra.mxu0 0.0
  %3873 = vmatpush.msra.mxu0 0.0
  %3874 = vmatpush.msra.mxu0 0.0
  %3875 = vmatpush.msra.mxu0 0.0
  %3876 = vmatpush.msra.mxu0 0.0
  %3877 = vmatpush.msra.mxu0 0.0
  %3878 = vmatpush.msra.mxu0 0.0
  %3879 = vmatpush.msra.mxu0 0.0
  %3880 = vmatpush.msra.mxu0 0.0
  %3881 = vmatpush.msra.mxu0 0.0
  %3882 = vmatpush.msra.mxu0 0.0
  %3883 = vmatpush.msra.mxu0 0.0
  %3884 = vmatpush.msra.mxu0 %v3852
  %3885 = vmatpush.msra.mxu0 %v3537
  %3886 = vmatmul.f32.gmra.mxu0 %v3850
  %v3887 = vpop.f32.mrf.mxu0
  %v3888 = vadd.f32 %v3687, %v3887
  %3889 = vdwg.mxu0
  %3890 = vmatpush.msra.mxu0 0.0
  %3891 = vmatpush.msra.mxu0 0.0
  %3892 = vmatpush.msra.mxu0 0.0
  %3893 = vmatpush.msra.mxu0 0.0
  %3894 = vmatpush.msra.mxu0 0.0
  %3895 = vmatpush.msra.mxu0 0.0
  %3896 = vmatpush.msra.mxu0 0.0
  %3897 = vmatpush.msra.mxu0 0.0
  %3898 = vmatpush.msra.mxu0 0.0
  %3899 = vmatpush.msra.mxu0 0.0
  %3900 = vmatpush.msra.mxu0 0.0
  %3901 = vmatpush.msra.mxu0 0.0
  %3902 = vmatpush.msra.mxu0 0.0
  %3903 = vmatpush.msra.mxu0 0.0
  %3904 = vmatpush.msra.mxu0 %v3854
  %3905 = vmatpush.msra.mxu0 %v3538
  %3906 = vmatmul.f32.gmra.mxu0 %v3850
  %v3907 = vpop.f32.mrf.mxu0
  %v3908 = vadd.f32 %v3707, %v3907
  %3909 = vdwg.mxu0
  %3910 = vmatpush.msra.mxu0 0.0
  %3911 = vmatpush.msra.mxu0 0.0
  %3912 = vmatpush.msra.mxu0 0.0
  %3913 = vmatpush.msra.mxu0 0.0
  %3914 = vmatpush.msra.mxu0 0.0
  %3915 = vmatpush.msra.mxu0 0.0
  %3916 = vmatpush.msra.mxu0 0.0
  %3917 = vmatpush.msra.mxu0 0.0
  %3918 = vmatpush.msra.mxu0 0.0
  %3919 = vmatpush.msra.mxu0 0.0
  %3920 = vmatpush.msra.mxu0 0.0
  %3921 = vmatpush.msra.mxu0 0.0
  %3922 = vmatpush.msra.mxu0 0.0
  %3923 = vmatpush.msra.mxu0 0.0
  %3924 = vmatpush.msra.mxu0 %v3856
  %3925 = vmatpush.msra.mxu0 %v3539
  %3926 = vmatmul.f32.gmra.mxu0 %v3850
  %v3927 = vpop.f32.mrf.mxu0
  %v3928 = vadd.f32 %v3727, %v3927
  %3929 = vdwg.mxu0
  %3930 = vmatpush.msra.mxu0 0.0
  %3931 = vmatpush.msra.mxu0 0.0
  %3932 = vmatpush.msra.mxu0 0.0
  %3933 = vmatpush.msra.mxu0 0.0
  %3934 = vmatpush.msra.mxu0 0.0
  %3935 = vmatpush.msra.mxu0 0.0
  %3936 = vmatpush.msra.mxu0 0.0
  %3937 = vmatpush.msra.mxu0 0.0
  %3938 = vmatpush.msra.mxu0 0.0
  %3939 = vmatpush.msra.mxu0 0.0
  %3940 = vmatpush.msra.mxu0 0.0
  %3941 = vmatpush.msra.mxu0 0.0
  %3942 = vmatpush.msra.mxu0 0.0
  %3943 = vmatpush.msra.mxu0 0.0
  %3944 = vmatpush.msra.mxu0 %v3858
  %3945 = vmatpush.msra.mxu0 %v3540
  %3946 = vmatmul.f32.gmra.mxu0 %v3850
  %v3947 = vpop.f32.mrf.mxu0
  %v3948 = vadd.f32 %v3747, %v3947
  %3949 = vdwg.mxu0
  %3950 = vmatpush.msra.mxu0 0.0
  %3951 = vmatpush.msra.mxu0 0.0
  %3952 = vmatpush.msra.mxu0 0.0
  %3953 = vmatpush.msra.mxu0 0.0
  %3954 = vmatpush.msra.mxu0 0.0
  %3955 = vmatpush.msra.mxu0 0.0
  %3956 = vmatpush.msra.mxu0 0.0
  %3957 = vmatpush.msra.mxu0 0.0
  %3958 = vmatpush.msra.mxu0 0.0
  %3959 = vmatpush.msra.mxu0 0.0
  %3960 = vmatpush.msra.mxu0 0.0
  %3961 = vmatpush.msra.mxu0 0.0
  %3962 = vmatpush.msra.mxu0 0.0
  %3963 = vmatpush.msra.mxu0 0.0
  %3964 = vmatpush.msra.mxu0 %v3860
  %3965 = vmatpush.msra.mxu0 %v3541
  %3966 = vmatmul.f32.gmra.mxu0 %v3850
  %v3967 = vpop.f32.mrf.mxu0
  %v3968 = vadd.f32 %v3767, %v3967
  %3969 = vdwg.mxu0
  %3970 = vmatpush.msra.mxu0 0.0
  %3971 = vmatpush.msra.mxu0 0.0
  %3972 = vmatpush.msra.mxu0 0.0
  %3973 = vmatpush.msra.mxu0 0.0
  %3974 = vmatpush.msra.mxu0 0.0
  %3975 = vmatpush.msra.mxu0 0.0
  %3976 = vmatpush.msra.mxu0 0.0
  %3977 = vmatpush.msra.mxu0 0.0
  %3978 = vmatpush.msra.mxu0 0.0
  %3979 = vmatpush.msra.mxu0 0.0
  %3980 = vmatpush.msra.mxu0 0.0
  %3981 = vmatpush.msra.mxu0 0.0
  %3982 = vmatpush.msra.mxu0 0.0
  %3983 = vmatpush.msra.mxu0 0.0
  %3984 = vmatpush.msra.mxu0 %v3862
  %3985 = vmatpush.msra.mxu0 %v3542
  %3986 = vmatmul.f32.gmra.mxu0 %v3850
  %v3987 = vpop.f32.mrf.mxu0
  %v3988 = vadd.f32 %v3787, %v3987
  %3989 = vdwg.mxu0
  %3990 = vmatpush.msra.mxu0 0.0
  %3991 = vmatpush.msra.mxu0 0.0
  %3992 = vmatpush.msra.mxu0 0.0
  %3993 = vmatpush.msra.mxu0 0.0
  %3994 = vmatpush.msra.mxu0 0.0
  %3995 = vmatpush.msra.mxu0 0.0
  %3996 = vmatpush.msra.mxu0 0.0
  %3997 = vmatpush.msra.mxu0 0.0
  %3998 = vmatpush.msra.mxu0 0.0
  %3999 = vmatpush.msra.mxu0 0.0
  %4000 = vmatpush.msra.mxu0 0.0
  %4001 = vmatpush.msra.mxu0 0.0
  %4002 = vmatpush.msra.mxu0 0.0
  %4003 = vmatpush.msra.mxu0 0.0
  %4004 = vmatpush.msra.mxu0 %v3864
  %4005 = vmatpush.msra.mxu0 %v3543
  %4006 = vmatmul.f32.gmra.mxu0 %v3850
  %v4007 = vpop.f32.mrf.mxu0
  %v4008 = vadd.f32 %v3807, %v4007
  %4009 = vdwg.mxu0
  %4010 = vmatpush.msra.mxu0 0.0
  %4011 = vmatpush.msra.mxu0 0.0
  %4012 = vmatpush.msra.mxu0 0.0
  %4013 = vmatpush.msra.mxu0 0.0
  %4014 = vmatpush.msra.mxu0 0.0
  %4015 = vmatpush.msra.mxu0 0.0
  %4016 = vmatpush.msra.mxu0 0.0
  %4017 = vmatpush.msra.mxu0 0.0
  %4018 = vmatpush.msra.mxu0 0.0
  %4019 = vmatpush.msra.mxu0 0.0
  %4020 = vmatpush.msra.mxu0 0.0
  %4021 = vmatpush.msra.mxu0 0.0
  %4022 = vmatpush.msra.mxu0 0.0
  %4023 = vmatpush.msra.mxu0 0.0
  %4024 = vmatpush.msra.mxu0 %v3866
  %4025 = vmatpush.msra.mxu0 %v3544
  %4026 = vmatmul.f32.gmra.mxu0 %v3850
  %v4027 = vpop.f32.mrf.mxu0
  %v4028 = vadd.f32 %v3827, %v4027
  %4029 = vdwg.mxu0
  %4030 = vmatpush.msra.mxu0 0.0
  %4031 = vmatpush.msra.mxu0 0.0
  %4032 = vmatpush.msra.mxu0 0.0
  %4033 = vmatpush.msra.mxu0 0.0
  %4034 = vmatpush.msra.mxu0 0.0
  %4035 = vmatpush.msra.mxu0 0.0
  %4036 = vmatpush.msra.mxu0 0.0
  %4037 = vmatpush.msra.mxu0 0.0
  %4038 = vmatpush.msra.mxu0 0.0
  %4039 = vmatpush.msra.mxu0 0.0
  %4040 = vmatpush.msra.mxu0 0.0
  %4041 = vmatpush.msra.mxu0 0.0
  %4042 = vmatpush.msra.mxu0 0.0
  %4043 = vmatpush.msra.mxu0 0.0
  %4044 = vmatpush.msra.mxu0 %v3868
  %4045 = vmatpush.msra.mxu0 %v3545
  %4046 = vmatmul.f32.gmra.mxu0 %v3850
  %v4047 = vpop.f32.mrf.mxu0
  %v4048 = vadd.f32 %v3847, %v4047
  %4049 = vdwg.mxu0
  %s4050 = scalar_lea.vmem %s5, 16
  %v4051 = vld [vmem:[%s4050] sm:$0x3f]
  %4052 = vrot.lane.b32.xlu0 %v3537, 126
  %v4053 = vpop.permute.xlu0 %4052
  %4054 = vrot.lane.b32.xlu0 %v3538, 126
  %v4055 = vpop.permute.xlu0 %4054
  %4056 = vrot.lane.b32.xlu0 %v3539, 126
  %v4057 = vpop.permute.xlu0 %4056
  %4058 = vrot.lane.b32.xlu0 %v3540, 126
  %v4059 = vpop.permute.xlu0 %4058
  %4060 = vrot.lane.b32.xlu0 %v3541, 126
  %v4061 = vpop.permute.xlu0 %4060
  %4062 = vrot.lane.b32.xlu0 %v3542, 126
  %v4063 = vpop.permute.xlu0 %4062
  %4064 = vrot.lane.b32.xlu0 %v3543, 126
  %v4065 = vpop.permute.xlu0 %4064
  %4066 = vrot.lane.b32.xlu0 %v3544, 126
  %v4067 = vpop.permute.xlu0 %4066
  %4068 = vrot.lane.b32.xlu0 %v3545, 126
  %v4069 = vpop.permute.xlu0 %4068
  %4070 = vrot.lane.b32.xlu0 %v3556, 126
  %v4071 = vpop.permute.xlu0 %4070
  %4072 = vrot.lane.b32.xlu0 %v3546, 126
  %v4073 = vpop.permute.xlu0 %4072
  %4074 = vrot.lane.b32.xlu0 %v3547, 126
  %v4075 = vpop.permute.xlu0 %4074
  %4076 = vrot.lane.b32.xlu0 %v3548, 126
  %v4077 = vpop.permute.xlu0 %4076
  %4078 = vrot.lane.b32.xlu0 %v3549, 126
  %v4079 = vpop.permute.xlu0 %4078
  %4080 = vrot.lane.b32.xlu0 %v3550, 126
  %v4081 = vpop.permute.xlu0 %4080
  %4082 = vrot.lane.b32.xlu0 %v3551, 126
  %v4083 = vpop.permute.xlu0 %4082
  %4084 = vrot.lane.b32.xlu0 %v3552, 126
  %v4085 = vpop.permute.xlu0 %4084
  %4086 = vrot.lane.b32.xlu0 %v3553, 126
  %v4087 = vpop.permute.xlu0 %4086
  %4088 = vrot.lane.b32.xlu0 %v3554, 126
  %v4089 = vpop.permute.xlu0 %4088
  %4090 = vrot.lane.b32.xlu0 %v3557, 126
  %v4091 = vpop.permute.xlu0 %4090
  %v4092 = vsel %vm233, %v4053, %v4055
  %v4093 = vsel %vm233, %v4055, %v4057
  %v4094 = vsel %vm233, %v4057, %v4059
  %v4095 = vsel %vm233, %v4059, %v4061
  %v4096 = vsel %vm233, %v4061, %v4063
  %v4097 = vsel %vm233, %v4063, %v4065
  %v4098 = vsel %vm233, %v4065, %v4067
  %v4099 = vsel %vm233, %v4067, %v4069
  %v4100 = vsel %vm233, %v4069, %v4071
  %v4101 = vsel %vm233, %v4073, %v4075
  %v4102 = vsel %vm233, %v4075, %v4077
  %v4103 = vsel %vm233, %v4077, %v4079
  %v4104 = vsel %vm233, %v4079, %v4081
  %v4105 = vsel %vm233, %v4081, %v4083
  %v4106 = vsel %vm233, %v4083, %v4085
  %v4107 = vsel %vm233, %v4085, %v4087
  %v4108 = vsel %vm233, %v4087, %v4089
  %v4109 = vsel %vm233, %v4089, %v4091
  %v4120 = vsel %vm3647, %v4051, 0
  %v4122 = vsel %vm776, %v4101, 0
  %v4124 = vsel %vm776, %v4102, 0
  %v4126 = vsel %vm776, %v4103, 0
  %v4128 = vsel %vm776, %v4104, 0
  %v4130 = vsel %vm776, %v4105, 0
  %v4132 = vsel %vm776, %v4106, 0
  %v4134 = vsel %vm776, %v4107, 0
  %v4136 = vsel %vm776, %v4108, 0
  %v4138 = vsel %vm776, %v4109, 0
  %4140 = vmatpush.msra.mxu0 0.0
  %4141 = vmatpush.msra.mxu0 0.0
  %4142 = vmatpush.msra.mxu0 0.0
  %4143 = vmatpush.msra.mxu0 0.0
  %4144 = vmatpush.msra.mxu0 0.0
  %4145 = vmatpush.msra.mxu0 0.0
  %4146 = vmatpush.msra.mxu0 0.0
  %4147 = vmatpush.msra.mxu0 0.0
  %4148 = vmatpush.msra.mxu0 0.0
  %4149 = vmatpush.msra.mxu0 0.0
  %4150 = vmatpush.msra.mxu0 0.0
  %4151 = vmatpush.msra.mxu0 0.0
  %4152 = vmatpush.msra.mxu0 0.0
  %4153 = vmatpush.msra.mxu0 0.0
  %4154 = vmatpush.msra.mxu0 %v4122
  %4155 = vmatpush.msra.mxu0 %v4092
  %4156 = vmatmul.f32.gmra.mxu0 %v4120
  %v4157 = vpop.f32.mrf.mxu0
  %v4158 = vadd.f32 0.0, %v4157
  %4159 = vdwg.mxu0
  %4160 = vmatpush.msra.mxu0 0.0
  %4161 = vmatpush.msra.mxu0 0.0
  %4162 = vmatpush.msra.mxu0 0.0
  %4163 = vmatpush.msra.mxu0 0.0
  %4164 = vmatpush.msra.mxu0 0.0
  %4165 = vmatpush.msra.mxu0 0.0
  %4166 = vmatpush.msra.mxu0 0.0
  %4167 = vmatpush.msra.mxu0 0.0
  %4168 = vmatpush.msra.mxu0 0.0
  %4169 = vmatpush.msra.mxu0 0.0
  %4170 = vmatpush.msra.mxu0 0.0
  %4171 = vmatpush.msra.mxu0 0.0
  %4172 = vmatpush.msra.mxu0 0.0
  %4173 = vmatpush.msra.mxu0 0.0
  %4174 = vmatpush.msra.mxu0 %v4124
  %4175 = vmatpush.msra.mxu0 %v4093
  %4176 = vmatmul.f32.gmra.mxu0 %v4120
  %v4177 = vpop.f32.mrf.mxu0
  %v4178 = vadd.f32 0.0, %v4177
  %4179 = vdwg.mxu0
  %4180 = vmatpush.msra.mxu0 0.0
  %4181 = vmatpush.msra.mxu0 0.0
  %4182 = vmatpush.msra.mxu0 0.0
  %4183 = vmatpush.msra.mxu0 0.0
  %4184 = vmatpush.msra.mxu0 0.0
  %4185 = vmatpush.msra.mxu0 0.0
  %4186 = vmatpush.msra.mxu0 0.0
  %4187 = vmatpush.msra.mxu0 0.0
  %4188 = vmatpush.msra.mxu0 0.0
  %4189 = vmatpush.msra.mxu0 0.0
  %4190 = vmatpush.msra.mxu0 0.0
  %4191 = vmatpush.msra.mxu0 0.0
  %4192 = vmatpush.msra.mxu0 0.0
  %4193 = vmatpush.msra.mxu0 0.0
  %4194 = vmatpush.msra.mxu0 %v4126
  %4195 = vmatpush.msra.mxu0 %v4094
  %4196 = vmatmul.f32.gmra.mxu0 %v4120
  %v4197 = vpop.f32.mrf.mxu0
  %v4198 = vadd.f32 0.0, %v4197
  %4199 = vdwg.mxu0
  %4200 = vmatpush.msra.mxu0 0.0
  %4201 = vmatpush.msra.mxu0 0.0
  %4202 = vmatpush.msra.mxu0 0.0
  %4203 = vmatpush.msra.mxu0 0.0
  %4204 = vmatpush.msra.mxu0 0.0
  %4205 = vmatpush.msra.mxu0 0.0
  %4206 = vmatpush.msra.mxu0 0.0
  %4207 = vmatpush.msra.mxu0 0.0
  %4208 = vmatpush.msra.mxu0 0.0
  %4209 = vmatpush.msra.mxu0 0.0
  %4210 = vmatpush.msra.mxu0 0.0
  %4211 = vmatpush.msra.mxu0 0.0
  %4212 = vmatpush.msra.mxu0 0.0
  %4213 = vmatpush.msra.mxu0 0.0
  %4214 = vmatpush.msra.mxu0 %v4128
  %4215 = vmatpush.msra.mxu0 %v4095
  %4216 = vmatmul.f32.gmra.mxu0 %v4120
  %v4217 = vpop.f32.mrf.mxu0
  %v4218 = vadd.f32 0.0, %v4217
  %4219 = vdwg.mxu0
  %4220 = vmatpush.msra.mxu0 0.0
  %4221 = vmatpush.msra.mxu0 0.0
  %4222 = vmatpush.msra.mxu0 0.0
  %4223 = vmatpush.msra.mxu0 0.0
  %4224 = vmatpush.msra.mxu0 0.0
  %4225 = vmatpush.msra.mxu0 0.0
  %4226 = vmatpush.msra.mxu0 0.0
  %4227 = vmatpush.msra.mxu0 0.0
  %4228 = vmatpush.msra.mxu0 0.0
  %4229 = vmatpush.msra.mxu0 0.0
  %4230 = vmatpush.msra.mxu0 0.0
  %4231 = vmatpush.msra.mxu0 0.0
  %4232 = vmatpush.msra.mxu0 0.0
  %4233 = vmatpush.msra.mxu0 0.0
  %4234 = vmatpush.msra.mxu0 %v4130
  %4235 = vmatpush.msra.mxu0 %v4096
  %4236 = vmatmul.f32.gmra.mxu0 %v4120
  %v4237 = vpop.f32.mrf.mxu0
  %v4238 = vadd.f32 0.0, %v4237
  %4239 = vdwg.mxu0
  %4240 = vmatpush.msra.mxu0 0.0
  %4241 = vmatpush.msra.mxu0 0.0
  %4242 = vmatpush.msra.mxu0 0.0
  %4243 = vmatpush.msra.mxu0 0.0
  %4244 = vmatpush.msra.mxu0 0.0
  %4245 = vmatpush.msra.mxu0 0.0
  %4246 = vmatpush.msra.mxu0 0.0
  %4247 = vmatpush.msra.mxu0 0.0
  %4248 = vmatpush.msra.mxu0 0.0
  %4249 = vmatpush.msra.mxu0 0.0
  %4250 = vmatpush.msra.mxu0 0.0
  %4251 = vmatpush.msra.mxu0 0.0
  %4252 = vmatpush.msra.mxu0 0.0
  %4253 = vmatpush.msra.mxu0 0.0
  %4254 = vmatpush.msra.mxu0 %v4132
  %4255 = vmatpush.msra.mxu0 %v4097
  %4256 = vmatmul.f32.gmra.mxu0 %v4120
  %v4257 = vpop.f32.mrf.mxu0
  %v4258 = vadd.f32 0.0, %v4257
  %4259 = vdwg.mxu0
  %4260 = vmatpush.msra.mxu0 0.0
  %4261 = vmatpush.msra.mxu0 0.0
  %4262 = vmatpush.msra.mxu0 0.0
  %4263 = vmatpush.msra.mxu0 0.0
  %4264 = vmatpush.msra.mxu0 0.0
  %4265 = vmatpush.msra.mxu0 0.0
  %4266 = vmatpush.msra.mxu0 0.0
  %4267 = vmatpush.msra.mxu0 0.0
  %4268 = vmatpush.msra.mxu0 0.0
  %4269 = vmatpush.msra.mxu0 0.0
  %4270 = vmatpush.msra.mxu0 0.0
  %4271 = vmatpush.msra.mxu0 0.0
  %4272 = vmatpush.msra.mxu0 0.0
  %4273 = vmatpush.msra.mxu0 0.0
  %4274 = vmatpush.msra.mxu0 %v4134
  %4275 = vmatpush.msra.mxu0 %v4098
  %4276 = vmatmul.f32.gmra.mxu0 %v4120
  %v4277 = vpop.f32.mrf.mxu0
  %v4278 = vadd.f32 0.0, %v4277
  %4279 = vdwg.mxu0
  %4280 = vmatpush.msra.mxu0 0.0
  %4281 = vmatpush.msra.mxu0 0.0
  %4282 = vmatpush.msra.mxu0 0.0
  %4283 = vmatpush.msra.mxu0 0.0
  %4284 = vmatpush.msra.mxu0 0.0
  %4285 = vmatpush.msra.mxu0 0.0
  %4286 = vmatpush.msra.mxu0 0.0
  %4287 = vmatpush.msra.mxu0 0.0
  %4288 = vmatpush.msra.mxu0 0.0
  %4289 = vmatpush.msra.mxu0 0.0
  %4290 = vmatpush.msra.mxu0 0.0
  %4291 = vmatpush.msra.mxu0 0.0
  %4292 = vmatpush.msra.mxu0 0.0
  %4293 = vmatpush.msra.mxu0 0.0
  %4294 = vmatpush.msra.mxu0 %v4136
  %4295 = vmatpush.msra.mxu0 %v4099
  %4296 = vmatmul.f32.gmra.mxu0 %v4120
  %v4297 = vpop.f32.mrf.mxu0
  %v4298 = vadd.f32 0.0, %v4297
  %4299 = vdwg.mxu0
  %4300 = vmatpush.msra.mxu0 0.0
  %4301 = vmatpush.msra.mxu0 0.0
  %4302 = vmatpush.msra.mxu0 0.0
  %4303 = vmatpush.msra.mxu0 0.0
  %4304 = vmatpush.msra.mxu0 0.0
  %4305 = vmatpush.msra.mxu0 0.0
  %4306 = vmatpush.msra.mxu0 0.0
  %4307 = vmatpush.msra.mxu0 0.0
  %4308 = vmatpush.msra.mxu0 0.0
  %4309 = vmatpush.msra.mxu0 0.0
  %4310 = vmatpush.msra.mxu0 0.0
  %4311 = vmatpush.msra.mxu0 0.0
  %4312 = vmatpush.msra.mxu0 0.0
  %4313 = vmatpush.msra.mxu0 0.0
  %4314 = vmatpush.msra.mxu0 %v4138
  %4315 = vmatpush.msra.mxu0 %v4100
  %4316 = vmatmul.f32.gmra.mxu0 %v4120
  %v4317 = vpop.f32.mrf.mxu0
  %v4318 = vadd.f32 0.0, %v4317
  %4319 = vdwg.mxu0
  %v4320 = vadd.f32 %v3888, %v4158
  %v4321 = vadd.f32 %v3908, %v4178
  %v4322 = vadd.f32 %v3928, %v4198
  %v4323 = vadd.f32 %v3948, %v4218
  %v4324 = vadd.f32 %v3968, %v4238
  %v4325 = vadd.f32 %v3988, %v4258
  %v4326 = vadd.f32 %v4008, %v4278
  %v4327 = vadd.f32 %v4028, %v4298
  %v4328 = vadd.f32 %v4048, %v4318
  %s4329 = scalar_lea.vmem %s5, 24
  %v4330 = vld [vmem:[%s4329] sm:$0x3f]
  %4331 = vrot.lane.b32.xlu0 %v3537, 104
  %v4332 = vpop.permute.xlu0 %4331
  %4333 = vrot.lane.b32.xlu0 %v3538, 104
  %v4334 = vpop.permute.xlu0 %4333
  %4335 = vrot.lane.b32.xlu0 %v3539, 104
  %v4336 = vpop.permute.xlu0 %4335
  %4337 = vrot.lane.b32.xlu0 %v3540, 104
  %v4338 = vpop.permute.xlu0 %4337
  %4339 = vrot.lane.b32.xlu0 %v3541, 104
  %v4340 = vpop.permute.xlu0 %4339
  %4341 = vrot.lane.b32.xlu0 %v3542, 104
  %v4342 = vpop.permute.xlu0 %4341
  %4343 = vrot.lane.b32.xlu0 %v3543, 104
  %v4344 = vpop.permute.xlu0 %4343
  %4345 = vrot.lane.b32.xlu0 %v3544, 104
  %v4346 = vpop.permute.xlu0 %4345
  %4347 = vrot.lane.b32.xlu0 %v3545, 104
  %v4348 = vpop.permute.xlu0 %4347
  %4349 = vrot.lane.b32.xlu0 %v3556, 104
  %v4350 = vpop.permute.xlu0 %4349
  %4351 = vrot.lane.b32.xlu0 %v3546, 104
  %v4352 = vpop.permute.xlu0 %4351
  %4353 = vrot.lane.b32.xlu0 %v3547, 104
  %v4354 = vpop.permute.xlu0 %4353
  %4355 = vrot.lane.b32.xlu0 %v3548, 104
  %v4356 = vpop.permute.xlu0 %4355
  %4357 = vrot.lane.b32.xlu0 %v3549, 104
  %v4358 = vpop.permute.xlu0 %4357
  %4359 = vrot.lane.b32.xlu0 %v3550, 104
  %v4360 = vpop.permute.xlu0 %4359
  %4361 = vrot.lane.b32.xlu0 %v3551, 104
  %v4362 = vpop.permute.xlu0 %4361
  %4363 = vrot.lane.b32.xlu0 %v3552, 104
  %v4364 = vpop.permute.xlu0 %4363
  %4365 = vrot.lane.b32.xlu0 %v3553, 104
  %v4366 = vpop.permute.xlu0 %4365
  %4367 = vrot.lane.b32.xlu0 %v3554, 104
  %v4368 = vpop.permute.xlu0 %4367
  %4369 = vrot.lane.b32.xlu0 %v3557, 104
  %v4370 = vpop.permute.xlu0 %4369
  %v4371 = vsel %vm308, %v4332, %v4334
  %v4372 = vsel %vm308, %v4334, %v4336
  %v4373 = vsel %vm308, %v4336, %v4338
  %v4374 = vsel %vm308, %v4338, %v4340
  %v4375 = vsel %vm308, %v4340, %v4342
  %v4376 = vsel %vm308, %v4342, %v4344
  %v4377 = vsel %vm308, %v4344, %v4346
  %v4378 = vsel %vm308, %v4346, %v4348
  %v4379 = vsel %vm308, %v4348, %v4350
  %v4380 = vsel %vm308, %v4352, %v4354
  %v4381 = vsel %vm308, %v4354, %v4356
  %v4382 = vsel %vm308, %v4356, %v4358
  %v4383 = vsel %vm308, %v4358, %v4360
  %v4384 = vsel %vm308, %v4360, %v4362
  %v4385 = vsel %vm308, %v4362, %v4364
  %v4386 = vsel %vm308, %v4364, %v4366
  %v4387 = vsel %vm308, %v4366, %v4368
  %v4388 = vsel %vm308, %v4368, %v4370
  %v4399 = vsel %vm3647, %v4330, 0
  %v4401 = vsel %vm776, %v4380, 0
  %v4403 = vsel %vm776, %v4381, 0
  %v4405 = vsel %vm776, %v4382, 0
  %v4407 = vsel %vm776, %v4383, 0
  %v4409 = vsel %vm776, %v4384, 0
  %v4411 = vsel %vm776, %v4385, 0
  %v4413 = vsel %vm776, %v4386, 0
  %v4415 = vsel %vm776, %v4387, 0
  %v4417 = vsel %vm776, %v4388, 0
  %4419 = vmatpush.msra.mxu0 0.0
  %4420 = vmatpush.msra.mxu0 0.0
  %4421 = vmatpush.msra.mxu0 0.0
  %4422 = vmatpush.msra.mxu0 0.0
  %4423 = vmatpush.msra.mxu0 0.0
  %4424 = vmatpush.msra.mxu0 0.0
  %4425 = vmatpush.msra.mxu0 0.0
  %4426 = vmatpush.msra.mxu0 0.0
  %4427 = vmatpush.msra.mxu0 0.0
  %4428 = vmatpush.msra.mxu0 0.0
  %4429 = vmatpush.msra.mxu0 0.0
  %4430 = vmatpush.msra.mxu0 0.0
  %4431 = vmatpush.msra.mxu0 0.0
  %4432 = vmatpush.msra.mxu0 0.0
  %4433 = vmatpush.msra.mxu0 %v4401
  %4434 = vmatpush.msra.mxu0 %v4371
  %4435 = vmatmul.f32.gmra.mxu0 %v4399
  %v4436 = vpop.f32.mrf.mxu0
  %v4437 = vadd.f32 0.0, %v4436
  %4438 = vdwg.mxu0
  %4439 = vmatpush.msra.mxu0 0.0
  %4440 = vmatpush.msra.mxu0 0.0
  %4441 = vmatpush.msra.mxu0 0.0
  %4442 = vmatpush.msra.mxu0 0.0
  %4443 = vmatpush.msra.mxu0 0.0
  %4444 = vmatpush.msra.mxu0 0.0
  %4445 = vmatpush.msra.mxu0 0.0
  %4446 = vmatpush.msra.mxu0 0.0
  %4447 = vmatpush.msra.mxu0 0.0
  %4448 = vmatpush.msra.mxu0 0.0
  %4449 = vmatpush.msra.mxu0 0.0
  %4450 = vmatpush.msra.mxu0 0.0
  %4451 = vmatpush.msra.mxu0 0.0
  %4452 = vmatpush.msra.mxu0 0.0
  %4453 = vmatpush.msra.mxu0 %v4403
  %4454 = vmatpush.msra.mxu0 %v4372
  %4455 = vmatmul.f32.gmra.mxu0 %v4399
  %v4456 = vpop.f32.mrf.mxu0
  %v4457 = vadd.f32 0.0, %v4456
  %4458 = vdwg.mxu0
  %4459 = vmatpush.msra.mxu0 0.0
  %4460 = vmatpush.msra.mxu0 0.0
  %4461 = vmatpush.msra.mxu0 0.0
  %4462 = vmatpush.msra.mxu0 0.0
  %4463 = vmatpush.msra.mxu0 0.0
  %4464 = vmatpush.msra.mxu0 0.0
  %4465 = vmatpush.msra.mxu0 0.0
  %4466 = vmatpush.msra.mxu0 0.0
  %4467 = vmatpush.msra.mxu0 0.0
  %4468 = vmatpush.msra.mxu0 0.0
  %4469 = vmatpush.msra.mxu0 0.0
  %4470 = vmatpush.msra.mxu0 0.0
  %4471 = vmatpush.msra.mxu0 0.0
  %4472 = vmatpush.msra.mxu0 0.0
  %4473 = vmatpush.msra.mxu0 %v4405
  %4474 = vmatpush.msra.mxu0 %v4373
  %4475 = vmatmul.f32.gmra.mxu0 %v4399
  %v4476 = vpop.f32.mrf.mxu0
  %v4477 = vadd.f32 0.0, %v4476
  %4478 = vdwg.mxu0
  %4479 = vmatpush.msra.mxu0 0.0
  %4480 = vmatpush.msra.mxu0 0.0
  %4481 = vmatpush.msra.mxu0 0.0
  %4482 = vmatpush.msra.mxu0 0.0
  %4483 = vmatpush.msra.mxu0 0.0
  %4484 = vmatpush.msra.mxu0 0.0
  %4485 = vmatpush.msra.mxu0 0.0
  %4486 = vmatpush.msra.mxu0 0.0
  %4487 = vmatpush.msra.mxu0 0.0
  %4488 = vmatpush.msra.mxu0 0.0
  %4489 = vmatpush.msra.mxu0 0.0
  %4490 = vmatpush.msra.mxu0 0.0
  %4491 = vmatpush.msra.mxu0 0.0
  %4492 = vmatpush.msra.mxu0 0.0
  %4493 = vmatpush.msra.mxu0 %v4407
  %4494 = vmatpush.msra.mxu0 %v4374
  %4495 = vmatmul.f32.gmra.mxu0 %v4399
  %v4496 = vpop.f32.mrf.mxu0
  %v4497 = vadd.f32 0.0, %v4496
  %4498 = vdwg.mxu0
  %4499 = vmatpush.msra.mxu0 0.0
  %4500 = vmatpush.msra.mxu0 0.0
  %4501 = vmatpush.msra.mxu0 0.0
  %4502 = vmatpush.msra.mxu0 0.0
  %4503 = vmatpush.msra.mxu0 0.0
  %4504 = vmatpush.msra.mxu0 0.0
  %4505 = vmatpush.msra.mxu0 0.0
  %4506 = vmatpush.msra.mxu0 0.0
  %4507 = vmatpush.msra.mxu0 0.0
  %4508 = vmatpush.msra.mxu0 0.0
  %4509 = vmatpush.msra.mxu0 0.0
  %4510 = vmatpush.msra.mxu0 0.0
  %4511 = vmatpush.msra.mxu0 0.0
  %4512 = vmatpush.msra.mxu0 0.0
  %4513 = vmatpush.msra.mxu0 %v4409
  %4514 = vmatpush.msra.mxu0 %v4375
  %4515 = vmatmul.f32.gmra.mxu0 %v4399
  %v4516 = vpop.f32.mrf.mxu0
  %v4517 = vadd.f32 0.0, %v4516
  %4518 = vdwg.mxu0
  %4519 = vmatpush.msra.mxu0 0.0
  %4520 = vmatpush.msra.mxu0 0.0
  %4521 = vmatpush.msra.mxu0 0.0
  %4522 = vmatpush.msra.mxu0 0.0
  %4523 = vmatpush.msra.mxu0 0.0
  %4524 = vmatpush.msra.mxu0 0.0
  %4525 = vmatpush.msra.mxu0 0.0
  %4526 = vmatpush.msra.mxu0 0.0
  %4527 = vmatpush.msra.mxu0 0.0
  %4528 = vmatpush.msra.mxu0 0.0
  %4529 = vmatpush.msra.mxu0 0.0
  %4530 = vmatpush.msra.mxu0 0.0
  %4531 = vmatpush.msra.mxu0 0.0
  %4532 = vmatpush.msra.mxu0 0.0
  %4533 = vmatpush.msra.mxu0 %v4411
  %4534 = vmatpush.msra.mxu0 %v4376
  %4535 = vmatmul.f32.gmra.mxu0 %v4399
  %v4536 = vpop.f32.mrf.mxu0
  %v4537 = vadd.f32 0.0, %v4536
  %4538 = vdwg.mxu0
  %4539 = vmatpush.msra.mxu0 0.0
  %4540 = vmatpush.msra.mxu0 0.0
  %4541 = vmatpush.msra.mxu0 0.0
  %4542 = vmatpush.msra.mxu0 0.0
  %4543 = vmatpush.msra.mxu0 0.0
  %4544 = vmatpush.msra.mxu0 0.0
  %4545 = vmatpush.msra.mxu0 0.0
  %4546 = vmatpush.msra.mxu0 0.0
  %4547 = vmatpush.msra.mxu0 0.0
  %4548 = vmatpush.msra.mxu0 0.0
  %4549 = vmatpush.msra.mxu0 0.0
  %4550 = vmatpush.msra.mxu0 0.0
  %4551 = vmatpush.msra.mxu0 0.0
  %4552 = vmatpush.msra.mxu0 0.0
  %4553 = vmatpush.msra.mxu0 %v4413
  %4554 = vmatpush.msra.mxu0 %v4377
  %4555 = vmatmul.f32.gmra.mxu0 %v4399
  %v4556 = vpop.f32.mrf.mxu0
  %v4557 = vadd.f32 0.0, %v4556
  %4558 = vdwg.mxu0
  %4559 = vmatpush.msra.mxu0 0.0
  %4560 = vmatpush.msra.mxu0 0.0
  %4561 = vmatpush.msra.mxu0 0.0
  %4562 = vmatpush.msra.mxu0 0.0
  %4563 = vmatpush.msra.mxu0 0.0
  %4564 = vmatpush.msra.mxu0 0.0
  %4565 = vmatpush.msra.mxu0 0.0
  %4566 = vmatpush.msra.mxu0 0.0
  %4567 = vmatpush.msra.mxu0 0.0
  %4568 = vmatpush.msra.mxu0 0.0
  %4569 = vmatpush.msra.mxu0 0.0
  %4570 = vmatpush.msra.mxu0 0.0
  %4571 = vmatpush.msra.mxu0 0.0
  %4572 = vmatpush.msra.mxu0 0.0
  %4573 = vmatpush.msra.mxu0 %v4415
  %4574 = vmatpush.msra.mxu0 %v4378
  %4575 = vmatmul.f32.gmra.mxu0 %v4399
  %v4576 = vpop.f32.mrf.mxu0
  %v4577 = vadd.f32 0.0, %v4576
  %4578 = vdwg.mxu0
  %4579 = vmatpush.msra.mxu0 0.0
  %4580 = vmatpush.msra.mxu0 0.0
  %4581 = vmatpush.msra.mxu0 0.0
  %4582 = vmatpush.msra.mxu0 0.0
  %4583 = vmatpush.msra.mxu0 0.0
  %4584 = vmatpush.msra.mxu0 0.0
  %4585 = vmatpush.msra.mxu0 0.0
  %4586 = vmatpush.msra.mxu0 0.0
  %4587 = vmatpush.msra.mxu0 0.0
  %4588 = vmatpush.msra.mxu0 0.0
  %4589 = vmatpush.msra.mxu0 0.0
  %4590 = vmatpush.msra.mxu0 0.0
  %4591 = vmatpush.msra.mxu0 0.0
  %4592 = vmatpush.msra.mxu0 0.0
  %4593 = vmatpush.msra.mxu0 %v4417
  %4594 = vmatpush.msra.mxu0 %v4379
  %4595 = vmatmul.f32.gmra.mxu0 %v4399
  %v4596 = vpop.f32.mrf.mxu0
  %v4597 = vadd.f32 0.0, %v4596
  %4598 = vdwg.mxu0
  %v4599 = vadd.f32 %v4320, %v4437
  %v4600 = vadd.f32 %v4321, %v4457
  %v4601 = vadd.f32 %v4322, %v4477
  %v4602 = vadd.f32 %v4323, %v4497
  %v4603 = vadd.f32 %v4324, %v4517
  %v4604 = vadd.f32 %v4325, %v4537
  %v4605 = vadd.f32 %v4326, %v4557
  %v4606 = vadd.f32 %v4327, %v4577
  %v4607 = vadd.f32 %v4328, %v4597
  %s4608 = scalar_lea.vmem %s5, 32
  %v4609 = vld [vmem:[%s4608] sm:$0x3f]
  %4610 = vrot.lane.b32.xlu0 %v3537, 103
  %v4611 = vpop.permute.xlu0 %4610
  %4612 = vrot.lane.b32.xlu0 %v3538, 103
  %v4613 = vpop.permute.xlu0 %4612
  %4614 = vrot.lane.b32.xlu0 %v3539, 103
  %v4615 = vpop.permute.xlu0 %4614
  %4616 = vrot.lane.b32.xlu0 %v3540, 103
  %v4617 = vpop.permute.xlu0 %4616
  %4618 = vrot.lane.b32.xlu0 %v3541, 103
  %v4619 = vpop.permute.xlu0 %4618
  %4620 = vrot.lane.b32.xlu0 %v3542, 103
  %v4621 = vpop.permute.xlu0 %4620
  %4622 = vrot.lane.b32.xlu0 %v3543, 103
  %v4623 = vpop.permute.xlu0 %4622
  %4624 = vrot.lane.b32.xlu0 %v3544, 103
  %v4625 = vpop.permute.xlu0 %4624
  %4626 = vrot.lane.b32.xlu0 %v3545, 103
  %v4627 = vpop.permute.xlu0 %4626
  %4628 = vrot.lane.b32.xlu0 %v3556, 103
  %v4629 = vpop.permute.xlu0 %4628
  %4630 = vrot.lane.b32.xlu0 %v3546, 103
  %v4631 = vpop.permute.xlu0 %4630
  %4632 = vrot.lane.b32.xlu0 %v3547, 103
  %v4633 = vpop.permute.xlu0 %4632
  %4634 = vrot.lane.b32.xlu0 %v3548, 103
  %v4635 = vpop.permute.xlu0 %4634
  %4636 = vrot.lane.b32.xlu0 %v3549, 103
  %v4637 = vpop.permute.xlu0 %4636
  %4638 = vrot.lane.b32.xlu0 %v3550, 103
  %v4639 = vpop.permute.xlu0 %4638
  %4640 = vrot.lane.b32.xlu0 %v3551, 103
  %v4641 = vpop.permute.xlu0 %4640
  %4642 = vrot.lane.b32.xlu0 %v3552, 103
  %v4643 = vpop.permute.xlu0 %4642
  %4644 = vrot.lane.b32.xlu0 %v3553, 103
  %v4645 = vpop.permute.xlu0 %4644
  %4646 = vrot.lane.b32.xlu0 %v3554, 103
  %v4647 = vpop.permute.xlu0 %4646
  %4648 = vrot.lane.b32.xlu0 %v3557, 103
  %v4649 = vpop.permute.xlu0 %4648
  %v4650 = vsel %vm383, %v4611, %v4613
  %v4651 = vsel %vm383, %v4613, %v4615
  %v4652 = vsel %vm383, %v4615, %v4617
  %v4653 = vsel %vm383, %v4617, %v4619
  %v4654 = vsel %vm383, %v4619, %v4621
  %v4655 = vsel %vm383, %v4621, %v4623
  %v4656 = vsel %vm383, %v4623, %v4625
  %v4657 = vsel %vm383, %v4625, %v4627
  %v4658 = vsel %vm383, %v4627, %v4629
  %v4659 = vsel %vm383, %v4631, %v4633
  %v4660 = vsel %vm383, %v4633, %v4635
  %v4661 = vsel %vm383, %v4635, %v4637
  %v4662 = vsel %vm383, %v4637, %v4639
  %v4663 = vsel %vm383, %v4639, %v4641
  %v4664 = vsel %vm383, %v4641, %v4643
  %v4665 = vsel %vm383, %v4643, %v4645
  %v4666 = vsel %vm383, %v4645, %v4647
  %v4667 = vsel %vm383, %v4647, %v4649
  %v4678 = vsel %vm3647, %v4609, 0
  %v4680 = vsel %vm776, %v4659, 0
  %v4682 = vsel %vm776, %v4660, 0
  %v4684 = vsel %vm776, %v4661, 0
  %v4686 = vsel %vm776, %v4662, 0
  %v4688 = vsel %vm776, %v4663, 0
  %v4690 = vsel %vm776, %v4664, 0
  %v4692 = vsel %vm776, %v4665, 0
  %v4694 = vsel %vm776, %v4666, 0
  %v4696 = vsel %vm776, %v4667, 0
  %4698 = vmatpush.msra.mxu0 0.0
  %4699 = vmatpush.msra.mxu0 0.0
  %4700 = vmatpush.msra.mxu0 0.0
  %4701 = vmatpush.msra.mxu0 0.0
  %4702 = vmatpush.msra.mxu0 0.0
  %4703 = vmatpush.msra.mxu0 0.0
  %4704 = vmatpush.msra.mxu0 0.0
  %4705 = vmatpush.msra.mxu0 0.0
  %4706 = vmatpush.msra.mxu0 0.0
  %4707 = vmatpush.msra.mxu0 0.0
  %4708 = vmatpush.msra.mxu0 0.0
  %4709 = vmatpush.msra.mxu0 0.0
  %4710 = vmatpush.msra.mxu0 0.0
  %4711 = vmatpush.msra.mxu0 0.0
  %4712 = vmatpush.msra.mxu0 %v4680
  %4713 = vmatpush.msra.mxu0 %v4650
  %4714 = vmatmul.f32.gmra.mxu0 %v4678
  %v4715 = vpop.f32.mrf.mxu0
  %v4716 = vadd.f32 0.0, %v4715
  %4717 = vdwg.mxu0
  %4718 = vmatpush.msra.mxu0 0.0
  %4719 = vmatpush.msra.mxu0 0.0
  %4720 = vmatpush.msra.mxu0 0.0
  %4721 = vmatpush.msra.mxu0 0.0
  %4722 = vmatpush.msra.mxu0 0.0
  %4723 = vmatpush.msra.mxu0 0.0
  %4724 = vmatpush.msra.mxu0 0.0
  %4725 = vmatpush.msra.mxu0 0.0
  %4726 = vmatpush.msra.mxu0 0.0
  %4727 = vmatpush.msra.mxu0 0.0
  %4728 = vmatpush.msra.mxu0 0.0
  %4729 = vmatpush.msra.mxu0 0.0
  %4730 = vmatpush.msra.mxu0 0.0
  %4731 = vmatpush.msra.mxu0 0.0
  %4732 = vmatpush.msra.mxu0 %v4682
  %4733 = vmatpush.msra.mxu0 %v4651
  %4734 = vmatmul.f32.gmra.mxu0 %v4678
  %v4735 = vpop.f32.mrf.mxu0
  %v4736 = vadd.f32 0.0, %v4735
  %4737 = vdwg.mxu0
  %4738 = vmatpush.msra.mxu0 0.0
  %4739 = vmatpush.msra.mxu0 0.0
  %4740 = vmatpush.msra.mxu0 0.0
  %4741 = vmatpush.msra.mxu0 0.0
  %4742 = vmatpush.msra.mxu0 0.0
  %4743 = vmatpush.msra.mxu0 0.0
  %4744 = vmatpush.msra.mxu0 0.0
  %4745 = vmatpush.msra.mxu0 0.0
  %4746 = vmatpush.msra.mxu0 0.0
  %4747 = vmatpush.msra.mxu0 0.0
  %4748 = vmatpush.msra.mxu0 0.0
  %4749 = vmatpush.msra.mxu0 0.0
  %4750 = vmatpush.msra.mxu0 0.0
  %4751 = vmatpush.msra.mxu0 0.0
  %4752 = vmatpush.msra.mxu0 %v4684
  %4753 = vmatpush.msra.mxu0 %v4652
  %4754 = vmatmul.f32.gmra.mxu0 %v4678
  %v4755 = vpop.f32.mrf.mxu0
  %v4756 = vadd.f32 0.0, %v4755
  %4757 = vdwg.mxu0
  %4758 = vmatpush.msra.mxu0 0.0
  %4759 = vmatpush.msra.mxu0 0.0
  %4760 = vmatpush.msra.mxu0 0.0
  %4761 = vmatpush.msra.mxu0 0.0
  %4762 = vmatpush.msra.mxu0 0.0
  %4763 = vmatpush.msra.mxu0 0.0
  %4764 = vmatpush.msra.mxu0 0.0
  %4765 = vmatpush.msra.mxu0 0.0
  %4766 = vmatpush.msra.mxu0 0.0
  %4767 = vmatpush.msra.mxu0 0.0
  %4768 = vmatpush.msra.mxu0 0.0
  %4769 = vmatpush.msra.mxu0 0.0
  %4770 = vmatpush.msra.mxu0 0.0
  %4771 = vmatpush.msra.mxu0 0.0
  %4772 = vmatpush.msra.mxu0 %v4686
  %4773 = vmatpush.msra.mxu0 %v4653
  %4774 = vmatmul.f32.gmra.mxu0 %v4678
  %v4775 = vpop.f32.mrf.mxu0
  %v4776 = vadd.f32 0.0, %v4775
  %4777 = vdwg.mxu0
  %4778 = vmatpush.msra.mxu0 0.0
  %4779 = vmatpush.msra.mxu0 0.0
  %4780 = vmatpush.msra.mxu0 0.0
  %4781 = vmatpush.msra.mxu0 0.0
  %4782 = vmatpush.msra.mxu0 0.0
  %4783 = vmatpush.msra.mxu0 0.0
  %4784 = vmatpush.msra.mxu0 0.0
  %4785 = vmatpush.msra.mxu0 0.0
  %4786 = vmatpush.msra.mxu0 0.0
  %4787 = vmatpush.msra.mxu0 0.0
  %4788 = vmatpush.msra.mxu0 0.0
  %4789 = vmatpush.msra.mxu0 0.0
  %4790 = vmatpush.msra.mxu0 0.0
  %4791 = vmatpush.msra.mxu0 0.0
  %4792 = vmatpush.msra.mxu0 %v4688
  %4793 = vmatpush.msra.mxu0 %v4654
  %4794 = vmatmul.f32.gmra.mxu0 %v4678
  %v4795 = vpop.f32.mrf.mxu0
  %v4796 = vadd.f32 0.0, %v4795
  %4797 = vdwg.mxu0
  %4798 = vmatpush.msra.mxu0 0.0
  %4799 = vmatpush.msra.mxu0 0.0
  %4800 = vmatpush.msra.mxu0 0.0
  %4801 = vmatpush.msra.mxu0 0.0
  %4802 = vmatpush.msra.mxu0 0.0
  %4803 = vmatpush.msra.mxu0 0.0
  %4804 = vmatpush.msra.mxu0 0.0
  %4805 = vmatpush.msra.mxu0 0.0
  %4806 = vmatpush.msra.mxu0 0.0
  %4807 = vmatpush.msra.mxu0 0.0
  %4808 = vmatpush.msra.mxu0 0.0
  %4809 = vmatpush.msra.mxu0 0.0
  %4810 = vmatpush.msra.mxu0 0.0
  %4811 = vmatpush.msra.mxu0 0.0
  %4812 = vmatpush.msra.mxu0 %v4690
  %4813 = vmatpush.msra.mxu0 %v4655
  %4814 = vmatmul.f32.gmra.mxu0 %v4678
  %v4815 = vpop.f32.mrf.mxu0
  %v4816 = vadd.f32 0.0, %v4815
  %4817 = vdwg.mxu0
  %4818 = vmatpush.msra.mxu0 0.0
  %4819 = vmatpush.msra.mxu0 0.0
  %4820 = vmatpush.msra.mxu0 0.0
  %4821 = vmatpush.msra.mxu0 0.0
  %4822 = vmatpush.msra.mxu0 0.0
  %4823 = vmatpush.msra.mxu0 0.0
  %4824 = vmatpush.msra.mxu0 0.0
  %4825 = vmatpush.msra.mxu0 0.0
  %4826 = vmatpush.msra.mxu0 0.0
  %4827 = vmatpush.msra.mxu0 0.0
  %4828 = vmatpush.msra.mxu0 0.0
  %4829 = vmatpush.msra.mxu0 0.0
  %4830 = vmatpush.msra.mxu0 0.0
  %4831 = vmatpush.msra.mxu0 0.0
  %4832 = vmatpush.msra.mxu0 %v4692
  %4833 = vmatpush.msra.mxu0 %v4656
  %4834 = vmatmul.f32.gmra.mxu0 %v4678
  %v4835 = vpop.f32.mrf.mxu0
  %v4836 = vadd.f32 0.0, %v4835
  %4837 = vdwg.mxu0
  %4838 = vmatpush.msra.mxu0 0.0
  %4839 = vmatpush.msra.mxu0 0.0
  %4840 = vmatpush.msra.mxu0 0.0
  %4841 = vmatpush.msra.mxu0 0.0
  %4842 = vmatpush.msra.mxu0 0.0
  %4843 = vmatpush.msra.mxu0 0.0
  %4844 = vmatpush.msra.mxu0 0.0
  %4845 = vmatpush.msra.mxu0 0.0
  %4846 = vmatpush.msra.mxu0 0.0
  %4847 = vmatpush.msra.mxu0 0.0
  %4848 = vmatpush.msra.mxu0 0.0
  %4849 = vmatpush.msra.mxu0 0.0
  %4850 = vmatpush.msra.mxu0 0.0
  %4851 = vmatpush.msra.mxu0 0.0
  %4852 = vmatpush.msra.mxu0 %v4694
  %4853 = vmatpush.msra.mxu0 %v4657
  %4854 = vmatmul.f32.gmra.mxu0 %v4678
  %v4855 = vpop.f32.mrf.mxu0
  %v4856 = vadd.f32 0.0, %v4855
  %4857 = vdwg.mxu0
  %4858 = vmatpush.msra.mxu0 0.0
  %4859 = vmatpush.msra.mxu0 0.0
  %4860 = vmatpush.msra.mxu0 0.0
  %4861 = vmatpush.msra.mxu0 0.0
  %4862 = vmatpush.msra.mxu0 0.0
  %4863 = vmatpush.msra.mxu0 0.0
  %4864 = vmatpush.msra.mxu0 0.0
  %4865 = vmatpush.msra.mxu0 0.0
  %4866 = vmatpush.msra.mxu0 0.0
  %4867 = vmatpush.msra.mxu0 0.0
  %4868 = vmatpush.msra.mxu0 0.0
  %4869 = vmatpush.msra.mxu0 0.0
  %4870 = vmatpush.msra.mxu0 0.0
  %4871 = vmatpush.msra.mxu0 0.0
  %4872 = vmatpush.msra.mxu0 %v4696
  %4873 = vmatpush.msra.mxu0 %v4658
  %4874 = vmatmul.f32.gmra.mxu0 %v4678
  %v4875 = vpop.f32.mrf.mxu0
  %v4876 = vadd.f32 0.0, %v4875
  %4877 = vdwg.mxu0
  %v4878 = vadd.f32 %v4599, %v4716
  %v4879 = vadd.f32 %v4600, %v4736
  %v4880 = vadd.f32 %v4601, %v4756
  %v4881 = vadd.f32 %v4602, %v4776
  %v4882 = vadd.f32 %v4603, %v4796
  %v4883 = vadd.f32 %v4604, %v4816
  %v4884 = vadd.f32 %v4605, %v4836
  %v4885 = vadd.f32 %v4606, %v4856
  %v4886 = vadd.f32 %v4607, %v4876
  %s4887 = scalar_lea.vmem %s5, 40
  %v4888 = vld [vmem:[%s4887] sm:$0x3f]
  %4889 = vrot.lane.b32.xlu0 %v3537, 102
  %v4890 = vpop.permute.xlu0 %4889
  %4891 = vrot.lane.b32.xlu0 %v3538, 102
  %v4892 = vpop.permute.xlu0 %4891
  %4893 = vrot.lane.b32.xlu0 %v3539, 102
  %v4894 = vpop.permute.xlu0 %4893
  %4895 = vrot.lane.b32.xlu0 %v3540, 102
  %v4896 = vpop.permute.xlu0 %4895
  %4897 = vrot.lane.b32.xlu0 %v3541, 102
  %v4898 = vpop.permute.xlu0 %4897
  %4899 = vrot.lane.b32.xlu0 %v3542, 102
  %v4900 = vpop.permute.xlu0 %4899
  %4901 = vrot.lane.b32.xlu0 %v3543, 102
  %v4902 = vpop.permute.xlu0 %4901
  %4903 = vrot.lane.b32.xlu0 %v3544, 102
  %v4904 = vpop.permute.xlu0 %4903
  %4905 = vrot.lane.b32.xlu0 %v3545, 102
  %v4906 = vpop.permute.xlu0 %4905
  %4907 = vrot.lane.b32.xlu0 %v3556, 102
  %v4908 = vpop.permute.xlu0 %4907
  %4909 = vrot.lane.b32.xlu0 %v3546, 102
  %v4910 = vpop.permute.xlu0 %4909
  %4911 = vrot.lane.b32.xlu0 %v3547, 102
  %v4912 = vpop.permute.xlu0 %4911
  %4913 = vrot.lane.b32.xlu0 %v3548, 102
  %v4914 = vpop.permute.xlu0 %4913
  %4915 = vrot.lane.b32.xlu0 %v3549, 102
  %v4916 = vpop.permute.xlu0 %4915
  %4917 = vrot.lane.b32.xlu0 %v3550, 102
  %v4918 = vpop.permute.xlu0 %4917
  %4919 = vrot.lane.b32.xlu0 %v3551, 102
  %v4920 = vpop.permute.xlu0 %4919
  %4921 = vrot.lane.b32.xlu0 %v3552, 102
  %v4922 = vpop.permute.xlu0 %4921
  %4923 = vrot.lane.b32.xlu0 %v3553, 102
  %v4924 = vpop.permute.xlu0 %4923
  %4925 = vrot.lane.b32.xlu0 %v3554, 102
  %v4926 = vpop.permute.xlu0 %4925
  %4927 = vrot.lane.b32.xlu0 %v3557, 102
  %v4928 = vpop.permute.xlu0 %4927
  %v4929 = vsel %vm458, %v4890, %v4892
  %v4930 = vsel %vm458, %v4892, %v4894
  %v4931 = vsel %vm458, %v4894, %v4896
  %v4932 = vsel %vm458, %v4896, %v4898
  %v4933 = vsel %vm458, %v4898, %v4900
  %v4934 = vsel %vm458, %v4900, %v4902
  %v4935 = vsel %vm458, %v4902, %v4904
  %v4936 = vsel %vm458, %v4904, %v4906
  %v4937 = vsel %vm458, %v4906, %v4908
  %v4938 = vsel %vm458, %v4910, %v4912
  %v4939 = vsel %vm458, %v4912, %v4914
  %v4940 = vsel %vm458, %v4914, %v4916
  %v4941 = vsel %vm458, %v4916, %v4918
  %v4942 = vsel %vm458, %v4918, %v4920
  %v4943 = vsel %vm458, %v4920, %v4922
  %v4944 = vsel %vm458, %v4922, %v4924
  %v4945 = vsel %vm458, %v4924, %v4926
  %v4946 = vsel %vm458, %v4926, %v4928
  %v4957 = vsel %vm3647, %v4888, 0
  %v4959 = vsel %vm776, %v4938, 0
  %v4961 = vsel %vm776, %v4939, 0
  %v4963 = vsel %vm776, %v4940, 0
  %v4965 = vsel %vm776, %v4941, 0
  %v4967 = vsel %vm776, %v4942, 0
  %v4969 = vsel %vm776, %v4943, 0
  %v4971 = vsel %vm776, %v4944, 0
  %v4973 = vsel %vm776, %v4945, 0
  %v4975 = vsel %vm776, %v4946, 0
  %4977 = vmatpush.msra.mxu0 0.0
  %4978 = vmatpush.msra.mxu0 0.0
  %4979 = vmatpush.msra.mxu0 0.0
  %4980 = vmatpush.msra.mxu0 0.0
  %4981 = vmatpush.msra.mxu0 0.0
  %4982 = vmatpush.msra.mxu0 0.0
  %4983 = vmatpush.msra.mxu0 0.0
  %4984 = vmatpush.msra.mxu0 0.0
  %4985 = vmatpush.msra.mxu0 0.0
  %4986 = vmatpush.msra.mxu0 0.0
  %4987 = vmatpush.msra.mxu0 0.0
  %4988 = vmatpush.msra.mxu0 0.0
  %4989 = vmatpush.msra.mxu0 0.0
  %4990 = vmatpush.msra.mxu0 0.0
  %4991 = vmatpush.msra.mxu0 %v4959
  %4992 = vmatpush.msra.mxu0 %v4929
  %4993 = vmatmul.f32.gmra.mxu0 %v4957
  %v4994 = vpop.f32.mrf.mxu0
  %v4995 = vadd.f32 0.0, %v4994
  %4996 = vdwg.mxu0
  %4997 = vmatpush.msra.mxu0 0.0
  %4998 = vmatpush.msra.mxu0 0.0
  %4999 = vmatpush.msra.mxu0 0.0
  %5000 = vmatpush.msra.mxu0 0.0
  %5001 = vmatpush.msra.mxu0 0.0
  %5002 = vmatpush.msra.mxu0 0.0
  %5003 = vmatpush.msra.mxu0 0.0
  %5004 = vmatpush.msra.mxu0 0.0
  %5005 = vmatpush.msra.mxu0 0.0
  %5006 = vmatpush.msra.mxu0 0.0
  %5007 = vmatpush.msra.mxu0 0.0
  %5008 = vmatpush.msra.mxu0 0.0
  %5009 = vmatpush.msra.mxu0 0.0
  %5010 = vmatpush.msra.mxu0 0.0
  %5011 = vmatpush.msra.mxu0 %v4961
  %5012 = vmatpush.msra.mxu0 %v4930
  %5013 = vmatmul.f32.gmra.mxu0 %v4957
  %v5014 = vpop.f32.mrf.mxu0
  %v5015 = vadd.f32 0.0, %v5014
  %5016 = vdwg.mxu0
  %5017 = vmatpush.msra.mxu0 0.0
  %5018 = vmatpush.msra.mxu0 0.0
  %5019 = vmatpush.msra.mxu0 0.0
  %5020 = vmatpush.msra.mxu0 0.0
  %5021 = vmatpush.msra.mxu0 0.0
  %5022 = vmatpush.msra.mxu0 0.0
  %5023 = vmatpush.msra.mxu0 0.0
  %5024 = vmatpush.msra.mxu0 0.0
  %5025 = vmatpush.msra.mxu0 0.0
  %5026 = vmatpush.msra.mxu0 0.0
  %5027 = vmatpush.msra.mxu0 0.0
  %5028 = vmatpush.msra.mxu0 0.0
  %5029 = vmatpush.msra.mxu0 0.0
  %5030 = vmatpush.msra.mxu0 0.0
  %5031 = vmatpush.msra.mxu0 %v4963
  %5032 = vmatpush.msra.mxu0 %v4931
  %5033 = vmatmul.f32.gmra.mxu0 %v4957
  %v5034 = vpop.f32.mrf.mxu0
  %v5035 = vadd.f32 0.0, %v5034
  %5036 = vdwg.mxu0
  %5037 = vmatpush.msra.mxu0 0.0
  %5038 = vmatpush.msra.mxu0 0.0
  %5039 = vmatpush.msra.mxu0 0.0
  %5040 = vmatpush.msra.mxu0 0.0
  %5041 = vmatpush.msra.mxu0 0.0
  %5042 = vmatpush.msra.mxu0 0.0
  %5043 = vmatpush.msra.mxu0 0.0
  %5044 = vmatpush.msra.mxu0 0.0
  %5045 = vmatpush.msra.mxu0 0.0
  %5046 = vmatpush.msra.mxu0 0.0
  %5047 = vmatpush.msra.mxu0 0.0
  %5048 = vmatpush.msra.mxu0 0.0
  %5049 = vmatpush.msra.mxu0 0.0
  %5050 = vmatpush.msra.mxu0 0.0
  %5051 = vmatpush.msra.mxu0 %v4965
  %5052 = vmatpush.msra.mxu0 %v4932
  %5053 = vmatmul.f32.gmra.mxu0 %v4957
  %v5054 = vpop.f32.mrf.mxu0
  %v5055 = vadd.f32 0.0, %v5054
  %5056 = vdwg.mxu0
  %5057 = vmatpush.msra.mxu0 0.0
  %5058 = vmatpush.msra.mxu0 0.0
  %5059 = vmatpush.msra.mxu0 0.0
  %5060 = vmatpush.msra.mxu0 0.0
  %5061 = vmatpush.msra.mxu0 0.0
  %5062 = vmatpush.msra.mxu0 0.0
  %5063 = vmatpush.msra.mxu0 0.0
  %5064 = vmatpush.msra.mxu0 0.0
  %5065 = vmatpush.msra.mxu0 0.0
  %5066 = vmatpush.msra.mxu0 0.0
  %5067 = vmatpush.msra.mxu0 0.0
  %5068 = vmatpush.msra.mxu0 0.0
  %5069 = vmatpush.msra.mxu0 0.0
  %5070 = vmatpush.msra.mxu0 0.0
  %5071 = vmatpush.msra.mxu0 %v4967
  %5072 = vmatpush.msra.mxu0 %v4933
  %5073 = vmatmul.f32.gmra.mxu0 %v4957
  %v5074 = vpop.f32.mrf.mxu0
  %v5075 = vadd.f32 0.0, %v5074
  %5076 = vdwg.mxu0
  %5077 = vmatpush.msra.mxu0 0.0
  %5078 = vmatpush.msra.mxu0 0.0
  %5079 = vmatpush.msra.mxu0 0.0
  %5080 = vmatpush.msra.mxu0 0.0
  %5081 = vmatpush.msra.mxu0 0.0
  %5082 = vmatpush.msra.mxu0 0.0
  %5083 = vmatpush.msra.mxu0 0.0
  %5084 = vmatpush.msra.mxu0 0.0
  %5085 = vmatpush.msra.mxu0 0.0
  %5086 = vmatpush.msra.mxu0 0.0
  %5087 = vmatpush.msra.mxu0 0.0
  %5088 = vmatpush.msra.mxu0 0.0
  %5089 = vmatpush.msra.mxu0 0.0
  %5090 = vmatpush.msra.mxu0 0.0
  %5091 = vmatpush.msra.mxu0 %v4969
  %5092 = vmatpush.msra.mxu0 %v4934
  %5093 = vmatmul.f32.gmra.mxu0 %v4957
  %v5094 = vpop.f32.mrf.mxu0
  %v5095 = vadd.f32 0.0, %v5094
  %5096 = vdwg.mxu0
  %5097 = vmatpush.msra.mxu0 0.0
  %5098 = vmatpush.msra.mxu0 0.0
  %5099 = vmatpush.msra.mxu0 0.0
  %5100 = vmatpush.msra.mxu0 0.0
  %5101 = vmatpush.msra.mxu0 0.0
  %5102 = vmatpush.msra.mxu0 0.0
  %5103 = vmatpush.msra.mxu0 0.0
  %5104 = vmatpush.msra.mxu0 0.0
  %5105 = vmatpush.msra.mxu0 0.0
  %5106 = vmatpush.msra.mxu0 0.0
  %5107 = vmatpush.msra.mxu0 0.0
  %5108 = vmatpush.msra.mxu0 0.0
  %5109 = vmatpush.msra.mxu0 0.0
  %5110 = vmatpush.msra.mxu0 0.0
  %5111 = vmatpush.msra.mxu0 %v4971
  %5112 = vmatpush.msra.mxu0 %v4935
  %5113 = vmatmul.f32.gmra.mxu0 %v4957
  %v5114 = vpop.f32.mrf.mxu0
  %v5115 = vadd.f32 0.0, %v5114
  %5116 = vdwg.mxu0
  %5117 = vmatpush.msra.mxu0 0.0
  %5118 = vmatpush.msra.mxu0 0.0
  %5119 = vmatpush.msra.mxu0 0.0
  %5120 = vmatpush.msra.mxu0 0.0
  %5121 = vmatpush.msra.mxu0 0.0
  %5122 = vmatpush.msra.mxu0 0.0
  %5123 = vmatpush.msra.mxu0 0.0
  %5124 = vmatpush.msra.mxu0 0.0
  %5125 = vmatpush.msra.mxu0 0.0
  %5126 = vmatpush.msra.mxu0 0.0
  %5127 = vmatpush.msra.mxu0 0.0
  %5128 = vmatpush.msra.mxu0 0.0
  %5129 = vmatpush.msra.mxu0 0.0
  %5130 = vmatpush.msra.mxu0 0.0
  %5131 = vmatpush.msra.mxu0 %v4973
  %5132 = vmatpush.msra.mxu0 %v4936
  %5133 = vmatmul.f32.gmra.mxu0 %v4957
  %v5134 = vpop.f32.mrf.mxu0
  %v5135 = vadd.f32 0.0, %v5134
  %5136 = vdwg.mxu0
  %5137 = vmatpush.msra.mxu0 0.0
  %5138 = vmatpush.msra.mxu0 0.0
  %5139 = vmatpush.msra.mxu0 0.0
  %5140 = vmatpush.msra.mxu0 0.0
  %5141 = vmatpush.msra.mxu0 0.0
  %5142 = vmatpush.msra.mxu0 0.0
  %5143 = vmatpush.msra.mxu0 0.0
  %5144 = vmatpush.msra.mxu0 0.0
  %5145 = vmatpush.msra.mxu0 0.0
  %5146 = vmatpush.msra.mxu0 0.0
  %5147 = vmatpush.msra.mxu0 0.0
  %5148 = vmatpush.msra.mxu0 0.0
  %5149 = vmatpush.msra.mxu0 0.0
  %5150 = vmatpush.msra.mxu0 0.0
  %5151 = vmatpush.msra.mxu0 %v4975
  %5152 = vmatpush.msra.mxu0 %v4937
  %5153 = vmatmul.f32.gmra.mxu0 %v4957
  %v5154 = vpop.f32.mrf.mxu0
  %v5155 = vadd.f32 0.0, %v5154
  %5156 = vdwg.mxu0
  %v5157 = vadd.f32 %v4878, %v4995
  %v5158 = vadd.f32 %v4879, %v5015
  %v5159 = vadd.f32 %v4880, %v5035
  %v5160 = vadd.f32 %v4881, %v5055
  %v5161 = vadd.f32 %v4882, %v5075
  %v5162 = vadd.f32 %v4883, %v5095
  %v5163 = vadd.f32 %v4884, %v5115
  %v5164 = vadd.f32 %v4885, %v5135
  %v5165 = vadd.f32 %v4886, %v5155
  %s5166 = scalar_lea.vmem %s5, 48
  %v5167 = vld [vmem:[%s5166] sm:$0x3f]
  %5168 = vrot.lane.b32.xlu0 %v3537, 80
  %v5169 = vpop.permute.xlu0 %5168
  %5170 = vrot.lane.b32.xlu0 %v3538, 80
  %v5171 = vpop.permute.xlu0 %5170
  %5172 = vrot.lane.b32.xlu0 %v3539, 80
  %v5173 = vpop.permute.xlu0 %5172
  %5174 = vrot.lane.b32.xlu0 %v3540, 80
  %v5175 = vpop.permute.xlu0 %5174
  %5176 = vrot.lane.b32.xlu0 %v3541, 80
  %v5177 = vpop.permute.xlu0 %5176
  %5178 = vrot.lane.b32.xlu0 %v3542, 80
  %v5179 = vpop.permute.xlu0 %5178
  %5180 = vrot.lane.b32.xlu0 %v3543, 80
  %v5181 = vpop.permute.xlu0 %5180
  %5182 = vrot.lane.b32.xlu0 %v3544, 80
  %v5183 = vpop.permute.xlu0 %5182
  %5184 = vrot.lane.b32.xlu0 %v3545, 80
  %v5185 = vpop.permute.xlu0 %5184
  %5186 = vrot.lane.b32.xlu0 %v3556, 80
  %v5187 = vpop.permute.xlu0 %5186
  %5188 = vrot.lane.b32.xlu0 %v3546, 80
  %v5189 = vpop.permute.xlu0 %5188
  %5190 = vrot.lane.b32.xlu0 %v3547, 80
  %v5191 = vpop.permute.xlu0 %5190
  %5192 = vrot.lane.b32.xlu0 %v3548, 80
  %v5193 = vpop.permute.xlu0 %5192
  %5194 = vrot.lane.b32.xlu0 %v3549, 80
  %v5195 = vpop.permute.xlu0 %5194
  %5196 = vrot.lane.b32.xlu0 %v3550, 80
  %v5197 = vpop.permute.xlu0 %5196
  %5198 = vrot.lane.b32.xlu0 %v3551, 80
  %v5199 = vpop.permute.xlu0 %5198
  %5200 = vrot.lane.b32.xlu0 %v3552, 80
  %v5201 = vpop.permute.xlu0 %5200
  %5202 = vrot.lane.b32.xlu0 %v3553, 80
  %v5203 = vpop.permute.xlu0 %5202
  %5204 = vrot.lane.b32.xlu0 %v3554, 80
  %v5205 = vpop.permute.xlu0 %5204
  %5206 = vrot.lane.b32.xlu0 %v3557, 80
  %v5207 = vpop.permute.xlu0 %5206
  %v5208 = vsel %vm533, %v5169, %v5171
  %v5209 = vsel %vm533, %v5171, %v5173
  %v5210 = vsel %vm533, %v5173, %v5175
  %v5211 = vsel %vm533, %v5175, %v5177
  %v5212 = vsel %vm533, %v5177, %v5179
  %v5213 = vsel %vm533, %v5179, %v5181
  %v5214 = vsel %vm533, %v5181, %v5183
  %v5215 = vsel %vm533, %v5183, %v5185
  %v5216 = vsel %vm533, %v5185, %v5187
  %v5217 = vsel %vm533, %v5189, %v5191
  %v5218 = vsel %vm533, %v5191, %v5193
  %v5219 = vsel %vm533, %v5193, %v5195
  %v5220 = vsel %vm533, %v5195, %v5197
  %v5221 = vsel %vm533, %v5197, %v5199
  %v5222 = vsel %vm533, %v5199, %v5201
  %v5223 = vsel %vm533, %v5201, %v5203
  %v5224 = vsel %vm533, %v5203, %v5205
  %v5225 = vsel %vm533, %v5205, %v5207
  %v5236 = vsel %vm3647, %v5167, 0
  %v5238 = vsel %vm776, %v5217, 0
  %v5240 = vsel %vm776, %v5218, 0
  %v5242 = vsel %vm776, %v5219, 0
  %v5244 = vsel %vm776, %v5220, 0
  %v5246 = vsel %vm776, %v5221, 0
  %v5248 = vsel %vm776, %v5222, 0
  %v5250 = vsel %vm776, %v5223, 0
  %v5252 = vsel %vm776, %v5224, 0
  %v5254 = vsel %vm776, %v5225, 0
  %5256 = vmatpush.msra.mxu0 0.0
  %5257 = vmatpush.msra.mxu0 0.0
  %5258 = vmatpush.msra.mxu0 0.0
  %5259 = vmatpush.msra.mxu0 0.0
  %5260 = vmatpush.msra.mxu0 0.0
  %5261 = vmatpush.msra.mxu0 0.0
  %5262 = vmatpush.msra.mxu0 0.0
  %5263 = vmatpush.msra.mxu0 0.0
  %5264 = vmatpush.msra.mxu0 0.0
  %5265 = vmatpush.msra.mxu0 0.0
  %5266 = vmatpush.msra.mxu0 0.0
  %5267 = vmatpush.msra.mxu0 0.0
  %5268 = vmatpush.msra.mxu0 0.0
  %5269 = vmatpush.msra.mxu0 0.0
  %5270 = vmatpush.msra.mxu0 %v5238
  %5271 = vmatpush.msra.mxu0 %v5208
  %5272 = vmatmul.f32.gmra.mxu0 %v5236
  %v5273 = vpop.f32.mrf.mxu0
  %v5274 = vadd.f32 0.0, %v5273
  %5275 = vdwg.mxu0
  %5276 = vmatpush.msra.mxu0 0.0
  %5277 = vmatpush.msra.mxu0 0.0
  %5278 = vmatpush.msra.mxu0 0.0
  %5279 = vmatpush.msra.mxu0 0.0
  %5280 = vmatpush.msra.mxu0 0.0
  %5281 = vmatpush.msra.mxu0 0.0
  %5282 = vmatpush.msra.mxu0 0.0
  %5283 = vmatpush.msra.mxu0 0.0
  %5284 = vmatpush.msra.mxu0 0.0
  %5285 = vmatpush.msra.mxu0 0.0
  %5286 = vmatpush.msra.mxu0 0.0
  %5287 = vmatpush.msra.mxu0 0.0
  %5288 = vmatpush.msra.mxu0 0.0
  %5289 = vmatpush.msra.mxu0 0.0
  %5290 = vmatpush.msra.mxu0 %v5240
  %5291 = vmatpush.msra.mxu0 %v5209
  %5292 = vmatmul.f32.gmra.mxu0 %v5236
  %v5293 = vpop.f32.mrf.mxu0
  %v5294 = vadd.f32 0.0, %v5293
  %5295 = vdwg.mxu0
  %5296 = vmatpush.msra.mxu0 0.0
  %5297 = vmatpush.msra.mxu0 0.0
  %5298 = vmatpush.msra.mxu0 0.0
  %5299 = vmatpush.msra.mxu0 0.0
  %5300 = vmatpush.msra.mxu0 0.0
  %5301 = vmatpush.msra.mxu0 0.0
  %5302 = vmatpush.msra.mxu0 0.0
  %5303 = vmatpush.msra.mxu0 0.0
  %5304 = vmatpush.msra.mxu0 0.0
  %5305 = vmatpush.msra.mxu0 0.0
  %5306 = vmatpush.msra.mxu0 0.0
  %5307 = vmatpush.msra.mxu0 0.0
  %5308 = vmatpush.msra.mxu0 0.0
  %5309 = vmatpush.msra.mxu0 0.0
  %5310 = vmatpush.msra.mxu0 %v5242
  %5311 = vmatpush.msra.mxu0 %v5210
  %5312 = vmatmul.f32.gmra.mxu0 %v5236
  %v5313 = vpop.f32.mrf.mxu0
  %v5314 = vadd.f32 0.0, %v5313
  %5315 = vdwg.mxu0
  %5316 = vmatpush.msra.mxu0 0.0
  %5317 = vmatpush.msra.mxu0 0.0
  %5318 = vmatpush.msra.mxu0 0.0
  %5319 = vmatpush.msra.mxu0 0.0
  %5320 = vmatpush.msra.mxu0 0.0
  %5321 = vmatpush.msra.mxu0 0.0
  %5322 = vmatpush.msra.mxu0 0.0
  %5323 = vmatpush.msra.mxu0 0.0
  %5324 = vmatpush.msra.mxu0 0.0
  %5325 = vmatpush.msra.mxu0 0.0
  %5326 = vmatpush.msra.mxu0 0.0
  %5327 = vmatpush.msra.mxu0 0.0
  %5328 = vmatpush.msra.mxu0 0.0
  %5329 = vmatpush.msra.mxu0 0.0
  %5330 = vmatpush.msra.mxu0 %v5244
  %5331 = vmatpush.msra.mxu0 %v5211
  %5332 = vmatmul.f32.gmra.mxu0 %v5236
  %v5333 = vpop.f32.mrf.mxu0
  %v5334 = vadd.f32 0.0, %v5333
  %5335 = vdwg.mxu0
  %5336 = vmatpush.msra.mxu0 0.0
  %5337 = vmatpush.msra.mxu0 0.0
  %5338 = vmatpush.msra.mxu0 0.0
  %5339 = vmatpush.msra.mxu0 0.0
  %5340 = vmatpush.msra.mxu0 0.0
  %5341 = vmatpush.msra.mxu0 0.0
  %5342 = vmatpush.msra.mxu0 0.0
  %5343 = vmatpush.msra.mxu0 0.0
  %5344 = vmatpush.msra.mxu0 0.0
  %5345 = vmatpush.msra.mxu0 0.0
  %5346 = vmatpush.msra.mxu0 0.0
  %5347 = vmatpush.msra.mxu0 0.0
  %5348 = vmatpush.msra.mxu0 0.0
  %5349 = vmatpush.msra.mxu0 0.0
  %5350 = vmatpush.msra.mxu0 %v5246
  %5351 = vmatpush.msra.mxu0 %v5212
  %5352 = vmatmul.f32.gmra.mxu0 %v5236
  %v5353 = vpop.f32.mrf.mxu0
  %v5354 = vadd.f32 0.0, %v5353
  %5355 = vdwg.mxu0
  %5356 = vmatpush.msra.mxu0 0.0
  %5357 = vmatpush.msra.mxu0 0.0
  %5358 = vmatpush.msra.mxu0 0.0
  %5359 = vmatpush.msra.mxu0 0.0
  %5360 = vmatpush.msra.mxu0 0.0
  %5361 = vmatpush.msra.mxu0 0.0
  %5362 = vmatpush.msra.mxu0 0.0
  %5363 = vmatpush.msra.mxu0 0.0
  %5364 = vmatpush.msra.mxu0 0.0
  %5365 = vmatpush.msra.mxu0 0.0
  %5366 = vmatpush.msra.mxu0 0.0
  %5367 = vmatpush.msra.mxu0 0.0
  %5368 = vmatpush.msra.mxu0 0.0
  %5369 = vmatpush.msra.mxu0 0.0
  %5370 = vmatpush.msra.mxu0 %v5248
  %5371 = vmatpush.msra.mxu0 %v5213
  %5372 = vmatmul.f32.gmra.mxu0 %v5236
  %v5373 = vpop.f32.mrf.mxu0
  %v5374 = vadd.f32 0.0, %v5373
  %5375 = vdwg.mxu0
  %5376 = vmatpush.msra.mxu0 0.0
  %5377 = vmatpush.msra.mxu0 0.0
  %5378 = vmatpush.msra.mxu0 0.0
  %5379 = vmatpush.msra.mxu0 0.0
  %5380 = vmatpush.msra.mxu0 0.0
  %5381 = vmatpush.msra.mxu0 0.0
  %5382 = vmatpush.msra.mxu0 0.0
  %5383 = vmatpush.msra.mxu0 0.0
  %5384 = vmatpush.msra.mxu0 0.0
  %5385 = vmatpush.msra.mxu0 0.0
  %5386 = vmatpush.msra.mxu0 0.0
  %5387 = vmatpush.msra.mxu0 0.0
  %5388 = vmatpush.msra.mxu0 0.0
  %5389 = vmatpush.msra.mxu0 0.0
  %5390 = vmatpush.msra.mxu0 %v5250
  %5391 = vmatpush.msra.mxu0 %v5214
  %5392 = vmatmul.f32.gmra.mxu0 %v5236
  %v5393 = vpop.f32.mrf.mxu0
  %v5394 = vadd.f32 0.0, %v5393
  %5395 = vdwg.mxu0
  %5396 = vmatpush.msra.mxu0 0.0
  %5397 = vmatpush.msra.mxu0 0.0
  %5398 = vmatpush.msra.mxu0 0.0
  %5399 = vmatpush.msra.mxu0 0.0
  %5400 = vmatpush.msra.mxu0 0.0
  %5401 = vmatpush.msra.mxu0 0.0
  %5402 = vmatpush.msra.mxu0 0.0
  %5403 = vmatpush.msra.mxu0 0.0
  %5404 = vmatpush.msra.mxu0 0.0
  %5405 = vmatpush.msra.mxu0 0.0
  %5406 = vmatpush.msra.mxu0 0.0
  %5407 = vmatpush.msra.mxu0 0.0
  %5408 = vmatpush.msra.mxu0 0.0
  %5409 = vmatpush.msra.mxu0 0.0
  %5410 = vmatpush.msra.mxu0 %v5252
  %5411 = vmatpush.msra.mxu0 %v5215
  %5412 = vmatmul.f32.gmra.mxu0 %v5236
  %v5413 = vpop.f32.mrf.mxu0
  %v5414 = vadd.f32 0.0, %v5413
  %5415 = vdwg.mxu0
  %5416 = vmatpush.msra.mxu0 0.0
  %5417 = vmatpush.msra.mxu0 0.0
  %5418 = vmatpush.msra.mxu0 0.0
  %5419 = vmatpush.msra.mxu0 0.0
  %5420 = vmatpush.msra.mxu0 0.0
  %5421 = vmatpush.msra.mxu0 0.0
  %5422 = vmatpush.msra.mxu0 0.0
  %5423 = vmatpush.msra.mxu0 0.0
  %5424 = vmatpush.msra.mxu0 0.0
  %5425 = vmatpush.msra.mxu0 0.0
  %5426 = vmatpush.msra.mxu0 0.0
  %5427 = vmatpush.msra.mxu0 0.0
  %5428 = vmatpush.msra.mxu0 0.0
  %5429 = vmatpush.msra.mxu0 0.0
  %5430 = vmatpush.msra.mxu0 %v5254
  %5431 = vmatpush.msra.mxu0 %v5216
  %5432 = vmatmul.f32.gmra.mxu0 %v5236
  %v5433 = vpop.f32.mrf.mxu0
  %v5434 = vadd.f32 0.0, %v5433
  %5435 = vdwg.mxu0
  %v5436 = vadd.f32 %v5157, %v5274
  %v5437 = vadd.f32 %v5158, %v5294
  %v5438 = vadd.f32 %v5159, %v5314
  %v5439 = vadd.f32 %v5160, %v5334
  %v5440 = vadd.f32 %v5161, %v5354
  %v5441 = vadd.f32 %v5162, %v5374
  %v5442 = vadd.f32 %v5163, %v5394
  %v5443 = vadd.f32 %v5164, %v5414
  %v5444 = vadd.f32 %v5165, %v5434
  %s5445 = scalar_lea.vmem %s5, 56
  %v5446 = vld [vmem:[%s5445] sm:$0x3f]
  %5447 = vrot.lane.b32.xlu0 %v3537, 79
  %v5448 = vpop.permute.xlu0 %5447
  %5449 = vrot.lane.b32.xlu0 %v3538, 79
  %v5450 = vpop.permute.xlu0 %5449
  %5451 = vrot.lane.b32.xlu0 %v3539, 79
  %v5452 = vpop.permute.xlu0 %5451
  %5453 = vrot.lane.b32.xlu0 %v3540, 79
  %v5454 = vpop.permute.xlu0 %5453
  %5455 = vrot.lane.b32.xlu0 %v3541, 79
  %v5456 = vpop.permute.xlu0 %5455
  %5457 = vrot.lane.b32.xlu0 %v3542, 79
  %v5458 = vpop.permute.xlu0 %5457
  %5459 = vrot.lane.b32.xlu0 %v3543, 79
  %v5460 = vpop.permute.xlu0 %5459
  %5461 = vrot.lane.b32.xlu0 %v3544, 79
  %v5462 = vpop.permute.xlu0 %5461
  %5463 = vrot.lane.b32.xlu0 %v3545, 79
  %v5464 = vpop.permute.xlu0 %5463
  %5465 = vrot.lane.b32.xlu0 %v3556, 79
  %v5466 = vpop.permute.xlu0 %5465
  %5467 = vrot.lane.b32.xlu0 %v3546, 79
  %v5468 = vpop.permute.xlu0 %5467
  %5469 = vrot.lane.b32.xlu0 %v3547, 79
  %v5470 = vpop.permute.xlu0 %5469
  %5471 = vrot.lane.b32.xlu0 %v3548, 79
  %v5472 = vpop.permute.xlu0 %5471
  %5473 = vrot.lane.b32.xlu0 %v3549, 79
  %v5474 = vpop.permute.xlu0 %5473
  %5475 = vrot.lane.b32.xlu0 %v3550, 79
  %v5476 = vpop.permute.xlu0 %5475
  %5477 = vrot.lane.b32.xlu0 %v3551, 79
  %v5478 = vpop.permute.xlu0 %5477
  %5479 = vrot.lane.b32.xlu0 %v3552, 79
  %v5480 = vpop.permute.xlu0 %5479
  %5481 = vrot.lane.b32.xlu0 %v3553, 79
  %v5482 = vpop.permute.xlu0 %5481
  %5483 = vrot.lane.b32.xlu0 %v3554, 79
  %v5484 = vpop.permute.xlu0 %5483
  %5485 = vrot.lane.b32.xlu0 %v3557, 79
  %v5486 = vpop.permute.xlu0 %5485
  %v5487 = vsel %vm608, %v5448, %v5450
  %v5488 = vsel %vm608, %v5450, %v5452
  %v5489 = vsel %vm608, %v5452, %v5454
  %v5490 = vsel %vm608, %v5454, %v5456
  %v5491 = vsel %vm608, %v5456, %v5458
  %v5492 = vsel %vm608, %v5458, %v5460
  %v5493 = vsel %vm608, %v5460, %v5462
  %v5494 = vsel %vm608, %v5462, %v5464
  %v5495 = vsel %vm608, %v5464, %v5466
  %v5496 = vsel %vm608, %v5468, %v5470
  %v5497 = vsel %vm608, %v5470, %v5472
  %v5498 = vsel %vm608, %v5472, %v5474
  %v5499 = vsel %vm608, %v5474, %v5476
  %v5500 = vsel %vm608, %v5476, %v5478
  %v5501 = vsel %vm608, %v5478, %v5480
  %v5502 = vsel %vm608, %v5480, %v5482
  %v5503 = vsel %vm608, %v5482, %v5484
  %v5504 = vsel %vm608, %v5484, %v5486
  %v5515 = vsel %vm3647, %v5446, 0
  %v5517 = vsel %vm776, %v5496, 0
  %v5519 = vsel %vm776, %v5497, 0
  %v5521 = vsel %vm776, %v5498, 0
  %v5523 = vsel %vm776, %v5499, 0
  %v5525 = vsel %vm776, %v5500, 0
  %v5527 = vsel %vm776, %v5501, 0
  %v5529 = vsel %vm776, %v5502, 0
  %v5531 = vsel %vm776, %v5503, 0
  %v5533 = vsel %vm776, %v5504, 0
  %5535 = vmatpush.msra.mxu0 0.0
  %5536 = vmatpush.msra.mxu0 0.0
  %5537 = vmatpush.msra.mxu0 0.0
  %5538 = vmatpush.msra.mxu0 0.0
  %5539 = vmatpush.msra.mxu0 0.0
  %5540 = vmatpush.msra.mxu0 0.0
  %5541 = vmatpush.msra.mxu0 0.0
  %5542 = vmatpush.msra.mxu0 0.0
  %5543 = vmatpush.msra.mxu0 0.0
  %5544 = vmatpush.msra.mxu0 0.0
  %5545 = vmatpush.msra.mxu0 0.0
  %5546 = vmatpush.msra.mxu0 0.0
  %5547 = vmatpush.msra.mxu0 0.0
  %5548 = vmatpush.msra.mxu0 0.0
  %5549 = vmatpush.msra.mxu0 %v5517
  %5550 = vmatpush.msra.mxu0 %v5487
  %5551 = vmatmul.f32.gmra.mxu0 %v5515
  %v5552 = vpop.f32.mrf.mxu0
  %v5553 = vadd.f32 0.0, %v5552
  %5554 = vdwg.mxu0
  %5555 = vmatpush.msra.mxu0 0.0
  %5556 = vmatpush.msra.mxu0 0.0
  %5557 = vmatpush.msra.mxu0 0.0
  %5558 = vmatpush.msra.mxu0 0.0
  %5559 = vmatpush.msra.mxu0 0.0
  %5560 = vmatpush.msra.mxu0 0.0
  %5561 = vmatpush.msra.mxu0 0.0
  %5562 = vmatpush.msra.mxu0 0.0
  %5563 = vmatpush.msra.mxu0 0.0
  %5564 = vmatpush.msra.mxu0 0.0
  %5565 = vmatpush.msra.mxu0 0.0
  %5566 = vmatpush.msra.mxu0 0.0
  %5567 = vmatpush.msra.mxu0 0.0
  %5568 = vmatpush.msra.mxu0 0.0
  %5569 = vmatpush.msra.mxu0 %v5519
  %5570 = vmatpush.msra.mxu0 %v5488
  %5571 = vmatmul.f32.gmra.mxu0 %v5515
  %v5572 = vpop.f32.mrf.mxu0
  %v5573 = vadd.f32 0.0, %v5572
  %5574 = vdwg.mxu0
  %5575 = vmatpush.msra.mxu0 0.0
  %5576 = vmatpush.msra.mxu0 0.0
  %5577 = vmatpush.msra.mxu0 0.0
  %5578 = vmatpush.msra.mxu0 0.0
  %5579 = vmatpush.msra.mxu0 0.0
  %5580 = vmatpush.msra.mxu0 0.0
  %5581 = vmatpush.msra.mxu0 0.0
  %5582 = vmatpush.msra.mxu0 0.0
  %5583 = vmatpush.msra.mxu0 0.0
  %5584 = vmatpush.msra.mxu0 0.0
  %5585 = vmatpush.msra.mxu0 0.0
  %5586 = vmatpush.msra.mxu0 0.0
  %5587 = vmatpush.msra.mxu0 0.0
  %5588 = vmatpush.msra.mxu0 0.0
  %5589 = vmatpush.msra.mxu0 %v5521
  %5590 = vmatpush.msra.mxu0 %v5489
  %5591 = vmatmul.f32.gmra.mxu0 %v5515
  %v5592 = vpop.f32.mrf.mxu0
  %v5593 = vadd.f32 0.0, %v5592
  %5594 = vdwg.mxu0
  %5595 = vmatpush.msra.mxu0 0.0
  %5596 = vmatpush.msra.mxu0 0.0
  %5597 = vmatpush.msra.mxu0 0.0
  %5598 = vmatpush.msra.mxu0 0.0
  %5599 = vmatpush.msra.mxu0 0.0
  %5600 = vmatpush.msra.mxu0 0.0
  %5601 = vmatpush.msra.mxu0 0.0
  %5602 = vmatpush.msra.mxu0 0.0
  %5603 = vmatpush.msra.mxu0 0.0
  %5604 = vmatpush.msra.mxu0 0.0
  %5605 = vmatpush.msra.mxu0 0.0
  %5606 = vmatpush.msra.mxu0 0.0
  %5607 = vmatpush.msra.mxu0 0.0
  %5608 = vmatpush.msra.mxu0 0.0
  %5609 = vmatpush.msra.mxu0 %v5523
  %5610 = vmatpush.msra.mxu0 %v5490
  %5611 = vmatmul.f32.gmra.mxu0 %v5515
  %v5612 = vpop.f32.mrf.mxu0
  %v5613 = vadd.f32 0.0, %v5612
  %5614 = vdwg.mxu0
  %5615 = vmatpush.msra.mxu0 0.0
  %5616 = vmatpush.msra.mxu0 0.0
  %5617 = vmatpush.msra.mxu0 0.0
  %5618 = vmatpush.msra.mxu0 0.0
  %5619 = vmatpush.msra.mxu0 0.0
  %5620 = vmatpush.msra.mxu0 0.0
  %5621 = vmatpush.msra.mxu0 0.0
  %5622 = vmatpush.msra.mxu0 0.0
  %5623 = vmatpush.msra.mxu0 0.0
  %5624 = vmatpush.msra.mxu0 0.0
  %5625 = vmatpush.msra.mxu0 0.0
  %5626 = vmatpush.msra.mxu0 0.0
  %5627 = vmatpush.msra.mxu0 0.0
  %5628 = vmatpush.msra.mxu0 0.0
  %5629 = vmatpush.msra.mxu0 %v5525
  %5630 = vmatpush.msra.mxu0 %v5491
  %5631 = vmatmul.f32.gmra.mxu0 %v5515
  %v5632 = vpop.f32.mrf.mxu0
  %v5633 = vadd.f32 0.0, %v5632
  %5634 = vdwg.mxu0
  %5635 = vmatpush.msra.mxu0 0.0
  %5636 = vmatpush.msra.mxu0 0.0
  %5637 = vmatpush.msra.mxu0 0.0
  %5638 = vmatpush.msra.mxu0 0.0
  %5639 = vmatpush.msra.mxu0 0.0
  %5640 = vmatpush.msra.mxu0 0.0
  %5641 = vmatpush.msra.mxu0 0.0
  %5642 = vmatpush.msra.mxu0 0.0
  %5643 = vmatpush.msra.mxu0 0.0
  %5644 = vmatpush.msra.mxu0 0.0
  %5645 = vmatpush.msra.mxu0 0.0
  %5646 = vmatpush.msra.mxu0 0.0
  %5647 = vmatpush.msra.mxu0 0.0
  %5648 = vmatpush.msra.mxu0 0.0
  %5649 = vmatpush.msra.mxu0 %v5527
  %5650 = vmatpush.msra.mxu0 %v5492
  %5651 = vmatmul.f32.gmra.mxu0 %v5515
  %v5652 = vpop.f32.mrf.mxu0
  %v5653 = vadd.f32 0.0, %v5652
  %5654 = vdwg.mxu0
  %5655 = vmatpush.msra.mxu0 0.0
  %5656 = vmatpush.msra.mxu0 0.0
  %5657 = vmatpush.msra.mxu0 0.0
  %5658 = vmatpush.msra.mxu0 0.0
  %5659 = vmatpush.msra.mxu0 0.0
  %5660 = vmatpush.msra.mxu0 0.0
  %5661 = vmatpush.msra.mxu0 0.0
  %5662 = vmatpush.msra.mxu0 0.0
  %5663 = vmatpush.msra.mxu0 0.0
  %5664 = vmatpush.msra.mxu0 0.0
  %5665 = vmatpush.msra.mxu0 0.0
  %5666 = vmatpush.msra.mxu0 0.0
  %5667 = vmatpush.msra.mxu0 0.0
  %5668 = vmatpush.msra.mxu0 0.0
  %5669 = vmatpush.msra.mxu0 %v5529
  %5670 = vmatpush.msra.mxu0 %v5493
  %5671 = vmatmul.f32.gmra.mxu0 %v5515
  %v5672 = vpop.f32.mrf.mxu0
  %v5673 = vadd.f32 0.0, %v5672
  %5674 = vdwg.mxu0
  %5675 = vmatpush.msra.mxu0 0.0
  %5676 = vmatpush.msra.mxu0 0.0
  %5677 = vmatpush.msra.mxu0 0.0
  %5678 = vmatpush.msra.mxu0 0.0
  %5679 = vmatpush.msra.mxu0 0.0
  %5680 = vmatpush.msra.mxu0 0.0
  %5681 = vmatpush.msra.mxu0 0.0
  %5682 = vmatpush.msra.mxu0 0.0
  %5683 = vmatpush.msra.mxu0 0.0
  %5684 = vmatpush.msra.mxu0 0.0
  %5685 = vmatpush.msra.mxu0 0.0
  %5686 = vmatpush.msra.mxu0 0.0
  %5687 = vmatpush.msra.mxu0 0.0
  %5688 = vmatpush.msra.mxu0 0.0
  %5689 = vmatpush.msra.mxu0 %v5531
  %5690 = vmatpush.msra.mxu0 %v5494
  %5691 = vmatmul.f32.gmra.mxu0 %v5515
  %v5692 = vpop.f32.mrf.mxu0
  %v5693 = vadd.f32 0.0, %v5692
  %5694 = vdwg.mxu0
  %5695 = vmatpush.msra.mxu0 0.0
  %5696 = vmatpush.msra.mxu0 0.0
  %5697 = vmatpush.msra.mxu0 0.0
  %5698 = vmatpush.msra.mxu0 0.0
  %5699 = vmatpush.msra.mxu0 0.0
  %5700 = vmatpush.msra.mxu0 0.0
  %5701 = vmatpush.msra.mxu0 0.0
  %5702 = vmatpush.msra.mxu0 0.0
  %5703 = vmatpush.msra.mxu0 0.0
  %5704 = vmatpush.msra.mxu0 0.0
  %5705 = vmatpush.msra.mxu0 0.0
  %5706 = vmatpush.msra.mxu0 0.0
  %5707 = vmatpush.msra.mxu0 0.0
  %5708 = vmatpush.msra.mxu0 0.0
  %5709 = vmatpush.msra.mxu0 %v5533
  %5710 = vmatpush.msra.mxu0 %v5495
  %5711 = vmatmul.f32.gmra.mxu0 %v5515
  %v5712 = vpop.f32.mrf.mxu0
  %v5713 = vadd.f32 0.0, %v5712
  %5714 = vdwg.mxu0
  %v5715 = vadd.f32 %v5436, %v5553
  %v5716 = vadd.f32 %v5437, %v5573
  %v5717 = vadd.f32 %v5438, %v5593
  %v5718 = vadd.f32 %v5439, %v5613
  %v5719 = vadd.f32 %v5440, %v5633
  %v5720 = vadd.f32 %v5441, %v5653
  %v5721 = vadd.f32 %v5442, %v5673
  %v5722 = vadd.f32 %v5443, %v5693
  %v5723 = vadd.f32 %v5444, %v5713
  %s5724 = scalar_lea.vmem %s5, 64
  %v5725 = vld [vmem:[%s5724] sm:$0x3f]
  %5726 = vrot.lane.b32.xlu0 %v3537, 78
  %v5727 = vpop.permute.xlu0 %5726
  %5728 = vrot.lane.b32.xlu0 %v3538, 78
  %v5729 = vpop.permute.xlu0 %5728
  %5730 = vrot.lane.b32.xlu0 %v3539, 78
  %v5731 = vpop.permute.xlu0 %5730
  %5732 = vrot.lane.b32.xlu0 %v3540, 78
  %v5733 = vpop.permute.xlu0 %5732
  %5734 = vrot.lane.b32.xlu0 %v3541, 78
  %v5735 = vpop.permute.xlu0 %5734
  %5736 = vrot.lane.b32.xlu0 %v3542, 78
  %v5737 = vpop.permute.xlu0 %5736
  %5738 = vrot.lane.b32.xlu0 %v3543, 78
  %v5739 = vpop.permute.xlu0 %5738
  %5740 = vrot.lane.b32.xlu0 %v3544, 78
  %v5741 = vpop.permute.xlu0 %5740
  %5742 = vrot.lane.b32.xlu0 %v3545, 78
  %v5743 = vpop.permute.xlu0 %5742
  %5744 = vrot.lane.b32.xlu0 %v3556, 78
  %v5745 = vpop.permute.xlu0 %5744
  %5746 = vrot.lane.b32.xlu0 %v3546, 78
  %v5747 = vpop.permute.xlu0 %5746
  %5748 = vrot.lane.b32.xlu0 %v3547, 78
  %v5749 = vpop.permute.xlu0 %5748
  %5750 = vrot.lane.b32.xlu0 %v3548, 78
  %v5751 = vpop.permute.xlu0 %5750
  %5752 = vrot.lane.b32.xlu0 %v3549, 78
  %v5753 = vpop.permute.xlu0 %5752
  %5754 = vrot.lane.b32.xlu0 %v3550, 78
  %v5755 = vpop.permute.xlu0 %5754
  %5756 = vrot.lane.b32.xlu0 %v3551, 78
  %v5757 = vpop.permute.xlu0 %5756
  %5758 = vrot.lane.b32.xlu0 %v3552, 78
  %v5759 = vpop.permute.xlu0 %5758
  %5760 = vrot.lane.b32.xlu0 %v3553, 78
  %v5761 = vpop.permute.xlu0 %5760
  %5762 = vrot.lane.b32.xlu0 %v3554, 78
  %v5763 = vpop.permute.xlu0 %5762
  %5764 = vrot.lane.b32.xlu0 %v3557, 78
  %v5765 = vpop.permute.xlu0 %5764
  %v5766 = vsel %vm683, %v5727, %v5729
  %v5767 = vsel %vm683, %v5729, %v5731
  %v5768 = vsel %vm683, %v5731, %v5733
  %v5769 = vsel %vm683, %v5733, %v5735
  %v5770 = vsel %vm683, %v5735, %v5737
  %v5771 = vsel %vm683, %v5737, %v5739
  %v5772 = vsel %vm683, %v5739, %v5741
  %v5773 = vsel %vm683, %v5741, %v5743
  %v5774 = vsel %vm683, %v5743, %v5745
  %v5775 = vsel %vm683, %v5747, %v5749
  %v5776 = vsel %vm683, %v5749, %v5751
  %v5777 = vsel %vm683, %v5751, %v5753
  %v5778 = vsel %vm683, %v5753, %v5755
  %v5779 = vsel %vm683, %v5755, %v5757
  %v5780 = vsel %vm683, %v5757, %v5759
  %v5781 = vsel %vm683, %v5759, %v5761
  %v5782 = vsel %vm683, %v5761, %v5763
  %v5783 = vsel %vm683, %v5763, %v5765
  %v5794 = vsel %vm3647, %v5725, 0
  %v5796 = vsel %vm776, %v5775, 0
  %v5798 = vsel %vm776, %v5776, 0
  %v5800 = vsel %vm776, %v5777, 0
  %v5802 = vsel %vm776, %v5778, 0
  %v5804 = vsel %vm776, %v5779, 0
  %v5806 = vsel %vm776, %v5780, 0
  %v5808 = vsel %vm776, %v5781, 0
  %v5810 = vsel %vm776, %v5782, 0
  %v5812 = vsel %vm776, %v5783, 0
  %5814 = vmatpush.msra.mxu0 0.0
  %5815 = vmatpush.msra.mxu0 0.0
  %5816 = vmatpush.msra.mxu0 0.0
  %5817 = vmatpush.msra.mxu0 0.0
  %5818 = vmatpush.msra.mxu0 0.0
  %5819 = vmatpush.msra.mxu0 0.0
  %5820 = vmatpush.msra.mxu0 0.0
  %5821 = vmatpush.msra.mxu0 0.0
  %5822 = vmatpush.msra.mxu0 0.0
  %5823 = vmatpush.msra.mxu0 0.0
  %5824 = vmatpush.msra.mxu0 0.0
  %5825 = vmatpush.msra.mxu0 0.0
  %5826 = vmatpush.msra.mxu0 0.0
  %5827 = vmatpush.msra.mxu0 0.0
  %5828 = vmatpush.msra.mxu0 %v5796
  %5829 = vmatpush.msra.mxu0 %v5766
  %5830 = vmatmul.f32.gmra.mxu0 %v5794
  %v5831 = vpop.f32.mrf.mxu0
  %v5832 = vadd.f32 0.0, %v5831
  %5833 = vdwg.mxu0
  %5834 = vmatpush.msra.mxu0 0.0
  %5835 = vmatpush.msra.mxu0 0.0
  %5836 = vmatpush.msra.mxu0 0.0
  %5837 = vmatpush.msra.mxu0 0.0
  %5838 = vmatpush.msra.mxu0 0.0
  %5839 = vmatpush.msra.mxu0 0.0
  %5840 = vmatpush.msra.mxu0 0.0
  %5841 = vmatpush.msra.mxu0 0.0
  %5842 = vmatpush.msra.mxu0 0.0
  %5843 = vmatpush.msra.mxu0 0.0
  %5844 = vmatpush.msra.mxu0 0.0
  %5845 = vmatpush.msra.mxu0 0.0
  %5846 = vmatpush.msra.mxu0 0.0
  %5847 = vmatpush.msra.mxu0 0.0
  %5848 = vmatpush.msra.mxu0 %v5798
  %5849 = vmatpush.msra.mxu0 %v5767
  %5850 = vmatmul.f32.gmra.mxu0 %v5794
  %v5851 = vpop.f32.mrf.mxu0
  %v5852 = vadd.f32 0.0, %v5851
  %5853 = vdwg.mxu0
  %5854 = vmatpush.msra.mxu0 0.0
  %5855 = vmatpush.msra.mxu0 0.0
  %5856 = vmatpush.msra.mxu0 0.0
  %5857 = vmatpush.msra.mxu0 0.0
  %5858 = vmatpush.msra.mxu0 0.0
  %5859 = vmatpush.msra.mxu0 0.0
  %5860 = vmatpush.msra.mxu0 0.0
  %5861 = vmatpush.msra.mxu0 0.0
  %5862 = vmatpush.msra.mxu0 0.0
  %5863 = vmatpush.msra.mxu0 0.0
  %5864 = vmatpush.msra.mxu0 0.0
  %5865 = vmatpush.msra.mxu0 0.0
  %5866 = vmatpush.msra.mxu0 0.0
  %5867 = vmatpush.msra.mxu0 0.0
  %5868 = vmatpush.msra.mxu0 %v5800
  %5869 = vmatpush.msra.mxu0 %v5768
  %5870 = vmatmul.f32.gmra.mxu0 %v5794
  %v5871 = vpop.f32.mrf.mxu0
  %v5872 = vadd.f32 0.0, %v5871
  %5873 = vdwg.mxu0
  %5874 = vmatpush.msra.mxu0 0.0
  %5875 = vmatpush.msra.mxu0 0.0
  %5876 = vmatpush.msra.mxu0 0.0
  %5877 = vmatpush.msra.mxu0 0.0
  %5878 = vmatpush.msra.mxu0 0.0
  %5879 = vmatpush.msra.mxu0 0.0
  %5880 = vmatpush.msra.mxu0 0.0
  %5881 = vmatpush.msra.mxu0 0.0
  %5882 = vmatpush.msra.mxu0 0.0
  %5883 = vmatpush.msra.mxu0 0.0
  %5884 = vmatpush.msra.mxu0 0.0
  %5885 = vmatpush.msra.mxu0 0.0
  %5886 = vmatpush.msra.mxu0 0.0
  %5887 = vmatpush.msra.mxu0 0.0
  %5888 = vmatpush.msra.mxu0 %v5802
  %5889 = vmatpush.msra.mxu0 %v5769
  %5890 = vmatmul.f32.gmra.mxu0 %v5794
  %v5891 = vpop.f32.mrf.mxu0
  %v5892 = vadd.f32 0.0, %v5891
  %5893 = vdwg.mxu0
  %5894 = vmatpush.msra.mxu0 0.0
  %5895 = vmatpush.msra.mxu0 0.0
  %5896 = vmatpush.msra.mxu0 0.0
  %5897 = vmatpush.msra.mxu0 0.0
  %5898 = vmatpush.msra.mxu0 0.0
  %5899 = vmatpush.msra.mxu0 0.0
  %5900 = vmatpush.msra.mxu0 0.0
  %5901 = vmatpush.msra.mxu0 0.0
  %5902 = vmatpush.msra.mxu0 0.0
  %5903 = vmatpush.msra.mxu0 0.0
  %5904 = vmatpush.msra.mxu0 0.0
  %5905 = vmatpush.msra.mxu0 0.0
  %5906 = vmatpush.msra.mxu0 0.0
  %5907 = vmatpush.msra.mxu0 0.0
  %5908 = vmatpush.msra.mxu0 %v5804
  %5909 = vmatpush.msra.mxu0 %v5770
  %5910 = vmatmul.f32.gmra.mxu0 %v5794
  %v5911 = vpop.f32.mrf.mxu0
  %v5912 = vadd.f32 0.0, %v5911
  %5913 = vdwg.mxu0
  %5914 = vmatpush.msra.mxu0 0.0
  %5915 = vmatpush.msra.mxu0 0.0
  %5916 = vmatpush.msra.mxu0 0.0
  %5917 = vmatpush.msra.mxu0 0.0
  %5918 = vmatpush.msra.mxu0 0.0
  %5919 = vmatpush.msra.mxu0 0.0
  %5920 = vmatpush.msra.mxu0 0.0
  %5921 = vmatpush.msra.mxu0 0.0
  %5922 = vmatpush.msra.mxu0 0.0
  %5923 = vmatpush.msra.mxu0 0.0
  %5924 = vmatpush.msra.mxu0 0.0
  %5925 = vmatpush.msra.mxu0 0.0
  %5926 = vmatpush.msra.mxu0 0.0
  %5927 = vmatpush.msra.mxu0 0.0
  %5928 = vmatpush.msra.mxu0 %v5806
  %5929 = vmatpush.msra.mxu0 %v5771
  %5930 = vmatmul.f32.gmra.mxu0 %v5794
  %v5931 = vpop.f32.mrf.mxu0
  %v5932 = vadd.f32 0.0, %v5931
  %5933 = vdwg.mxu0
  %5934 = vmatpush.msra.mxu0 0.0
  %5935 = vmatpush.msra.mxu0 0.0
  %5936 = vmatpush.msra.mxu0 0.0
  %5937 = vmatpush.msra.mxu0 0.0
  %5938 = vmatpush.msra.mxu0 0.0
  %5939 = vmatpush.msra.mxu0 0.0
  %5940 = vmatpush.msra.mxu0 0.0
  %5941 = vmatpush.msra.mxu0 0.0
  %5942 = vmatpush.msra.mxu0 0.0
  %5943 = vmatpush.msra.mxu0 0.0
  %5944 = vmatpush.msra.mxu0 0.0
  %5945 = vmatpush.msra.mxu0 0.0
  %5946 = vmatpush.msra.mxu0 0.0
  %5947 = vmatpush.msra.mxu0 0.0
  %5948 = vmatpush.msra.mxu0 %v5808
  %5949 = vmatpush.msra.mxu0 %v5772
  %5950 = vmatmul.f32.gmra.mxu0 %v5794
  %v5951 = vpop.f32.mrf.mxu0
  %v5952 = vadd.f32 0.0, %v5951
  %5953 = vdwg.mxu0
  %5954 = vmatpush.msra.mxu0 0.0
  %5955 = vmatpush.msra.mxu0 0.0
  %5956 = vmatpush.msra.mxu0 0.0
  %5957 = vmatpush.msra.mxu0 0.0
  %5958 = vmatpush.msra.mxu0 0.0
  %5959 = vmatpush.msra.mxu0 0.0
  %5960 = vmatpush.msra.mxu0 0.0
  %5961 = vmatpush.msra.mxu0 0.0
  %5962 = vmatpush.msra.mxu0 0.0
  %5963 = vmatpush.msra.mxu0 0.0
  %5964 = vmatpush.msra.mxu0 0.0
  %5965 = vmatpush.msra.mxu0 0.0
  %5966 = vmatpush.msra.mxu0 0.0
  %5967 = vmatpush.msra.mxu0 0.0
  %5968 = vmatpush.msra.mxu0 %v5810
  %5969 = vmatpush.msra.mxu0 %v5773
  %5970 = vmatmul.f32.gmra.mxu0 %v5794
  %v5971 = vpop.f32.mrf.mxu0
  %v5972 = vadd.f32 0.0, %v5971
  %5973 = vdwg.mxu0
  %5974 = vmatpush.msra.mxu0 0.0
  %5975 = vmatpush.msra.mxu0 0.0
  %5976 = vmatpush.msra.mxu0 0.0
  %5977 = vmatpush.msra.mxu0 0.0
  %5978 = vmatpush.msra.mxu0 0.0
  %5979 = vmatpush.msra.mxu0 0.0
  %5980 = vmatpush.msra.mxu0 0.0
  %5981 = vmatpush.msra.mxu0 0.0
  %5982 = vmatpush.msra.mxu0 0.0
  %5983 = vmatpush.msra.mxu0 0.0
  %5984 = vmatpush.msra.mxu0 0.0
  %5985 = vmatpush.msra.mxu0 0.0
  %5986 = vmatpush.msra.mxu0 0.0
  %5987 = vmatpush.msra.mxu0 0.0
  %5988 = vmatpush.msra.mxu0 %v5812
  %5989 = vmatpush.msra.mxu0 %v5774
  %5990 = vmatmul.f32.gmra.mxu0 %v5794
  %v5991 = vpop.f32.mrf.mxu0
  %v5992 = vadd.f32 0.0, %v5991
  %5993 = vdwg.mxu0
  %v5994 = vadd.f32 %v5715, %v5832
  %v5995 = vadd.f32 %v5716, %v5852
  %v5996 = vadd.f32 %v5717, %v5872
  %v5997 = vadd.f32 %v5718, %v5892
  %v5998 = vadd.f32 %v5719, %v5912
  %v5999 = vadd.f32 %v5720, %v5932
  %v6000 = vadd.f32 %v5721, %v5952
  %v6001 = vadd.f32 %v5722, %v5972
  %v6002 = vadd.f32 %v5723, %v5992
  %v6003 = vld [vmem:[%s6] sm:$0x3f]
  %6005 = vset.pattern.permute.xlu0 0
  %6006 = vperm.xlu0 %6005, %v6003
  %v6007 = vpop.permute.xlu0 %6006
  %v6009 = vadd.f32 %v5994, %v6007
  %v6010 = vadd.f32 %v5995, %v6007
  %v6011 = vadd.f32 %v5996, %v6007
  %v6012 = vadd.f32 %v5997, %v6007
  %v6013 = vadd.f32 %v5998, %v6007
  %v6014 = vadd.f32 %v5999, %v6007
  %v6015 = vadd.f32 %v6000, %v6007
  %v6016 = vadd.f32 %v6001, %v6007
  %v6017 = vadd.f32 %v6002, %v6007
  %v6018 = vmax.f32 %v6009, 0.0
  %v6019 = vmax.f32 %v6010, 0.0
  %v6020 = vmax.f32 %v6011, 0.0
  %v6021 = vmax.f32 %v6012, 0.0
  %v6022 = vmax.f32 %v6013, 0.0
  %v6023 = vmax.f32 %v6014, 0.0
  %v6024 = vmax.f32 %v6015, 0.0
  %v6025 = vmax.f32 %v6016, 0.0
  %v6026 = vmax.f32 %v6017, 0.0
  %s6027 = scalar_lea.vmem %s9, 2
  %v6028 = vld [vmem:[%s6027] ss:$4 sm:$0xff]
  %s6029 = scalar_lea.vmem %s9, 34
  %v6030 = vld [vmem:[%s6029] ss:$4 sm:$0x1]
  %v6033 = vperm.slane %v6028, 0
  %v6034 = vperm.slane %v6028, 1
  %v6035 = vperm.slane %v6028, 2
  %v6036 = vperm.slane %v6028, 3
  %v6037 = vperm.slane %v6028, 4
  %v6038 = vperm.slane %v6028, 5
  %v6039 = vperm.slane %v6028, 6
  %v6040 = vperm.slane %v6028, 7
  %v6041 = vperm.slane %v6030, 0
  %v6051 = vmul.f32 %v6018, %v6033
  %v6052 = vmul.f32 %v6019, %v6034
  %v6053 = vmul.f32 %v6020, %v6035
  %v6054 = vmul.f32 %v6021, %v6036
  %v6055 = vmul.f32 %v6022, %v6037
  %v6056 = vmul.f32 %v6023, %v6038
  %v6057 = vmul.f32 %v6024, %v6039
  %v6058 = vmul.f32 %v6025, %v6040
  %v6059 = vmul.f32 %v6026, %v6041
  %6060 = vst [vmem:[#allocation4] sm:$0x3f] %v6051
  %6061 = vst [vmem:[#allocation4 + $0x8] sm:$0x3f] %v6052
  %6062 = vst [vmem:[#allocation4 + $0x10] sm:$0x3f] %v6053
  %6063 = vst [vmem:[#allocation4 + $0x18] sm:$0x3f] %v6054
  %6064 = vst [vmem:[#allocation4 + $0x20] sm:$0x3f] %v6055
  %6065 = vst [vmem:[#allocation4 + $0x28] sm:$0x3f] %v6056
  %6066 = vst [vmem:[#allocation4 + $0x30] sm:$0x3f] %v6057
  %6067 = vst [vmem:[#allocation4 + $0x38] sm:$0x3f] %v6058
  %6068 = vst [vmem:[#allocation4 + $0x40] sm:$0x3f] %v6059
  %v6069 = vld [vmem:[#allocation4] sm:$0x3f]
  %v6070 = vld [vmem:[#allocation4 + $0x8] sm:$0x3f]
  %v6071 = vld [vmem:[#allocation4 + $0x10] sm:$0x3f]
  %v6072 = vld [vmem:[#allocation4 + $0x18] sm:$0x3f]
  %v6073 = vld [vmem:[#allocation4 + $0x20] sm:$0x3f]
  %v6074 = vld [vmem:[#allocation4 + $0x28] sm:$0x3f]
  %v6075 = vld [vmem:[#allocation4 + $0x30] sm:$0x3f]
  %v6076 = vld [vmem:[#allocation4 + $0x38] sm:$0x3f]
  %v6077 = vld [vmem:[#allocation4 + $0x40] sm:$0x3f]
  %v6078 = vld [vmem:[%s7] sm:$0x1]
  %v6079 = vld [vmem:[#allocation4 + $0x48] sm:$0x3f]
  %s6080 = scalar_lea.vmem %s7, 1
  %v6081 = vld [vmem:[%s6080] sm:$0x1]
  %6092 = vrot.lane.b32.xlu0 %v6069, 127
  %v6093 = vpop.permute.xlu0 %6092
  %6094 = vrot.lane.b32.xlu0 %v6070, 127
  %v6095 = vpop.permute.xlu0 %6094
  %6096 = vrot.lane.b32.xlu0 %v6071, 127
  %v6097 = vpop.permute.xlu0 %6096
  %6098 = vrot.lane.b32.xlu0 %v6072, 127
  %v6099 = vpop.permute.xlu0 %6098
  %6100 = vrot.lane.b32.xlu0 %v6073, 127
  %v6101 = vpop.permute.xlu0 %6100
  %6102 = vrot.lane.b32.xlu0 %v6074, 127
  %v6103 = vpop.permute.xlu0 %6102
  %6104 = vrot.lane.b32.xlu0 %v6075, 127
  %v6105 = vpop.permute.xlu0 %6104
  %6106 = vrot.lane.b32.xlu0 %v6076, 127
  %v6107 = vpop.permute.xlu0 %6106
  %6108 = vrot.lane.b32.xlu0 %v6077, 127
  %v6109 = vpop.permute.xlu0 %6108
  %6110 = vrot.lane.b32.xlu0 %v6079, 127
  %v6111 = vpop.permute.xlu0 %6110
  %v6112 = vsel %vm158, %v6093, %v6095
  %v6113 = vsel %vm158, %v6095, %v6097
  %v6114 = vsel %vm158, %v6097, %v6099
  %v6115 = vsel %vm158, %v6099, %v6101
  %v6116 = vsel %vm158, %v6101, %v6103
  %v6117 = vsel %vm158, %v6103, %v6105
  %v6118 = vsel %vm158, %v6105, %v6107
  %v6119 = vsel %vm158, %v6107, %v6109
  %v6120 = vsel %vm158, %v6109, %v6111
  %vm6121 = vcmask 48128
  %v6123 = vsel %vm6121, %v6081, 0
  %vm6125 = vcmask 1045504
  %v6126 = vsel %vm6125, %v6112, 0
  %v6128 = vsel %vm6125, %v6113, 0
  %v6130 = vsel %vm6125, %v6114, 0
  %v6132 = vsel %vm6125, %v6115, 0
  %v6134 = vsel %vm6125, %v6116, 0
  %v6136 = vsel %vm6125, %v6117, 0
  %v6138 = vsel %vm6125, %v6118, 0
  %v6140 = vsel %vm6125, %v6119, 0
  %v6142 = vsel %vm6125, %v6120, 0
  %6144 = vmatpush.msra.mxu0 0.0
  %6145 = vmatpush.msra.mxu0 0.0
  %6146 = vmatpush.msra.mxu0 0.0
  %6147 = vmatpush.msra.mxu0 0.0
  %6148 = vmatpush.msra.mxu0 0.0
  %6149 = vmatpush.msra.mxu0 0.0
  %6150 = vmatpush.msra.mxu0 0.0
  %6151 = vmatpush.msra.mxu0 0.0
  %6152 = vmatpush.msra.mxu0 0.0
  %6153 = vmatpush.msra.mxu0 0.0
  %6154 = vmatpush.msra.mxu0 0.0
  %6155 = vmatpush.msra.mxu0 0.0
  %6156 = vmatpush.msra.mxu0 0.0
  %6157 = vmatpush.msra.mxu0 0.0
  %6158 = vmatpush.msra.mxu0 0.0
  %6159 = vmatpush.msra.mxu0 %v6126
  %6160 = vmatmul.f32.gmra.mxu0 %v6123
  %v6161 = vpop.f32.mrf.mxu0
  %v6162 = vadd.f32 0.0, %v6161
  %6163 = vdwg.mxu0
  %6164 = vmatpush.msra.mxu0 0.0
  %6165 = vmatpush.msra.mxu0 0.0
  %6166 = vmatpush.msra.mxu0 0.0
  %6167 = vmatpush.msra.mxu0 0.0
  %6168 = vmatpush.msra.mxu0 0.0
  %6169 = vmatpush.msra.mxu0 0.0
  %6170 = vmatpush.msra.mxu0 0.0
  %6171 = vmatpush.msra.mxu0 0.0
  %6172 = vmatpush.msra.mxu0 0.0
  %6173 = vmatpush.msra.mxu0 0.0
  %6174 = vmatpush.msra.mxu0 0.0
  %6175 = vmatpush.msra.mxu0 0.0
  %6176 = vmatpush.msra.mxu0 0.0
  %6177 = vmatpush.msra.mxu0 0.0
  %6178 = vmatpush.msra.mxu0 0.0
  %6179 = vmatpush.msra.mxu0 %v6128
  %6180 = vmatmul.f32.gmra.mxu0 %v6123
  %v6181 = vpop.f32.mrf.mxu0
  %v6182 = vadd.f32 0.0, %v6181
  %6183 = vdwg.mxu0
  %6184 = vmatpush.msra.mxu0 0.0
  %6185 = vmatpush.msra.mxu0 0.0
  %6186 = vmatpush.msra.mxu0 0.0
  %6187 = vmatpush.msra.mxu0 0.0
  %6188 = vmatpush.msra.mxu0 0.0
  %6189 = vmatpush.msra.mxu0 0.0
  %6190 = vmatpush.msra.mxu0 0.0
  %6191 = vmatpush.msra.mxu0 0.0
  %6192 = vmatpush.msra.mxu0 0.0
  %6193 = vmatpush.msra.mxu0 0.0
  %6194 = vmatpush.msra.mxu0 0.0
  %6195 = vmatpush.msra.mxu0 0.0
  %6196 = vmatpush.msra.mxu0 0.0
  %6197 = vmatpush.msra.mxu0 0.0
  %6198 = vmatpush.msra.mxu0 0.0
  %6199 = vmatpush.msra.mxu0 %v6130
  %6200 = vmatmul.f32.gmra.mxu0 %v6123
  %v6201 = vpop.f32.mrf.mxu0
  %v6202 = vadd.f32 0.0, %v6201
  %6203 = vdwg.mxu0
  %6204 = vmatpush.msra.mxu0 0.0
  %6205 = vmatpush.msra.mxu0 0.0
  %6206 = vmatpush.msra.mxu0 0.0
  %6207 = vmatpush.msra.mxu0 0.0
  %6208 = vmatpush.msra.mxu0 0.0
  %6209 = vmatpush.msra.mxu0 0.0
  %6210 = vmatpush.msra.mxu0 0.0
  %6211 = vmatpush.msra.mxu0 0.0
  %6212 = vmatpush.msra.mxu0 0.0
  %6213 = vmatpush.msra.mxu0 0.0
  %6214 = vmatpush.msra.mxu0 0.0
  %6215 = vmatpush.msra.mxu0 0.0
  %6216 = vmatpush.msra.mxu0 0.0
  %6217 = vmatpush.msra.mxu0 0.0
  %6218 = vmatpush.msra.mxu0 0.0
  %6219 = vmatpush.msra.mxu0 %v6132
  %6220 = vmatmul.f32.gmra.mxu0 %v6123
  %v6221 = vpop.f32.mrf.mxu0
  %v6222 = vadd.f32 0.0, %v6221
  %6223 = vdwg.mxu0
  %6224 = vmatpush.msra.mxu0 0.0
  %6225 = vmatpush.msra.mxu0 0.0
  %6226 = vmatpush.msra.mxu0 0.0
  %6227 = vmatpush.msra.mxu0 0.0
  %6228 = vmatpush.msra.mxu0 0.0
  %6229 = vmatpush.msra.mxu0 0.0
  %6230 = vmatpush.msra.mxu0 0.0
  %6231 = vmatpush.msra.mxu0 0.0
  %6232 = vmatpush.msra.mxu0 0.0
  %6233 = vmatpush.msra.mxu0 0.0
  %6234 = vmatpush.msra.mxu0 0.0
  %6235 = vmatpush.msra.mxu0 0.0
  %6236 = vmatpush.msra.mxu0 0.0
  %6237 = vmatpush.msra.mxu0 0.0
  %6238 = vmatpush.msra.mxu0 0.0
  %6239 = vmatpush.msra.mxu0 %v6134
  %6240 = vmatmul.f32.gmra.mxu0 %v6123
  %v6241 = vpop.f32.mrf.mxu0
  %v6242 = vadd.f32 0.0, %v6241
  %6243 = vdwg.mxu0
  %6244 = vmatpush.msra.mxu0 0.0
  %6245 = vmatpush.msra.mxu0 0.0
  %6246 = vmatpush.msra.mxu0 0.0
  %6247 = vmatpush.msra.mxu0 0.0
  %6248 = vmatpush.msra.mxu0 0.0
  %6249 = vmatpush.msra.mxu0 0.0
  %6250 = vmatpush.msra.mxu0 0.0
  %6251 = vmatpush.msra.mxu0 0.0
  %6252 = vmatpush.msra.mxu0 0.0
  %6253 = vmatpush.msra.mxu0 0.0
  %6254 = vmatpush.msra.mxu0 0.0
  %6255 = vmatpush.msra.mxu0 0.0
  %6256 = vmatpush.msra.mxu0 0.0
  %6257 = vmatpush.msra.mxu0 0.0
  %6258 = vmatpush.msra.mxu0 0.0
  %6259 = vmatpush.msra.mxu0 %v6136
  %6260 = vmatmul.f32.gmra.mxu0 %v6123
  %v6261 = vpop.f32.mrf.mxu0
  %v6262 = vadd.f32 0.0, %v6261
  %6263 = vdwg.mxu0
  %6264 = vmatpush.msra.mxu0 0.0
  %6265 = vmatpush.msra.mxu0 0.0
  %6266 = vmatpush.msra.mxu0 0.0
  %6267 = vmatpush.msra.mxu0 0.0
  %6268 = vmatpush.msra.mxu0 0.0
  %6269 = vmatpush.msra.mxu0 0.0
  %6270 = vmatpush.msra.mxu0 0.0
  %6271 = vmatpush.msra.mxu0 0.0
  %6272 = vmatpush.msra.mxu0 0.0
  %6273 = vmatpush.msra.mxu0 0.0
  %6274 = vmatpush.msra.mxu0 0.0
  %6275 = vmatpush.msra.mxu0 0.0
  %6276 = vmatpush.msra.mxu0 0.0
  %6277 = vmatpush.msra.mxu0 0.0
  %6278 = vmatpush.msra.mxu0 0.0
  %6279 = vmatpush.msra.mxu0 %v6138
  %6280 = vmatmul.f32.gmra.mxu0 %v6123
  %v6281 = vpop.f32.mrf.mxu0
  %v6282 = vadd.f32 0.0, %v6281
  %6283 = vdwg.mxu0
  %6284 = vmatpush.msra.mxu0 0.0
  %6285 = vmatpush.msra.mxu0 0.0
  %6286 = vmatpush.msra.mxu0 0.0
  %6287 = vmatpush.msra.mxu0 0.0
  %6288 = vmatpush.msra.mxu0 0.0
  %6289 = vmatpush.msra.mxu0 0.0
  %6290 = vmatpush.msra.mxu0 0.0
  %6291 = vmatpush.msra.mxu0 0.0
  %6292 = vmatpush.msra.mxu0 0.0
  %6293 = vmatpush.msra.mxu0 0.0
  %6294 = vmatpush.msra.mxu0 0.0
  %6295 = vmatpush.msra.mxu0 0.0
  %6296 = vmatpush.msra.mxu0 0.0
  %6297 = vmatpush.msra.mxu0 0.0
  %6298 = vmatpush.msra.mxu0 0.0
  %6299 = vmatpush.msra.mxu0 %v6140
  %6300 = vmatmul.f32.gmra.mxu0 %v6123
  %v6301 = vpop.f32.mrf.mxu0
  %v6302 = vadd.f32 0.0, %v6301
  %6303 = vdwg.mxu0
  %6304 = vmatpush.msra.mxu0 0.0
  %6305 = vmatpush.msra.mxu0 0.0
  %6306 = vmatpush.msra.mxu0 0.0
  %6307 = vmatpush.msra.mxu0 0.0
  %6308 = vmatpush.msra.mxu0 0.0
  %6309 = vmatpush.msra.mxu0 0.0
  %6310 = vmatpush.msra.mxu0 0.0
  %6311 = vmatpush.msra.mxu0 0.0
  %6312 = vmatpush.msra.mxu0 0.0
  %6313 = vmatpush.msra.mxu0 0.0
  %6314 = vmatpush.msra.mxu0 0.0
  %6315 = vmatpush.msra.mxu0 0.0
  %6316 = vmatpush.msra.mxu0 0.0
  %6317 = vmatpush.msra.mxu0 0.0
  %6318 = vmatpush.msra.mxu0 0.0
  %6319 = vmatpush.msra.mxu0 %v6142
  %6320 = vmatmul.f32.gmra.mxu0 %v6123
  %v6321 = vpop.f32.mrf.mxu0
  %v6322 = vadd.f32 0.0, %v6321
  %6323 = vdwg.mxu0
  %v6325 = vsel %vm6121, %v6078, 0
  %v6327 = vsel %vm6125, %v6069, 0
  %v6329 = vsel %vm6125, %v6070, 0
  %v6331 = vsel %vm6125, %v6071, 0
  %v6333 = vsel %vm6125, %v6072, 0
  %v6335 = vsel %vm6125, %v6073, 0
  %v6337 = vsel %vm6125, %v6074, 0
  %v6339 = vsel %vm6125, %v6075, 0
  %v6341 = vsel %vm6125, %v6076, 0
  %v6343 = vsel %vm6125, %v6077, 0
  %6345 = vmatpush.msra.mxu0 0.0
  %6346 = vmatpush.msra.mxu0 0.0
  %6347 = vmatpush.msra.mxu0 0.0
  %6348 = vmatpush.msra.mxu0 0.0
  %6349 = vmatpush.msra.mxu0 0.0
  %6350 = vmatpush.msra.mxu0 0.0
  %6351 = vmatpush.msra.mxu0 0.0
  %6352 = vmatpush.msra.mxu0 0.0
  %6353 = vmatpush.msra.mxu0 0.0
  %6354 = vmatpush.msra.mxu0 0.0
  %6355 = vmatpush.msra.mxu0 0.0
  %6356 = vmatpush.msra.mxu0 0.0
  %6357 = vmatpush.msra.mxu0 0.0
  %6358 = vmatpush.msra.mxu0 0.0
  %6359 = vmatpush.msra.mxu0 0.0
  %6360 = vmatpush.msra.mxu0 %v6327
  %6361 = vmatmul.f32.gmra.mxu0 %v6325
  %v6362 = vpop.f32.mrf.mxu0
  %v6363 = vadd.f32 %v6162, %v6362
  %6364 = vdwg.mxu0
  %6365 = vmatpush.msra.mxu0 0.0
  %6366 = vmatpush.msra.mxu0 0.0
  %6367 = vmatpush.msra.mxu0 0.0
  %6368 = vmatpush.msra.mxu0 0.0
  %6369 = vmatpush.msra.mxu0 0.0
  %6370 = vmatpush.msra.mxu0 0.0
  %6371 = vmatpush.msra.mxu0 0.0
  %6372 = vmatpush.msra.mxu0 0.0
  %6373 = vmatpush.msra.mxu0 0.0
  %6374 = vmatpush.msra.mxu0 0.0
  %6375 = vmatpush.msra.mxu0 0.0
  %6376 = vmatpush.msra.mxu0 0.0
  %6377 = vmatpush.msra.mxu0 0.0
  %6378 = vmatpush.msra.mxu0 0.0
  %6379 = vmatpush.msra.mxu0 0.0
  %6380 = vmatpush.msra.mxu0 %v6329
  %6381 = vmatmul.f32.gmra.mxu0 %v6325
  %v6382 = vpop.f32.mrf.mxu0
  %v6383 = vadd.f32 %v6182, %v6382
  %6384 = vdwg.mxu0
  %6385 = vmatpush.msra.mxu0 0.0
  %6386 = vmatpush.msra.mxu0 0.0
  %6387 = vmatpush.msra.mxu0 0.0
  %6388 = vmatpush.msra.mxu0 0.0
  %6389 = vmatpush.msra.mxu0 0.0
  %6390 = vmatpush.msra.mxu0 0.0
  %6391 = vmatpush.msra.mxu0 0.0
  %6392 = vmatpush.msra.mxu0 0.0
  %6393 = vmatpush.msra.mxu0 0.0
  %6394 = vmatpush.msra.mxu0 0.0
  %6395 = vmatpush.msra.mxu0 0.0
  %6396 = vmatpush.msra.mxu0 0.0
  %6397 = vmatpush.msra.mxu0 0.0
  %6398 = vmatpush.msra.mxu0 0.0
  %6399 = vmatpush.msra.mxu0 0.0
  %6400 = vmatpush.msra.mxu0 %v6331
  %6401 = vmatmul.f32.gmra.mxu0 %v6325
  %v6402 = vpop.f32.mrf.mxu0
  %v6403 = vadd.f32 %v6202, %v6402
  %6404 = vdwg.mxu0
  %6405 = vmatpush.msra.mxu0 0.0
  %6406 = vmatpush.msra.mxu0 0.0
  %6407 = vmatpush.msra.mxu0 0.0
  %6408 = vmatpush.msra.mxu0 0.0
  %6409 = vmatpush.msra.mxu0 0.0
  %6410 = vmatpush.msra.mxu0 0.0
  %6411 = vmatpush.msra.mxu0 0.0
  %6412 = vmatpush.msra.mxu0 0.0
  %6413 = vmatpush.msra.mxu0 0.0
  %6414 = vmatpush.msra.mxu0 0.0
  %6415 = vmatpush.msra.mxu0 0.0
  %6416 = vmatpush.msra.mxu0 0.0
  %6417 = vmatpush.msra.mxu0 0.0
  %6418 = vmatpush.msra.mxu0 0.0
  %6419 = vmatpush.msra.mxu0 0.0
  %6420 = vmatpush.msra.mxu0 %v6333
  %6421 = vmatmul.f32.gmra.mxu0 %v6325
  %v6422 = vpop.f32.mrf.mxu0
  %v6423 = vadd.f32 %v6222, %v6422
  %6424 = vdwg.mxu0
  %6425 = vmatpush.msra.mxu0 0.0
  %6426 = vmatpush.msra.mxu0 0.0
  %6427 = vmatpush.msra.mxu0 0.0
  %6428 = vmatpush.msra.mxu0 0.0
  %6429 = vmatpush.msra.mxu0 0.0
  %6430 = vmatpush.msra.mxu0 0.0
  %6431 = vmatpush.msra.mxu0 0.0
  %6432 = vmatpush.msra.mxu0 0.0
  %6433 = vmatpush.msra.mxu0 0.0
  %6434 = vmatpush.msra.mxu0 0.0
  %6435 = vmatpush.msra.mxu0 0.0
  %6436 = vmatpush.msra.mxu0 0.0
  %6437 = vmatpush.msra.mxu0 0.0
  %6438 = vmatpush.msra.mxu0 0.0
  %6439 = vmatpush.msra.mxu0 0.0
  %6440 = vmatpush.msra.mxu0 %v6335
  %6441 = vmatmul.f32.gmra.mxu0 %v6325
  %v6442 = vpop.f32.mrf.mxu0
  %v6443 = vadd.f32 %v6242, %v6442
  %6444 = vdwg.mxu0
  %6445 = vmatpush.msra.mxu0 0.0
  %6446 = vmatpush.msra.mxu0 0.0
  %6447 = vmatpush.msra.mxu0 0.0
  %6448 = vmatpush.msra.mxu0 0.0
  %6449 = vmatpush.msra.mxu0 0.0
  %6450 = vmatpush.msra.mxu0 0.0
  %6451 = vmatpush.msra.mxu0 0.0
  %6452 = vmatpush.msra.mxu0 0.0
  %6453 = vmatpush.msra.mxu0 0.0
  %6454 = vmatpush.msra.mxu0 0.0
  %6455 = vmatpush.msra.mxu0 0.0
  %6456 = vmatpush.msra.mxu0 0.0
  %6457 = vmatpush.msra.mxu0 0.0
  %6458 = vmatpush.msra.mxu0 0.0
  %6459 = vmatpush.msra.mxu0 0.0
  %6460 = vmatpush.msra.mxu0 %v6337
  %6461 = vmatmul.f32.gmra.mxu0 %v6325
  %v6462 = vpop.f32.mrf.mxu0
  %v6463 = vadd.f32 %v6262, %v6462
  %6464 = vdwg.mxu0
  %6465 = vmatpush.msra.mxu0 0.0
  %6466 = vmatpush.msra.mxu0 0.0
  %6467 = vmatpush.msra.mxu0 0.0
  %6468 = vmatpush.msra.mxu0 0.0
  %6469 = vmatpush.msra.mxu0 0.0
  %6470 = vmatpush.msra.mxu0 0.0
  %6471 = vmatpush.msra.mxu0 0.0
  %6472 = vmatpush.msra.mxu0 0.0
  %6473 = vmatpush.msra.mxu0 0.0
  %6474 = vmatpush.msra.mxu0 0.0
  %6475 = vmatpush.msra.mxu0 0.0
  %6476 = vmatpush.msra.mxu0 0.0
  %6477 = vmatpush.msra.mxu0 0.0
  %6478 = vmatpush.msra.mxu0 0.0
  %6479 = vmatpush.msra.mxu0 0.0
  %6480 = vmatpush.msra.mxu0 %v6339
  %6481 = vmatmul.f32.gmra.mxu0 %v6325
  %v6482 = vpop.f32.mrf.mxu0
  %v6483 = vadd.f32 %v6282, %v6482
  %6484 = vdwg.mxu0
  %6485 = vmatpush.msra.mxu0 0.0
  %6486 = vmatpush.msra.mxu0 0.0
  %6487 = vmatpush.msra.mxu0 0.0
  %6488 = vmatpush.msra.mxu0 0.0
  %6489 = vmatpush.msra.mxu0 0.0
  %6490 = vmatpush.msra.mxu0 0.0
  %6491 = vmatpush.msra.mxu0 0.0
  %6492 = vmatpush.msra.mxu0 0.0
  %6493 = vmatpush.msra.mxu0 0.0
  %6494 = vmatpush.msra.mxu0 0.0
  %6495 = vmatpush.msra.mxu0 0.0
  %6496 = vmatpush.msra.mxu0 0.0
  %6497 = vmatpush.msra.mxu0 0.0
  %6498 = vmatpush.msra.mxu0 0.0
  %6499 = vmatpush.msra.mxu0 0.0
  %6500 = vmatpush.msra.mxu0 %v6341
  %6501 = vmatmul.f32.gmra.mxu0 %v6325
  %v6502 = vpop.f32.mrf.mxu0
  %v6503 = vadd.f32 %v6302, %v6502
  %6504 = vdwg.mxu0
  %6505 = vmatpush.msra.mxu0 0.0
  %6506 = vmatpush.msra.mxu0 0.0
  %6507 = vmatpush.msra.mxu0 0.0
  %6508 = vmatpush.msra.mxu0 0.0
  %6509 = vmatpush.msra.mxu0 0.0
  %6510 = vmatpush.msra.mxu0 0.0
  %6511 = vmatpush.msra.mxu0 0.0
  %6512 = vmatpush.msra.mxu0 0.0
  %6513 = vmatpush.msra.mxu0 0.0
  %6514 = vmatpush.msra.mxu0 0.0
  %6515 = vmatpush.msra.mxu0 0.0
  %6516 = vmatpush.msra.mxu0 0.0
  %6517 = vmatpush.msra.mxu0 0.0
  %6518 = vmatpush.msra.mxu0 0.0
  %6519 = vmatpush.msra.mxu0 0.0
  %6520 = vmatpush.msra.mxu0 %v6343
  %6521 = vmatmul.f32.gmra.mxu0 %v6325
  %v6522 = vpop.f32.mrf.mxu0
  %v6523 = vadd.f32 %v6322, %v6522
  %6524 = vdwg.mxu0
  %s6525 = scalar_lea.vmem %s7, 2
  %v6526 = vld [vmem:[%s6525] sm:$0x1]
  %6527 = vrot.lane.b32.xlu0 %v6069, 126
  %v6528 = vpop.permute.xlu0 %6527
  %6529 = vrot.lane.b32.xlu0 %v6070, 126
  %v6530 = vpop.permute.xlu0 %6529
  %6531 = vrot.lane.b32.xlu0 %v6071, 126
  %v6532 = vpop.permute.xlu0 %6531
  %6533 = vrot.lane.b32.xlu0 %v6072, 126
  %v6534 = vpop.permute.xlu0 %6533
  %6535 = vrot.lane.b32.xlu0 %v6073, 126
  %v6536 = vpop.permute.xlu0 %6535
  %6537 = vrot.lane.b32.xlu0 %v6074, 126
  %v6538 = vpop.permute.xlu0 %6537
  %6539 = vrot.lane.b32.xlu0 %v6075, 126
  %v6540 = vpop.permute.xlu0 %6539
  %6541 = vrot.lane.b32.xlu0 %v6076, 126
  %v6542 = vpop.permute.xlu0 %6541
  %6543 = vrot.lane.b32.xlu0 %v6077, 126
  %v6544 = vpop.permute.xlu0 %6543
  %6545 = vrot.lane.b32.xlu0 %v6079, 126
  %v6546 = vpop.permute.xlu0 %6545
  %v6547 = vsel %vm233, %v6528, %v6530
  %v6548 = vsel %vm233, %v6530, %v6532
  %v6549 = vsel %vm233, %v6532, %v6534
  %v6550 = vsel %vm233, %v6534, %v6536
  %v6551 = vsel %vm233, %v6536, %v6538
  %v6552 = vsel %vm233, %v6538, %v6540
  %v6553 = vsel %vm233, %v6540, %v6542
  %v6554 = vsel %vm233, %v6542, %v6544
  %v6555 = vsel %vm233, %v6544, %v6546
  %v6557 = vsel %vm6121, %v6526, 0
  %v6559 = vsel %vm6125, %v6547, 0
  %v6561 = vsel %vm6125, %v6548, 0
  %v6563 = vsel %vm6125, %v6549, 0
  %v6565 = vsel %vm6125, %v6550, 0
  %v6567 = vsel %vm6125, %v6551, 0
  %v6569 = vsel %vm6125, %v6552, 0
  %v6571 = vsel %vm6125, %v6553, 0
  %v6573 = vsel %vm6125, %v6554, 0
  %v6575 = vsel %vm6125, %v6555, 0
  %6577 = vmatpush.msra.mxu0 0.0
  %6578 = vmatpush.msra.mxu0 0.0
  %6579 = vmatpush.msra.mxu0 0.0
  %6580 = vmatpush.msra.mxu0 0.0
  %6581 = vmatpush.msra.mxu0 0.0
  %6582 = vmatpush.msra.mxu0 0.0
  %6583 = vmatpush.msra.mxu0 0.0
  %6584 = vmatpush.msra.mxu0 0.0
  %6585 = vmatpush.msra.mxu0 0.0
  %6586 = vmatpush.msra.mxu0 0.0
  %6587 = vmatpush.msra.mxu0 0.0
  %6588 = vmatpush.msra.mxu0 0.0
  %6589 = vmatpush.msra.mxu0 0.0
  %6590 = vmatpush.msra.mxu0 0.0
  %6591 = vmatpush.msra.mxu0 0.0
  %6592 = vmatpush.msra.mxu0 %v6559
  %6593 = vmatmul.f32.gmra.mxu0 %v6557
  %v6594 = vpop.f32.mrf.mxu0
  %v6595 = vadd.f32 0.0, %v6594
  %6596 = vdwg.mxu0
  %6597 = vmatpush.msra.mxu0 0.0
  %6598 = vmatpush.msra.mxu0 0.0
  %6599 = vmatpush.msra.mxu0 0.0
  %6600 = vmatpush.msra.mxu0 0.0
  %6601 = vmatpush.msra.mxu0 0.0
  %6602 = vmatpush.msra.mxu0 0.0
  %6603 = vmatpush.msra.mxu0 0.0
  %6604 = vmatpush.msra.mxu0 0.0
  %6605 = vmatpush.msra.mxu0 0.0
  %6606 = vmatpush.msra.mxu0 0.0
  %6607 = vmatpush.msra.mxu0 0.0
  %6608 = vmatpush.msra.mxu0 0.0
  %6609 = vmatpush.msra.mxu0 0.0
  %6610 = vmatpush.msra.mxu0 0.0
  %6611 = vmatpush.msra.mxu0 0.0
  %6612 = vmatpush.msra.mxu0 %v6561
  %6613 = vmatmul.f32.gmra.mxu0 %v6557
  %v6614 = vpop.f32.mrf.mxu0
  %v6615 = vadd.f32 0.0, %v6614
  %6616 = vdwg.mxu0
  %6617 = vmatpush.msra.mxu0 0.0
  %6618 = vmatpush.msra.mxu0 0.0
  %6619 = vmatpush.msra.mxu0 0.0
  %6620 = vmatpush.msra.mxu0 0.0
  %6621 = vmatpush.msra.mxu0 0.0
  %6622 = vmatpush.msra.mxu0 0.0
  %6623 = vmatpush.msra.mxu0 0.0
  %6624 = vmatpush.msra.mxu0 0.0
  %6625 = vmatpush.msra.mxu0 0.0
  %6626 = vmatpush.msra.mxu0 0.0
  %6627 = vmatpush.msra.mxu0 0.0
  %6628 = vmatpush.msra.mxu0 0.0
  %6629 = vmatpush.msra.mxu0 0.0
  %6630 = vmatpush.msra.mxu0 0.0
  %6631 = vmatpush.msra.mxu0 0.0
  %6632 = vmatpush.msra.mxu0 %v6563
  %6633 = vmatmul.f32.gmra.mxu0 %v6557
  %v6634 = vpop.f32.mrf.mxu0
  %v6635 = vadd.f32 0.0, %v6634
  %6636 = vdwg.mxu0
  %6637 = vmatpush.msra.mxu0 0.0
  %6638 = vmatpush.msra.mxu0 0.0
  %6639 = vmatpush.msra.mxu0 0.0
  %6640 = vmatpush.msra.mxu0 0.0
  %6641 = vmatpush.msra.mxu0 0.0
  %6642 = vmatpush.msra.mxu0 0.0
  %6643 = vmatpush.msra.mxu0 0.0
  %6644 = vmatpush.msra.mxu0 0.0
  %6645 = vmatpush.msra.mxu0 0.0
  %6646 = vmatpush.msra.mxu0 0.0
  %6647 = vmatpush.msra.mxu0 0.0
  %6648 = vmatpush.msra.mxu0 0.0
  %6649 = vmatpush.msra.mxu0 0.0
  %6650 = vmatpush.msra.mxu0 0.0
  %6651 = vmatpush.msra.mxu0 0.0
  %6652 = vmatpush.msra.mxu0 %v6565
  %6653 = vmatmul.f32.gmra.mxu0 %v6557
  %v6654 = vpop.f32.mrf.mxu0
  %v6655 = vadd.f32 0.0, %v6654
  %6656 = vdwg.mxu0
  %6657 = vmatpush.msra.mxu0 0.0
  %6658 = vmatpush.msra.mxu0 0.0
  %6659 = vmatpush.msra.mxu0 0.0
  %6660 = vmatpush.msra.mxu0 0.0
  %6661 = vmatpush.msra.mxu0 0.0
  %6662 = vmatpush.msra.mxu0 0.0
  %6663 = vmatpush.msra.mxu0 0.0
  %6664 = vmatpush.msra.mxu0 0.0
  %6665 = vmatpush.msra.mxu0 0.0
  %6666 = vmatpush.msra.mxu0 0.0
  %6667 = vmatpush.msra.mxu0 0.0
  %6668 = vmatpush.msra.mxu0 0.0
  %6669 = vmatpush.msra.mxu0 0.0
  %6670 = vmatpush.msra.mxu0 0.0
  %6671 = vmatpush.msra.mxu0 0.0
  %6672 = vmatpush.msra.mxu0 %v6567
  %6673 = vmatmul.f32.gmra.mxu0 %v6557
  %v6674 = vpop.f32.mrf.mxu0
  %v6675 = vadd.f32 0.0, %v6674
  %6676 = vdwg.mxu0
  %6677 = vmatpush.msra.mxu0 0.0
  %6678 = vmatpush.msra.mxu0 0.0
  %6679 = vmatpush.msra.mxu0 0.0
  %6680 = vmatpush.msra.mxu0 0.0
  %6681 = vmatpush.msra.mxu0 0.0
  %6682 = vmatpush.msra.mxu0 0.0
  %6683 = vmatpush.msra.mxu0 0.0
  %6684 = vmatpush.msra.mxu0 0.0
  %6685 = vmatpush.msra.mxu0 0.0
  %6686 = vmatpush.msra.mxu0 0.0
  %6687 = vmatpush.msra.mxu0 0.0
  %6688 = vmatpush.msra.mxu0 0.0
  %6689 = vmatpush.msra.mxu0 0.0
  %6690 = vmatpush.msra.mxu0 0.0
  %6691 = vmatpush.msra.mxu0 0.0
  %6692 = vmatpush.msra.mxu0 %v6569
  %6693 = vmatmul.f32.gmra.mxu0 %v6557
  %v6694 = vpop.f32.mrf.mxu0
  %v6695 = vadd.f32 0.0, %v6694
  %6696 = vdwg.mxu0
  %6697 = vmatpush.msra.mxu0 0.0
  %6698 = vmatpush.msra.mxu0 0.0
  %6699 = vmatpush.msra.mxu0 0.0
  %6700 = vmatpush.msra.mxu0 0.0
  %6701 = vmatpush.msra.mxu0 0.0
  %6702 = vmatpush.msra.mxu0 0.0
  %6703 = vmatpush.msra.mxu0 0.0
  %6704 = vmatpush.msra.mxu0 0.0
  %6705 = vmatpush.msra.mxu0 0.0
  %6706 = vmatpush.msra.mxu0 0.0
  %6707 = vmatpush.msra.mxu0 0.0
  %6708 = vmatpush.msra.mxu0 0.0
  %6709 = vmatpush.msra.mxu0 0.0
  %6710 = vmatpush.msra.mxu0 0.0
  %6711 = vmatpush.msra.mxu0 0.0
  %6712 = vmatpush.msra.mxu0 %v6571
  %6713 = vmatmul.f32.gmra.mxu0 %v6557
  %v6714 = vpop.f32.mrf.mxu0
  %v6715 = vadd.f32 0.0, %v6714
  %6716 = vdwg.mxu0
  %6717 = vmatpush.msra.mxu0 0.0
  %6718 = vmatpush.msra.mxu0 0.0
  %6719 = vmatpush.msra.mxu0 0.0
  %6720 = vmatpush.msra.mxu0 0.0
  %6721 = vmatpush.msra.mxu0 0.0
  %6722 = vmatpush.msra.mxu0 0.0
  %6723 = vmatpush.msra.mxu0 0.0
  %6724 = vmatpush.msra.mxu0 0.0
  %6725 = vmatpush.msra.mxu0 0.0
  %6726 = vmatpush.msra.mxu0 0.0
  %6727 = vmatpush.msra.mxu0 0.0
  %6728 = vmatpush.msra.mxu0 0.0
  %6729 = vmatpush.msra.mxu0 0.0
  %6730 = vmatpush.msra.mxu0 0.0
  %6731 = vmatpush.msra.mxu0 0.0
  %6732 = vmatpush.msra.mxu0 %v6573
  %6733 = vmatmul.f32.gmra.mxu0 %v6557
  %v6734 = vpop.f32.mrf.mxu0
  %v6735 = vadd.f32 0.0, %v6734
  %6736 = vdwg.mxu0
  %6737 = vmatpush.msra.mxu0 0.0
  %6738 = vmatpush.msra.mxu0 0.0
  %6739 = vmatpush.msra.mxu0 0.0
  %6740 = vmatpush.msra.mxu0 0.0
  %6741 = vmatpush.msra.mxu0 0.0
  %6742 = vmatpush.msra.mxu0 0.0
  %6743 = vmatpush.msra.mxu0 0.0
  %6744 = vmatpush.msra.mxu0 0.0
  %6745 = vmatpush.msra.mxu0 0.0
  %6746 = vmatpush.msra.mxu0 0.0
  %6747 = vmatpush.msra.mxu0 0.0
  %6748 = vmatpush.msra.mxu0 0.0
  %6749 = vmatpush.msra.mxu0 0.0
  %6750 = vmatpush.msra.mxu0 0.0
  %6751 = vmatpush.msra.mxu0 0.0
  %6752 = vmatpush.msra.mxu0 %v6575
  %6753 = vmatmul.f32.gmra.mxu0 %v6557
  %v6754 = vpop.f32.mrf.mxu0
  %v6755 = vadd.f32 0.0, %v6754
  %6756 = vdwg.mxu0
  %v6757 = vadd.f32 %v6363, %v6595
  %v6758 = vadd.f32 %v6383, %v6615
  %v6759 = vadd.f32 %v6403, %v6635
  %v6760 = vadd.f32 %v6423, %v6655
  %v6761 = vadd.f32 %v6443, %v6675
  %v6762 = vadd.f32 %v6463, %v6695
  %v6763 = vadd.f32 %v6483, %v6715
  %v6764 = vadd.f32 %v6503, %v6735
  %v6765 = vadd.f32 %v6523, %v6755
  %s6766 = scalar_lea.vmem %s7, 3
  %v6767 = vld [vmem:[%s6766] sm:$0x1]
  %6768 = vrot.lane.b32.xlu0 %v6069, 104
  %v6769 = vpop.permute.xlu0 %6768
  %6770 = vrot.lane.b32.xlu0 %v6070, 104
  %v6771 = vpop.permute.xlu0 %6770
  %6772 = vrot.lane.b32.xlu0 %v6071, 104
  %v6773 = vpop.permute.xlu0 %6772
  %6774 = vrot.lane.b32.xlu0 %v6072, 104
  %v6775 = vpop.permute.xlu0 %6774
  %6776 = vrot.lane.b32.xlu0 %v6073, 104
  %v6777 = vpop.permute.xlu0 %6776
  %6778 = vrot.lane.b32.xlu0 %v6074, 104
  %v6779 = vpop.permute.xlu0 %6778
  %6780 = vrot.lane.b32.xlu0 %v6075, 104
  %v6781 = vpop.permute.xlu0 %6780
  %6782 = vrot.lane.b32.xlu0 %v6076, 104
  %v6783 = vpop.permute.xlu0 %6782
  %6784 = vrot.lane.b32.xlu0 %v6077, 104
  %v6785 = vpop.permute.xlu0 %6784
  %6786 = vrot.lane.b32.xlu0 %v6079, 104
  %v6787 = vpop.permute.xlu0 %6786
  %v6788 = vsel %vm308, %v6769, %v6771
  %v6789 = vsel %vm308, %v6771, %v6773
  %v6790 = vsel %vm308, %v6773, %v6775
  %v6791 = vsel %vm308, %v6775, %v6777
  %v6792 = vsel %vm308, %v6777, %v6779
  %v6793 = vsel %vm308, %v6779, %v6781
  %v6794 = vsel %vm308, %v6781, %v6783
  %v6795 = vsel %vm308, %v6783, %v6785
  %v6796 = vsel %vm308, %v6785, %v6787
  %v6798 = vsel %vm6121, %v6767, 0
  %v6800 = vsel %vm6125, %v6788, 0
  %v6802 = vsel %vm6125, %v6789, 0
  %v6804 = vsel %vm6125, %v6790, 0
  %v6806 = vsel %vm6125, %v6791, 0
  %v6808 = vsel %vm6125, %v6792, 0
  %v6810 = vsel %vm6125, %v6793, 0
  %v6812 = vsel %vm6125, %v6794, 0
  %v6814 = vsel %vm6125, %v6795, 0
  %v6816 = vsel %vm6125, %v6796, 0
  %6818 = vmatpush.msra.mxu0 0.0
  %6819 = vmatpush.msra.mxu0 0.0
  %6820 = vmatpush.msra.mxu0 0.0
  %6821 = vmatpush.msra.mxu0 0.0
  %6822 = vmatpush.msra.mxu0 0.0
  %6823 = vmatpush.msra.mxu0 0.0
  %6824 = vmatpush.msra.mxu0 0.0
  %6825 = vmatpush.msra.mxu0 0.0
  %6826 = vmatpush.msra.mxu0 0.0
  %6827 = vmatpush.msra.mxu0 0.0
  %6828 = vmatpush.msra.mxu0 0.0
  %6829 = vmatpush.msra.mxu0 0.0
  %6830 = vmatpush.msra.mxu0 0.0
  %6831 = vmatpush.msra.mxu0 0.0
  %6832 = vmatpush.msra.mxu0 0.0
  %6833 = vmatpush.msra.mxu0 %v6800
  %6834 = vmatmul.f32.gmra.mxu0 %v6798
  %v6835 = vpop.f32.mrf.mxu0
  %v6836 = vadd.f32 0.0, %v6835
  %6837 = vdwg.mxu0
  %6838 = vmatpush.msra.mxu0 0.0
  %6839 = vmatpush.msra.mxu0 0.0
  %6840 = vmatpush.msra.mxu0 0.0
  %6841 = vmatpush.msra.mxu0 0.0
  %6842 = vmatpush.msra.mxu0 0.0
  %6843 = vmatpush.msra.mxu0 0.0
  %6844 = vmatpush.msra.mxu0 0.0
  %6845 = vmatpush.msra.mxu0 0.0
  %6846 = vmatpush.msra.mxu0 0.0
  %6847 = vmatpush.msra.mxu0 0.0
  %6848 = vmatpush.msra.mxu0 0.0
  %6849 = vmatpush.msra.mxu0 0.0
  %6850 = vmatpush.msra.mxu0 0.0
  %6851 = vmatpush.msra.mxu0 0.0
  %6852 = vmatpush.msra.mxu0 0.0
  %6853 = vmatpush.msra.mxu0 %v6802
  %6854 = vmatmul.f32.gmra.mxu0 %v6798
  %v6855 = vpop.f32.mrf.mxu0
  %v6856 = vadd.f32 0.0, %v6855
  %6857 = vdwg.mxu0
  %6858 = vmatpush.msra.mxu0 0.0
  %6859 = vmatpush.msra.mxu0 0.0
  %6860 = vmatpush.msra.mxu0 0.0
  %6861 = vmatpush.msra.mxu0 0.0
  %6862 = vmatpush.msra.mxu0 0.0
  %6863 = vmatpush.msra.mxu0 0.0
  %6864 = vmatpush.msra.mxu0 0.0
  %6865 = vmatpush.msra.mxu0 0.0
  %6866 = vmatpush.msra.mxu0 0.0
  %6867 = vmatpush.msra.mxu0 0.0
  %6868 = vmatpush.msra.mxu0 0.0
  %6869 = vmatpush.msra.mxu0 0.0
  %6870 = vmatpush.msra.mxu0 0.0
  %6871 = vmatpush.msra.mxu0 0.0
  %6872 = vmatpush.msra.mxu0 0.0
  %6873 = vmatpush.msra.mxu0 %v6804
  %6874 = vmatmul.f32.gmra.mxu0 %v6798
  %v6875 = vpop.f32.mrf.mxu0
  %v6876 = vadd.f32 0.0, %v6875
  %6877 = vdwg.mxu0
  %6878 = vmatpush.msra.mxu0 0.0
  %6879 = vmatpush.msra.mxu0 0.0
  %6880 = vmatpush.msra.mxu0 0.0
  %6881 = vmatpush.msra.mxu0 0.0
  %6882 = vmatpush.msra.mxu0 0.0
  %6883 = vmatpush.msra.mxu0 0.0
  %6884 = vmatpush.msra.mxu0 0.0
  %6885 = vmatpush.msra.mxu0 0.0
  %6886 = vmatpush.msra.mxu0 0.0
  %6887 = vmatpush.msra.mxu0 0.0
  %6888 = vmatpush.msra.mxu0 0.0
  %6889 = vmatpush.msra.mxu0 0.0
  %6890 = vmatpush.msra.mxu0 0.0
  %6891 = vmatpush.msra.mxu0 0.0
  %6892 = vmatpush.msra.mxu0 0.0
  %6893 = vmatpush.msra.mxu0 %v6806
  %6894 = vmatmul.f32.gmra.mxu0 %v6798
  %v6895 = vpop.f32.mrf.mxu0
  %v6896 = vadd.f32 0.0, %v6895
  %6897 = vdwg.mxu0
  %6898 = vmatpush.msra.mxu0 0.0
  %6899 = vmatpush.msra.mxu0 0.0
  %6900 = vmatpush.msra.mxu0 0.0
  %6901 = vmatpush.msra.mxu0 0.0
  %6902 = vmatpush.msra.mxu0 0.0
  %6903 = vmatpush.msra.mxu0 0.0
  %6904 = vmatpush.msra.mxu0 0.0
  %6905 = vmatpush.msra.mxu0 0.0
  %6906 = vmatpush.msra.mxu0 0.0
  %6907 = vmatpush.msra.mxu0 0.0
  %6908 = vmatpush.msra.mxu0 0.0
  %6909 = vmatpush.msra.mxu0 0.0
  %6910 = vmatpush.msra.mxu0 0.0
  %6911 = vmatpush.msra.mxu0 0.0
  %6912 = vmatpush.msra.mxu0 0.0
  %6913 = vmatpush.msra.mxu0 %v6808
  %6914 = vmatmul.f32.gmra.mxu0 %v6798
  %v6915 = vpop.f32.mrf.mxu0
  %v6916 = vadd.f32 0.0, %v6915
  %6917 = vdwg.mxu0
  %6918 = vmatpush.msra.mxu0 0.0
  %6919 = vmatpush.msra.mxu0 0.0
  %6920 = vmatpush.msra.mxu0 0.0
  %6921 = vmatpush.msra.mxu0 0.0
  %6922 = vmatpush.msra.mxu0 0.0
  %6923 = vmatpush.msra.mxu0 0.0
  %6924 = vmatpush.msra.mxu0 0.0
  %6925 = vmatpush.msra.mxu0 0.0
  %6926 = vmatpush.msra.mxu0 0.0
  %6927 = vmatpush.msra.mxu0 0.0
  %6928 = vmatpush.msra.mxu0 0.0
  %6929 = vmatpush.msra.mxu0 0.0
  %6930 = vmatpush.msra.mxu0 0.0
  %6931 = vmatpush.msra.mxu0 0.0
  %6932 = vmatpush.msra.mxu0 0.0
  %6933 = vmatpush.msra.mxu0 %v6810
  %6934 = vmatmul.f32.gmra.mxu0 %v6798
  %v6935 = vpop.f32.mrf.mxu0
  %v6936 = vadd.f32 0.0, %v6935
  %6937 = vdwg.mxu0
  %6938 = vmatpush.msra.mxu0 0.0
  %6939 = vmatpush.msra.mxu0 0.0
  %6940 = vmatpush.msra.mxu0 0.0
  %6941 = vmatpush.msra.mxu0 0.0
  %6942 = vmatpush.msra.mxu0 0.0
  %6943 = vmatpush.msra.mxu0 0.0
  %6944 = vmatpush.msra.mxu0 0.0
  %6945 = vmatpush.msra.mxu0 0.0
  %6946 = vmatpush.msra.mxu0 0.0
  %6947 = vmatpush.msra.mxu0 0.0
  %6948 = vmatpush.msra.mxu0 0.0
  %6949 = vmatpush.msra.mxu0 0.0
  %6950 = vmatpush.msra.mxu0 0.0
  %6951 = vmatpush.msra.mxu0 0.0
  %6952 = vmatpush.msra.mxu0 0.0
  %6953 = vmatpush.msra.mxu0 %v6812
  %6954 = vmatmul.f32.gmra.mxu0 %v6798
  %v6955 = vpop.f32.mrf.mxu0
  %v6956 = vadd.f32 0.0, %v6955
  %6957 = vdwg.mxu0
  %6958 = vmatpush.msra.mxu0 0.0
  %6959 = vmatpush.msra.mxu0 0.0
  %6960 = vmatpush.msra.mxu0 0.0
  %6961 = vmatpush.msra.mxu0 0.0
  %6962 = vmatpush.msra.mxu0 0.0
  %6963 = vmatpush.msra.mxu0 0.0
  %6964 = vmatpush.msra.mxu0 0.0
  %6965 = vmatpush.msra.mxu0 0.0
  %6966 = vmatpush.msra.mxu0 0.0
  %6967 = vmatpush.msra.mxu0 0.0
  %6968 = vmatpush.msra.mxu0 0.0
  %6969 = vmatpush.msra.mxu0 0.0
  %6970 = vmatpush.msra.mxu0 0.0
  %6971 = vmatpush.msra.mxu0 0.0
  %6972 = vmatpush.msra.mxu0 0.0
  %6973 = vmatpush.msra.mxu0 %v6814
  %6974 = vmatmul.f32.gmra.mxu0 %v6798
  %v6975 = vpop.f32.mrf.mxu0
  %v6976 = vadd.f32 0.0, %v6975
  %6977 = vdwg.mxu0
  %6978 = vmatpush.msra.mxu0 0.0
  %6979 = vmatpush.msra.mxu0 0.0
  %6980 = vmatpush.msra.mxu0 0.0
  %6981 = vmatpush.msra.mxu0 0.0
  %6982 = vmatpush.msra.mxu0 0.0
  %6983 = vmatpush.msra.mxu0 0.0
  %6984 = vmatpush.msra.mxu0 0.0
  %6985 = vmatpush.msra.mxu0 0.0
  %6986 = vmatpush.msra.mxu0 0.0
  %6987 = vmatpush.msra.mxu0 0.0
  %6988 = vmatpush.msra.mxu0 0.0
  %6989 = vmatpush.msra.mxu0 0.0
  %6990 = vmatpush.msra.mxu0 0.0
  %6991 = vmatpush.msra.mxu0 0.0
  %6992 = vmatpush.msra.mxu0 0.0
  %6993 = vmatpush.msra.mxu0 %v6816
  %6994 = vmatmul.f32.gmra.mxu0 %v6798
  %v6995 = vpop.f32.mrf.mxu0
  %v6996 = vadd.f32 0.0, %v6995
  %6997 = vdwg.mxu0
  %v6998 = vadd.f32 %v6757, %v6836
  %v6999 = vadd.f32 %v6758, %v6856
  %v7000 = vadd.f32 %v6759, %v6876
  %v7001 = vadd.f32 %v6760, %v6896
  %v7002 = vadd.f32 %v6761, %v6916
  %v7003 = vadd.f32 %v6762, %v6936
  %v7004 = vadd.f32 %v6763, %v6956
  %v7005 = vadd.f32 %v6764, %v6976
  %v7006 = vadd.f32 %v6765, %v6996
  %s7007 = scalar_lea.vmem %s7, 4
  %v7008 = vld [vmem:[%s7007] sm:$0x1]
  %7009 = vrot.lane.b32.xlu0 %v6069, 103
  %v7010 = vpop.permute.xlu0 %7009
  %7011 = vrot.lane.b32.xlu0 %v6070, 103
  %v7012 = vpop.permute.xlu0 %7011
  %7013 = vrot.lane.b32.xlu0 %v6071, 103
  %v7014 = vpop.permute.xlu0 %7013
  %7015 = vrot.lane.b32.xlu0 %v6072, 103
  %v7016 = vpop.permute.xlu0 %7015
  %7017 = vrot.lane.b32.xlu0 %v6073, 103
  %v7018 = vpop.permute.xlu0 %7017
  %7019 = vrot.lane.b32.xlu0 %v6074, 103
  %v7020 = vpop.permute.xlu0 %7019
  %7021 = vrot.lane.b32.xlu0 %v6075, 103
  %v7022 = vpop.permute.xlu0 %7021
  %7023 = vrot.lane.b32.xlu0 %v6076, 103
  %v7024 = vpop.permute.xlu0 %7023
  %7025 = vrot.lane.b32.xlu0 %v6077, 103
  %v7026 = vpop.permute.xlu0 %7025
  %7027 = vrot.lane.b32.xlu0 %v6079, 103
  %v7028 = vpop.permute.xlu0 %7027
  %v7029 = vsel %vm383, %v7010, %v7012
  %v7030 = vsel %vm383, %v7012, %v7014
  %v7031 = vsel %vm383, %v7014, %v7016
  %v7032 = vsel %vm383, %v7016, %v7018
  %v7033 = vsel %vm383, %v7018, %v7020
  %v7034 = vsel %vm383, %v7020, %v7022
  %v7035 = vsel %vm383, %v7022, %v7024
  %v7036 = vsel %vm383, %v7024, %v7026
  %v7037 = vsel %vm383, %v7026, %v7028
  %v7039 = vsel %vm6121, %v7008, 0
  %v7041 = vsel %vm6125, %v7029, 0
  %v7043 = vsel %vm6125, %v7030, 0
  %v7045 = vsel %vm6125, %v7031, 0
  %v7047 = vsel %vm6125, %v7032, 0
  %v7049 = vsel %vm6125, %v7033, 0
  %v7051 = vsel %vm6125, %v7034, 0
  %v7053 = vsel %vm6125, %v7035, 0
  %v7055 = vsel %vm6125, %v7036, 0
  %v7057 = vsel %vm6125, %v7037, 0
  %7059 = vmatpush.msra.mxu0 0.0
  %7060 = vmatpush.msra.mxu0 0.0
  %7061 = vmatpush.msra.mxu0 0.0
  %7062 = vmatpush.msra.mxu0 0.0
  %7063 = vmatpush.msra.mxu0 0.0
  %7064 = vmatpush.msra.mxu0 0.0
  %7065 = vmatpush.msra.mxu0 0.0
  %7066 = vmatpush.msra.mxu0 0.0
  %7067 = vmatpush.msra.mxu0 0.0
  %7068 = vmatpush.msra.mxu0 0.0
  %7069 = vmatpush.msra.mxu0 0.0
  %7070 = vmatpush.msra.mxu0 0.0
  %7071 = vmatpush.msra.mxu0 0.0
  %7072 = vmatpush.msra.mxu0 0.0
  %7073 = vmatpush.msra.mxu0 0.0
  %7074 = vmatpush.msra.mxu0 %v7041
  %7075 = vmatmul.f32.gmra.mxu0 %v7039
  %v7076 = vpop.f32.mrf.mxu0
  %v7077 = vadd.f32 0.0, %v7076
  %7078 = vdwg.mxu0
  %7079 = vmatpush.msra.mxu0 0.0
  %7080 = vmatpush.msra.mxu0 0.0
  %7081 = vmatpush.msra.mxu0 0.0
  %7082 = vmatpush.msra.mxu0 0.0
  %7083 = vmatpush.msra.mxu0 0.0
  %7084 = vmatpush.msra.mxu0 0.0
  %7085 = vmatpush.msra.mxu0 0.0
  %7086 = vmatpush.msra.mxu0 0.0
  %7087 = vmatpush.msra.mxu0 0.0
  %7088 = vmatpush.msra.mxu0 0.0
  %7089 = vmatpush.msra.mxu0 0.0
  %7090 = vmatpush.msra.mxu0 0.0
  %7091 = vmatpush.msra.mxu0 0.0
  %7092 = vmatpush.msra.mxu0 0.0
  %7093 = vmatpush.msra.mxu0 0.0
  %7094 = vmatpush.msra.mxu0 %v7043
  %7095 = vmatmul.f32.gmra.mxu0 %v7039
  %v7096 = vpop.f32.mrf.mxu0
  %v7097 = vadd.f32 0.0, %v7096
  %7098 = vdwg.mxu0
  %7099 = vmatpush.msra.mxu0 0.0
  %7100 = vmatpush.msra.mxu0 0.0
  %7101 = vmatpush.msra.mxu0 0.0
  %7102 = vmatpush.msra.mxu0 0.0
  %7103 = vmatpush.msra.mxu0 0.0
  %7104 = vmatpush.msra.mxu0 0.0
  %7105 = vmatpush.msra.mxu0 0.0
  %7106 = vmatpush.msra.mxu0 0.0
  %7107 = vmatpush.msra.mxu0 0.0
  %7108 = vmatpush.msra.mxu0 0.0
  %7109 = vmatpush.msra.mxu0 0.0
  %7110 = vmatpush.msra.mxu0 0.0
  %7111 = vmatpush.msra.mxu0 0.0
  %7112 = vmatpush.msra.mxu0 0.0
  %7113 = vmatpush.msra.mxu0 0.0
  %7114 = vmatpush.msra.mxu0 %v7045
  %7115 = vmatmul.f32.gmra.mxu0 %v7039
  %v7116 = vpop.f32.mrf.mxu0
  %v7117 = vadd.f32 0.0, %v7116
  %7118 = vdwg.mxu0
  %7119 = vmatpush.msra.mxu0 0.0
  %7120 = vmatpush.msra.mxu0 0.0
  %7121 = vmatpush.msra.mxu0 0.0
  %7122 = vmatpush.msra.mxu0 0.0
  %7123 = vmatpush.msra.mxu0 0.0
  %7124 = vmatpush.msra.mxu0 0.0
  %7125 = vmatpush.msra.mxu0 0.0
  %7126 = vmatpush.msra.mxu0 0.0
  %7127 = vmatpush.msra.mxu0 0.0
  %7128 = vmatpush.msra.mxu0 0.0
  %7129 = vmatpush.msra.mxu0 0.0
  %7130 = vmatpush.msra.mxu0 0.0
  %7131 = vmatpush.msra.mxu0 0.0
  %7132 = vmatpush.msra.mxu0 0.0
  %7133 = vmatpush.msra.mxu0 0.0
  %7134 = vmatpush.msra.mxu0 %v7047
  %7135 = vmatmul.f32.gmra.mxu0 %v7039
  %v7136 = vpop.f32.mrf.mxu0
  %v7137 = vadd.f32 0.0, %v7136
  %7138 = vdwg.mxu0
  %7139 = vmatpush.msra.mxu0 0.0
  %7140 = vmatpush.msra.mxu0 0.0
  %7141 = vmatpush.msra.mxu0 0.0
  %7142 = vmatpush.msra.mxu0 0.0
  %7143 = vmatpush.msra.mxu0 0.0
  %7144 = vmatpush.msra.mxu0 0.0
  %7145 = vmatpush.msra.mxu0 0.0
  %7146 = vmatpush.msra.mxu0 0.0
  %7147 = vmatpush.msra.mxu0 0.0
  %7148 = vmatpush.msra.mxu0 0.0
  %7149 = vmatpush.msra.mxu0 0.0
  %7150 = vmatpush.msra.mxu0 0.0
  %7151 = vmatpush.msra.mxu0 0.0
  %7152 = vmatpush.msra.mxu0 0.0
  %7153 = vmatpush.msra.mxu0 0.0
  %7154 = vmatpush.msra.mxu0 %v7049
  %7155 = vmatmul.f32.gmra.mxu0 %v7039
  %v7156 = vpop.f32.mrf.mxu0
  %v7157 = vadd.f32 0.0, %v7156
  %7158 = vdwg.mxu0
  %7159 = vmatpush.msra.mxu0 0.0
  %7160 = vmatpush.msra.mxu0 0.0
  %7161 = vmatpush.msra.mxu0 0.0
  %7162 = vmatpush.msra.mxu0 0.0
  %7163 = vmatpush.msra.mxu0 0.0
  %7164 = vmatpush.msra.mxu0 0.0
  %7165 = vmatpush.msra.mxu0 0.0
  %7166 = vmatpush.msra.mxu0 0.0
  %7167 = vmatpush.msra.mxu0 0.0
  %7168 = vmatpush.msra.mxu0 0.0
  %7169 = vmatpush.msra.mxu0 0.0
  %7170 = vmatpush.msra.mxu0 0.0
  %7171 = vmatpush.msra.mxu0 0.0
  %7172 = vmatpush.msra.mxu0 0.0
  %7173 = vmatpush.msra.mxu0 0.0
  %7174 = vmatpush.msra.mxu0 %v7051
  %7175 = vmatmul.f32.gmra.mxu0 %v7039
  %v7176 = vpop.f32.mrf.mxu0
  %v7177 = vadd.f32 0.0, %v7176
  %7178 = vdwg.mxu0
  %7179 = vmatpush.msra.mxu0 0.0
  %7180 = vmatpush.msra.mxu0 0.0
  %7181 = vmatpush.msra.mxu0 0.0
  %7182 = vmatpush.msra.mxu0 0.0
  %7183 = vmatpush.msra.mxu0 0.0
  %7184 = vmatpush.msra.mxu0 0.0
  %7185 = vmatpush.msra.mxu0 0.0
  %7186 = vmatpush.msra.mxu0 0.0
  %7187 = vmatpush.msra.mxu0 0.0
  %7188 = vmatpush.msra.mxu0 0.0
  %7189 = vmatpush.msra.mxu0 0.0
  %7190 = vmatpush.msra.mxu0 0.0
  %7191 = vmatpush.msra.mxu0 0.0
  %7192 = vmatpush.msra.mxu0 0.0
  %7193 = vmatpush.msra.mxu0 0.0
  %7194 = vmatpush.msra.mxu0 %v7053
  %7195 = vmatmul.f32.gmra.mxu0 %v7039
  %v7196 = vpop.f32.mrf.mxu0
  %v7197 = vadd.f32 0.0, %v7196
  %7198 = vdwg.mxu0
  %7199 = vmatpush.msra.mxu0 0.0
  %7200 = vmatpush.msra.mxu0 0.0
  %7201 = vmatpush.msra.mxu0 0.0
  %7202 = vmatpush.msra.mxu0 0.0
  %7203 = vmatpush.msra.mxu0 0.0
  %7204 = vmatpush.msra.mxu0 0.0
  %7205 = vmatpush.msra.mxu0 0.0
  %7206 = vmatpush.msra.mxu0 0.0
  %7207 = vmatpush.msra.mxu0 0.0
  %7208 = vmatpush.msra.mxu0 0.0
  %7209 = vmatpush.msra.mxu0 0.0
  %7210 = vmatpush.msra.mxu0 0.0
  %7211 = vmatpush.msra.mxu0 0.0
  %7212 = vmatpush.msra.mxu0 0.0
  %7213 = vmatpush.msra.mxu0 0.0
  %7214 = vmatpush.msra.mxu0 %v7055
  %7215 = vmatmul.f32.gmra.mxu0 %v7039
  %v7216 = vpop.f32.mrf.mxu0
  %v7217 = vadd.f32 0.0, %v7216
  %7218 = vdwg.mxu0
  %7219 = vmatpush.msra.mxu0 0.0
  %7220 = vmatpush.msra.mxu0 0.0
  %7221 = vmatpush.msra.mxu0 0.0
  %7222 = vmatpush.msra.mxu0 0.0
  %7223 = vmatpush.msra.mxu0 0.0
  %7224 = vmatpush.msra.mxu0 0.0
  %7225 = vmatpush.msra.mxu0 0.0
  %7226 = vmatpush.msra.mxu0 0.0
  %7227 = vmatpush.msra.mxu0 0.0
  %7228 = vmatpush.msra.mxu0 0.0
  %7229 = vmatpush.msra.mxu0 0.0
  %7230 = vmatpush.msra.mxu0 0.0
  %7231 = vmatpush.msra.mxu0 0.0
  %7232 = vmatpush.msra.mxu0 0.0
  %7233 = vmatpush.msra.mxu0 0.0
  %7234 = vmatpush.msra.mxu0 %v7057
  %7235 = vmatmul.f32.gmra.mxu0 %v7039
  %v7236 = vpop.f32.mrf.mxu0
  %v7237 = vadd.f32 0.0, %v7236
  %7238 = vdwg.mxu0
  %v7239 = vadd.f32 %v6998, %v7077
  %v7240 = vadd.f32 %v6999, %v7097
  %v7241 = vadd.f32 %v7000, %v7117
  %v7242 = vadd.f32 %v7001, %v7137
  %v7243 = vadd.f32 %v7002, %v7157
  %v7244 = vadd.f32 %v7003, %v7177
  %v7245 = vadd.f32 %v7004, %v7197
  %v7246 = vadd.f32 %v7005, %v7217
  %v7247 = vadd.f32 %v7006, %v7237
  %s7248 = scalar_lea.vmem %s7, 5
  %v7249 = vld [vmem:[%s7248] sm:$0x1]
  %7250 = vrot.lane.b32.xlu0 %v6069, 102
  %v7251 = vpop.permute.xlu0 %7250
  %7252 = vrot.lane.b32.xlu0 %v6070, 102
  %v7253 = vpop.permute.xlu0 %7252
  %7254 = vrot.lane.b32.xlu0 %v6071, 102
  %v7255 = vpop.permute.xlu0 %7254
  %7256 = vrot.lane.b32.xlu0 %v6072, 102
  %v7257 = vpop.permute.xlu0 %7256
  %7258 = vrot.lane.b32.xlu0 %v6073, 102
  %v7259 = vpop.permute.xlu0 %7258
  %7260 = vrot.lane.b32.xlu0 %v6074, 102
  %v7261 = vpop.permute.xlu0 %7260
  %7262 = vrot.lane.b32.xlu0 %v6075, 102
  %v7263 = vpop.permute.xlu0 %7262
  %7264 = vrot.lane.b32.xlu0 %v6076, 102
  %v7265 = vpop.permute.xlu0 %7264
  %7266 = vrot.lane.b32.xlu0 %v6077, 102
  %v7267 = vpop.permute.xlu0 %7266
  %7268 = vrot.lane.b32.xlu0 %v6079, 102
  %v7269 = vpop.permute.xlu0 %7268
  %v7270 = vsel %vm458, %v7251, %v7253
  %v7271 = vsel %vm458, %v7253, %v7255
  %v7272 = vsel %vm458, %v7255, %v7257
  %v7273 = vsel %vm458, %v7257, %v7259
  %v7274 = vsel %vm458, %v7259, %v7261
  %v7275 = vsel %vm458, %v7261, %v7263
  %v7276 = vsel %vm458, %v7263, %v7265
  %v7277 = vsel %vm458, %v7265, %v7267
  %v7278 = vsel %vm458, %v7267, %v7269
  %v7280 = vsel %vm6121, %v7249, 0
  %v7282 = vsel %vm6125, %v7270, 0
  %v7284 = vsel %vm6125, %v7271, 0
  %v7286 = vsel %vm6125, %v7272, 0
  %v7288 = vsel %vm6125, %v7273, 0
  %v7290 = vsel %vm6125, %v7274, 0
  %v7292 = vsel %vm6125, %v7275, 0
  %v7294 = vsel %vm6125, %v7276, 0
  %v7296 = vsel %vm6125, %v7277, 0
  %v7298 = vsel %vm6125, %v7278, 0
  %7300 = vmatpush.msra.mxu0 0.0
  %7301 = vmatpush.msra.mxu0 0.0
  %7302 = vmatpush.msra.mxu0 0.0
  %7303 = vmatpush.msra.mxu0 0.0
  %7304 = vmatpush.msra.mxu0 0.0
  %7305 = vmatpush.msra.mxu0 0.0
  %7306 = vmatpush.msra.mxu0 0.0
  %7307 = vmatpush.msra.mxu0 0.0
  %7308 = vmatpush.msra.mxu0 0.0
  %7309 = vmatpush.msra.mxu0 0.0
  %7310 = vmatpush.msra.mxu0 0.0
  %7311 = vmatpush.msra.mxu0 0.0
  %7312 = vmatpush.msra.mxu0 0.0
  %7313 = vmatpush.msra.mxu0 0.0
  %7314 = vmatpush.msra.mxu0 0.0
  %7315 = vmatpush.msra.mxu0 %v7282
  %7316 = vmatmul.f32.gmra.mxu0 %v7280
  %v7317 = vpop.f32.mrf.mxu0
  %v7318 = vadd.f32 0.0, %v7317
  %7319 = vdwg.mxu0
  %7320 = vmatpush.msra.mxu0 0.0
  %7321 = vmatpush.msra.mxu0 0.0
  %7322 = vmatpush.msra.mxu0 0.0
  %7323 = vmatpush.msra.mxu0 0.0
  %7324 = vmatpush.msra.mxu0 0.0
  %7325 = vmatpush.msra.mxu0 0.0
  %7326 = vmatpush.msra.mxu0 0.0
  %7327 = vmatpush.msra.mxu0 0.0
  %7328 = vmatpush.msra.mxu0 0.0
  %7329 = vmatpush.msra.mxu0 0.0
  %7330 = vmatpush.msra.mxu0 0.0
  %7331 = vmatpush.msra.mxu0 0.0
  %7332 = vmatpush.msra.mxu0 0.0
  %7333 = vmatpush.msra.mxu0 0.0
  %7334 = vmatpush.msra.mxu0 0.0
  %7335 = vmatpush.msra.mxu0 %v7284
  %7336 = vmatmul.f32.gmra.mxu0 %v7280
  %v7337 = vpop.f32.mrf.mxu0
  %v7338 = vadd.f32 0.0, %v7337
  %7339 = vdwg.mxu0
  %7340 = vmatpush.msra.mxu0 0.0
  %7341 = vmatpush.msra.mxu0 0.0
  %7342 = vmatpush.msra.mxu0 0.0
  %7343 = vmatpush.msra.mxu0 0.0
  %7344 = vmatpush.msra.mxu0 0.0
  %7345 = vmatpush.msra.mxu0 0.0
  %7346 = vmatpush.msra.mxu0 0.0
  %7347 = vmatpush.msra.mxu0 0.0
  %7348 = vmatpush.msra.mxu0 0.0
  %7349 = vmatpush.msra.mxu0 0.0
  %7350 = vmatpush.msra.mxu0 0.0
  %7351 = vmatpush.msra.mxu0 0.0
  %7352 = vmatpush.msra.mxu0 0.0
  %7353 = vmatpush.msra.mxu0 0.0
  %7354 = vmatpush.msra.mxu0 0.0
  %7355 = vmatpush.msra.mxu0 %v7286
  %7356 = vmatmul.f32.gmra.mxu0 %v7280
  %v7357 = vpop.f32.mrf.mxu0
  %v7358 = vadd.f32 0.0, %v7357
  %7359 = vdwg.mxu0
  %7360 = vmatpush.msra.mxu0 0.0
  %7361 = vmatpush.msra.mxu0 0.0
  %7362 = vmatpush.msra.mxu0 0.0
  %7363 = vmatpush.msra.mxu0 0.0
  %7364 = vmatpush.msra.mxu0 0.0
  %7365 = vmatpush.msra.mxu0 0.0
  %7366 = vmatpush.msra.mxu0 0.0
  %7367 = vmatpush.msra.mxu0 0.0
  %7368 = vmatpush.msra.mxu0 0.0
  %7369 = vmatpush.msra.mxu0 0.0
  %7370 = vmatpush.msra.mxu0 0.0
  %7371 = vmatpush.msra.mxu0 0.0
  %7372 = vmatpush.msra.mxu0 0.0
  %7373 = vmatpush.msra.mxu0 0.0
  %7374 = vmatpush.msra.mxu0 0.0
  %7375 = vmatpush.msra.mxu0 %v7288
  %7376 = vmatmul.f32.gmra.mxu0 %v7280
  %v7377 = vpop.f32.mrf.mxu0
  %v7378 = vadd.f32 0.0, %v7377
  %7379 = vdwg.mxu0
  %7380 = vmatpush.msra.mxu0 0.0
  %7381 = vmatpush.msra.mxu0 0.0
  %7382 = vmatpush.msra.mxu0 0.0
  %7383 = vmatpush.msra.mxu0 0.0
  %7384 = vmatpush.msra.mxu0 0.0
  %7385 = vmatpush.msra.mxu0 0.0
  %7386 = vmatpush.msra.mxu0 0.0
  %7387 = vmatpush.msra.mxu0 0.0
  %7388 = vmatpush.msra.mxu0 0.0
  %7389 = vmatpush.msra.mxu0 0.0
  %7390 = vmatpush.msra.mxu0 0.0
  %7391 = vmatpush.msra.mxu0 0.0
  %7392 = vmatpush.msra.mxu0 0.0
  %7393 = vmatpush.msra.mxu0 0.0
  %7394 = vmatpush.msra.mxu0 0.0
  %7395 = vmatpush.msra.mxu0 %v7290
  %7396 = vmatmul.f32.gmra.mxu0 %v7280
  %v7397 = vpop.f32.mrf.mxu0
  %v7398 = vadd.f32 0.0, %v7397
  %7399 = vdwg.mxu0
  %7400 = vmatpush.msra.mxu0 0.0
  %7401 = vmatpush.msra.mxu0 0.0
  %7402 = vmatpush.msra.mxu0 0.0
  %7403 = vmatpush.msra.mxu0 0.0
  %7404 = vmatpush.msra.mxu0 0.0
  %7405 = vmatpush.msra.mxu0 0.0
  %7406 = vmatpush.msra.mxu0 0.0
  %7407 = vmatpush.msra.mxu0 0.0
  %7408 = vmatpush.msra.mxu0 0.0
  %7409 = vmatpush.msra.mxu0 0.0
  %7410 = vmatpush.msra.mxu0 0.0
  %7411 = vmatpush.msra.mxu0 0.0
  %7412 = vmatpush.msra.mxu0 0.0
  %7413 = vmatpush.msra.mxu0 0.0
  %7414 = vmatpush.msra.mxu0 0.0
  %7415 = vmatpush.msra.mxu0 %v7292
  %7416 = vmatmul.f32.gmra.mxu0 %v7280
  %v7417 = vpop.f32.mrf.mxu0
  %v7418 = vadd.f32 0.0, %v7417
  %7419 = vdwg.mxu0
  %7420 = vmatpush.msra.mxu0 0.0
  %7421 = vmatpush.msra.mxu0 0.0
  %7422 = vmatpush.msra.mxu0 0.0
  %7423 = vmatpush.msra.mxu0 0.0
  %7424 = vmatpush.msra.mxu0 0.0
  %7425 = vmatpush.msra.mxu0 0.0
  %7426 = vmatpush.msra.mxu0 0.0
  %7427 = vmatpush.msra.mxu0 0.0
  %7428 = vmatpush.msra.mxu0 0.0
  %7429 = vmatpush.msra.mxu0 0.0
  %7430 = vmatpush.msra.mxu0 0.0
  %7431 = vmatpush.msra.mxu0 0.0
  %7432 = vmatpush.msra.mxu0 0.0
  %7433 = vmatpush.msra.mxu0 0.0
  %7434 = vmatpush.msra.mxu0 0.0
  %7435 = vmatpush.msra.mxu0 %v7294
  %7436 = vmatmul.f32.gmra.mxu0 %v7280
  %v7437 = vpop.f32.mrf.mxu0
  %v7438 = vadd.f32 0.0, %v7437
  %7439 = vdwg.mxu0
  %7440 = vmatpush.msra.mxu0 0.0
  %7441 = vmatpush.msra.mxu0 0.0
  %7442 = vmatpush.msra.mxu0 0.0
  %7443 = vmatpush.msra.mxu0 0.0
  %7444 = vmatpush.msra.mxu0 0.0
  %7445 = vmatpush.msra.mxu0 0.0
  %7446 = vmatpush.msra.mxu0 0.0
  %7447 = vmatpush.msra.mxu0 0.0
  %7448 = vmatpush.msra.mxu0 0.0
  %7449 = vmatpush.msra.mxu0 0.0
  %7450 = vmatpush.msra.mxu0 0.0
  %7451 = vmatpush.msra.mxu0 0.0
  %7452 = vmatpush.msra.mxu0 0.0
  %7453 = vmatpush.msra.mxu0 0.0
  %7454 = vmatpush.msra.mxu0 0.0
  %7455 = vmatpush.msra.mxu0 %v7296
  %7456 = vmatmul.f32.gmra.mxu0 %v7280
  %v7457 = vpop.f32.mrf.mxu0
  %v7458 = vadd.f32 0.0, %v7457
  %7459 = vdwg.mxu0
  %7460 = vmatpush.msra.mxu0 0.0
  %7461 = vmatpush.msra.mxu0 0.0
  %7462 = vmatpush.msra.mxu0 0.0
  %7463 = vmatpush.msra.mxu0 0.0
  %7464 = vmatpush.msra.mxu0 0.0
  %7465 = vmatpush.msra.mxu0 0.0
  %7466 = vmatpush.msra.mxu0 0.0
  %7467 = vmatpush.msra.mxu0 0.0
  %7468 = vmatpush.msra.mxu0 0.0
  %7469 = vmatpush.msra.mxu0 0.0
  %7470 = vmatpush.msra.mxu0 0.0
  %7471 = vmatpush.msra.mxu0 0.0
  %7472 = vmatpush.msra.mxu0 0.0
  %7473 = vmatpush.msra.mxu0 0.0
  %7474 = vmatpush.msra.mxu0 0.0
  %7475 = vmatpush.msra.mxu0 %v7298
  %7476 = vmatmul.f32.gmra.mxu0 %v7280
  %v7477 = vpop.f32.mrf.mxu0
  %v7478 = vadd.f32 0.0, %v7477
  %7479 = vdwg.mxu0
  %v7480 = vadd.f32 %v7239, %v7318
  %v7481 = vadd.f32 %v7240, %v7338
  %v7482 = vadd.f32 %v7241, %v7358
  %v7483 = vadd.f32 %v7242, %v7378
  %v7484 = vadd.f32 %v7243, %v7398
  %v7485 = vadd.f32 %v7244, %v7418
  %v7486 = vadd.f32 %v7245, %v7438
  %v7487 = vadd.f32 %v7246, %v7458
  %v7488 = vadd.f32 %v7247, %v7478
  %s7489 = scalar_lea.vmem %s7, 6
  %v7490 = vld [vmem:[%s7489] sm:$0x1]
  %7491 = vrot.lane.b32.xlu0 %v6069, 80
  %v7492 = vpop.permute.xlu0 %7491
  %7493 = vrot.lane.b32.xlu0 %v6070, 80
  %v7494 = vpop.permute.xlu0 %7493
  %7495 = vrot.lane.b32.xlu0 %v6071, 80
  %v7496 = vpop.permute.xlu0 %7495
  %7497 = vrot.lane.b32.xlu0 %v6072, 80
  %v7498 = vpop.permute.xlu0 %7497
  %7499 = vrot.lane.b32.xlu0 %v6073, 80
  %v7500 = vpop.permute.xlu0 %7499
  %7501 = vrot.lane.b32.xlu0 %v6074, 80
  %v7502 = vpop.permute.xlu0 %7501
  %7503 = vrot.lane.b32.xlu0 %v6075, 80
  %v7504 = vpop.permute.xlu0 %7503
  %7505 = vrot.lane.b32.xlu0 %v6076, 80
  %v7506 = vpop.permute.xlu0 %7505
  %7507 = vrot.lane.b32.xlu0 %v6077, 80
  %v7508 = vpop.permute.xlu0 %7507
  %7509 = vrot.lane.b32.xlu0 %v6079, 80
  %v7510 = vpop.permute.xlu0 %7509
  %v7511 = vsel %vm533, %v7492, %v7494
  %v7512 = vsel %vm533, %v7494, %v7496
  %v7513 = vsel %vm533, %v7496, %v7498
  %v7514 = vsel %vm533, %v7498, %v7500
  %v7515 = vsel %vm533, %v7500, %v7502
  %v7516 = vsel %vm533, %v7502, %v7504
  %v7517 = vsel %vm533, %v7504, %v7506
  %v7518 = vsel %vm533, %v7506, %v7508
  %v7519 = vsel %vm533, %v7508, %v7510
  %v7521 = vsel %vm6121, %v7490, 0
  %v7523 = vsel %vm6125, %v7511, 0
  %v7525 = vsel %vm6125, %v7512, 0
  %v7527 = vsel %vm6125, %v7513, 0
  %v7529 = vsel %vm6125, %v7514, 0
  %v7531 = vsel %vm6125, %v7515, 0
  %v7533 = vsel %vm6125, %v7516, 0
  %v7535 = vsel %vm6125, %v7517, 0
  %v7537 = vsel %vm6125, %v7518, 0
  %v7539 = vsel %vm6125, %v7519, 0
  %7541 = vmatpush.msra.mxu0 0.0
  %7542 = vmatpush.msra.mxu0 0.0
  %7543 = vmatpush.msra.mxu0 0.0
  %7544 = vmatpush.msra.mxu0 0.0
  %7545 = vmatpush.msra.mxu0 0.0
  %7546 = vmatpush.msra.mxu0 0.0
  %7547 = vmatpush.msra.mxu0 0.0
  %7548 = vmatpush.msra.mxu0 0.0
  %7549 = vmatpush.msra.mxu0 0.0
  %7550 = vmatpush.msra.mxu0 0.0
  %7551 = vmatpush.msra.mxu0 0.0
  %7552 = vmatpush.msra.mxu0 0.0
  %7553 = vmatpush.msra.mxu0 0.0
  %7554 = vmatpush.msra.mxu0 0.0
  %7555 = vmatpush.msra.mxu0 0.0
  %7556 = vmatpush.msra.mxu0 %v7523
  %7557 = vmatmul.f32.gmra.mxu0 %v7521
  %v7558 = vpop.f32.mrf.mxu0
  %v7559 = vadd.f32 0.0, %v7558
  %7560 = vdwg.mxu0
  %7561 = vmatpush.msra.mxu0 0.0
  %7562 = vmatpush.msra.mxu0 0.0
  %7563 = vmatpush.msra.mxu0 0.0
  %7564 = vmatpush.msra.mxu0 0.0
  %7565 = vmatpush.msra.mxu0 0.0
  %7566 = vmatpush.msra.mxu0 0.0
  %7567 = vmatpush.msra.mxu0 0.0
  %7568 = vmatpush.msra.mxu0 0.0
  %7569 = vmatpush.msra.mxu0 0.0
  %7570 = vmatpush.msra.mxu0 0.0
  %7571 = vmatpush.msra.mxu0 0.0
  %7572 = vmatpush.msra.mxu0 0.0
  %7573 = vmatpush.msra.mxu0 0.0
  %7574 = vmatpush.msra.mxu0 0.0
  %7575 = vmatpush.msra.mxu0 0.0
  %7576 = vmatpush.msra.mxu0 %v7525
  %7577 = vmatmul.f32.gmra.mxu0 %v7521
  %v7578 = vpop.f32.mrf.mxu0
  %v7579 = vadd.f32 0.0, %v7578
  %7580 = vdwg.mxu0
  %7581 = vmatpush.msra.mxu0 0.0
  %7582 = vmatpush.msra.mxu0 0.0
  %7583 = vmatpush.msra.mxu0 0.0
  %7584 = vmatpush.msra.mxu0 0.0
  %7585 = vmatpush.msra.mxu0 0.0
  %7586 = vmatpush.msra.mxu0 0.0
  %7587 = vmatpush.msra.mxu0 0.0
  %7588 = vmatpush.msra.mxu0 0.0
  %7589 = vmatpush.msra.mxu0 0.0
  %7590 = vmatpush.msra.mxu0 0.0
  %7591 = vmatpush.msra.mxu0 0.0
  %7592 = vmatpush.msra.mxu0 0.0
  %7593 = vmatpush.msra.mxu0 0.0
  %7594 = vmatpush.msra.mxu0 0.0
  %7595 = vmatpush.msra.mxu0 0.0
  %7596 = vmatpush.msra.mxu0 %v7527
  %7597 = vmatmul.f32.gmra.mxu0 %v7521
  %v7598 = vpop.f32.mrf.mxu0
  %v7599 = vadd.f32 0.0, %v7598
  %7600 = vdwg.mxu0
  %7601 = vmatpush.msra.mxu0 0.0
  %7602 = vmatpush.msra.mxu0 0.0
  %7603 = vmatpush.msra.mxu0 0.0
  %7604 = vmatpush.msra.mxu0 0.0
  %7605 = vmatpush.msra.mxu0 0.0
  %7606 = vmatpush.msra.mxu0 0.0
  %7607 = vmatpush.msra.mxu0 0.0
  %7608 = vmatpush.msra.mxu0 0.0
  %7609 = vmatpush.msra.mxu0 0.0
  %7610 = vmatpush.msra.mxu0 0.0
  %7611 = vmatpush.msra.mxu0 0.0
  %7612 = vmatpush.msra.mxu0 0.0
  %7613 = vmatpush.msra.mxu0 0.0
  %7614 = vmatpush.msra.mxu0 0.0
  %7615 = vmatpush.msra.mxu0 0.0
  %7616 = vmatpush.msra.mxu0 %v7529
  %7617 = vmatmul.f32.gmra.mxu0 %v7521
  %v7618 = vpop.f32.mrf.mxu0
  %v7619 = vadd.f32 0.0, %v7618
  %7620 = vdwg.mxu0
  %7621 = vmatpush.msra.mxu0 0.0
  %7622 = vmatpush.msra.mxu0 0.0
  %7623 = vmatpush.msra.mxu0 0.0
  %7624 = vmatpush.msra.mxu0 0.0
  %7625 = vmatpush.msra.mxu0 0.0
  %7626 = vmatpush.msra.mxu0 0.0
  %7627 = vmatpush.msra.mxu0 0.0
  %7628 = vmatpush.msra.mxu0 0.0
  %7629 = vmatpush.msra.mxu0 0.0
  %7630 = vmatpush.msra.mxu0 0.0
  %7631 = vmatpush.msra.mxu0 0.0
  %7632 = vmatpush.msra.mxu0 0.0
  %7633 = vmatpush.msra.mxu0 0.0
  %7634 = vmatpush.msra.mxu0 0.0
  %7635 = vmatpush.msra.mxu0 0.0
  %7636 = vmatpush.msra.mxu0 %v7531
  %7637 = vmatmul.f32.gmra.mxu0 %v7521
  %v7638 = vpop.f32.mrf.mxu0
  %v7639 = vadd.f32 0.0, %v7638
  %7640 = vdwg.mxu0
  %7641 = vmatpush.msra.mxu0 0.0
  %7642 = vmatpush.msra.mxu0 0.0
  %7643 = vmatpush.msra.mxu0 0.0
  %7644 = vmatpush.msra.mxu0 0.0
  %7645 = vmatpush.msra.mxu0 0.0
  %7646 = vmatpush.msra.mxu0 0.0
  %7647 = vmatpush.msra.mxu0 0.0
  %7648 = vmatpush.msra.mxu0 0.0
  %7649 = vmatpush.msra.mxu0 0.0
  %7650 = vmatpush.msra.mxu0 0.0
  %7651 = vmatpush.msra.mxu0 0.0
  %7652 = vmatpush.msra.mxu0 0.0
  %7653 = vmatpush.msra.mxu0 0.0
  %7654 = vmatpush.msra.mxu0 0.0
  %7655 = vmatpush.msra.mxu0 0.0
  %7656 = vmatpush.msra.mxu0 %v7533
  %7657 = vmatmul.f32.gmra.mxu0 %v7521
  %v7658 = vpop.f32.mrf.mxu0
  %v7659 = vadd.f32 0.0, %v7658
  %7660 = vdwg.mxu0
  %7661 = vmatpush.msra.mxu0 0.0
  %7662 = vmatpush.msra.mxu0 0.0
  %7663 = vmatpush.msra.mxu0 0.0
  %7664 = vmatpush.msra.mxu0 0.0
  %7665 = vmatpush.msra.mxu0 0.0
  %7666 = vmatpush.msra.mxu0 0.0
  %7667 = vmatpush.msra.mxu0 0.0
  %7668 = vmatpush.msra.mxu0 0.0
  %7669 = vmatpush.msra.mxu0 0.0
  %7670 = vmatpush.msra.mxu0 0.0
  %7671 = vmatpush.msra.mxu0 0.0
  %7672 = vmatpush.msra.mxu0 0.0
  %7673 = vmatpush.msra.mxu0 0.0
  %7674 = vmatpush.msra.mxu0 0.0
  %7675 = vmatpush.msra.mxu0 0.0
  %7676 = vmatpush.msra.mxu0 %v7535
  %7677 = vmatmul.f32.gmra.mxu0 %v7521
  %v7678 = vpop.f32.mrf.mxu0
  %v7679 = vadd.f32 0.0, %v7678
  %7680 = vdwg.mxu0
  %7681 = vmatpush.msra.mxu0 0.0
  %7682 = vmatpush.msra.mxu0 0.0
  %7683 = vmatpush.msra.mxu0 0.0
  %7684 = vmatpush.msra.mxu0 0.0
  %7685 = vmatpush.msra.mxu0 0.0
  %7686 = vmatpush.msra.mxu0 0.0
  %7687 = vmatpush.msra.mxu0 0.0
  %7688 = vmatpush.msra.mxu0 0.0
  %7689 = vmatpush.msra.mxu0 0.0
  %7690 = vmatpush.msra.mxu0 0.0
  %7691 = vmatpush.msra.mxu0 0.0
  %7692 = vmatpush.msra.mxu0 0.0
  %7693 = vmatpush.msra.mxu0 0.0
  %7694 = vmatpush.msra.mxu0 0.0
  %7695 = vmatpush.msra.mxu0 0.0
  %7696 = vmatpush.msra.mxu0 %v7537
  %7697 = vmatmul.f32.gmra.mxu0 %v7521
  %v7698 = vpop.f32.mrf.mxu0
  %v7699 = vadd.f32 0.0, %v7698
  %7700 = vdwg.mxu0
  %7701 = vmatpush.msra.mxu0 0.0
  %7702 = vmatpush.msra.mxu0 0.0
  %7703 = vmatpush.msra.mxu0 0.0
  %7704 = vmatpush.msra.mxu0 0.0
  %7705 = vmatpush.msra.mxu0 0.0
  %7706 = vmatpush.msra.mxu0 0.0
  %7707 = vmatpush.msra.mxu0 0.0
  %7708 = vmatpush.msra.mxu0 0.0
  %7709 = vmatpush.msra.mxu0 0.0
  %7710 = vmatpush.msra.mxu0 0.0
  %7711 = vmatpush.msra.mxu0 0.0
  %7712 = vmatpush.msra.mxu0 0.0
  %7713 = vmatpush.msra.mxu0 0.0
  %7714 = vmatpush.msra.mxu0 0.0
  %7715 = vmatpush.msra.mxu0 0.0
  %7716 = vmatpush.msra.mxu0 %v7539
  %7717 = vmatmul.f32.gmra.mxu0 %v7521
  %v7718 = vpop.f32.mrf.mxu0
  %v7719 = vadd.f32 0.0, %v7718
  %7720 = vdwg.mxu0
  %v7721 = vadd.f32 %v7480, %v7559
  %v7722 = vadd.f32 %v7481, %v7579
  %v7723 = vadd.f32 %v7482, %v7599
  %v7724 = vadd.f32 %v7483, %v7619
  %v7725 = vadd.f32 %v7484, %v7639
  %v7726 = vadd.f32 %v7485, %v7659
  %v7727 = vadd.f32 %v7486, %v7679
  %v7728 = vadd.f32 %v7487, %v7699
  %v7729 = vadd.f32 %v7488, %v7719
  %s7730 = scalar_lea.vmem %s7, 7
  %v7731 = vld [vmem:[%s7730] sm:$0x1]
  %7732 = vrot.lane.b32.xlu0 %v6069, 79
  %v7733 = vpop.permute.xlu0 %7732
  %7734 = vrot.lane.b32.xlu0 %v6070, 79
  %v7735 = vpop.permute.xlu0 %7734
  %7736 = vrot.lane.b32.xlu0 %v6071, 79
  %v7737 = vpop.permute.xlu0 %7736
  %7738 = vrot.lane.b32.xlu0 %v6072, 79
  %v7739 = vpop.permute.xlu0 %7738
  %7740 = vrot.lane.b32.xlu0 %v6073, 79
  %v7741 = vpop.permute.xlu0 %7740
  %7742 = vrot.lane.b32.xlu0 %v6074, 79
  %v7743 = vpop.permute.xlu0 %7742
  %7744 = vrot.lane.b32.xlu0 %v6075, 79
  %v7745 = vpop.permute.xlu0 %7744
  %7746 = vrot.lane.b32.xlu0 %v6076, 79
  %v7747 = vpop.permute.xlu0 %7746
  %7748 = vrot.lane.b32.xlu0 %v6077, 79
  %v7749 = vpop.permute.xlu0 %7748
  %7750 = vrot.lane.b32.xlu0 %v6079, 79
  %v7751 = vpop.permute.xlu0 %7750
  %v7752 = vsel %vm608, %v7733, %v7735
  %v7753 = vsel %vm608, %v7735, %v7737
  %v7754 = vsel %vm608, %v7737, %v7739
  %v7755 = vsel %vm608, %v7739, %v7741
  %v7756 = vsel %vm608, %v7741, %v7743
  %v7757 = vsel %vm608, %v7743, %v7745
  %v7758 = vsel %vm608, %v7745, %v7747
  %v7759 = vsel %vm608, %v7747, %v7749
  %v7760 = vsel %vm608, %v7749, %v7751
  %v7762 = vsel %vm6121, %v7731, 0
  %v7764 = vsel %vm6125, %v7752, 0
  %v7766 = vsel %vm6125, %v7753, 0
  %v7768 = vsel %vm6125, %v7754, 0
  %v7770 = vsel %vm6125, %v7755, 0
  %v7772 = vsel %vm6125, %v7756, 0
  %v7774 = vsel %vm6125, %v7757, 0
  %v7776 = vsel %vm6125, %v7758, 0
  %v7778 = vsel %vm6125, %v7759, 0
  %v7780 = vsel %vm6125, %v7760, 0
  %7782 = vmatpush.msra.mxu0 0.0
  %7783 = vmatpush.msra.mxu0 0.0
  %7784 = vmatpush.msra.mxu0 0.0
  %7785 = vmatpush.msra.mxu0 0.0
  %7786 = vmatpush.msra.mxu0 0.0
  %7787 = vmatpush.msra.mxu0 0.0
  %7788 = vmatpush.msra.mxu0 0.0
  %7789 = vmatpush.msra.mxu0 0.0
  %7790 = vmatpush.msra.mxu0 0.0
  %7791 = vmatpush.msra.mxu0 0.0
  %7792 = vmatpush.msra.mxu0 0.0
  %7793 = vmatpush.msra.mxu0 0.0
  %7794 = vmatpush.msra.mxu0 0.0
  %7795 = vmatpush.msra.mxu0 0.0
  %7796 = vmatpush.msra.mxu0 0.0
  %7797 = vmatpush.msra.mxu0 %v7764
  %7798 = vmatmul.f32.gmra.mxu0 %v7762
  %v7799 = vpop.f32.mrf.mxu0
  %v7800 = vadd.f32 0.0, %v7799
  %7801 = vdwg.mxu0
  %7802 = vmatpush.msra.mxu0 0.0
  %7803 = vmatpush.msra.mxu0 0.0
  %7804 = vmatpush.msra.mxu0 0.0
  %7805 = vmatpush.msra.mxu0 0.0
  %7806 = vmatpush.msra.mxu0 0.0
  %7807 = vmatpush.msra.mxu0 0.0
  %7808 = vmatpush.msra.mxu0 0.0
  %7809 = vmatpush.msra.mxu0 0.0
  %7810 = vmatpush.msra.mxu0 0.0
  %7811 = vmatpush.msra.mxu0 0.0
  %7812 = vmatpush.msra.mxu0 0.0
  %7813 = vmatpush.msra.mxu0 0.0
  %7814 = vmatpush.msra.mxu0 0.0
  %7815 = vmatpush.msra.mxu0 0.0
  %7816 = vmatpush.msra.mxu0 0.0
  %7817 = vmatpush.msra.mxu0 %v7766
  %7818 = vmatmul.f32.gmra.mxu0 %v7762
  %v7819 = vpop.f32.mrf.mxu0
  %v7820 = vadd.f32 0.0, %v7819
  %7821 = vdwg.mxu0
  %7822 = vmatpush.msra.mxu0 0.0
  %7823 = vmatpush.msra.mxu0 0.0
  %7824 = vmatpush.msra.mxu0 0.0
  %7825 = vmatpush.msra.mxu0 0.0
  %7826 = vmatpush.msra.mxu0 0.0
  %7827 = vmatpush.msra.mxu0 0.0
  %7828 = vmatpush.msra.mxu0 0.0
  %7829 = vmatpush.msra.mxu0 0.0
  %7830 = vmatpush.msra.mxu0 0.0
  %7831 = vmatpush.msra.mxu0 0.0
  %7832 = vmatpush.msra.mxu0 0.0
  %7833 = vmatpush.msra.mxu0 0.0
  %7834 = vmatpush.msra.mxu0 0.0
  %7835 = vmatpush.msra.mxu0 0.0
  %7836 = vmatpush.msra.mxu0 0.0
  %7837 = vmatpush.msra.mxu0 %v7768
  %7838 = vmatmul.f32.gmra.mxu0 %v7762
  %v7839 = vpop.f32.mrf.mxu0
  %v7840 = vadd.f32 0.0, %v7839
  %7841 = vdwg.mxu0
  %7842 = vmatpush.msra.mxu0 0.0
  %7843 = vmatpush.msra.mxu0 0.0
  %7844 = vmatpush.msra.mxu0 0.0
  %7845 = vmatpush.msra.mxu0 0.0
  %7846 = vmatpush.msra.mxu0 0.0
  %7847 = vmatpush.msra.mxu0 0.0
  %7848 = vmatpush.msra.mxu0 0.0
  %7849 = vmatpush.msra.mxu0 0.0
  %7850 = vmatpush.msra.mxu0 0.0
  %7851 = vmatpush.msra.mxu0 0.0
  %7852 = vmatpush.msra.mxu0 0.0
  %7853 = vmatpush.msra.mxu0 0.0
  %7854 = vmatpush.msra.mxu0 0.0
  %7855 = vmatpush.msra.mxu0 0.0
  %7856 = vmatpush.msra.mxu0 0.0
  %7857 = vmatpush.msra.mxu0 %v7770
  %7858 = vmatmul.f32.gmra.mxu0 %v7762
  %v7859 = vpop.f32.mrf.mxu0
  %v7860 = vadd.f32 0.0, %v7859
  %7861 = vdwg.mxu0
  %7862 = vmatpush.msra.mxu0 0.0
  %7863 = vmatpush.msra.mxu0 0.0
  %7864 = vmatpush.msra.mxu0 0.0
  %7865 = vmatpush.msra.mxu0 0.0
  %7866 = vmatpush.msra.mxu0 0.0
  %7867 = vmatpush.msra.mxu0 0.0
  %7868 = vmatpush.msra.mxu0 0.0
  %7869 = vmatpush.msra.mxu0 0.0
  %7870 = vmatpush.msra.mxu0 0.0
  %7871 = vmatpush.msra.mxu0 0.0
  %7872 = vmatpush.msra.mxu0 0.0
  %7873 = vmatpush.msra.mxu0 0.0
  %7874 = vmatpush.msra.mxu0 0.0
  %7875 = vmatpush.msra.mxu0 0.0
  %7876 = vmatpush.msra.mxu0 0.0
  %7877 = vmatpush.msra.mxu0 %v7772
  %7878 = vmatmul.f32.gmra.mxu0 %v7762
  %v7879 = vpop.f32.mrf.mxu0
  %v7880 = vadd.f32 0.0, %v7879
  %7881 = vdwg.mxu0
  %7882 = vmatpush.msra.mxu0 0.0
  %7883 = vmatpush.msra.mxu0 0.0
  %7884 = vmatpush.msra.mxu0 0.0
  %7885 = vmatpush.msra.mxu0 0.0
  %7886 = vmatpush.msra.mxu0 0.0
  %7887 = vmatpush.msra.mxu0 0.0
  %7888 = vmatpush.msra.mxu0 0.0
  %7889 = vmatpush.msra.mxu0 0.0
  %7890 = vmatpush.msra.mxu0 0.0
  %7891 = vmatpush.msra.mxu0 0.0
  %7892 = vmatpush.msra.mxu0 0.0
  %7893 = vmatpush.msra.mxu0 0.0
  %7894 = vmatpush.msra.mxu0 0.0
  %7895 = vmatpush.msra.mxu0 0.0
  %7896 = vmatpush.msra.mxu0 0.0
  %7897 = vmatpush.msra.mxu0 %v7774
  %7898 = vmatmul.f32.gmra.mxu0 %v7762
  %v7899 = vpop.f32.mrf.mxu0
  %v7900 = vadd.f32 0.0, %v7899
  %7901 = vdwg.mxu0
  %7902 = vmatpush.msra.mxu0 0.0
  %7903 = vmatpush.msra.mxu0 0.0
  %7904 = vmatpush.msra.mxu0 0.0
  %7905 = vmatpush.msra.mxu0 0.0
  %7906 = vmatpush.msra.mxu0 0.0
  %7907 = vmatpush.msra.mxu0 0.0
  %7908 = vmatpush.msra.mxu0 0.0
  %7909 = vmatpush.msra.mxu0 0.0
  %7910 = vmatpush.msra.mxu0 0.0
  %7911 = vmatpush.msra.mxu0 0.0
  %7912 = vmatpush.msra.mxu0 0.0
  %7913 = vmatpush.msra.mxu0 0.0
  %7914 = vmatpush.msra.mxu0 0.0
  %7915 = vmatpush.msra.mxu0 0.0
  %7916 = vmatpush.msra.mxu0 0.0
  %7917 = vmatpush.msra.mxu0 %v7776
  %7918 = vmatmul.f32.gmra.mxu0 %v7762
  %v7919 = vpop.f32.mrf.mxu0
  %v7920 = vadd.f32 0.0, %v7919
  %7921 = vdwg.mxu0
  %7922 = vmatpush.msra.mxu0 0.0
  %7923 = vmatpush.msra.mxu0 0.0
  %7924 = vmatpush.msra.mxu0 0.0
  %7925 = vmatpush.msra.mxu0 0.0
  %7926 = vmatpush.msra.mxu0 0.0
  %7927 = vmatpush.msra.mxu0 0.0
  %7928 = vmatpush.msra.mxu0 0.0
  %7929 = vmatpush.msra.mxu0 0.0
  %7930 = vmatpush.msra.mxu0 0.0
  %7931 = vmatpush.msra.mxu0 0.0
  %7932 = vmatpush.msra.mxu0 0.0
  %7933 = vmatpush.msra.mxu0 0.0
  %7934 = vmatpush.msra.mxu0 0.0
  %7935 = vmatpush.msra.mxu0 0.0
  %7936 = vmatpush.msra.mxu0 0.0
  %7937 = vmatpush.msra.mxu0 %v7778
  %7938 = vmatmul.f32.gmra.mxu0 %v7762
  %v7939 = vpop.f32.mrf.mxu0
  %v7940 = vadd.f32 0.0, %v7939
  %7941 = vdwg.mxu0
  %7942 = vmatpush.msra.mxu0 0.0
  %7943 = vmatpush.msra.mxu0 0.0
  %7944 = vmatpush.msra.mxu0 0.0
  %7945 = vmatpush.msra.mxu0 0.0
  %7946 = vmatpush.msra.mxu0 0.0
  %7947 = vmatpush.msra.mxu0 0.0
  %7948 = vmatpush.msra.mxu0 0.0
  %7949 = vmatpush.msra.mxu0 0.0
  %7950 = vmatpush.msra.mxu0 0.0
  %7951 = vmatpush.msra.mxu0 0.0
  %7952 = vmatpush.msra.mxu0 0.0
  %7953 = vmatpush.msra.mxu0 0.0
  %7954 = vmatpush.msra.mxu0 0.0
  %7955 = vmatpush.msra.mxu0 0.0
  %7956 = vmatpush.msra.mxu0 0.0
  %7957 = vmatpush.msra.mxu0 %v7780
  %7958 = vmatmul.f32.gmra.mxu0 %v7762
  %v7959 = vpop.f32.mrf.mxu0
  %v7960 = vadd.f32 0.0, %v7959
  %7961 = vdwg.mxu0
  %v7962 = vadd.f32 %v7721, %v7800
  %v7963 = vadd.f32 %v7722, %v7820
  %v7964 = vadd.f32 %v7723, %v7840
  %v7965 = vadd.f32 %v7724, %v7860
  %v7966 = vadd.f32 %v7725, %v7880
  %v7967 = vadd.f32 %v7726, %v7900
  %v7968 = vadd.f32 %v7727, %v7920
  %v7969 = vadd.f32 %v7728, %v7940
  %v7970 = vadd.f32 %v7729, %v7960
  %s7971 = scalar_lea.vmem %s7, 8
  %v7972 = vld [vmem:[%s7971] sm:$0x1]
  %7973 = vrot.lane.b32.xlu0 %v6069, 78
  %v7974 = vpop.permute.xlu0 %7973
  %7975 = vrot.lane.b32.xlu0 %v6070, 78
  %v7976 = vpop.permute.xlu0 %7975
  %7977 = vrot.lane.b32.xlu0 %v6071, 78
  %v7978 = vpop.permute.xlu0 %7977
  %7979 = vrot.lane.b32.xlu0 %v6072, 78
  %v7980 = vpop.permute.xlu0 %7979
  %7981 = vrot.lane.b32.xlu0 %v6073, 78
  %v7982 = vpop.permute.xlu0 %7981
  %7983 = vrot.lane.b32.xlu0 %v6074, 78
  %v7984 = vpop.permute.xlu0 %7983
  %7985 = vrot.lane.b32.xlu0 %v6075, 78
  %v7986 = vpop.permute.xlu0 %7985
  %7987 = vrot.lane.b32.xlu0 %v6076, 78
  %v7988 = vpop.permute.xlu0 %7987
  %7989 = vrot.lane.b32.xlu0 %v6077, 78
  %v7990 = vpop.permute.xlu0 %7989
  %7991 = vrot.lane.b32.xlu0 %v6079, 78
  %v7992 = vpop.permute.xlu0 %7991
  %v7993 = vsel %vm683, %v7974, %v7976
  %v7994 = vsel %vm683, %v7976, %v7978
  %v7995 = vsel %vm683, %v7978, %v7980
  %v7996 = vsel %vm683, %v7980, %v7982
  %v7997 = vsel %vm683, %v7982, %v7984
  %v7998 = vsel %vm683, %v7984, %v7986
  %v7999 = vsel %vm683, %v7986, %v7988
  %v8000 = vsel %vm683, %v7988, %v7990
  %v8001 = vsel %vm683, %v7990, %v7992
  %v8003 = vsel %vm6121, %v7972, 0
  %v8005 = vsel %vm6125, %v7993, 0
  %v8007 = vsel %vm6125, %v7994, 0
  %v8009 = vsel %vm6125, %v7995, 0
  %v8011 = vsel %vm6125, %v7996, 0
  %v8013 = vsel %vm6125, %v7997, 0
  %v8015 = vsel %vm6125, %v7998, 0
  %v8017 = vsel %vm6125, %v7999, 0
  %v8019 = vsel %vm6125, %v8000, 0
  %v8021 = vsel %vm6125, %v8001, 0
  %8023 = vmatpush.msra.mxu0 0.0
  %8024 = vmatpush.msra.mxu0 0.0
  %8025 = vmatpush.msra.mxu0 0.0
  %8026 = vmatpush.msra.mxu0 0.0
  %8027 = vmatpush.msra.mxu0 0.0
  %8028 = vmatpush.msra.mxu0 0.0
  %8029 = vmatpush.msra.mxu0 0.0
  %8030 = vmatpush.msra.mxu0 0.0
  %8031 = vmatpush.msra.mxu0 0.0
  %8032 = vmatpush.msra.mxu0 0.0
  %8033 = vmatpush.msra.mxu0 0.0
  %8034 = vmatpush.msra.mxu0 0.0
  %8035 = vmatpush.msra.mxu0 0.0
  %8036 = vmatpush.msra.mxu0 0.0
  %8037 = vmatpush.msra.mxu0 0.0
  %8038 = vmatpush.msra.mxu0 %v8005
  %8039 = vmatmul.f32.gmra.mxu0 %v8003
  %v8040 = vpop.f32.mrf.mxu0
  %v8041 = vadd.f32 0.0, %v8040
  %8042 = vdwg.mxu0
  %8043 = vmatpush.msra.mxu0 0.0
  %8044 = vmatpush.msra.mxu0 0.0
  %8045 = vmatpush.msra.mxu0 0.0
  %8046 = vmatpush.msra.mxu0 0.0
  %8047 = vmatpush.msra.mxu0 0.0
  %8048 = vmatpush.msra.mxu0 0.0
  %8049 = vmatpush.msra.mxu0 0.0
  %8050 = vmatpush.msra.mxu0 0.0
  %8051 = vmatpush.msra.mxu0 0.0
  %8052 = vmatpush.msra.mxu0 0.0
  %8053 = vmatpush.msra.mxu0 0.0
  %8054 = vmatpush.msra.mxu0 0.0
  %8055 = vmatpush.msra.mxu0 0.0
  %8056 = vmatpush.msra.mxu0 0.0
  %8057 = vmatpush.msra.mxu0 0.0
  %8058 = vmatpush.msra.mxu0 %v8007
  %8059 = vmatmul.f32.gmra.mxu0 %v8003
  %v8060 = vpop.f32.mrf.mxu0
  %v8061 = vadd.f32 0.0, %v8060
  %8062 = vdwg.mxu0
  %8063 = vmatpush.msra.mxu0 0.0
  %8064 = vmatpush.msra.mxu0 0.0
  %8065 = vmatpush.msra.mxu0 0.0
  %8066 = vmatpush.msra.mxu0 0.0
  %8067 = vmatpush.msra.mxu0 0.0
  %8068 = vmatpush.msra.mxu0 0.0
  %8069 = vmatpush.msra.mxu0 0.0
  %8070 = vmatpush.msra.mxu0 0.0
  %8071 = vmatpush.msra.mxu0 0.0
  %8072 = vmatpush.msra.mxu0 0.0
  %8073 = vmatpush.msra.mxu0 0.0
  %8074 = vmatpush.msra.mxu0 0.0
  %8075 = vmatpush.msra.mxu0 0.0
  %8076 = vmatpush.msra.mxu0 0.0
  %8077 = vmatpush.msra.mxu0 0.0
  %8078 = vmatpush.msra.mxu0 %v8009
  %8079 = vmatmul.f32.gmra.mxu0 %v8003
  %v8080 = vpop.f32.mrf.mxu0
  %v8081 = vadd.f32 0.0, %v8080
  %8082 = vdwg.mxu0
  %8083 = vmatpush.msra.mxu0 0.0
  %8084 = vmatpush.msra.mxu0 0.0
  %8085 = vmatpush.msra.mxu0 0.0
  %8086 = vmatpush.msra.mxu0 0.0
  %8087 = vmatpush.msra.mxu0 0.0
  %8088 = vmatpush.msra.mxu0 0.0
  %8089 = vmatpush.msra.mxu0 0.0
  %8090 = vmatpush.msra.mxu0 0.0
  %8091 = vmatpush.msra.mxu0 0.0
  %8092 = vmatpush.msra.mxu0 0.0
  %8093 = vmatpush.msra.mxu0 0.0
  %8094 = vmatpush.msra.mxu0 0.0
  %8095 = vmatpush.msra.mxu0 0.0
  %8096 = vmatpush.msra.mxu0 0.0
  %8097 = vmatpush.msra.mxu0 0.0
  %8098 = vmatpush.msra.mxu0 %v8011
  %8099 = vmatmul.f32.gmra.mxu0 %v8003
  %v8100 = vpop.f32.mrf.mxu0
  %v8101 = vadd.f32 0.0, %v8100
  %8102 = vdwg.mxu0
  %8103 = vmatpush.msra.mxu0 0.0
  %8104 = vmatpush.msra.mxu0 0.0
  %8105 = vmatpush.msra.mxu0 0.0
  %8106 = vmatpush.msra.mxu0 0.0
  %8107 = vmatpush.msra.mxu0 0.0
  %8108 = vmatpush.msra.mxu0 0.0
  %8109 = vmatpush.msra.mxu0 0.0
  %8110 = vmatpush.msra.mxu0 0.0
  %8111 = vmatpush.msra.mxu0 0.0
  %8112 = vmatpush.msra.mxu0 0.0
  %8113 = vmatpush.msra.mxu0 0.0
  %8114 = vmatpush.msra.mxu0 0.0
  %8115 = vmatpush.msra.mxu0 0.0
  %8116 = vmatpush.msra.mxu0 0.0
  %8117 = vmatpush.msra.mxu0 0.0
  %8118 = vmatpush.msra.mxu0 %v8013
  %8119 = vmatmul.f32.gmra.mxu0 %v8003
  %v8120 = vpop.f32.mrf.mxu0
  %v8121 = vadd.f32 0.0, %v8120
  %8122 = vdwg.mxu0
  %8123 = vmatpush.msra.mxu0 0.0
  %8124 = vmatpush.msra.mxu0 0.0
  %8125 = vmatpush.msra.mxu0 0.0
  %8126 = vmatpush.msra.mxu0 0.0
  %8127 = vmatpush.msra.mxu0 0.0
  %8128 = vmatpush.msra.mxu0 0.0
  %8129 = vmatpush.msra.mxu0 0.0
  %8130 = vmatpush.msra.mxu0 0.0
  %8131 = vmatpush.msra.mxu0 0.0
  %8132 = vmatpush.msra.mxu0 0.0
  %8133 = vmatpush.msra.mxu0 0.0
  %8134 = vmatpush.msra.mxu0 0.0
  %8135 = vmatpush.msra.mxu0 0.0
  %8136 = vmatpush.msra.mxu0 0.0
  %8137 = vmatpush.msra.mxu0 0.0
  %8138 = vmatpush.msra.mxu0 %v8015
  %8139 = vmatmul.f32.gmra.mxu0 %v8003
  %v8140 = vpop.f32.mrf.mxu0
  %v8141 = vadd.f32 0.0, %v8140
  %8142 = vdwg.mxu0
  %8143 = vmatpush.msra.mxu0 0.0
  %8144 = vmatpush.msra.mxu0 0.0
  %8145 = vmatpush.msra.mxu0 0.0
  %8146 = vmatpush.msra.mxu0 0.0
  %8147 = vmatpush.msra.mxu0 0.0
  %8148 = vmatpush.msra.mxu0 0.0
  %8149 = vmatpush.msra.mxu0 0.0
  %8150 = vmatpush.msra.mxu0 0.0
  %8151 = vmatpush.msra.mxu0 0.0
  %8152 = vmatpush.msra.mxu0 0.0
  %8153 = vmatpush.msra.mxu0 0.0
  %8154 = vmatpush.msra.mxu0 0.0
  %8155 = vmatpush.msra.mxu0 0.0
  %8156 = vmatpush.msra.mxu0 0.0
  %8157 = vmatpush.msra.mxu0 0.0
  %8158 = vmatpush.msra.mxu0 %v8017
  %8159 = vmatmul.f32.gmra.mxu0 %v8003
  %v8160 = vpop.f32.mrf.mxu0
  %v8161 = vadd.f32 0.0, %v8160
  %8162 = vdwg.mxu0
  %8163 = vmatpush.msra.mxu0 0.0
  %8164 = vmatpush.msra.mxu0 0.0
  %8165 = vmatpush.msra.mxu0 0.0
  %8166 = vmatpush.msra.mxu0 0.0
  %8167 = vmatpush.msra.mxu0 0.0
  %8168 = vmatpush.msra.mxu0 0.0
  %8169 = vmatpush.msra.mxu0 0.0
  %8170 = vmatpush.msra.mxu0 0.0
  %8171 = vmatpush.msra.mxu0 0.0
  %8172 = vmatpush.msra.mxu0 0.0
  %8173 = vmatpush.msra.mxu0 0.0
  %8174 = vmatpush.msra.mxu0 0.0
  %8175 = vmatpush.msra.mxu0 0.0
  %8176 = vmatpush.msra.mxu0 0.0
  %8177 = vmatpush.msra.mxu0 0.0
  %8178 = vmatpush.msra.mxu0 %v8019
  %8179 = vmatmul.f32.gmra.mxu0 %v8003
  %v8180 = vpop.f32.mrf.mxu0
  %v8181 = vadd.f32 0.0, %v8180
  %8182 = vdwg.mxu0
  %8183 = vmatpush.msra.mxu0 0.0
  %8184 = vmatpush.msra.mxu0 0.0
  %8185 = vmatpush.msra.mxu0 0.0
  %8186 = vmatpush.msra.mxu0 0.0
  %8187 = vmatpush.msra.mxu0 0.0
  %8188 = vmatpush.msra.mxu0 0.0
  %8189 = vmatpush.msra.mxu0 0.0
  %8190 = vmatpush.msra.mxu0 0.0
  %8191 = vmatpush.msra.mxu0 0.0
  %8192 = vmatpush.msra.mxu0 0.0
  %8193 = vmatpush.msra.mxu0 0.0
  %8194 = vmatpush.msra.mxu0 0.0
  %8195 = vmatpush.msra.mxu0 0.0
  %8196 = vmatpush.msra.mxu0 0.0
  %8197 = vmatpush.msra.mxu0 0.0
  %8198 = vmatpush.msra.mxu0 %v8021
  %8199 = vmatmul.f32.gmra.mxu0 %v8003
  %v8200 = vpop.f32.mrf.mxu0
  %v8201 = vadd.f32 0.0, %v8200
  %8202 = vdwg.mxu0
  %v8203 = vadd.f32 %v7962, %v8041
  %v8204 = vadd.f32 %v7963, %v8061
  %v8205 = vadd.f32 %v7964, %v8081
  %v8206 = vadd.f32 %v7965, %v8101
  %v8207 = vadd.f32 %v7966, %v8121
  %v8208 = vadd.f32 %v7967, %v8141
  %v8209 = vadd.f32 %v7968, %v8161
  %v8210 = vadd.f32 %v7969, %v8181
  %v8211 = vadd.f32 %v7970, %v8201
  %v8212 = vld [vmem:[#allocation5] sm:$0x1]
  %8214 = vset.pattern.permute.xlu0 0
  %8215 = vperm.xlu0 %8214, %v8212
  %v8216 = vpop.permute.xlu0 %8215
  %v8218 = vperm.slane %v8216, 0
  %v8219 = vadd.f32 %v8203, %v8218
  %v8220 = vadd.f32 %v8204, %v8218
  %v8221 = vadd.f32 %v8205, %v8218
  %v8222 = vadd.f32 %v8206, %v8218
  %v8223 = vadd.f32 %v8207, %v8218
  %v8224 = vadd.f32 %v8208, %v8218
  %v8225 = vadd.f32 %v8209, %v8218
  %v8226 = vadd.f32 %v8210, %v8218
  %v8227 = vadd.f32 %v8211, %v8218
  %v8236 = vrot.slane %v8220, 7
  %v8237 = vrot.slane %v8221, 6
  %v8238 = vrot.slane %v8222, 5
  %v8239 = vrot.slane %v8223, 4
  %v8240 = vrot.slane %v8224, 3
  %v8241 = vrot.slane %v8225, 2
  %v8242 = vrot.slane %v8226, 1
  %vm8243 = vcmask 1040384
  %v8244 = vsel %vm8243, %v8219, %v8236
  %vm8245 = vcmask 1042434
  %v8246 = vsel %vm8245, %v8237, %v8238
  %v8247 = vsel %vm772, %v8244, %v8246
  %vm8248 = vcmask 1044484
  %v8249 = vsel %vm8248, %v8239, %v8240
  %vm8250 = vcmask 1046534
  %v8251 = vsel %vm8250, %v8241, %v8242
  %v8252 = vsel %vm774, %v8249, %v8251
  %v8253 = vsel %vm776, %v8247, %v8252
  %8255 = vst [vmem:[%s10] sm:$0xff] %v8253
  %v8256 = vlaneseq
  %vm8257 = vcmp.ge.s32.totalorder %v8256, 0
  %vm8258 = vcmp.lt.s32.totalorder %v8256, 128
  %vm8259 = vmand %vm8257, %vm8258
  %8260 = vst.msk [vmem:[%s10 + $0x8] sm:$0x1] %vm8259, %v8227
  // Predicated region
  $region42: #{ensemble_unet_forward.1} parent=0 // pred_check
    _
  $region43: #{ensemble_unet_forward.1} parent=0 // pred_check_branch
    %8262 = sbr.rel (0) target = $region45
  $region44: #{ensemble_unet_forward.1} parent=0 // pred_region
    _
  $region45: #{ensemble_unet_forward.1} parent=0 // pred_fallthru
    _
  // Predicated region
  $region46: #{ensemble_unet_forward.1} parent=0 // pred_check
    _
  $region47: #{ensemble_unet_forward.1} parent=0 // pred_check_branch
    %8264 = sbr.rel (0) target = $region49
  $region48: #{ensemble_unet_forward.1} parent=0 // pred_region
    _
  $region49: #{ensemble_unet_forward.1} parent=0 // pred_fallthru
    _

</llo_original>
